<compile_context>
chip_gen: v7x
topology: tpu7x:2x2x1
jax: 0.10.0
libtpu: 0.0.40
codegen_flags: <defaults>
</compile_context>

<pallas_src>
import jax
import jax.numpy as jnp
from jax.experimental import pallas as pl
from jax.experimental.pallas import tpu as pltpu

EPS = 1e-5
LANE = 128


def resnet_block_kernel(x_ref, w1_ref, g1_ref, b1_ref, w2_ref, g2_ref, b2_ref,
                        o_ref, pad_ref):
    """Whole ResNet basic block (stride=1, no downsample) in one invocation.

    x_ref   : (N, H, W, C)      f32 input, C already lane-padded (mult of 128)
    w*_ref  : (9*C, C)          bf16 conv weights, HWIO flattened as (ky,kx,ci)
    g*/b*   : (1, C)            f32 BN gamma / beta (zero in padded channels)
    o_ref   : (N, H, W, C)      f32 output
    pad_ref : (N, H+2, W+2, C)  bf16 zero-padded conv-input scratch (reused)
    """
    N, H, W, C = x_ref.shape
    NHW = N * H * W
    inv_n = 1.0 / NHW

    # --- zero only the 1-wide halo; interior is fully overwritten below -----
    zrow = jnp.zeros((N, 1, W + 2, C), pad_ref.dtype)
    zcol = jnp.zeros((N, H, 1, C), pad_ref.dtype)
    pad_ref[:, 0:1, :, :] = zrow                      # top row (incl. corners)
    pad_ref[:, H + 1:H + 2, :, :] = zrow              # bottom row
    pad_ref[:, 1:H + 1, 0:1, :] = zcol                # left column
    pad_ref[:, 1:H + 1, W + 1:W + 2, :] = zcol        # right column

    def conv3x3(w_ref):
        # dy-grouped im2col: 3 matmuls with K = 3*C, f32 accumulation on the
        # MXU.  Only a (NHW, 3*C) bf16 patch is live at any time.
        acc = jnp.zeros((NHW, C), jnp.float32)
        for dy in range(3):                           # static unroll
            rows = pad_ref[:, dy:dy + H, :, :]        # (N, H, W+2, C) bf16
            patch = jnp.concatenate(
                [rows[:, :, dx:dx + W, :] for dx in range(3)], axis=-1
            ).reshape(NHW, 3 * C)
            acc += jnp.dot(patch, w_ref[dy * 3 * C:(dy + 1) * 3 * C, :],
                           preferred_element_type=jnp.float32)
        return acc

    def bn_scale_shift(y, g_ref, b_ref):
        # PyTorch training-mode BatchNorm2d folded to one scale/shift.  Sum and
        # sum-of-squares in a single traversal of y (f32 accumulation).
        # TODO(synk): E[x^2]-E[x]^2 can cancel badly at large activation
        #             magnitudes; switch to shifted/two-pass variance then.
        mean = jnp.sum(y, axis=0, keepdims=True) * inv_n              # (1, C)
        var = jnp.sum(y * y, axis=0, keepdims=True) * inv_n - mean * mean
        scale = g_ref[...] * jax.lax.rsqrt(var + EPS)                 # (1, C)
        shift = b_ref[...] - mean * scale
        return scale, shift

    # --- conv1 -> bn1 -> relu, written straight back into the scratch -------
    pad_ref[:, 1:H + 1, 1:W + 1, :] = x_ref[...].astype(jnp.bfloat16)
    y = conv3x3(w1_ref)
    scale, shift = bn_scale_shift(y, g1_ref, b1_ref)
    h = jnp.maximum(y * scale + shift, 0.0)
    pad_ref[:, 1:H + 1, 1:W + 1, :] = h.reshape(N, H, W, C).astype(jnp.bfloat16)

    # --- conv2 -> bn2 -> +identity -> relu -----------------------------------
    y = conv3x3(w2_ref)
    scale, shift = bn_scale_shift(y, g2_ref, b2_ref)
    # Residual add re-reads the resident x_ref buffer (no long-lived f32 copy).
    out = jnp.maximum(
        y * scale + shift + x_ref[...].astype(jnp.float32).reshape(NHW, C), 0.0)
    o_ref[...] = out.reshape(N, H, W, C).astype(o_ref.dtype)


def _vmem_limit_bytes():
    # Generation-aware scoped-VMEM limit: ~112 MiB on v5e/v6e, ~56 MiB on v7x.
    try:
        cap = int(pltpu.get_tpu_info().vmem_capacity_bytes)
    except Exception:
        cap = 64 * 1024 * 1024
    return max(32 * 1024 * 1024, min(cap - 8 * 1024 * 1024, 112 * 1024 * 1024))


@jax.jit
def resnet_block(x_nchw, w1, g1, b1, w2, g2, b2):
    """Wrapper: NCHW in/out (PyTorch convention), lane-padded NHWC inside."""
    N, C, H, W = x_nchw.shape
    Cp = ((C + LANE - 1) // LANE) * LANE   # lane-pad channels to multiple of 128

    # NCHW -> NHWC, zero-pad channels.  Everything lives under one jit so the
    # layout plumbing fuses into a single XLA computation around pallas_call.
    x = jnp.transpose(x_nchw, (0, 2, 3, 1))
    x = jnp.pad(x, ((0, 0), (0, 0), (0, 0), (0, Cp - C)))

    def prep_w(w):  # HWIO (3,3,C,C) -> (9*Cp, Cp), bf16 for native MXU rate
        w = jnp.pad(w, ((0, 0), (0, 0), (0, Cp - C), (0, Cp - C)))
        return w.reshape(9 * Cp, Cp).astype(jnp.bfloat16)

    def prep_v(v):  # (C,) -> (1, Cp); padded channels stay exactly zero
        return jnp.pad(v, (0, Cp - C)).reshape(1, Cp)

    # No grid => single invocation, whole arrays resident in VMEM, and no
    # pointless double-buffering of the whole-array blocks.
    vmem_spec = pl.BlockSpec(memory_space=pltpu.MemorySpace.VMEM)

    out = pl.pallas_call(
        resnet_block_kernel,
        out_shape=jax.ShapeDtypeStruct((N, H, W, Cp), jnp.float32),
        in_specs=[vmem_spec] * 7,
        out_specs=vmem_spec,
        scratch_shapes=[pltpu.VMEM((N, H + 2, W + 2, Cp), jnp.bfloat16)],
        compiler_params=pltpu.CompilerParams(
            vmem_limit_bytes=_vmem_limit_bytes()),
    )(x, prep_w(w1), prep_v(g1), prep_v(b1),
      prep_w(w2), prep_v(g2), prep_v(b2))

    return jnp.transpose(out[..., :C], (0, 3, 1, 2))  # NHWC -> NCHW


def ref_resnet_block(x_nchw, w1, g1, b1, w2, g2, b2):
    """Pure-JAX reference (mirrors the PyTorch forward, f32 throughout)."""
    def conv(x, w):
        return jax.lax.conv_general_dilated(
            x, w, window_strides=(1, 1), padding=((1, 1), (1, 1)),
            dimension_numbers=("NCHW", "HWIO", "NCHW"))

    def bn(y, g, b):
        mean = jnp.mean(y, axis=(0, 2, 3), keepdims=True)
        var = jnp.mean(jnp.square(y - mean), axis=(0, 2, 3), keepdims=True)
        return ((y - mean) * jax.lax.rsqrt(var + EPS)
                * g.reshape(1, -1, 1, 1) + b.reshape(1, -1, 1, 1))

    h = jax.nn.relu(bn(conv(x_nchw, w1), g1, b1))
    h = bn(conv(h, w2), g2, b2) + x_nchw
    return jax.nn.relu(h)


if __name__ == "__main__":
    key = jax.random.PRNGKey(0)
    N, C, H, W = 2, 4, 16, 16  # downsample=None => in_channels == out_channels
    ks = jax.random.split(key, 6)

    x = jax.random.normal(ks[0], (N, C, H, W), jnp.float32)
    w1 = 0.2 * jax.random.normal(ks[1], (3, 3, C, C), jnp.float32)  # HWIO
    w2 = 0.2 * jax.random.normal(ks[2], (3, 3, C, C), jnp.float32)
    g1 = 1.0 + 0.1 * jax.random.normal(ks[3], (C,), jnp.float32)
    g2 = 1.0 + 0.1 * jax.random.normal(ks[4], (C,), jnp.float32)
    b1 = 0.1 * jax.random.normal(ks[5], (C,), jnp.float32)
    b2 = jnp.zeros((C,), jnp.float32)

    out = jax.block_until_ready(resnet_block(x, w1, g1, b1, w2, g2, b2))

    ref = ref_resnet_block(x, w1, g1, b1, w2, g2, b2)
    assert out.shape == (N, C, H, W)
    # bf16 MXU operands + single-pass variance -> slightly looser tolerance.
    max_err = float(jnp.max(jnp.abs(out - ref)))
    assert max_err < 3e-2, f"mismatch vs reference: max abs err = {max_err}"

    print("KERNEL_OK")
</pallas_src>

<mosaic_0001>
module attributes {stable_mosaic.version = 11 : i64} {
  func.func @resnet_block_kernel(%arg0: memref<2x16x16x128xf32, #tpu.memory_space<vmem>>, %arg1: memref<1152x128xbf16, #tpu.memory_space<vmem>>, %arg2: memref<1x128xf32, #tpu.memory_space<vmem>>, %arg3: memref<1x128xf32, #tpu.memory_space<vmem>>, %arg4: memref<1152x128xbf16, #tpu.memory_space<vmem>>, %arg5: memref<1x128xf32, #tpu.memory_space<vmem>>, %arg6: memref<1x128xf32, #tpu.memory_space<vmem>>, %arg7: memref<2x16x16x128xf32, #tpu.memory_space<vmem>>, %arg8: memref<2x18x18x128xbf16, #tpu.memory_space<vmem>>) attributes {dimension_semantics = [], scalar_prefetch = 0 : i64, scratch_operands = 1 : i64, tpu.core_type = #tpu.core_type<tc>} {
    %cst = arith.constant 0.000000e+00 : bf16
    %0 = vector.broadcast %cst : bf16 to vector<2x1x18x128xbf16>
    %cst_0 = arith.constant 0.000000e+00 : bf16
    %1 = vector.broadcast %cst_0 : bf16 to vector<2x16x1x128xbf16>
    %c0 = arith.constant 0 : index
    %c0_1 = arith.constant 0 : index
    %c0_2 = arith.constant 0 : index
    %c0_3 = arith.constant 0 : index
    %2 = vector.load %arg8[%c0, %c0_1, %c0_2, %c0_3] : memref<2x18x18x128xbf16, #tpu.memory_space<vmem>>, vector<2x1x18x128xbf16>
    tpu.vector_store %arg8[%c0, %c0_1, %c0_2, %c0_3], %0 {strides = array<i32>} : memref<2x18x18x128xbf16, #tpu.memory_space<vmem>>, vector<2x1x18x128xbf16>,
    %c0_4 = arith.constant 0 : index
    %c17 = arith.constant 17 : index
    %c0_5 = arith.constant 0 : index
    %c0_6 = arith.constant 0 : index
    %3 = vector.load %arg8[%c0_4, %c17, %c0_5, %c0_6] : memref<2x18x18x128xbf16, #tpu.memory_space<vmem>>, vector<2x1x18x128xbf16>
    tpu.vector_store %arg8[%c0_4, %c17, %c0_5, %c0_6], %0 {strides = array<i32>} : memref<2x18x18x128xbf16, #tpu.memory_space<vmem>>, vector<2x1x18x128xbf16>,
    %c0_7 = arith.constant 0 : index
    %c1 = arith.constant 1 : index
    %c0_8 = arith.constant 0 : index
    %c0_9 = arith.constant 0 : index
    %4 = vector.load %arg8[%c0_7, %c1, %c0_8, %c0_9] : memref<2x18x18x128xbf16, #tpu.memory_space<vmem>>, vector<2x16x1x128xbf16>
    tpu.vector_store %arg8[%c0_7, %c1, %c0_8, %c0_9], %1 {strides = array<i32>} : memref<2x18x18x128xbf16, #tpu.memory_space<vmem>>, vector<2x16x1x128xbf16>,
    %c0_10 = arith.constant 0 : index
    %c1_11 = arith.constant 1 : index
    %c17_12 = arith.constant 17 : index
    %c0_13 = arith.constant 0 : index
    %5 = vector.load %arg8[%c0_10, %c1_11, %c17_12, %c0_13] : memref<2x18x18x128xbf16, #tpu.memory_space<vmem>>, vector<2x16x1x128xbf16>
    tpu.vector_store %arg8[%c0_10, %c1_11, %c17_12, %c0_13], %1 {strides = array<i32>} : memref<2x18x18x128xbf16, #tpu.memory_space<vmem>>, vector<2x16x1x128xbf16>,
    %c0_14 = arith.constant 0 : index
    %c0_15 = arith.constant 0 : index
    %c0_16 = arith.constant 0 : index
    %c0_17 = arith.constant 0 : index
    %6 = vector.load %arg0[%c0_14, %c0_15, %c0_16, %c0_17] : memref<2x16x16x128xf32, #tpu.memory_space<vmem>>, vector<2x16x16x128xf32>
    %7 = arith.truncf %6 : vector<2x16x16x128xf32> to vector<2x16x16x128xbf16>
    %c0_18 = arith.constant 0 : index
    %c1_19 = arith.constant 1 : index
    %c1_20 = arith.constant 1 : index
    %c0_21 = arith.constant 0 : index
    %8 = vector.load %arg8[%c0_18, %c1_19, %c1_20, %c0_21] : memref<2x18x18x128xbf16, #tpu.memory_space<vmem>>, vector<2x16x16x128xbf16>
    tpu.vector_store %arg8[%c0_18, %c1_19, %c1_20, %c0_21], %7 {strides = array<i32>} : memref<2x18x18x128xbf16, #tpu.memory_space<vmem>>, vector<2x16x16x128xbf16>,
    %cst_22 = arith.constant 0.000000e+00 : f32
    %9 = vector.broadcast %cst_22 : f32 to vector<512x128xf32>
    %c0_23 = arith.constant 0 : index
    %c0_24 = arith.constant 0 : index
    %c0_25 = arith.constant 0 : index
    %c0_26 = arith.constant 0 : index
    %10 = vector.load %arg8[%c0_23, %c0_24, %c0_25, %c0_26] : memref<2x18x18x128xbf16, #tpu.memory_space<vmem>>, vector<2x16x18x128xbf16>
    %11 = vector.extract_strided_slice %10 {offsets = [0, 0, 0, 0], sizes = [2, 16, 16, 128], strides = [1, 1, 1, 1]} : vector<2x16x18x128xbf16> to vector<2x16x16x128xbf16>
    %12 = vector.extract_strided_slice %10 {offsets = [0, 0, 1, 0], sizes = [2, 16, 16, 128], strides = [1, 1, 1, 1]} : vector<2x16x18x128xbf16> to vector<2x16x16x128xbf16>
    %13 = vector.extract_strided_slice %10 {offsets = [0, 0, 2, 0], sizes = [2, 16, 16, 128], strides = [1, 1, 1, 1]} : vector<2x16x18x128xbf16> to vector<2x16x16x128xbf16>
    %14 = tpu.concatenate %11, %12, %13 in 3 : vector<2x16x16x128xbf16>, vector<2x16x16x128xbf16>, vector<2x16x16x128xbf16> -> vector<2x16x16x384xbf16>
    %15 = vector.shape_cast %14 : vector<2x16x16x384xbf16> to vector<512x384xbf16>
    %c0_27 = arith.constant 0 : index
    %c0_28 = arith.constant 0 : index
    %16 = vector.load %arg1[%c0_27, %c0_28] : memref<1152x128xbf16, #tpu.memory_space<vmem>>, vector<384x128xbf16>
    %cst_29 = arith.constant dense<0.000000e+00> : vector<512x128xf32>
    %17 = tpu.matmul %15, %16, %cst_29 {dimension_numbers = #tpu.dot_dimension_numbers<[1], [0], [0], [1], [0, 0, 1, 1], [], []>} : vector<512x384xbf16>, vector<384x128xbf16>, vector<512x128xf32> -> vector<512x128xf32>
    %18 = arith.addf %9, %17 : vector<512x128xf32>
    %c0_30 = arith.constant 0 : index
    %c1_31 = arith.constant 1 : index
    %c0_32 = arith.constant 0 : index
    %c0_33 = arith.constant 0 : index
    %19 = vector.load %arg8[%c0_30, %c1_31, %c0_32, %c0_33] : memref<2x18x18x128xbf16, #tpu.memory_space<vmem>>, vector<2x16x18x128xbf16>
    %20 = vector.extract_strided_slice %19 {offsets = [0, 0, 0, 0], sizes = [2, 16, 16, 128], strides = [1, 1, 1, 1]} : vector<2x16x18x128xbf16> to vector<2x16x16x128xbf16>
    %21 = vector.extract_strided_slice %19 {offsets = [0, 0, 1, 0], sizes = [2, 16, 16, 128], strides = [1, 1, 1, 1]} : vector<2x16x18x128xbf16> to vector<2x16x16x128xbf16>
    %22 = vector.extract_strided_slice %19 {offsets = [0, 0, 2, 0], sizes = [2, 16, 16, 128], strides = [1, 1, 1, 1]} : vector<2x16x18x128xbf16> to vector<2x16x16x128xbf16>
    %23 = tpu.concatenate %20, %21, %22 in 3 : vector<2x16x16x128xbf16>, vector<2x16x16x128xbf16>, vector<2x16x16x128xbf16> -> vector<2x16x16x384xbf16>
    %24 = vector.shape_cast %23 : vector<2x16x16x384xbf16> to vector<512x384xbf16>
    %c384 = arith.constant 384 : index
    %c0_34 = arith.constant 0 : index
    %25 = vector.load %arg1[%c384, %c0_34] : memref<1152x128xbf16, #tpu.memory_space<vmem>>, vector<384x128xbf16>
    %cst_35 = arith.constant dense<0.000000e+00> : vector<512x128xf32>
    %26 = tpu.matmul %24, %25, %cst_35 {dimension_numbers = #tpu.dot_dimension_numbers<[1], [0], [0], [1], [0, 0, 1, 1], [], []>} : vector<512x384xbf16>, vector<384x128xbf16>, vector<512x128xf32> -> vector<512x128xf32>
    %27 = arith.addf %18, %26 : vector<512x128xf32>
    %c0_36 = arith.constant 0 : index
    %c2 = arith.constant 2 : index
    %c0_37 = arith.constant 0 : index
    %c0_38 = arith.constant 0 : index
    %28 = vector.load %arg8[%c0_36, %c2, %c0_37, %c0_38] : memref<2x18x18x128xbf16, #tpu.memory_space<vmem>>, vector<2x16x18x128xbf16>
    %29 = vector.extract_strided_slice %28 {offsets = [0, 0, 0, 0], sizes = [2, 16, 16, 128], strides = [1, 1, 1, 1]} : vector<2x16x18x128xbf16> to vector<2x16x16x128xbf16>
    %30 = vector.extract_strided_slice %28 {offsets = [0, 0, 1, 0], sizes = [2, 16, 16, 128], strides = [1, 1, 1, 1]} : vector<2x16x18x128xbf16> to vector<2x16x16x128xbf16>
    %31 = vector.extract_strided_slice %28 {offsets = [0, 0, 2, 0], sizes = [2, 16, 16, 128], strides = [1, 1, 1, 1]} : vector<2x16x18x128xbf16> to vector<2x16x16x128xbf16>
    %32 = tpu.concatenate %29, %30, %31 in 3 : vector<2x16x16x128xbf16>, vector<2x16x16x128xbf16>, vector<2x16x16x128xbf16> -> vector<2x16x16x384xbf16>
    %33 = vector.shape_cast %32 : vector<2x16x16x384xbf16> to vector<512x384xbf16>
    %c768 = arith.constant 768 : index
    %c0_39 = arith.constant 0 : index
    %34 = vector.load %arg1[%c768, %c0_39] : memref<1152x128xbf16, #tpu.memory_space<vmem>>, vector<384x128xbf16>
    %cst_40 = arith.constant dense<0.000000e+00> : vector<512x128xf32>
    %35 = tpu.matmul %33, %34, %cst_40 {dimension_numbers = #tpu.dot_dimension_numbers<[1], [0], [0], [1], [0, 0, 1, 1], [], []>} : vector<512x384xbf16>, vector<384x128xbf16>, vector<512x128xf32> -> vector<512x128xf32>
    %36 = arith.addf %27, %35 : vector<512x128xf32>
    %cst_41 = arith.constant dense<0.000000e+00> : vector<128xf32>
    %37 = vector.multi_reduction <add>, %36, %cst_41 [0] : vector<512x128xf32> to vector<128xf32>
    %38 = vector.shape_cast %37 : vector<128xf32> to vector<1x128xf32>
    %cst_42 = arith.constant 0.001953125 : f32
    %39 = vector.broadcast %cst_42 : f32 to vector<1x128xf32>
    %40 = arith.mulf %38, %39 : vector<1x128xf32>
    %41 = arith.mulf %36, %36 : vector<512x128xf32>
    %cst_43 = arith.constant dense<0.000000e+00> : vector<128xf32>
    %42 = vector.multi_reduction <add>, %41, %cst_43 [0] : vector<512x128xf32> to vector<128xf32>
    %43 = vector.shape_cast %42 : vector<128xf32> to vector<1x128xf32>
    %cst_44 = arith.constant 0.001953125 : f32
    %44 = vector.broadcast %cst_44 : f32 to vector<1x128xf32>
    %45 = arith.mulf %43, %44 : vector<1x128xf32>
    %46 = arith.mulf %40, %40 : vector<1x128xf32>
    %47 = arith.subf %45, %46 : vector<1x128xf32>
    %c0_45 = arith.constant 0 : index
    %c0_46 = arith.constant 0 : index
    %48 = vector.load %arg2[%c0_45, %c0_46] : memref<1x128xf32, #tpu.memory_space<vmem>>, vector<1x128xf32>
    %cst_47 = arith.constant 9.99999974E-6 : f32
    %49 = vector.broadcast %cst_47 : f32 to vector<1x128xf32>
    %50 = arith.addf %47, %49 : vector<1x128xf32>
    %51 = math.rsqrt %50 : vector<1x128xf32>
    %52 = arith.mulf %48, %51 : vector<1x128xf32>
    %c0_48 = arith.constant 0 : index
    %c0_49 = arith.constant 0 : index
    %53 = vector.load %arg3[%c0_48, %c0_49] : memref<1x128xf32, #tpu.memory_space<vmem>>, vector<1x128xf32>
    %54 = arith.mulf %40, %52 : vector<1x128xf32>
    %55 = arith.subf %53, %54 : vector<1x128xf32>
    %56 = vector.broadcast %52 : vector<1x128xf32> to vector<512x128xf32>
    %57 = arith.mulf %36, %56 : vector<512x128xf32>
    %58 = vector.broadcast %55 : vector<1x128xf32> to vector<512x128xf32>
    %59 = arith.addf %57, %58 : vector<512x128xf32>
    %cst_50 = arith.constant 0.000000e+00 : f32
    %60 = vector.broadcast %cst_50 : f32 to vector<512x128xf32>
    %61 = arith.maximumf %59, %60 : vector<512x128xf32>
    %62 = vector.shape_cast %61 : vector<512x128xf32> to vector<2x16x16x128xf32>
    %63 = arith.truncf %62 : vector<2x16x16x128xf32> to vector<2x16x16x128xbf16>
    %c0_51 = arith.constant 0 : index
    %c1_52 = arith.constant 1 : index
    %c1_53 = arith.constant 1 : index
    %c0_54 = arith.constant 0 : index
    %64 = vector.load %arg8[%c0_51, %c1_52, %c1_53, %c0_54] : memref<2x18x18x128xbf16, #tpu.memory_space<vmem>>, vector<2x16x16x128xbf16>
    tpu.vector_store %arg8[%c0_51, %c1_52, %c1_53, %c0_54], %63 {strides = array<i32>} : memref<2x18x18x128xbf16, #tpu.memory_space<vmem>>, vector<2x16x16x128xbf16>,
    %cst_55 = arith.constant 0.000000e+00 : f32
    %65 = vector.broadcast %cst_55 : f32 to vector<512x128xf32>
    %c0_56 = arith.constant 0 : index
    %c0_57 = arith.constant 0 : index
    %c0_58 = arith.constant 0 : index
    %c0_59 = arith.constant 0 : index
    %66 = vector.load %arg8[%c0_56, %c0_57, %c0_58, %c0_59] : memref<2x18x18x128xbf16, #tpu.memory_space<vmem>>, vector<2x16x18x128xbf16>
    %67 = vector.extract_strided_slice %66 {offsets = [0, 0, 0, 0], sizes = [2, 16, 16, 128], strides = [1, 1, 1, 1]} : vector<2x16x18x128xbf16> to vector<2x16x16x128xbf16>
    %68 = vector.extract_strided_slice %66 {offsets = [0, 0, 1, 0], sizes = [2, 16, 16, 128], strides = [1, 1, 1, 1]} : vector<2x16x18x128xbf16> to vector<2x16x16x128xbf16>
    %69 = vector.extract_strided_slice %66 {offsets = [0, 0, 2, 0], sizes = [2, 16, 16, 128], strides = [1, 1, 1, 1]} : vector<2x16x18x128xbf16> to vector<2x16x16x128xbf16>
    %70 = tpu.concatenate %67, %68, %69 in 3 : vector<2x16x16x128xbf16>, vector<2x16x16x128xbf16>, vector<2x16x16x128xbf16> -> vector<2x16x16x384xbf16>
    %71 = vector.shape_cast %70 : vector<2x16x16x384xbf16> to vector<512x384xbf16>
    %c0_60 = arith.constant 0 : index
    %c0_61 = arith.constant 0 : index
    %72 = vector.load %arg4[%c0_60, %c0_61] : memref<1152x128xbf16, #tpu.memory_space<vmem>>, vector<384x128xbf16>
    %cst_62 = arith.constant dense<0.000000e+00> : vector<512x128xf32>
    %73 = tpu.matmul %71, %72, %cst_62 {dimension_numbers = #tpu.dot_dimension_numbers<[1], [0], [0], [1], [0, 0, 1, 1], [], []>} : vector<512x384xbf16>, vector<384x128xbf16>, vector<512x128xf32> -> vector<512x128xf32>
    %74 = arith.addf %65, %73 : vector<512x128xf32>
    %c0_63 = arith.constant 0 : index
    %c1_64 = arith.constant 1 : index
    %c0_65 = arith.constant 0 : index
    %c0_66 = arith.constant 0 : index
    %75 = vector.load %arg8[%c0_63, %c1_64, %c0_65, %c0_66] : memref<2x18x18x128xbf16, #tpu.memory_space<vmem>>, vector<2x16x18x128xbf16>
    %76 = vector.extract_strided_slice %75 {offsets = [0, 0, 0, 0], sizes = [2, 16, 16, 128], strides = [1, 1, 1, 1]} : vector<2x16x18x128xbf16> to vector<2x16x16x128xbf16>
    %77 = vector.extract_strided_slice %75 {offsets = [0, 0, 1, 0], sizes = [2, 16, 16, 128], strides = [1, 1, 1, 1]} : vector<2x16x18x128xbf16> to vector<2x16x16x128xbf16>
    %78 = vector.extract_strided_slice %75 {offsets = [0, 0, 2, 0], sizes = [2, 16, 16, 128], strides = [1, 1, 1, 1]} : vector<2x16x18x128xbf16> to vector<2x16x16x128xbf16>
    %79 = tpu.concatenate %76, %77, %78 in 3 : vector<2x16x16x128xbf16>, vector<2x16x16x128xbf16>, vector<2x16x16x128xbf16> -> vector<2x16x16x384xbf16>
    %80 = vector.shape_cast %79 : vector<2x16x16x384xbf16> to vector<512x384xbf16>
    %c384_67 = arith.constant 384 : index
    %c0_68 = arith.constant 0 : index
    %81 = vector.load %arg4[%c384_67, %c0_68] : memref<1152x128xbf16, #tpu.memory_space<vmem>>, vector<384x128xbf16>
    %cst_69 = arith.constant dense<0.000000e+00> : vector<512x128xf32>
    %82 = tpu.matmul %80, %81, %cst_69 {dimension_numbers = #tpu.dot_dimension_numbers<[1], [0], [0], [1], [0, 0, 1, 1], [], []>} : vector<512x384xbf16>, vector<384x128xbf16>, vector<512x128xf32> -> vector<512x128xf32>
    %83 = arith.addf %74, %82 : vector<512x128xf32>
    %c0_70 = arith.constant 0 : index
    %c2_71 = arith.constant 2 : index
    %c0_72 = arith.constant 0 : index
    %c0_73 = arith.constant 0 : index
    %84 = vector.load %arg8[%c0_70, %c2_71, %c0_72, %c0_73] : memref<2x18x18x128xbf16, #tpu.memory_space<vmem>>, vector<2x16x18x128xbf16>
    %85 = vector.extract_strided_slice %84 {offsets = [0, 0, 0, 0], sizes = [2, 16, 16, 128], strides = [1, 1, 1, 1]} : vector<2x16x18x128xbf16> to vector<2x16x16x128xbf16>
    %86 = vector.extract_strided_slice %84 {offsets = [0, 0, 1, 0], sizes = [2, 16, 16, 128], strides = [1, 1, 1, 1]} : vector<2x16x18x128xbf16> to vector<2x16x16x128xbf16>
    %87 = vector.extract_strided_slice %84 {offsets = [0, 0, 2, 0], sizes = [2, 16, 16, 128], strides = [1, 1, 1, 1]} : vector<2x16x18x128xbf16> to vector<2x16x16x128xbf16>
    %88 = tpu.concatenate %85, %86, %87 in 3 : vector<2x16x16x128xbf16>, vector<2x16x16x128xbf16>, vector<2x16x16x128xbf16> -> vector<2x16x16x384xbf16>
    %89 = vector.shape_cast %88 : vector<2x16x16x384xbf16> to vector<512x384xbf16>
    %c768_74 = arith.constant 768 : index
    %c0_75 = arith.constant 0 : index
    %90 = vector.load %arg4[%c768_74, %c0_75] : memref<1152x128xbf16, #tpu.memory_space<vmem>>, vector<384x128xbf16>
    %cst_76 = arith.constant dense<0.000000e+00> : vector<512x128xf32>
    %91 = tpu.matmul %89, %90, %cst_76 {dimension_numbers = #tpu.dot_dimension_numbers<[1], [0], [0], [1], [0, 0, 1, 1], [], []>} : vector<512x384xbf16>, vector<384x128xbf16>, vector<512x128xf32> -> vector<512x128xf32>
    %92 = arith.addf %83, %91 : vector<512x128xf32>
    %cst_77 = arith.constant dense<0.000000e+00> : vector<128xf32>
    %93 = vector.multi_reduction <add>, %92, %cst_77 [0] : vector<512x128xf32> to vector<128xf32>
    %94 = vector.shape_cast %93 : vector<128xf32> to vector<1x128xf32>
    %cst_78 = arith.constant 0.001953125 : f32
    %95 = vector.broadcast %cst_78 : f32 to vector<1x128xf32>
    %96 = arith.mulf %94, %95 : vector<1x128xf32>
    %97 = arith.mulf %92, %92 : vector<512x128xf32>
    %cst_79 = arith.constant dense<0.000000e+00> : vector<128xf32>
    %98 = vector.multi_reduction <add>, %97, %cst_79 [0] : vector<512x128xf32> to vector<128xf32>
    %99 = vector.shape_cast %98 : vector<128xf32> to vector<1x128xf32>
    %cst_80 = arith.constant 0.001953125 : f32
    %100 = vector.broadcast %cst_80 : f32 to vector<1x128xf32>
    %101 = arith.mulf %99, %100 : vector<1x128xf32>
    %102 = arith.mulf %96, %96 : vector<1x128xf32>
    %103 = arith.subf %101, %102 : vector<1x128xf32>
    %c0_81 = arith.constant 0 : index
    %c0_82 = arith.constant 0 : index
    %104 = vector.load %arg5[%c0_81, %c0_82] : memref<1x128xf32, #tpu.memory_space<vmem>>, vector<1x128xf32>
    %cst_83 = arith.constant 9.99999974E-6 : f32
    %105 = vector.broadcast %cst_83 : f32 to vector<1x128xf32>
    %106 = arith.addf %103, %105 : vector<1x128xf32>
    %107 = math.rsqrt %106 : vector<1x128xf32>
    %108 = arith.mulf %104, %107 : vector<1x128xf32>
    %c0_84 = arith.constant 0 : index
    %c0_85 = arith.constant 0 : index
    %109 = vector.load %arg6[%c0_84, %c0_85] : memref<1x128xf32, #tpu.memory_space<vmem>>, vector<1x128xf32>
    %110 = arith.mulf %96, %108 : vector<1x128xf32>
    %111 = arith.subf %109, %110 : vector<1x128xf32>
    %112 = vector.broadcast %108 : vector<1x128xf32> to vector<512x128xf32>
    %113 = arith.mulf %92, %112 : vector<512x128xf32>
    %114 = vector.broadcast %111 : vector<1x128xf32> to vector<512x128xf32>
    %115 = arith.addf %113, %114 : vector<512x128xf32>
    %c0_86 = arith.constant 0 : index
    %c0_87 = arith.constant 0 : index
    %c0_88 = arith.constant 0 : index
    %c0_89 = arith.constant 0 : index
    %116 = vector.load %arg0[%c0_86, %c0_87, %c0_88, %c0_89] : memref<2x16x16x128xf32, #tpu.memory_space<vmem>>, vector<2x16x16x128xf32>
    %117 = vector.shape_cast %116 : vector<2x16x16x128xf32> to vector<512x128xf32>
    %118 = arith.addf %115, %117 : vector<512x128xf32>
    %cst_90 = arith.constant 0.000000e+00 : f32
    %119 = vector.broadcast %cst_90 : f32 to vector<512x128xf32>
    %120 = arith.maximumf %118, %119 : vector<512x128xf32>
    %121 = vector.shape_cast %120 : vector<512x128xf32> to vector<2x16x16x128xf32>
    %c0_91 = arith.constant 0 : index
    %c0_92 = arith.constant 0 : index
    %c0_93 = arith.constant 0 : index
    %c0_94 = arith.constant 0 : index
    %122 = vector.load %arg7[%c0_91, %c0_92, %c0_93, %c0_94] : memref<2x16x16x128xf32, #tpu.memory_space<vmem>>, vector<2x16x16x128xf32>
    tpu.vector_store %arg7[%c0_91, %c0_92, %c0_93, %c0_94], %121 {strides = array<i32>} : memref<2x16x16x128xf32, #tpu.memory_space<vmem>>, vector<2x16x16x128xf32>,
    return
  }
}

</mosaic_0001>

<llo_original>
// kernel: resnet_block.1
$region0: #{resnet_block.1}
  #allocation0 [shape = 'u32[]', space=smem, size = 0x4, offset = 0x4, fixed_abs, tag = 'smem constant byte address 0x4 - core index']
  #allocation1 [shape = 'u32[144,128]{1,0:T(1,128)}', space=vmem, size = 0x12000, scoped, tag = 'internal scratch']
  #allocation2 [shape = 'bf16[2,18,18,128]{3,2,1,0:T(8,128)(2,1)}', space=vmem, size = 0x36000, scoped, tag = 'scratch operand']
  %s0 = inlined_call_operand.vmem [shape: f32[2,16,16,128], index: 0, kind: input, shape index: {}]
  %s1 = inlined_call_operand.vmem [shape: bf16[1152,128], index: 1, kind: input, shape index: {}]
  %s2 = inlined_call_operand.vmem [shape: f32[1,128], index: 2, kind: input, shape index: {}]
  %s3 = inlined_call_operand.vmem [shape: f32[1,128], index: 3, kind: input, shape index: {}]
  %s4 = inlined_call_operand.vmem [shape: bf16[1152,128], index: 4, kind: input, shape index: {}]
  %s5 = inlined_call_operand.vmem [shape: f32[1,128], index: 5, kind: input, shape index: {}]
  %s6 = inlined_call_operand.vmem [shape: f32[1,128], index: 6, kind: input, shape index: {}]
  %s7 = inlined_call_operand.vmem [shape: f32[2,16,16,128], index: 7, kind: output, shape index: {}]
  %s8 = sld [smem:[#allocation0]]
  $region38: #{resnet_block.1} parent=0
    _
  %s10 = ssub.s32 1, %s8
  %s11 = scalar_select 0, %s10, %s8
  // Predicated region
  $region2: #{resnet_block.1} parent=0 // pred_check
    _
  $region3: #{resnet_block.1} parent=0 // pred_check_branch
    %13 = sbr.rel (0) target = $region5
  $region4: #{resnet_block.1} parent=0 // pred_region
    _
  $region5: #{resnet_block.1} parent=0 // pred_fallthru
    _
  // Predicated region
  $region6: #{resnet_block.1} parent=0 // pred_check
    _
  $region7: #{resnet_block.1} parent=0 // pred_check_branch
    %15 = sbr.rel (0) target = $region9
  $region8: #{resnet_block.1} parent=0 // pred_region
    _
  $region9: #{resnet_block.1} parent=0 // pred_fallthru
    _
  // Predicated region
  $region10: #{resnet_block.1} parent=0 // pred_check
    _
  $region11: #{resnet_block.1} parent=0 // pred_check_branch
    %17 = sbr.rel (0) target = $region13
  $region12: #{resnet_block.1} parent=0 // pred_region
    _
  $region13: #{resnet_block.1} parent=0 // pred_fallthru
    _
  // Predicated region
  $region14: #{resnet_block.1} parent=0 // pred_check
    _
  $region15: #{resnet_block.1} parent=0 // pred_check_branch
    %19 = sbr.rel (0) target = $region17
  $region16: #{resnet_block.1} parent=0 // pred_region
    _
  $region17: #{resnet_block.1} parent=0 // pred_fallthru
    _
  // Predicated region
  $region18: #{resnet_block.1} parent=0 // pred_check
    _
  $region19: #{resnet_block.1} parent=0 // pred_check_branch
    %21 = sbr.rel (0) target = $region21
  $region20: #{resnet_block.1} parent=0 // pred_region
    _
  $region21: #{resnet_block.1} parent=0 // pred_fallthru
    _
  // Predicated region
  $region22: #{resnet_block.1} parent=0 // pred_check
    _
  $region23: #{resnet_block.1} parent=0 // pred_check_branch
    %23 = sbr.rel (0) target = $region25
  $region24: #{resnet_block.1} parent=0 // pred_region
    _
  $region25: #{resnet_block.1} parent=0 // pred_fallthru
    _
  // Predicated region
  $region26: #{resnet_block.1} parent=0 // pred_check
    _
  $region27: #{resnet_block.1} parent=0 // pred_check_branch
    %25 = sbr.rel (0) target = $region29
  $region28: #{resnet_block.1} parent=0 // pred_region
    _
  $region29: #{resnet_block.1} parent=0 // pred_fallthru
    _
  %27 = vst [vmem:[#allocation2] sm:$0xf] 0
  %28 = vst [vmem:[#allocation2 + $0x4] sm:$0xf] 0
  %29 = vst [vmem:[#allocation2 + $0x8] sm:$0x1] 0
  %30 = vst [vmem:[#allocation2 + $0xd8] sm:$0xf] 0
  %31 = vst [vmem:[#allocation2 + $0xdc] sm:$0xf] 0
  %32 = vst [vmem:[#allocation2 + $0xe0] sm:$0x1] 0
  %s33 = scalar_lea.vmem [#allocation2], 204
  %34 = vst [vmem:[%s33] sm:$0xf] 0
  %35 = vst [vmem:[%s33 + $0x4] sm:$0xf] 0
  %36 = vst [vmem:[%s33 + $0x8] sm:$0x1] 0
  %37 = vst [vmem:[%s33 + $0xd8] sm:$0xf] 0
  %38 = vst [vmem:[%s33 + $0xdc] sm:$0xf] 0
  %39 = vst [vmem:[%s33 + $0xe0] sm:$0x1] 0
  %s40 = scalar_lea.vmem [#allocation2], 12
  %vm41 = vcmask 1040384
  %vm42 = vsmask.f32 256
  %vm43 = vmand %vm41, %vm42
  %v44 = vld [vmem:[%s40] sm:$0x1]
  %v45 = vsel %vm43, 0, %v44
  %46 = vst [vmem:[%s40] sm:$0x1] %v45
  %v47 = vld [vmem:[%s40 + $0xc] sm:$0x1]
  %v48 = vsel %vm43, 0, %v47
  %49 = vst [vmem:[%s40 + $0xc] sm:$0x1] %v48
  %v50 = vld [vmem:[%s40 + $0x18] sm:$0x1]
  %v51 = vsel %vm43, 0, %v50
  %52 = vst [vmem:[%s40 + $0x18] sm:$0x1] %v51
  %v53 = vld [vmem:[%s40 + $0x24] sm:$0x1]
  %v54 = vsel %vm43, 0, %v53
  %55 = vst [vmem:[%s40 + $0x24] sm:$0x1] %v54
  %v56 = vld [vmem:[%s40 + $0x30] sm:$0x1]
  %v57 = vsel %vm43, 0, %v56
  %58 = vst [vmem:[%s40 + $0x30] sm:$0x1] %v57
  %v59 = vld [vmem:[%s40 + $0x3c] sm:$0x1]
  %v60 = vsel %vm43, 0, %v59
  %61 = vst [vmem:[%s40 + $0x3c] sm:$0x1] %v60
  %v62 = vld [vmem:[%s40 + $0x48] sm:$0x1]
  %v63 = vsel %vm43, 0, %v62
  %64 = vst [vmem:[%s40 + $0x48] sm:$0x1] %v63
  %v65 = vld [vmem:[%s40 + $0x54] sm:$0x1]
  %v66 = vsel %vm43, 0, %v65
  %67 = vst [vmem:[%s40 + $0x54] sm:$0x1] %v66
  %v68 = vld [vmem:[%s40 + $0x60] sm:$0x1]
  %v69 = vsel %vm43, 0, %v68
  %70 = vst [vmem:[%s40 + $0x60] sm:$0x1] %v69
  %v71 = vld [vmem:[%s40 + $0x6c] sm:$0x1]
  %v72 = vsel %vm43, 0, %v71
  %73 = vst [vmem:[%s40 + $0x6c] sm:$0x1] %v72
  %v74 = vld [vmem:[%s40 + $0x78] sm:$0x1]
  %v75 = vsel %vm43, 0, %v74
  %76 = vst [vmem:[%s40 + $0x78] sm:$0x1] %v75
  %v77 = vld [vmem:[%s40 + $0x84] sm:$0x1]
  %v78 = vsel %vm43, 0, %v77
  %79 = vst [vmem:[%s40 + $0x84] sm:$0x1] %v78
  %v80 = vld [vmem:[%s40 + $0x90] sm:$0x1]
  %v81 = vsel %vm43, 0, %v80
  %82 = vst [vmem:[%s40 + $0x90] sm:$0x1] %v81
  %v83 = vld [vmem:[%s40 + $0x9c] sm:$0x1]
  %v84 = vsel %vm43, 0, %v83
  %85 = vst [vmem:[%s40 + $0x9c] sm:$0x1] %v84
  %v86 = vld [vmem:[%s40 + $0xa8] sm:$0x1]
  %v87 = vsel %vm43, 0, %v86
  %88 = vst [vmem:[%s40 + $0xa8] sm:$0x1] %v87
  %v89 = vld [vmem:[%s40 + $0xb4] sm:$0x1]
  %v90 = vsel %vm43, 0, %v89
  %91 = vst [vmem:[%s40 + $0xb4] sm:$0x1] %v90
  %v92 = vld [vmem:[%s40 + $0xd8] sm:$0x1]
  %v93 = vsel %vm43, 0, %v92
  %94 = vst [vmem:[%s40 + $0xd8] sm:$0x1] %v93
  %v95 = vld [vmem:[%s40 + $0xe4] sm:$0x1]
  %v96 = vsel %vm43, 0, %v95
  %97 = vst [vmem:[%s40 + $0xe4] sm:$0x1] %v96
  %v98 = vld [vmem:[%s40 + $0xf0] sm:$0x1]
  %v99 = vsel %vm43, 0, %v98
  %100 = vst [vmem:[%s40 + $0xf0] sm:$0x1] %v99
  %v101 = vld [vmem:[%s40 + $0xfc] sm:$0x1]
  %v102 = vsel %vm43, 0, %v101
  %103 = vst [vmem:[%s40 + $0xfc] sm:$0x1] %v102
  %v104 = vld [vmem:[%s40 + $0x108] sm:$0x1]
  %v105 = vsel %vm43, 0, %v104
  %106 = vst [vmem:[%s40 + $0x108] sm:$0x1] %v105
  %v107 = vld [vmem:[%s40 + $0x114] sm:$0x1]
  %v108 = vsel %vm43, 0, %v107
  %109 = vst [vmem:[%s40 + $0x114] sm:$0x1] %v108
  %v110 = vld [vmem:[%s40 + $0x120] sm:$0x1]
  %v111 = vsel %vm43, 0, %v110
  %112 = vst [vmem:[%s40 + $0x120] sm:$0x1] %v111
  %v113 = vld [vmem:[%s40 + $0x12c] sm:$0x1]
  %v114 = vsel %vm43, 0, %v113
  %115 = vst [vmem:[%s40 + $0x12c] sm:$0x1] %v114
  %v116 = vld [vmem:[%s40 + $0x138] sm:$0x1]
  %v117 = vsel %vm43, 0, %v116
  %118 = vst [vmem:[%s40 + $0x138] sm:$0x1] %v117
  %v119 = vld [vmem:[%s40 + $0x144] sm:$0x1]
  %v120 = vsel %vm43, 0, %v119
  %121 = vst [vmem:[%s40 + $0x144] sm:$0x1] %v120
  %v122 = vld [vmem:[%s40 + $0x150] sm:$0x1]
  %v123 = vsel %vm43, 0, %v122
  %124 = vst [vmem:[%s40 + $0x150] sm:$0x1] %v123
  %v125 = vld [vmem:[%s40 + $0x15c] sm:$0x1]
  %v126 = vsel %vm43, 0, %v125
  %127 = vst [vmem:[%s40 + $0x15c] sm:$0x1] %v126
  %v128 = vld [vmem:[%s40 + $0x168] sm:$0x1]
  %v129 = vsel %vm43, 0, %v128
  %130 = vst [vmem:[%s40 + $0x168] sm:$0x1] %v129
  %v131 = vld [vmem:[%s40 + $0x174] sm:$0x1]
  %v132 = vsel %vm43, 0, %v131
  %133 = vst [vmem:[%s40 + $0x174] sm:$0x1] %v132
  %v134 = vld [vmem:[%s40 + $0x180] sm:$0x1]
  %v135 = vsel %vm43, 0, %v134
  %136 = vst [vmem:[%s40 + $0x180] sm:$0x1] %v135
  %v137 = vld [vmem:[%s40 + $0x18c] sm:$0x1]
  %v138 = vsel %vm43, 0, %v137
  %139 = vst [vmem:[%s40 + $0x18c] sm:$0x1] %v138
  %vm140 = vsmask.f32 7938
  %vm141 = vmand %vm41, %vm140
  %v142 = vld [vmem:[%s40 + $0x8] sm:$0x1]
  %v143 = vsel %vm141, 0, %v142
  %144 = vst [vmem:[%s40 + $0x8] sm:$0x1] %v143
  %v145 = vld [vmem:[%s40 + $0x14] sm:$0x1]
  %v146 = vsel %vm141, 0, %v145
  %147 = vst [vmem:[%s40 + $0x14] sm:$0x1] %v146
  %v148 = vld [vmem:[%s40 + $0x20] sm:$0x1]
  %v149 = vsel %vm141, 0, %v148
  %150 = vst [vmem:[%s40 + $0x20] sm:$0x1] %v149
  %v151 = vld [vmem:[%s40 + $0x2c] sm:$0x1]
  %v152 = vsel %vm141, 0, %v151
  %153 = vst [vmem:[%s40 + $0x2c] sm:$0x1] %v152
  %v154 = vld [vmem:[%s40 + $0x38] sm:$0x1]
  %v155 = vsel %vm141, 0, %v154
  %156 = vst [vmem:[%s40 + $0x38] sm:$0x1] %v155
  %v157 = vld [vmem:[%s40 + $0x44] sm:$0x1]
  %v158 = vsel %vm141, 0, %v157
  %159 = vst [vmem:[%s40 + $0x44] sm:$0x1] %v158
  %v160 = vld [vmem:[%s40 + $0x50] sm:$0x1]
  %v161 = vsel %vm141, 0, %v160
  %162 = vst [vmem:[%s40 + $0x50] sm:$0x1] %v161
  %v163 = vld [vmem:[%s40 + $0x5c] sm:$0x1]
  %v164 = vsel %vm141, 0, %v163
  %165 = vst [vmem:[%s40 + $0x5c] sm:$0x1] %v164
  %v166 = vld [vmem:[%s40 + $0x68] sm:$0x1]
  %v167 = vsel %vm141, 0, %v166
  %168 = vst [vmem:[%s40 + $0x68] sm:$0x1] %v167
  %v169 = vld [vmem:[%s40 + $0x74] sm:$0x1]
  %v170 = vsel %vm141, 0, %v169
  %171 = vst [vmem:[%s40 + $0x74] sm:$0x1] %v170
  %v172 = vld [vmem:[%s40 + $0x80] sm:$0x1]
  %v173 = vsel %vm141, 0, %v172
  %174 = vst [vmem:[%s40 + $0x80] sm:$0x1] %v173
  %v175 = vld [vmem:[%s40 + $0x8c] sm:$0x1]
  %v176 = vsel %vm141, 0, %v175
  %177 = vst [vmem:[%s40 + $0x8c] sm:$0x1] %v176
  %v178 = vld [vmem:[%s40 + $0x98] sm:$0x1]
  %v179 = vsel %vm141, 0, %v178
  %180 = vst [vmem:[%s40 + $0x98] sm:$0x1] %v179
  %v181 = vld [vmem:[%s40 + $0xa4] sm:$0x1]
  %v182 = vsel %vm141, 0, %v181
  %183 = vst [vmem:[%s40 + $0xa4] sm:$0x1] %v182
  %v184 = vld [vmem:[%s40 + $0xb0] sm:$0x1]
  %v185 = vsel %vm141, 0, %v184
  %186 = vst [vmem:[%s40 + $0xb0] sm:$0x1] %v185
  %v187 = vld [vmem:[%s40 + $0xbc] sm:$0x1]
  %v188 = vsel %vm141, 0, %v187
  %189 = vst [vmem:[%s40 + $0xbc] sm:$0x1] %v188
  %v190 = vld [vmem:[%s40 + $0xe0] sm:$0x1]
  %v191 = vsel %vm141, 0, %v190
  %192 = vst [vmem:[%s40 + $0xe0] sm:$0x1] %v191
  %v193 = vld [vmem:[%s40 + $0xec] sm:$0x1]
  %v194 = vsel %vm141, 0, %v193
  %195 = vst [vmem:[%s40 + $0xec] sm:$0x1] %v194
  %v196 = vld [vmem:[%s40 + $0xf8] sm:$0x1]
  %v197 = vsel %vm141, 0, %v196
  %198 = vst [vmem:[%s40 + $0xf8] sm:$0x1] %v197
  %v199 = vld [vmem:[%s40 + $0x104] sm:$0x1]
  %v200 = vsel %vm141, 0, %v199
  %201 = vst [vmem:[%s40 + $0x104] sm:$0x1] %v200
  %v202 = vld [vmem:[%s40 + $0x110] sm:$0x1]
  %v203 = vsel %vm141, 0, %v202
  %204 = vst [vmem:[%s40 + $0x110] sm:$0x1] %v203
  %v205 = vld [vmem:[%s40 + $0x11c] sm:$0x1]
  %v206 = vsel %vm141, 0, %v205
  %207 = vst [vmem:[%s40 + $0x11c] sm:$0x1] %v206
  %v208 = vld [vmem:[%s40 + $0x128] sm:$0x1]
  %v209 = vsel %vm141, 0, %v208
  %210 = vst [vmem:[%s40 + $0x128] sm:$0x1] %v209
  %v211 = vld [vmem:[%s40 + $0x134] sm:$0x1]
  %v212 = vsel %vm141, 0, %v211
  %213 = vst [vmem:[%s40 + $0x134] sm:$0x1] %v212
  %v214 = vld [vmem:[%s40 + $0x140] sm:$0x1]
  %v215 = vsel %vm141, 0, %v214
  %216 = vst [vmem:[%s40 + $0x140] sm:$0x1] %v215
  %v217 = vld [vmem:[%s40 + $0x14c] sm:$0x1]
  %v218 = vsel %vm141, 0, %v217
  %219 = vst [vmem:[%s40 + $0x14c] sm:$0x1] %v218
  %v220 = vld [vmem:[%s40 + $0x158] sm:$0x1]
  %v221 = vsel %vm141, 0, %v220
  %222 = vst [vmem:[%s40 + $0x158] sm:$0x1] %v221
  %v223 = vld [vmem:[%s40 + $0x164] sm:$0x1]
  %v224 = vsel %vm141, 0, %v223
  %225 = vst [vmem:[%s40 + $0x164] sm:$0x1] %v224
  %v226 = vld [vmem:[%s40 + $0x170] sm:$0x1]
  %v227 = vsel %vm141, 0, %v226
  %228 = vst [vmem:[%s40 + $0x170] sm:$0x1] %v227
  %v229 = vld [vmem:[%s40 + $0x17c] sm:$0x1]
  %v230 = vsel %vm141, 0, %v229
  %231 = vst [vmem:[%s40 + $0x17c] sm:$0x1] %v230
  %v232 = vld [vmem:[%s40 + $0x188] sm:$0x1]
  %v233 = vsel %vm141, 0, %v232
  %234 = vst [vmem:[%s40 + $0x188] sm:$0x1] %v233
  %v235 = vld [vmem:[%s40 + $0x194] sm:$0x1]
  %v236 = vsel %vm141, 0, %v235
  %237 = vst [vmem:[%s40 + $0x194] sm:$0x1] %v236
  %v238 = vld [vmem:[%s0] sm:$0xff]
  %v239 = vld [vmem:[%s0 + $0x8] sm:$0xff]
  %v240 = vld [vmem:[%s0 + $0x10] sm:$0xff]
  %v241 = vld [vmem:[%s0 + $0x18] sm:$0xff]
  %v242 = vld [vmem:[%s0 + $0x20] sm:$0xff]
  %v243 = vld [vmem:[%s0 + $0x28] sm:$0xff]
  %v244 = vld [vmem:[%s0 + $0x30] sm:$0xff]
  %v245 = vld [vmem:[%s0 + $0x38] sm:$0xff]
  %v246 = vld [vmem:[%s0 + $0x40] sm:$0xff]
  %v247 = vld [vmem:[%s0 + $0x48] sm:$0xff]
  %v248 = vld [vmem:[%s0 + $0x50] sm:$0xff]
  %v249 = vld [vmem:[%s0 + $0x58] sm:$0xff]
  %v250 = vld [vmem:[%s0 + $0x60] sm:$0xff]
  %v251 = vld [vmem:[%s0 + $0x68] sm:$0xff]
  %v252 = vld [vmem:[%s0 + $0x70] sm:$0xff]
  %v253 = vld [vmem:[%s0 + $0x78] sm:$0xff]
  %v254 = vld [vmem:[%s0 + $0x80] sm:$0xff]
  %v255 = vld [vmem:[%s0 + $0x88] sm:$0xff]
  %v256 = vld [vmem:[%s0 + $0x90] sm:$0xff]
  %v257 = vld [vmem:[%s0 + $0x98] sm:$0xff]
  %v258 = vld [vmem:[%s0 + $0xa0] sm:$0xff]
  %v259 = vld [vmem:[%s0 + $0xa8] sm:$0xff]
  %v260 = vld [vmem:[%s0 + $0xb0] sm:$0xff]
  %v261 = vld [vmem:[%s0 + $0xb8] sm:$0xff]
  %v262 = vld [vmem:[%s0 + $0xc0] sm:$0xff]
  %v263 = vld [vmem:[%s0 + $0xc8] sm:$0xff]
  %v264 = vld [vmem:[%s0 + $0xd0] sm:$0xff]
  %v265 = vld [vmem:[%s0 + $0xd8] sm:$0xff]
  %v266 = vld [vmem:[%s0 + $0xe0] sm:$0xff]
  %v267 = vld [vmem:[%s0 + $0xe8] sm:$0xff]
  %v268 = vld [vmem:[%s0 + $0xf0] sm:$0xff]
  %v269 = vld [vmem:[%s0 + $0xf8] sm:$0xff]
  %v270 = vld [vmem:[%s0 + $0x100] sm:$0xff]
  %v271 = vld [vmem:[%s0 + $0x108] sm:$0xff]
  %v272 = vld [vmem:[%s0 + $0x110] sm:$0xff]
  %v273 = vld [vmem:[%s0 + $0x118] sm:$0xff]
  %v274 = vld [vmem:[%s0 + $0x120] sm:$0xff]
  %v275 = vld [vmem:[%s0 + $0x128] sm:$0xff]
  %v276 = vld [vmem:[%s0 + $0x130] sm:$0xff]
  %v277 = vld [vmem:[%s0 + $0x138] sm:$0xff]
  %v278 = vld [vmem:[%s0 + $0x140] sm:$0xff]
  %v279 = vld [vmem:[%s0 + $0x148] sm:$0xff]
  %v280 = vld [vmem:[%s0 + $0x150] sm:$0xff]
  %v281 = vld [vmem:[%s0 + $0x158] sm:$0xff]
  %v282 = vld [vmem:[%s0 + $0x160] sm:$0xff]
  %v283 = vld [vmem:[%s0 + $0x168] sm:$0xff]
  %v284 = vld [vmem:[%s0 + $0x170] sm:$0xff]
  %v285 = vld [vmem:[%s0 + $0x178] sm:$0xff]
  %v286 = vld [vmem:[%s0 + $0x180] sm:$0xff]
  %v287 = vld [vmem:[%s0 + $0x188] sm:$0xff]
  %v288 = vld [vmem:[%s0 + $0x190] sm:$0xff]
  %v289 = vld [vmem:[%s0 + $0x198] sm:$0xff]
  %v290 = vld [vmem:[%s0 + $0x1a0] sm:$0xff]
  %v291 = vld [vmem:[%s0 + $0x1a8] sm:$0xff]
  %v292 = vld [vmem:[%s0 + $0x1b0] sm:$0xff]
  %v293 = vld [vmem:[%s0 + $0x1b8] sm:$0xff]
  %v294 = vld [vmem:[%s0 + $0x1c0] sm:$0xff]
  %v295 = vld [vmem:[%s0 + $0x1c8] sm:$0xff]
  %v296 = vld [vmem:[%s0 + $0x1d0] sm:$0xff]
  %v297 = vld [vmem:[%s0 + $0x1d8] sm:$0xff]
  %v298 = vld [vmem:[%s0 + $0x1e0] sm:$0xff]
  %v299 = vld [vmem:[%s0 + $0x1e8] sm:$0xff]
  %v300 = vld [vmem:[%s0 + $0x1f0] sm:$0xff]
  %v301 = vld [vmem:[%s0 + $0x1f8] sm:$0xff]
  %v302 = vpack.c.bf16 %v239, %v238
  %v303 = vpack.c.bf16 %v241, %v240
  %v304 = vpack.c.bf16 %v243, %v242
  %v305 = vpack.c.bf16 %v245, %v244
  %v306 = vpack.c.bf16 %v247, %v246
  %v307 = vpack.c.bf16 %v249, %v248
  %v308 = vpack.c.bf16 %v251, %v250
  %v309 = vpack.c.bf16 %v253, %v252
  %v310 = vpack.c.bf16 %v255, %v254
  %v311 = vpack.c.bf16 %v257, %v256
  %v312 = vpack.c.bf16 %v259, %v258
  %v313 = vpack.c.bf16 %v261, %v260
  %v314 = vpack.c.bf16 %v263, %v262
  %v315 = vpack.c.bf16 %v265, %v264
  %v316 = vpack.c.bf16 %v267, %v266
  %v317 = vpack.c.bf16 %v269, %v268
  %v318 = vpack.c.bf16 %v271, %v270
  %v319 = vpack.c.bf16 %v273, %v272
  %v320 = vpack.c.bf16 %v275, %v274
  %v321 = vpack.c.bf16 %v277, %v276
  %v322 = vpack.c.bf16 %v279, %v278
  %v323 = vpack.c.bf16 %v281, %v280
  %v324 = vpack.c.bf16 %v283, %v282
  %v325 = vpack.c.bf16 %v285, %v284
  %v326 = vpack.c.bf16 %v287, %v286
  %v327 = vpack.c.bf16 %v289, %v288
  %v328 = vpack.c.bf16 %v291, %v290
  %v329 = vpack.c.bf16 %v293, %v292
  %v330 = vpack.c.bf16 %v295, %v294
  %v331 = vpack.c.bf16 %v297, %v296
  %v332 = vpack.c.bf16 %v299, %v298
  %v333 = vpack.c.bf16 %v301, %v300
  %v366 = vunpack.c.l.b16 %v302
  %v367 = vunpack.c.h.b16 %v302
  %v368 = vunpack.c.l.b16 %v303
  %v369 = vunpack.c.h.b16 %v303
  %v370 = vunpack.c.l.b16 %v304
  %v371 = vunpack.c.h.b16 %v304
  %v372 = vunpack.c.l.b16 %v305
  %v373 = vunpack.c.h.b16 %v305
  %v374 = vunpack.c.l.b16 %v306
  %v375 = vunpack.c.h.b16 %v306
  %v376 = vunpack.c.l.b16 %v307
  %v377 = vunpack.c.h.b16 %v307
  %v378 = vunpack.c.l.b16 %v308
  %v379 = vunpack.c.h.b16 %v308
  %v380 = vunpack.c.l.b16 %v309
  %v381 = vunpack.c.h.b16 %v309
  %v382 = vunpack.c.l.b16 %v310
  %v383 = vunpack.c.h.b16 %v310
  %v384 = vunpack.c.l.b16 %v311
  %v385 = vunpack.c.h.b16 %v311
  %v386 = vunpack.c.l.b16 %v312
  %v387 = vunpack.c.h.b16 %v312
  %v388 = vunpack.c.l.b16 %v313
  %v389 = vunpack.c.h.b16 %v313
  %v390 = vunpack.c.l.b16 %v314
  %v391 = vunpack.c.h.b16 %v314
  %v392 = vunpack.c.l.b16 %v315
  %v393 = vunpack.c.h.b16 %v315
  %v394 = vunpack.c.l.b16 %v316
  %v395 = vunpack.c.h.b16 %v316
  %v396 = vunpack.c.l.b16 %v317
  %v397 = vunpack.c.h.b16 %v317
  %v398 = vunpack.c.l.b16 %v318
  %v399 = vunpack.c.h.b16 %v318
  %v400 = vunpack.c.l.b16 %v319
  %v401 = vunpack.c.h.b16 %v319
  %v402 = vunpack.c.l.b16 %v320
  %v403 = vunpack.c.h.b16 %v320
  %v404 = vunpack.c.l.b16 %v321
  %v405 = vunpack.c.h.b16 %v321
  %v406 = vunpack.c.l.b16 %v322
  %v407 = vunpack.c.h.b16 %v322
  %v408 = vunpack.c.l.b16 %v323
  %v409 = vunpack.c.h.b16 %v323
  %v410 = vunpack.c.l.b16 %v324
  %v411 = vunpack.c.h.b16 %v324
  %v412 = vunpack.c.l.b16 %v325
  %v413 = vunpack.c.h.b16 %v325
  %v414 = vunpack.c.l.b16 %v326
  %v415 = vunpack.c.h.b16 %v326
  %v416 = vunpack.c.l.b16 %v327
  %v417 = vunpack.c.h.b16 %v327
  %v418 = vunpack.c.l.b16 %v328
  %v419 = vunpack.c.h.b16 %v328
  %v420 = vunpack.c.l.b16 %v329
  %v421 = vunpack.c.h.b16 %v329
  %v422 = vunpack.c.l.b16 %v330
  %v423 = vunpack.c.h.b16 %v330
  %v424 = vunpack.c.l.b16 %v331
  %v425 = vunpack.c.h.b16 %v331
  %v426 = vunpack.c.l.b16 %v332
  %v427 = vunpack.c.h.b16 %v332
  %v428 = vunpack.c.l.b16 %v333
  %v429 = vunpack.c.h.b16 %v333
  %v430 = vpack.c.b16 %v366, %v366
  %v431 = vpack.c.b16 %v367, %v367
  %v432 = vpack.c.b16 %v368, %v368
  %v433 = vpack.c.b16 %v369, %v369
  %v434 = vpack.c.b16 %v370, %v370
  %v435 = vpack.c.b16 %v371, %v371
  %v436 = vpack.c.b16 %v372, %v372
  %v437 = vpack.c.b16 %v373, %v373
  %v438 = vpack.c.b16 %v374, %v374
  %v439 = vpack.c.b16 %v375, %v375
  %v440 = vpack.c.b16 %v376, %v376
  %v441 = vpack.c.b16 %v377, %v377
  %v442 = vpack.c.b16 %v378, %v378
  %v443 = vpack.c.b16 %v379, %v379
  %v444 = vpack.c.b16 %v380, %v380
  %v445 = vpack.c.b16 %v381, %v381
  %v446 = vpack.c.b16 %v382, %v382
  %v447 = vpack.c.b16 %v383, %v383
  %v448 = vpack.c.b16 %v384, %v384
  %v449 = vpack.c.b16 %v385, %v385
  %v450 = vpack.c.b16 %v386, %v386
  %v451 = vpack.c.b16 %v387, %v387
  %v452 = vpack.c.b16 %v388, %v388
  %v453 = vpack.c.b16 %v389, %v389
  %v454 = vpack.c.b16 %v390, %v390
  %v455 = vpack.c.b16 %v391, %v391
  %v456 = vpack.c.b16 %v392, %v392
  %v457 = vpack.c.b16 %v393, %v393
  %v458 = vpack.c.b16 %v394, %v394
  %v459 = vpack.c.b16 %v395, %v395
  %v460 = vpack.c.b16 %v396, %v396
  %v461 = vpack.c.b16 %v397, %v397
  %v462 = vpack.c.b16 %v398, %v398
  %v463 = vpack.c.b16 %v399, %v399
  %v464 = vpack.c.b16 %v400, %v400
  %v465 = vpack.c.b16 %v401, %v401
  %v466 = vpack.c.b16 %v402, %v402
  %v467 = vpack.c.b16 %v403, %v403
  %v468 = vpack.c.b16 %v404, %v404
  %v469 = vpack.c.b16 %v405, %v405
  %v470 = vpack.c.b16 %v406, %v406
  %v471 = vpack.c.b16 %v407, %v407
  %v472 = vpack.c.b16 %v408, %v408
  %v473 = vpack.c.b16 %v409, %v409
  %v474 = vpack.c.b16 %v410, %v410
  %v475 = vpack.c.b16 %v411, %v411
  %v476 = vpack.c.b16 %v412, %v412
  %v477 = vpack.c.b16 %v413, %v413
  %v478 = vpack.c.b16 %v414, %v414
  %v479 = vpack.c.b16 %v415, %v415
  %v480 = vpack.c.b16 %v416, %v416
  %v481 = vpack.c.b16 %v417, %v417
  %v482 = vpack.c.b16 %v418, %v418
  %v483 = vpack.c.b16 %v419, %v419
  %v484 = vpack.c.b16 %v420, %v420
  %v485 = vpack.c.b16 %v421, %v421
  %v486 = vpack.c.b16 %v422, %v422
  %v487 = vpack.c.b16 %v423, %v423
  %v488 = vpack.c.b16 %v424, %v424
  %v489 = vpack.c.b16 %v425, %v425
  %v490 = vpack.c.b16 %v426, %v426
  %v491 = vpack.c.b16 %v427, %v427
  %v492 = vpack.c.b16 %v428, %v428
  %v493 = vpack.c.b16 %v429, %v429
  %vm494 = vsmask.f32 4368
  %vm495 = vmor %vm42, %vm494
  %v497 = vshrl.u32 %v430, 16
  %v499 = vrot.slane %v497, 7
  %v500 = vshll.u32 %v430, 16
  %v502 = vor.u32 %v499, %v500
  %v503 = vrot.slane %v499, 4
  %v505 = vshrl.u32 %v431, 16
  %v507 = vrot.slane %v505, 7
  %v508 = vshll.u32 %v431, 16
  %v510 = vor.u32 %v507, %v508
  %v511 = vsel %vm495, %v503, %v510
  %v512 = vrot.slane %v507, 4
  %v514 = vshrl.u32 %v432, 16
  %v516 = vrot.slane %v514, 7
  %v517 = vshll.u32 %v432, 16
  %v519 = vor.u32 %v516, %v517
  %v520 = vrot.slane %v516, 4
  %v522 = vshrl.u32 %v433, 16
  %v524 = vrot.slane %v522, 7
  %v525 = vshll.u32 %v433, 16
  %v527 = vor.u32 %v524, %v525
  %v528 = vsel %vm495, %v520, %v527
  %v529 = vrot.slane %v524, 4
  %v531 = vshrl.u32 %v434, 16
  %v533 = vrot.slane %v531, 7
  %v534 = vshll.u32 %v434, 16
  %v536 = vor.u32 %v533, %v534
  %v537 = vrot.slane %v533, 4
  %v539 = vshrl.u32 %v435, 16
  %v541 = vrot.slane %v539, 7
  %v542 = vshll.u32 %v435, 16
  %v544 = vor.u32 %v541, %v542
  %v545 = vsel %vm495, %v537, %v544
  %v546 = vrot.slane %v541, 4
  %v548 = vshrl.u32 %v436, 16
  %v550 = vrot.slane %v548, 7
  %v551 = vshll.u32 %v436, 16
  %v553 = vor.u32 %v550, %v551
  %v554 = vrot.slane %v550, 4
  %v556 = vshrl.u32 %v437, 16
  %v558 = vrot.slane %v556, 7
  %v559 = vshll.u32 %v437, 16
  %v561 = vor.u32 %v558, %v559
  %v562 = vsel %vm495, %v554, %v561
  %v563 = vrot.slane %v558, 4
  %v565 = vshrl.u32 %v438, 16
  %v567 = vrot.slane %v565, 7
  %v568 = vshll.u32 %v438, 16
  %v570 = vor.u32 %v567, %v568
  %v571 = vrot.slane %v567, 4
  %v573 = vshrl.u32 %v439, 16
  %v575 = vrot.slane %v573, 7
  %v576 = vshll.u32 %v439, 16
  %v578 = vor.u32 %v575, %v576
  %v579 = vsel %vm495, %v571, %v578
  %v580 = vrot.slane %v575, 4
  %v582 = vshrl.u32 %v440, 16
  %v584 = vrot.slane %v582, 7
  %v585 = vshll.u32 %v440, 16
  %v587 = vor.u32 %v584, %v585
  %v588 = vrot.slane %v584, 4
  %v590 = vshrl.u32 %v441, 16
  %v592 = vrot.slane %v590, 7
  %v593 = vshll.u32 %v441, 16
  %v595 = vor.u32 %v592, %v593
  %v596 = vsel %vm495, %v588, %v595
  %v597 = vrot.slane %v592, 4
  %v599 = vshrl.u32 %v442, 16
  %v601 = vrot.slane %v599, 7
  %v602 = vshll.u32 %v442, 16
  %v604 = vor.u32 %v601, %v602
  %v605 = vrot.slane %v601, 4
  %v607 = vshrl.u32 %v443, 16
  %v609 = vrot.slane %v607, 7
  %v610 = vshll.u32 %v443, 16
  %v612 = vor.u32 %v609, %v610
  %v613 = vsel %vm495, %v605, %v612
  %v614 = vrot.slane %v609, 4
  %v616 = vshrl.u32 %v444, 16
  %v618 = vrot.slane %v616, 7
  %v619 = vshll.u32 %v444, 16
  %v621 = vor.u32 %v618, %v619
  %v622 = vrot.slane %v618, 4
  %v624 = vshrl.u32 %v445, 16
  %v626 = vrot.slane %v624, 7
  %v627 = vshll.u32 %v445, 16
  %v629 = vor.u32 %v626, %v627
  %v630 = vsel %vm495, %v622, %v629
  %v631 = vrot.slane %v626, 4
  %v633 = vshrl.u32 %v446, 16
  %v635 = vrot.slane %v633, 7
  %v636 = vshll.u32 %v446, 16
  %v638 = vor.u32 %v635, %v636
  %v639 = vrot.slane %v635, 4
  %v641 = vshrl.u32 %v447, 16
  %v643 = vrot.slane %v641, 7
  %v644 = vshll.u32 %v447, 16
  %v646 = vor.u32 %v643, %v644
  %v647 = vsel %vm495, %v639, %v646
  %v648 = vrot.slane %v643, 4
  %v650 = vshrl.u32 %v448, 16
  %v652 = vrot.slane %v650, 7
  %v653 = vshll.u32 %v448, 16
  %v655 = vor.u32 %v652, %v653
  %v656 = vrot.slane %v652, 4
  %v658 = vshrl.u32 %v449, 16
  %v660 = vrot.slane %v658, 7
  %v661 = vshll.u32 %v449, 16
  %v663 = vor.u32 %v660, %v661
  %v664 = vsel %vm495, %v656, %v663
  %v665 = vrot.slane %v660, 4
  %v667 = vshrl.u32 %v450, 16
  %v669 = vrot.slane %v667, 7
  %v670 = vshll.u32 %v450, 16
  %v672 = vor.u32 %v669, %v670
  %v673 = vrot.slane %v669, 4
  %v675 = vshrl.u32 %v451, 16
  %v677 = vrot.slane %v675, 7
  %v678 = vshll.u32 %v451, 16
  %v680 = vor.u32 %v677, %v678
  %v681 = vsel %vm495, %v673, %v680
  %v682 = vrot.slane %v677, 4
  %v684 = vshrl.u32 %v452, 16
  %v686 = vrot.slane %v684, 7
  %v687 = vshll.u32 %v452, 16
  %v689 = vor.u32 %v686, %v687
  %v690 = vrot.slane %v686, 4
  %v692 = vshrl.u32 %v453, 16
  %v694 = vrot.slane %v692, 7
  %v695 = vshll.u32 %v453, 16
  %v697 = vor.u32 %v694, %v695
  %v698 = vsel %vm495, %v690, %v697
  %v699 = vrot.slane %v694, 4
  %v701 = vshrl.u32 %v454, 16
  %v703 = vrot.slane %v701, 7
  %v704 = vshll.u32 %v454, 16
  %v706 = vor.u32 %v703, %v704
  %v707 = vrot.slane %v703, 4
  %v709 = vshrl.u32 %v455, 16
  %v711 = vrot.slane %v709, 7
  %v712 = vshll.u32 %v455, 16
  %v714 = vor.u32 %v711, %v712
  %v715 = vsel %vm495, %v707, %v714
  %v716 = vrot.slane %v711, 4
  %v718 = vshrl.u32 %v456, 16
  %v720 = vrot.slane %v718, 7
  %v721 = vshll.u32 %v456, 16
  %v723 = vor.u32 %v720, %v721
  %v724 = vrot.slane %v720, 4
  %v726 = vshrl.u32 %v457, 16
  %v728 = vrot.slane %v726, 7
  %v729 = vshll.u32 %v457, 16
  %v731 = vor.u32 %v728, %v729
  %v732 = vsel %vm495, %v724, %v731
  %v733 = vrot.slane %v728, 4
  %v735 = vshrl.u32 %v458, 16
  %v737 = vrot.slane %v735, 7
  %v738 = vshll.u32 %v458, 16
  %v740 = vor.u32 %v737, %v738
  %v741 = vrot.slane %v737, 4
  %v743 = vshrl.u32 %v459, 16
  %v745 = vrot.slane %v743, 7
  %v746 = vshll.u32 %v459, 16
  %v748 = vor.u32 %v745, %v746
  %v749 = vsel %vm495, %v741, %v748
  %v750 = vrot.slane %v745, 4
  %v752 = vshrl.u32 %v460, 16
  %v754 = vrot.slane %v752, 7
  %v755 = vshll.u32 %v460, 16
  %v757 = vor.u32 %v754, %v755
  %v758 = vrot.slane %v754, 4
  %v760 = vshrl.u32 %v461, 16
  %v762 = vrot.slane %v760, 7
  %v763 = vshll.u32 %v461, 16
  %v765 = vor.u32 %v762, %v763
  %v766 = vsel %vm495, %v758, %v765
  %v767 = vrot.slane %v762, 4
  %v769 = vshrl.u32 %v462, 16
  %v771 = vrot.slane %v769, 7
  %v772 = vshll.u32 %v462, 16
  %v774 = vor.u32 %v771, %v772
  %v775 = vrot.slane %v771, 4
  %v777 = vshrl.u32 %v463, 16
  %v779 = vrot.slane %v777, 7
  %v780 = vshll.u32 %v463, 16
  %v782 = vor.u32 %v779, %v780
  %v783 = vsel %vm495, %v775, %v782
  %v784 = vrot.slane %v779, 4
  %v786 = vshrl.u32 %v464, 16
  %v788 = vrot.slane %v786, 7
  %v789 = vshll.u32 %v464, 16
  %v791 = vor.u32 %v788, %v789
  %v792 = vrot.slane %v788, 4
  %v794 = vshrl.u32 %v465, 16
  %v796 = vrot.slane %v794, 7
  %v797 = vshll.u32 %v465, 16
  %v799 = vor.u32 %v796, %v797
  %v800 = vsel %vm495, %v792, %v799
  %v801 = vrot.slane %v796, 4
  %v803 = vshrl.u32 %v466, 16
  %v805 = vrot.slane %v803, 7
  %v806 = vshll.u32 %v466, 16
  %v808 = vor.u32 %v805, %v806
  %v809 = vrot.slane %v805, 4
  %v811 = vshrl.u32 %v467, 16
  %v813 = vrot.slane %v811, 7
  %v814 = vshll.u32 %v467, 16
  %v816 = vor.u32 %v813, %v814
  %v817 = vsel %vm495, %v809, %v816
  %v818 = vrot.slane %v813, 4
  %v820 = vshrl.u32 %v468, 16
  %v822 = vrot.slane %v820, 7
  %v823 = vshll.u32 %v468, 16
  %v825 = vor.u32 %v822, %v823
  %v826 = vrot.slane %v822, 4
  %v828 = vshrl.u32 %v469, 16
  %v830 = vrot.slane %v828, 7
  %v831 = vshll.u32 %v469, 16
  %v833 = vor.u32 %v830, %v831
  %v834 = vsel %vm495, %v826, %v833
  %v835 = vrot.slane %v830, 4
  %v837 = vshrl.u32 %v470, 16
  %v839 = vrot.slane %v837, 7
  %v840 = vshll.u32 %v470, 16
  %v842 = vor.u32 %v839, %v840
  %v843 = vrot.slane %v839, 4
  %v845 = vshrl.u32 %v471, 16
  %v847 = vrot.slane %v845, 7
  %v848 = vshll.u32 %v471, 16
  %v850 = vor.u32 %v847, %v848
  %v851 = vsel %vm495, %v843, %v850
  %v852 = vrot.slane %v847, 4
  %v854 = vshrl.u32 %v472, 16
  %v856 = vrot.slane %v854, 7
  %v857 = vshll.u32 %v472, 16
  %v859 = vor.u32 %v856, %v857
  %v860 = vrot.slane %v856, 4
  %v862 = vshrl.u32 %v473, 16
  %v864 = vrot.slane %v862, 7
  %v865 = vshll.u32 %v473, 16
  %v867 = vor.u32 %v864, %v865
  %v868 = vsel %vm495, %v860, %v867
  %v869 = vrot.slane %v864, 4
  %v871 = vshrl.u32 %v474, 16
  %v873 = vrot.slane %v871, 7
  %v874 = vshll.u32 %v474, 16
  %v876 = vor.u32 %v873, %v874
  %v877 = vrot.slane %v873, 4
  %v879 = vshrl.u32 %v475, 16
  %v881 = vrot.slane %v879, 7
  %v882 = vshll.u32 %v475, 16
  %v884 = vor.u32 %v881, %v882
  %v885 = vsel %vm495, %v877, %v884
  %v886 = vrot.slane %v881, 4
  %v888 = vshrl.u32 %v476, 16
  %v890 = vrot.slane %v888, 7
  %v891 = vshll.u32 %v476, 16
  %v893 = vor.u32 %v890, %v891
  %v894 = vrot.slane %v890, 4
  %v896 = vshrl.u32 %v477, 16
  %v898 = vrot.slane %v896, 7
  %v899 = vshll.u32 %v477, 16
  %v901 = vor.u32 %v898, %v899
  %v902 = vsel %vm495, %v894, %v901
  %v903 = vrot.slane %v898, 4
  %v905 = vshrl.u32 %v478, 16
  %v907 = vrot.slane %v905, 7
  %v908 = vshll.u32 %v478, 16
  %v910 = vor.u32 %v907, %v908
  %v911 = vrot.slane %v907, 4
  %v913 = vshrl.u32 %v479, 16
  %v915 = vrot.slane %v913, 7
  %v916 = vshll.u32 %v479, 16
  %v918 = vor.u32 %v915, %v916
  %v919 = vsel %vm495, %v911, %v918
  %v920 = vrot.slane %v915, 4
  %v922 = vshrl.u32 %v480, 16
  %v924 = vrot.slane %v922, 7
  %v925 = vshll.u32 %v480, 16
  %v927 = vor.u32 %v924, %v925
  %v928 = vrot.slane %v924, 4
  %v930 = vshrl.u32 %v481, 16
  %v932 = vrot.slane %v930, 7
  %v933 = vshll.u32 %v481, 16
  %v935 = vor.u32 %v932, %v933
  %v936 = vsel %vm495, %v928, %v935
  %v937 = vrot.slane %v932, 4
  %v939 = vshrl.u32 %v482, 16
  %v941 = vrot.slane %v939, 7
  %v942 = vshll.u32 %v482, 16
  %v944 = vor.u32 %v941, %v942
  %v945 = vrot.slane %v941, 4
  %v947 = vshrl.u32 %v483, 16
  %v949 = vrot.slane %v947, 7
  %v950 = vshll.u32 %v483, 16
  %v952 = vor.u32 %v949, %v950
  %v953 = vsel %vm495, %v945, %v952
  %v954 = vrot.slane %v949, 4
  %v956 = vshrl.u32 %v484, 16
  %v958 = vrot.slane %v956, 7
  %v959 = vshll.u32 %v484, 16
  %v961 = vor.u32 %v958, %v959
  %v962 = vrot.slane %v958, 4
  %v964 = vshrl.u32 %v485, 16
  %v966 = vrot.slane %v964, 7
  %v967 = vshll.u32 %v485, 16
  %v969 = vor.u32 %v966, %v967
  %v970 = vsel %vm495, %v962, %v969
  %v971 = vrot.slane %v966, 4
  %v973 = vshrl.u32 %v486, 16
  %v975 = vrot.slane %v973, 7
  %v976 = vshll.u32 %v486, 16
  %v978 = vor.u32 %v975, %v976
  %v979 = vrot.slane %v975, 4
  %v981 = vshrl.u32 %v487, 16
  %v983 = vrot.slane %v981, 7
  %v984 = vshll.u32 %v487, 16
  %v986 = vor.u32 %v983, %v984
  %v987 = vsel %vm495, %v979, %v986
  %v988 = vrot.slane %v983, 4
  %v990 = vshrl.u32 %v488, 16
  %v992 = vrot.slane %v990, 7
  %v993 = vshll.u32 %v488, 16
  %v995 = vor.u32 %v992, %v993
  %v996 = vrot.slane %v992, 4
  %v998 = vshrl.u32 %v489, 16
  %v1000 = vrot.slane %v998, 7
  %v1001 = vshll.u32 %v489, 16
  %v1003 = vor.u32 %v1000, %v1001
  %v1004 = vsel %vm495, %v996, %v1003
  %v1005 = vrot.slane %v1000, 4
  %v1007 = vshrl.u32 %v490, 16
  %v1009 = vrot.slane %v1007, 7
  %v1010 = vshll.u32 %v490, 16
  %v1012 = vor.u32 %v1009, %v1010
  %v1013 = vrot.slane %v1009, 4
  %v1015 = vshrl.u32 %v491, 16
  %v1017 = vrot.slane %v1015, 7
  %v1018 = vshll.u32 %v491, 16
  %v1020 = vor.u32 %v1017, %v1018
  %v1021 = vsel %vm495, %v1013, %v1020
  %v1022 = vrot.slane %v1017, 4
  %v1024 = vshrl.u32 %v492, 16
  %v1026 = vrot.slane %v1024, 7
  %v1027 = vshll.u32 %v492, 16
  %v1029 = vor.u32 %v1026, %v1027
  %v1030 = vrot.slane %v1026, 4
  %v1032 = vshrl.u32 %v493, 16
  %v1034 = vrot.slane %v1032, 7
  %v1035 = vshll.u32 %v493, 16
  %v1037 = vor.u32 %v1034, %v1035
  %v1038 = vsel %vm495, %v1030, %v1037
  %v1039 = vrot.slane %v1034, 4
  %vm1136 = vcmask 1043456
  %vm1137 = vmand %vm1136, %vm140
  %v1138 = vld [vmem:[%s40] sm:$0xf]
  %v1139 = vsel %vm1137, %v502, %v1138
  %1140 = vst [vmem:[%s40] sm:$0xf] %v1139
  %1141 = vst [vmem:[%s40 + $0x4] sm:$0xf] %v511
  %v1142 = vld [vmem:[%s40 + $0x8] sm:$0x1]
  %v1143 = vsel %vm43, %v512, %v1142
  %1144 = vst [vmem:[%s40 + $0x8] sm:$0x1] %v1143
  %v1145 = vld [vmem:[%s40 + $0xc] sm:$0xf]
  %v1146 = vsel %vm1137, %v519, %v1145
  %1147 = vst [vmem:[%s40 + $0xc] sm:$0xf] %v1146
  %1148 = vst [vmem:[%s40 + $0x10] sm:$0xf] %v528
  %v1149 = vld [vmem:[%s40 + $0x14] sm:$0x1]
  %v1150 = vsel %vm43, %v529, %v1149
  %1151 = vst [vmem:[%s40 + $0x14] sm:$0x1] %v1150
  %v1152 = vld [vmem:[%s40 + $0x18] sm:$0xf]
  %v1153 = vsel %vm1137, %v536, %v1152
  %1154 = vst [vmem:[%s40 + $0x18] sm:$0xf] %v1153
  %1155 = vst [vmem:[%s40 + $0x1c] sm:$0xf] %v545
  %v1156 = vld [vmem:[%s40 + $0x20] sm:$0x1]
  %v1157 = vsel %vm43, %v546, %v1156
  %1158 = vst [vmem:[%s40 + $0x20] sm:$0x1] %v1157
  %v1159 = vld [vmem:[%s40 + $0x24] sm:$0xf]
  %v1160 = vsel %vm1137, %v553, %v1159
  %1161 = vst [vmem:[%s40 + $0x24] sm:$0xf] %v1160
  %1162 = vst [vmem:[%s40 + $0x28] sm:$0xf] %v562
  %v1163 = vld [vmem:[%s40 + $0x2c] sm:$0x1]
  %v1164 = vsel %vm43, %v563, %v1163
  %1165 = vst [vmem:[%s40 + $0x2c] sm:$0x1] %v1164
  %v1166 = vld [vmem:[%s40 + $0x30] sm:$0xf]
  %v1167 = vsel %vm1137, %v570, %v1166
  %1168 = vst [vmem:[%s40 + $0x30] sm:$0xf] %v1167
  %1169 = vst [vmem:[%s40 + $0x34] sm:$0xf] %v579
  %v1170 = vld [vmem:[%s40 + $0x38] sm:$0x1]
  %v1171 = vsel %vm43, %v580, %v1170
  %1172 = vst [vmem:[%s40 + $0x38] sm:$0x1] %v1171
  %v1173 = vld [vmem:[%s40 + $0x3c] sm:$0xf]
  %v1174 = vsel %vm1137, %v587, %v1173
  %1175 = vst [vmem:[%s40 + $0x3c] sm:$0xf] %v1174
  %1176 = vst [vmem:[%s40 + $0x40] sm:$0xf] %v596
  %v1177 = vld [vmem:[%s40 + $0x44] sm:$0x1]
  %v1178 = vsel %vm43, %v597, %v1177
  %1179 = vst [vmem:[%s40 + $0x44] sm:$0x1] %v1178
  %v1180 = vld [vmem:[%s40 + $0x48] sm:$0xf]
  %v1181 = vsel %vm1137, %v604, %v1180
  %1182 = vst [vmem:[%s40 + $0x48] sm:$0xf] %v1181
  %1183 = vst [vmem:[%s40 + $0x4c] sm:$0xf] %v613
  %v1184 = vld [vmem:[%s40 + $0x50] sm:$0x1]
  %v1185 = vsel %vm43, %v614, %v1184
  %1186 = vst [vmem:[%s40 + $0x50] sm:$0x1] %v1185
  %v1187 = vld [vmem:[%s40 + $0x54] sm:$0xf]
  %v1188 = vsel %vm1137, %v621, %v1187
  %1189 = vst [vmem:[%s40 + $0x54] sm:$0xf] %v1188
  %1190 = vst [vmem:[%s40 + $0x58] sm:$0xf] %v630
  %v1191 = vld [vmem:[%s40 + $0x5c] sm:$0x1]
  %v1192 = vsel %vm43, %v631, %v1191
  %1193 = vst [vmem:[%s40 + $0x5c] sm:$0x1] %v1192
  %v1194 = vld [vmem:[%s40 + $0x60] sm:$0xf]
  %v1195 = vsel %vm1137, %v638, %v1194
  %1196 = vst [vmem:[%s40 + $0x60] sm:$0xf] %v1195
  %1197 = vst [vmem:[%s40 + $0x64] sm:$0xf] %v647
  %v1198 = vld [vmem:[%s40 + $0x68] sm:$0x1]
  %v1199 = vsel %vm43, %v648, %v1198
  %1200 = vst [vmem:[%s40 + $0x68] sm:$0x1] %v1199
  %v1201 = vld [vmem:[%s40 + $0x6c] sm:$0xf]
  %v1202 = vsel %vm1137, %v655, %v1201
  %1203 = vst [vmem:[%s40 + $0x6c] sm:$0xf] %v1202
  %1204 = vst [vmem:[%s40 + $0x70] sm:$0xf] %v664
  %v1205 = vld [vmem:[%s40 + $0x74] sm:$0x1]
  %v1206 = vsel %vm43, %v665, %v1205
  %1207 = vst [vmem:[%s40 + $0x74] sm:$0x1] %v1206
  %v1208 = vld [vmem:[%s40 + $0x78] sm:$0xf]
  %v1209 = vsel %vm1137, %v672, %v1208
  %1210 = vst [vmem:[%s40 + $0x78] sm:$0xf] %v1209
  %1211 = vst [vmem:[%s40 + $0x7c] sm:$0xf] %v681
  %v1212 = vld [vmem:[%s40 + $0x80] sm:$0x1]
  %v1213 = vsel %vm43, %v682, %v1212
  %1214 = vst [vmem:[%s40 + $0x80] sm:$0x1] %v1213
  %v1215 = vld [vmem:[%s40 + $0x84] sm:$0xf]
  %v1216 = vsel %vm1137, %v689, %v1215
  %1217 = vst [vmem:[%s40 + $0x84] sm:$0xf] %v1216
  %1218 = vst [vmem:[%s40 + $0x88] sm:$0xf] %v698
  %v1219 = vld [vmem:[%s40 + $0x8c] sm:$0x1]
  %v1220 = vsel %vm43, %v699, %v1219
  %1221 = vst [vmem:[%s40 + $0x8c] sm:$0x1] %v1220
  %v1222 = vld [vmem:[%s40 + $0x90] sm:$0xf]
  %v1223 = vsel %vm1137, %v706, %v1222
  %1224 = vst [vmem:[%s40 + $0x90] sm:$0xf] %v1223
  %1225 = vst [vmem:[%s40 + $0x94] sm:$0xf] %v715
  %v1226 = vld [vmem:[%s40 + $0x98] sm:$0x1]
  %v1227 = vsel %vm43, %v716, %v1226
  %1228 = vst [vmem:[%s40 + $0x98] sm:$0x1] %v1227
  %v1229 = vld [vmem:[%s40 + $0x9c] sm:$0xf]
  %v1230 = vsel %vm1137, %v723, %v1229
  %1231 = vst [vmem:[%s40 + $0x9c] sm:$0xf] %v1230
  %1232 = vst [vmem:[%s40 + $0xa0] sm:$0xf] %v732
  %v1233 = vld [vmem:[%s40 + $0xa4] sm:$0x1]
  %v1234 = vsel %vm43, %v733, %v1233
  %1235 = vst [vmem:[%s40 + $0xa4] sm:$0x1] %v1234
  %v1236 = vld [vmem:[%s40 + $0xa8] sm:$0xf]
  %v1237 = vsel %vm1137, %v740, %v1236
  %1238 = vst [vmem:[%s40 + $0xa8] sm:$0xf] %v1237
  %1239 = vst [vmem:[%s40 + $0xac] sm:$0xf] %v749
  %v1240 = vld [vmem:[%s40 + $0xb0] sm:$0x1]
  %v1241 = vsel %vm43, %v750, %v1240
  %1242 = vst [vmem:[%s40 + $0xb0] sm:$0x1] %v1241
  %v1243 = vld [vmem:[%s40 + $0xb4] sm:$0xf]
  %v1244 = vsel %vm1137, %v757, %v1243
  %1245 = vst [vmem:[%s40 + $0xb4] sm:$0xf] %v1244
  %1246 = vst [vmem:[%s40 + $0xb8] sm:$0xf] %v766
  %v1247 = vld [vmem:[%s40 + $0xbc] sm:$0x1]
  %v1248 = vsel %vm43, %v767, %v1247
  %1249 = vst [vmem:[%s40 + $0xbc] sm:$0x1] %v1248
  %v1250 = vld [vmem:[%s40 + $0xd8] sm:$0xf]
  %v1251 = vsel %vm1137, %v774, %v1250
  %1252 = vst [vmem:[%s40 + $0xd8] sm:$0xf] %v1251
  %1253 = vst [vmem:[%s40 + $0xdc] sm:$0xf] %v783
  %v1254 = vld [vmem:[%s40 + $0xe0] sm:$0x1]
  %v1255 = vsel %vm43, %v784, %v1254
  %1256 = vst [vmem:[%s40 + $0xe0] sm:$0x1] %v1255
  %v1257 = vld [vmem:[%s40 + $0xe4] sm:$0xf]
  %v1258 = vsel %vm1137, %v791, %v1257
  %1259 = vst [vmem:[%s40 + $0xe4] sm:$0xf] %v1258
  %1260 = vst [vmem:[%s40 + $0xe8] sm:$0xf] %v800
  %v1261 = vld [vmem:[%s40 + $0xec] sm:$0x1]
  %v1262 = vsel %vm43, %v801, %v1261
  %1263 = vst [vmem:[%s40 + $0xec] sm:$0x1] %v1262
  %v1264 = vld [vmem:[%s40 + $0xf0] sm:$0xf]
  %v1265 = vsel %vm1137, %v808, %v1264
  %1266 = vst [vmem:[%s40 + $0xf0] sm:$0xf] %v1265
  %1267 = vst [vmem:[%s40 + $0xf4] sm:$0xf] %v817
  %v1268 = vld [vmem:[%s40 + $0xf8] sm:$0x1]
  %v1269 = vsel %vm43, %v818, %v1268
  %1270 = vst [vmem:[%s40 + $0xf8] sm:$0x1] %v1269
  %v1271 = vld [vmem:[%s40 + $0xfc] sm:$0xf]
  %v1272 = vsel %vm1137, %v825, %v1271
  %1273 = vst [vmem:[%s40 + $0xfc] sm:$0xf] %v1272
  %1274 = vst [vmem:[%s40 + $0x100] sm:$0xf] %v834
  %v1275 = vld [vmem:[%s40 + $0x104] sm:$0x1]
  %v1276 = vsel %vm43, %v835, %v1275
  %1277 = vst [vmem:[%s40 + $0x104] sm:$0x1] %v1276
  %v1278 = vld [vmem:[%s40 + $0x108] sm:$0xf]
  %v1279 = vsel %vm1137, %v842, %v1278
  %1280 = vst [vmem:[%s40 + $0x108] sm:$0xf] %v1279
  %1281 = vst [vmem:[%s40 + $0x10c] sm:$0xf] %v851
  %v1282 = vld [vmem:[%s40 + $0x110] sm:$0x1]
  %v1283 = vsel %vm43, %v852, %v1282
  %1284 = vst [vmem:[%s40 + $0x110] sm:$0x1] %v1283
  %v1285 = vld [vmem:[%s40 + $0x114] sm:$0xf]
  %v1286 = vsel %vm1137, %v859, %v1285
  %1287 = vst [vmem:[%s40 + $0x114] sm:$0xf] %v1286
  %1288 = vst [vmem:[%s40 + $0x118] sm:$0xf] %v868
  %v1289 = vld [vmem:[%s40 + $0x11c] sm:$0x1]
  %v1290 = vsel %vm43, %v869, %v1289
  %1291 = vst [vmem:[%s40 + $0x11c] sm:$0x1] %v1290
  %v1292 = vld [vmem:[%s40 + $0x120] sm:$0xf]
  %v1293 = vsel %vm1137, %v876, %v1292
  %1294 = vst [vmem:[%s40 + $0x120] sm:$0xf] %v1293
  %1295 = vst [vmem:[%s40 + $0x124] sm:$0xf] %v885
  %v1296 = vld [vmem:[%s40 + $0x128] sm:$0x1]
  %v1297 = vsel %vm43, %v886, %v1296
  %1298 = vst [vmem:[%s40 + $0x128] sm:$0x1] %v1297
  %v1299 = vld [vmem:[%s40 + $0x12c] sm:$0xf]
  %v1300 = vsel %vm1137, %v893, %v1299
  %1301 = vst [vmem:[%s40 + $0x12c] sm:$0xf] %v1300
  %1302 = vst [vmem:[%s40 + $0x130] sm:$0xf] %v902
  %v1303 = vld [vmem:[%s40 + $0x134] sm:$0x1]
  %v1304 = vsel %vm43, %v903, %v1303
  %1305 = vst [vmem:[%s40 + $0x134] sm:$0x1] %v1304
  %v1306 = vld [vmem:[%s40 + $0x138] sm:$0xf]
  %v1307 = vsel %vm1137, %v910, %v1306
  %1308 = vst [vmem:[%s40 + $0x138] sm:$0xf] %v1307
  %1309 = vst [vmem:[%s40 + $0x13c] sm:$0xf] %v919
  %v1310 = vld [vmem:[%s40 + $0x140] sm:$0x1]
  %v1311 = vsel %vm43, %v920, %v1310
  %1312 = vst [vmem:[%s40 + $0x140] sm:$0x1] %v1311
  %v1313 = vld [vmem:[%s40 + $0x144] sm:$0xf]
  %v1314 = vsel %vm1137, %v927, %v1313
  %1315 = vst [vmem:[%s40 + $0x144] sm:$0xf] %v1314
  %1316 = vst [vmem:[%s40 + $0x148] sm:$0xf] %v936
  %v1317 = vld [vmem:[%s40 + $0x14c] sm:$0x1]
  %v1318 = vsel %vm43, %v937, %v1317
  %1319 = vst [vmem:[%s40 + $0x14c] sm:$0x1] %v1318
  %v1320 = vld [vmem:[%s40 + $0x150] sm:$0xf]
  %v1321 = vsel %vm1137, %v944, %v1320
  %1322 = vst [vmem:[%s40 + $0x150] sm:$0xf] %v1321
  %1323 = vst [vmem:[%s40 + $0x154] sm:$0xf] %v953
  %v1324 = vld [vmem:[%s40 + $0x158] sm:$0x1]
  %v1325 = vsel %vm43, %v954, %v1324
  %1326 = vst [vmem:[%s40 + $0x158] sm:$0x1] %v1325
  %v1327 = vld [vmem:[%s40 + $0x15c] sm:$0xf]
  %v1328 = vsel %vm1137, %v961, %v1327
  %1329 = vst [vmem:[%s40 + $0x15c] sm:$0xf] %v1328
  %1330 = vst [vmem:[%s40 + $0x160] sm:$0xf] %v970
  %v1331 = vld [vmem:[%s40 + $0x164] sm:$0x1]
  %v1332 = vsel %vm43, %v971, %v1331
  %1333 = vst [vmem:[%s40 + $0x164] sm:$0x1] %v1332
  %v1334 = vld [vmem:[%s40 + $0x168] sm:$0xf]
  %v1335 = vsel %vm1137, %v978, %v1334
  %1336 = vst [vmem:[%s40 + $0x168] sm:$0xf] %v1335
  %1337 = vst [vmem:[%s40 + $0x16c] sm:$0xf] %v987
  %v1338 = vld [vmem:[%s40 + $0x170] sm:$0x1]
  %v1339 = vsel %vm43, %v988, %v1338
  %1340 = vst [vmem:[%s40 + $0x170] sm:$0x1] %v1339
  %v1341 = vld [vmem:[%s40 + $0x174] sm:$0xf]
  %v1342 = vsel %vm1137, %v995, %v1341
  %1343 = vst [vmem:[%s40 + $0x174] sm:$0xf] %v1342
  %1344 = vst [vmem:[%s40 + $0x178] sm:$0xf] %v1004
  %v1345 = vld [vmem:[%s40 + $0x17c] sm:$0x1]
  %v1346 = vsel %vm43, %v1005, %v1345
  %1347 = vst [vmem:[%s40 + $0x17c] sm:$0x1] %v1346
  %v1348 = vld [vmem:[%s40 + $0x180] sm:$0xf]
  %v1349 = vsel %vm1137, %v1012, %v1348
  %1350 = vst [vmem:[%s40 + $0x180] sm:$0xf] %v1349
  %1351 = vst [vmem:[%s40 + $0x184] sm:$0xf] %v1021
  %v1352 = vld [vmem:[%s40 + $0x188] sm:$0x1]
  %v1353 = vsel %vm43, %v1022, %v1352
  %1354 = vst [vmem:[%s40 + $0x188] sm:$0x1] %v1353
  %v1355 = vld [vmem:[%s40 + $0x18c] sm:$0xf]
  %v1356 = vsel %vm1137, %v1029, %v1355
  %1357 = vst [vmem:[%s40 + $0x18c] sm:$0xf] %v1356
  %1358 = vst [vmem:[%s40 + $0x190] sm:$0xf] %v1038
  %v1359 = vld [vmem:[%s40 + $0x194] sm:$0x1]
  %v1360 = vsel %vm43, %v1039, %v1359
  %1361 = vst [vmem:[%s40 + $0x194] sm:$0x1] %v1360
  %v1362 = vld [vmem:[#allocation2] sm:$0xf]
  %v1363 = vld [vmem:[#allocation2 + $0x4] sm:$0xf]
  %v1364 = vld [vmem:[#allocation2 + $0x8] sm:$0x1]
  %v1365 = vld [vmem:[#allocation2 + $0xc] sm:$0xf]
  %v1366 = vld [vmem:[#allocation2 + $0x10] sm:$0xf]
  %v1367 = vld [vmem:[#allocation2 + $0x14] sm:$0x1]
  %v1368 = vld [vmem:[#allocation2 + $0x18] sm:$0xf]
  %v1369 = vld [vmem:[#allocation2 + $0x1c] sm:$0xf]
  %v1370 = vld [vmem:[#allocation2 + $0x20] sm:$0x1]
  %v1371 = vld [vmem:[#allocation2 + $0x24] sm:$0xf]
  %v1372 = vld [vmem:[#allocation2 + $0x28] sm:$0xf]
  %v1373 = vld [vmem:[#allocation2 + $0x2c] sm:$0x1]
  %v1374 = vld [vmem:[#allocation2 + $0x30] sm:$0xf]
  %v1375 = vld [vmem:[#allocation2 + $0x34] sm:$0xf]
  %v1376 = vld [vmem:[#allocation2 + $0x38] sm:$0x1]
  %v1377 = vld [vmem:[#allocation2 + $0x3c] sm:$0xf]
  %v1378 = vld [vmem:[#allocation2 + $0x40] sm:$0xf]
  %v1379 = vld [vmem:[#allocation2 + $0x44] sm:$0x1]
  %v1380 = vld [vmem:[#allocation2 + $0x48] sm:$0xf]
  %v1381 = vld [vmem:[#allocation2 + $0x4c] sm:$0xf]
  %v1382 = vld [vmem:[#allocation2 + $0x50] sm:$0x1]
  %v1383 = vld [vmem:[#allocation2 + $0x54] sm:$0xf]
  %v1384 = vld [vmem:[#allocation2 + $0x58] sm:$0xf]
  %v1385 = vld [vmem:[#allocation2 + $0x5c] sm:$0x1]
  %v1386 = vld [vmem:[#allocation2 + $0x60] sm:$0xf]
  %v1387 = vld [vmem:[#allocation2 + $0x64] sm:$0xf]
  %v1388 = vld [vmem:[#allocation2 + $0x68] sm:$0x1]
  %v1389 = vld [vmem:[#allocation2 + $0x6c] sm:$0xf]
  %v1390 = vld [vmem:[#allocation2 + $0x70] sm:$0xf]
  %v1391 = vld [vmem:[#allocation2 + $0x74] sm:$0x1]
  %v1392 = vld [vmem:[#allocation2 + $0x78] sm:$0xf]
  %v1393 = vld [vmem:[#allocation2 + $0x7c] sm:$0xf]
  %v1394 = vld [vmem:[#allocation2 + $0x80] sm:$0x1]
  %v1395 = vld [vmem:[#allocation2 + $0x84] sm:$0xf]
  %v1396 = vld [vmem:[#allocation2 + $0x88] sm:$0xf]
  %v1397 = vld [vmem:[#allocation2 + $0x8c] sm:$0x1]
  %v1398 = vld [vmem:[#allocation2 + $0x90] sm:$0xf]
  %v1399 = vld [vmem:[#allocation2 + $0x94] sm:$0xf]
  %v1400 = vld [vmem:[#allocation2 + $0x98] sm:$0x1]
  %v1401 = vld [vmem:[#allocation2 + $0x9c] sm:$0xf]
  %v1402 = vld [vmem:[#allocation2 + $0xa0] sm:$0xf]
  %v1403 = vld [vmem:[#allocation2 + $0xa4] sm:$0x1]
  %v1404 = vld [vmem:[#allocation2 + $0xa8] sm:$0xf]
  %v1405 = vld [vmem:[#allocation2 + $0xac] sm:$0xf]
  %v1406 = vld [vmem:[#allocation2 + $0xb0] sm:$0x1]
  %v1407 = vld [vmem:[#allocation2 + $0xb4] sm:$0xf]
  %v1408 = vld [vmem:[#allocation2 + $0xb8] sm:$0xf]
  %v1409 = vld [vmem:[#allocation2 + $0xbc] sm:$0x1]
  %v1410 = vld [vmem:[#allocation2 + $0xd8] sm:$0xf]
  %v1411 = vld [vmem:[#allocation2 + $0xdc] sm:$0xf]
  %v1412 = vld [vmem:[#allocation2 + $0xe0] sm:$0x1]
  %v1413 = vld [vmem:[#allocation2 + $0xe4] sm:$0xf]
  %v1414 = vld [vmem:[#allocation2 + $0xe8] sm:$0xf]
  %v1415 = vld [vmem:[#allocation2 + $0xec] sm:$0x1]
  %v1416 = vld [vmem:[#allocation2 + $0xf0] sm:$0xf]
  %v1417 = vld [vmem:[#allocation2 + $0xf4] sm:$0xf]
  %v1418 = vld [vmem:[#allocation2 + $0xf8] sm:$0x1]
  %v1419 = vld [vmem:[#allocation2 + $0xfc] sm:$0xf]
  %v1420 = vld [vmem:[#allocation2 + $0x100] sm:$0xf]
  %v1421 = vld [vmem:[#allocation2 + $0x104] sm:$0x1]
  %v1422 = vld [vmem:[#allocation2 + $0x108] sm:$0xf]
  %v1423 = vld [vmem:[#allocation2 + $0x10c] sm:$0xf]
  %v1424 = vld [vmem:[#allocation2 + $0x110] sm:$0x1]
  %v1425 = vld [vmem:[#allocation2 + $0x114] sm:$0xf]
  %v1426 = vld [vmem:[#allocation2 + $0x118] sm:$0xf]
  %v1427 = vld [vmem:[#allocation2 + $0x11c] sm:$0x1]
  %v1428 = vld [vmem:[#allocation2 + $0x120] sm:$0xf]
  %v1429 = vld [vmem:[#allocation2 + $0x124] sm:$0xf]
  %v1430 = vld [vmem:[#allocation2 + $0x128] sm:$0x1]
  %v1431 = vld [vmem:[#allocation2 + $0x12c] sm:$0xf]
  %v1432 = vld [vmem:[#allocation2 + $0x130] sm:$0xf]
  %v1433 = vld [vmem:[#allocation2 + $0x134] sm:$0x1]
  %v1434 = vld [vmem:[#allocation2 + $0x138] sm:$0xf]
  %v1435 = vld [vmem:[#allocation2 + $0x13c] sm:$0xf]
  %v1436 = vld [vmem:[#allocation2 + $0x140] sm:$0x1]
  %v1437 = vld [vmem:[#allocation2 + $0x144] sm:$0xf]
  %v1438 = vld [vmem:[#allocation2 + $0x148] sm:$0xf]
  %v1439 = vld [vmem:[#allocation2 + $0x14c] sm:$0x1]
  %v1440 = vld [vmem:[#allocation2 + $0x150] sm:$0xf]
  %v1441 = vld [vmem:[#allocation2 + $0x154] sm:$0xf]
  %v1442 = vld [vmem:[#allocation2 + $0x158] sm:$0x1]
  %v1443 = vld [vmem:[#allocation2 + $0x15c] sm:$0xf]
  %v1444 = vld [vmem:[#allocation2 + $0x160] sm:$0xf]
  %v1445 = vld [vmem:[#allocation2 + $0x164] sm:$0x1]
  %v1446 = vld [vmem:[#allocation2 + $0x168] sm:$0xf]
  %v1447 = vld [vmem:[#allocation2 + $0x16c] sm:$0xf]
  %v1448 = vld [vmem:[#allocation2 + $0x170] sm:$0x1]
  %v1449 = vld [vmem:[#allocation2 + $0x174] sm:$0xf]
  %v1450 = vld [vmem:[#allocation2 + $0x178] sm:$0xf]
  %v1451 = vld [vmem:[#allocation2 + $0x17c] sm:$0x1]
  %v1452 = vld [vmem:[#allocation2 + $0x180] sm:$0xf]
  %v1453 = vld [vmem:[#allocation2 + $0x184] sm:$0xf]
  %v1454 = vld [vmem:[#allocation2 + $0x188] sm:$0x1]
  %v1455 = vld [vmem:[#allocation2 + $0x18c] sm:$0xf]
  %v1456 = vld [vmem:[#allocation2 + $0x190] sm:$0xf]
  %v1457 = vld [vmem:[#allocation2 + $0x194] sm:$0x1]
  %v1522 = vunpack.c.l.b16 %v1362
  %v1523 = vunpack.c.l.b16 %v1363
  %v1524 = vunpack.c.l.b16 %v1365
  %v1525 = vunpack.c.l.b16 %v1366
  %v1526 = vunpack.c.l.b16 %v1368
  %v1527 = vunpack.c.l.b16 %v1369
  %v1528 = vunpack.c.l.b16 %v1371
  %v1529 = vunpack.c.l.b16 %v1372
  %v1530 = vunpack.c.l.b16 %v1374
  %v1531 = vunpack.c.l.b16 %v1375
  %v1532 = vunpack.c.l.b16 %v1377
  %v1533 = vunpack.c.l.b16 %v1378
  %v1534 = vunpack.c.l.b16 %v1380
  %v1535 = vunpack.c.l.b16 %v1381
  %v1536 = vunpack.c.l.b16 %v1383
  %v1537 = vunpack.c.l.b16 %v1384
  %v1538 = vunpack.c.l.b16 %v1386
  %v1539 = vunpack.c.l.b16 %v1387
  %v1540 = vunpack.c.l.b16 %v1389
  %v1541 = vunpack.c.l.b16 %v1390
  %v1542 = vunpack.c.l.b16 %v1392
  %v1543 = vunpack.c.l.b16 %v1393
  %v1544 = vunpack.c.l.b16 %v1395
  %v1545 = vunpack.c.l.b16 %v1396
  %v1546 = vunpack.c.l.b16 %v1398
  %v1547 = vunpack.c.l.b16 %v1399
  %v1548 = vunpack.c.l.b16 %v1401
  %v1549 = vunpack.c.l.b16 %v1402
  %v1550 = vunpack.c.l.b16 %v1404
  %v1551 = vunpack.c.l.b16 %v1405
  %v1552 = vunpack.c.l.b16 %v1407
  %v1553 = vunpack.c.l.b16 %v1408
  %v1554 = vunpack.c.l.b16 %v1410
  %v1555 = vunpack.c.l.b16 %v1411
  %v1556 = vunpack.c.l.b16 %v1413
  %v1557 = vunpack.c.l.b16 %v1414
  %v1558 = vunpack.c.l.b16 %v1416
  %v1559 = vunpack.c.l.b16 %v1417
  %v1560 = vunpack.c.l.b16 %v1419
  %v1561 = vunpack.c.l.b16 %v1420
  %v1562 = vunpack.c.l.b16 %v1422
  %v1563 = vunpack.c.l.b16 %v1423
  %v1564 = vunpack.c.l.b16 %v1425
  %v1565 = vunpack.c.l.b16 %v1426
  %v1566 = vunpack.c.l.b16 %v1428
  %v1567 = vunpack.c.l.b16 %v1429
  %v1568 = vunpack.c.l.b16 %v1431
  %v1569 = vunpack.c.l.b16 %v1432
  %v1570 = vunpack.c.l.b16 %v1434
  %v1571 = vunpack.c.l.b16 %v1435
  %v1572 = vunpack.c.l.b16 %v1437
  %v1573 = vunpack.c.l.b16 %v1438
  %v1574 = vunpack.c.l.b16 %v1440
  %v1575 = vunpack.c.l.b16 %v1441
  %v1576 = vunpack.c.l.b16 %v1443
  %v1577 = vunpack.c.l.b16 %v1444
  %v1578 = vunpack.c.l.b16 %v1446
  %v1579 = vunpack.c.l.b16 %v1447
  %v1580 = vunpack.c.l.b16 %v1449
  %v1581 = vunpack.c.l.b16 %v1450
  %v1582 = vunpack.c.l.b16 %v1452
  %v1583 = vunpack.c.l.b16 %v1453
  %v1584 = vunpack.c.l.b16 %v1455
  %v1585 = vunpack.c.l.b16 %v1456
  %v1586 = vpack.c.b16 %v1523, %v1522
  %v1587 = vpack.c.b16 %v1525, %v1524
  %v1588 = vpack.c.b16 %v1527, %v1526
  %v1589 = vpack.c.b16 %v1529, %v1528
  %v1590 = vpack.c.b16 %v1531, %v1530
  %v1591 = vpack.c.b16 %v1533, %v1532
  %v1592 = vpack.c.b16 %v1535, %v1534
  %v1593 = vpack.c.b16 %v1537, %v1536
  %v1594 = vpack.c.b16 %v1539, %v1538
  %v1595 = vpack.c.b16 %v1541, %v1540
  %v1596 = vpack.c.b16 %v1543, %v1542
  %v1597 = vpack.c.b16 %v1545, %v1544
  %v1598 = vpack.c.b16 %v1547, %v1546
  %v1599 = vpack.c.b16 %v1549, %v1548
  %v1600 = vpack.c.b16 %v1551, %v1550
  %v1601 = vpack.c.b16 %v1553, %v1552
  %v1602 = vpack.c.b16 %v1555, %v1554
  %v1603 = vpack.c.b16 %v1557, %v1556
  %v1604 = vpack.c.b16 %v1559, %v1558
  %v1605 = vpack.c.b16 %v1561, %v1560
  %v1606 = vpack.c.b16 %v1563, %v1562
  %v1607 = vpack.c.b16 %v1565, %v1564
  %v1608 = vpack.c.b16 %v1567, %v1566
  %v1609 = vpack.c.b16 %v1569, %v1568
  %v1610 = vpack.c.b16 %v1571, %v1570
  %v1611 = vpack.c.b16 %v1573, %v1572
  %v1612 = vpack.c.b16 %v1575, %v1574
  %v1613 = vpack.c.b16 %v1577, %v1576
  %v1614 = vpack.c.b16 %v1579, %v1578
  %v1615 = vpack.c.b16 %v1581, %v1580
  %v1616 = vpack.c.b16 %v1583, %v1582
  %v1617 = vpack.c.b16 %v1585, %v1584
  %v1682 = vunpack.c.l.b16 %v1364
  %v1683 = vunpack.c.l.b16 %v1367
  %v1684 = vunpack.c.l.b16 %v1370
  %v1685 = vunpack.c.l.b16 %v1373
  %v1686 = vunpack.c.l.b16 %v1376
  %v1687 = vunpack.c.l.b16 %v1379
  %v1688 = vunpack.c.l.b16 %v1382
  %v1689 = vunpack.c.l.b16 %v1385
  %v1690 = vunpack.c.l.b16 %v1388
  %v1691 = vunpack.c.l.b16 %v1391
  %v1692 = vunpack.c.l.b16 %v1394
  %v1693 = vunpack.c.l.b16 %v1397
  %v1694 = vunpack.c.l.b16 %v1400
  %v1695 = vunpack.c.l.b16 %v1403
  %v1696 = vunpack.c.l.b16 %v1406
  %v1697 = vunpack.c.l.b16 %v1409
  %v1698 = vunpack.c.l.b16 %v1412
  %v1699 = vunpack.c.l.b16 %v1415
  %v1700 = vunpack.c.l.b16 %v1418
  %v1701 = vunpack.c.l.b16 %v1421
  %v1702 = vunpack.c.l.b16 %v1424
  %v1703 = vunpack.c.l.b16 %v1427
  %v1704 = vunpack.c.l.b16 %v1430
  %v1705 = vunpack.c.l.b16 %v1433
  %v1706 = vunpack.c.l.b16 %v1436
  %v1707 = vunpack.c.l.b16 %v1439
  %v1708 = vunpack.c.l.b16 %v1442
  %v1709 = vunpack.c.l.b16 %v1445
  %v1710 = vunpack.c.l.b16 %v1448
  %v1711 = vunpack.c.l.b16 %v1451
  %v1712 = vunpack.c.l.b16 %v1454
  %v1713 = vunpack.c.l.b16 %v1457
  %v1714 = vpack.c.b16 %v1682, %v1682
  %v1715 = vpack.c.b16 %v1683, %v1683
  %v1716 = vpack.c.b16 %v1684, %v1684
  %v1717 = vpack.c.b16 %v1685, %v1685
  %v1718 = vpack.c.b16 %v1686, %v1686
  %v1719 = vpack.c.b16 %v1687, %v1687
  %v1720 = vpack.c.b16 %v1688, %v1688
  %v1721 = vpack.c.b16 %v1689, %v1689
  %v1722 = vpack.c.b16 %v1690, %v1690
  %v1723 = vpack.c.b16 %v1691, %v1691
  %v1724 = vpack.c.b16 %v1692, %v1692
  %v1725 = vpack.c.b16 %v1693, %v1693
  %v1726 = vpack.c.b16 %v1694, %v1694
  %v1727 = vpack.c.b16 %v1695, %v1695
  %v1728 = vpack.c.b16 %v1696, %v1696
  %v1729 = vpack.c.b16 %v1697, %v1697
  %v1730 = vpack.c.b16 %v1698, %v1698
  %v1731 = vpack.c.b16 %v1699, %v1699
  %v1732 = vpack.c.b16 %v1700, %v1700
  %v1733 = vpack.c.b16 %v1701, %v1701
  %v1734 = vpack.c.b16 %v1702, %v1702
  %v1735 = vpack.c.b16 %v1703, %v1703
  %v1736 = vpack.c.b16 %v1704, %v1704
  %v1737 = vpack.c.b16 %v1705, %v1705
  %v1738 = vpack.c.b16 %v1706, %v1706
  %v1739 = vpack.c.b16 %v1707, %v1707
  %v1740 = vpack.c.b16 %v1708, %v1708
  %v1741 = vpack.c.b16 %v1709, %v1709
  %v1742 = vpack.c.b16 %v1710, %v1710
  %v1743 = vpack.c.b16 %v1711, %v1711
  %v1744 = vpack.c.b16 %v1712, %v1712
  %v1745 = vpack.c.b16 %v1713, %v1713
  %vm1746 = vsmask.f32 7424
  %v1748 = vshrl.u32 %v1586, 16
  %v1750 = vshll.u32 %v1586, 16
  %v1752 = vrot.slane %v1750, 1
  %v1753 = vor.u32 %v1748, %v1752
  %v1755 = vshll.u32 %v1714, 16
  %v1757 = vrot.slane %v1755, 1
  %v1758 = vsel %vm1746, %v1753, %v1757
  %v1760 = vshrl.u32 %v1587, 16
  %v1762 = vshll.u32 %v1587, 16
  %v1764 = vrot.slane %v1762, 1
  %v1765 = vor.u32 %v1760, %v1764
  %v1767 = vshll.u32 %v1715, 16
  %v1769 = vrot.slane %v1767, 1
  %v1770 = vsel %vm1746, %v1765, %v1769
  %v1772 = vshrl.u32 %v1588, 16
  %v1774 = vshll.u32 %v1588, 16
  %v1776 = vrot.slane %v1774, 1
  %v1777 = vor.u32 %v1772, %v1776
  %v1779 = vshll.u32 %v1716, 16
  %v1781 = vrot.slane %v1779, 1
  %v1782 = vsel %vm1746, %v1777, %v1781
  %v1784 = vshrl.u32 %v1589, 16
  %v1786 = vshll.u32 %v1589, 16
  %v1788 = vrot.slane %v1786, 1
  %v1789 = vor.u32 %v1784, %v1788
  %v1791 = vshll.u32 %v1717, 16
  %v1793 = vrot.slane %v1791, 1
  %v1794 = vsel %vm1746, %v1789, %v1793
  %v1796 = vshrl.u32 %v1590, 16
  %v1798 = vshll.u32 %v1590, 16
  %v1800 = vrot.slane %v1798, 1
  %v1801 = vor.u32 %v1796, %v1800
  %v1803 = vshll.u32 %v1718, 16
  %v1805 = vrot.slane %v1803, 1
  %v1806 = vsel %vm1746, %v1801, %v1805
  %v1808 = vshrl.u32 %v1591, 16
  %v1810 = vshll.u32 %v1591, 16
  %v1812 = vrot.slane %v1810, 1
  %v1813 = vor.u32 %v1808, %v1812
  %v1815 = vshll.u32 %v1719, 16
  %v1817 = vrot.slane %v1815, 1
  %v1818 = vsel %vm1746, %v1813, %v1817
  %v1820 = vshrl.u32 %v1592, 16
  %v1822 = vshll.u32 %v1592, 16
  %v1824 = vrot.slane %v1822, 1
  %v1825 = vor.u32 %v1820, %v1824
  %v1827 = vshll.u32 %v1720, 16
  %v1829 = vrot.slane %v1827, 1
  %v1830 = vsel %vm1746, %v1825, %v1829
  %v1832 = vshrl.u32 %v1593, 16
  %v1834 = vshll.u32 %v1593, 16
  %v1836 = vrot.slane %v1834, 1
  %v1837 = vor.u32 %v1832, %v1836
  %v1839 = vshll.u32 %v1721, 16
  %v1841 = vrot.slane %v1839, 1
  %v1842 = vsel %vm1746, %v1837, %v1841
  %v1844 = vshrl.u32 %v1594, 16
  %v1846 = vshll.u32 %v1594, 16
  %v1848 = vrot.slane %v1846, 1
  %v1849 = vor.u32 %v1844, %v1848
  %v1851 = vshll.u32 %v1722, 16
  %v1853 = vrot.slane %v1851, 1
  %v1854 = vsel %vm1746, %v1849, %v1853
  %v1856 = vshrl.u32 %v1595, 16
  %v1858 = vshll.u32 %v1595, 16
  %v1860 = vrot.slane %v1858, 1
  %v1861 = vor.u32 %v1856, %v1860
  %v1863 = vshll.u32 %v1723, 16
  %v1865 = vrot.slane %v1863, 1
  %v1866 = vsel %vm1746, %v1861, %v1865
  %v1868 = vshrl.u32 %v1596, 16
  %v1870 = vshll.u32 %v1596, 16
  %v1872 = vrot.slane %v1870, 1
  %v1873 = vor.u32 %v1868, %v1872
  %v1875 = vshll.u32 %v1724, 16
  %v1877 = vrot.slane %v1875, 1
  %v1878 = vsel %vm1746, %v1873, %v1877
  %v1880 = vshrl.u32 %v1597, 16
  %v1882 = vshll.u32 %v1597, 16
  %v1884 = vrot.slane %v1882, 1
  %v1885 = vor.u32 %v1880, %v1884
  %v1887 = vshll.u32 %v1725, 16
  %v1889 = vrot.slane %v1887, 1
  %v1890 = vsel %vm1746, %v1885, %v1889
  %v1892 = vshrl.u32 %v1598, 16
  %v1894 = vshll.u32 %v1598, 16
  %v1896 = vrot.slane %v1894, 1
  %v1897 = vor.u32 %v1892, %v1896
  %v1899 = vshll.u32 %v1726, 16
  %v1901 = vrot.slane %v1899, 1
  %v1902 = vsel %vm1746, %v1897, %v1901
  %v1904 = vshrl.u32 %v1599, 16
  %v1906 = vshll.u32 %v1599, 16
  %v1908 = vrot.slane %v1906, 1
  %v1909 = vor.u32 %v1904, %v1908
  %v1911 = vshll.u32 %v1727, 16
  %v1913 = vrot.slane %v1911, 1
  %v1914 = vsel %vm1746, %v1909, %v1913
  %v1916 = vshrl.u32 %v1600, 16
  %v1918 = vshll.u32 %v1600, 16
  %v1920 = vrot.slane %v1918, 1
  %v1921 = vor.u32 %v1916, %v1920
  %v1923 = vshll.u32 %v1728, 16
  %v1925 = vrot.slane %v1923, 1
  %v1926 = vsel %vm1746, %v1921, %v1925
  %v1928 = vshrl.u32 %v1601, 16
  %v1930 = vshll.u32 %v1601, 16
  %v1932 = vrot.slane %v1930, 1
  %v1933 = vor.u32 %v1928, %v1932
  %v1935 = vshll.u32 %v1729, 16
  %v1937 = vrot.slane %v1935, 1
  %v1938 = vsel %vm1746, %v1933, %v1937
  %v1940 = vshrl.u32 %v1602, 16
  %v1942 = vshll.u32 %v1602, 16
  %v1944 = vrot.slane %v1942, 1
  %v1945 = vor.u32 %v1940, %v1944
  %v1947 = vshll.u32 %v1730, 16
  %v1949 = vrot.slane %v1947, 1
  %v1950 = vsel %vm1746, %v1945, %v1949
  %v1952 = vshrl.u32 %v1603, 16
  %v1954 = vshll.u32 %v1603, 16
  %v1956 = vrot.slane %v1954, 1
  %v1957 = vor.u32 %v1952, %v1956
  %v1959 = vshll.u32 %v1731, 16
  %v1961 = vrot.slane %v1959, 1
  %v1962 = vsel %vm1746, %v1957, %v1961
  %v1964 = vshrl.u32 %v1604, 16
  %v1966 = vshll.u32 %v1604, 16
  %v1968 = vrot.slane %v1966, 1
  %v1969 = vor.u32 %v1964, %v1968
  %v1971 = vshll.u32 %v1732, 16
  %v1973 = vrot.slane %v1971, 1
  %v1974 = vsel %vm1746, %v1969, %v1973
  %v1976 = vshrl.u32 %v1605, 16
  %v1978 = vshll.u32 %v1605, 16
  %v1980 = vrot.slane %v1978, 1
  %v1981 = vor.u32 %v1976, %v1980
  %v1983 = vshll.u32 %v1733, 16
  %v1985 = vrot.slane %v1983, 1
  %v1986 = vsel %vm1746, %v1981, %v1985
  %v1988 = vshrl.u32 %v1606, 16
  %v1990 = vshll.u32 %v1606, 16
  %v1992 = vrot.slane %v1990, 1
  %v1993 = vor.u32 %v1988, %v1992
  %v1995 = vshll.u32 %v1734, 16
  %v1997 = vrot.slane %v1995, 1
  %v1998 = vsel %vm1746, %v1993, %v1997
  %v2000 = vshrl.u32 %v1607, 16
  %v2002 = vshll.u32 %v1607, 16
  %v2004 = vrot.slane %v2002, 1
  %v2005 = vor.u32 %v2000, %v2004
  %v2007 = vshll.u32 %v1735, 16
  %v2009 = vrot.slane %v2007, 1
  %v2010 = vsel %vm1746, %v2005, %v2009
  %v2012 = vshrl.u32 %v1608, 16
  %v2014 = vshll.u32 %v1608, 16
  %v2016 = vrot.slane %v2014, 1
  %v2017 = vor.u32 %v2012, %v2016
  %v2019 = vshll.u32 %v1736, 16
  %v2021 = vrot.slane %v2019, 1
  %v2022 = vsel %vm1746, %v2017, %v2021
  %v2024 = vshrl.u32 %v1609, 16
  %v2026 = vshll.u32 %v1609, 16
  %v2028 = vrot.slane %v2026, 1
  %v2029 = vor.u32 %v2024, %v2028
  %v2031 = vshll.u32 %v1737, 16
  %v2033 = vrot.slane %v2031, 1
  %v2034 = vsel %vm1746, %v2029, %v2033
  %v2036 = vshrl.u32 %v1610, 16
  %v2038 = vshll.u32 %v1610, 16
  %v2040 = vrot.slane %v2038, 1
  %v2041 = vor.u32 %v2036, %v2040
  %v2043 = vshll.u32 %v1738, 16
  %v2045 = vrot.slane %v2043, 1
  %v2046 = vsel %vm1746, %v2041, %v2045
  %v2048 = vshrl.u32 %v1611, 16
  %v2050 = vshll.u32 %v1611, 16
  %v2052 = vrot.slane %v2050, 1
  %v2053 = vor.u32 %v2048, %v2052
  %v2055 = vshll.u32 %v1739, 16
  %v2057 = vrot.slane %v2055, 1
  %v2058 = vsel %vm1746, %v2053, %v2057
  %v2060 = vshrl.u32 %v1612, 16
  %v2062 = vshll.u32 %v1612, 16
  %v2064 = vrot.slane %v2062, 1
  %v2065 = vor.u32 %v2060, %v2064
  %v2067 = vshll.u32 %v1740, 16
  %v2069 = vrot.slane %v2067, 1
  %v2070 = vsel %vm1746, %v2065, %v2069
  %v2072 = vshrl.u32 %v1613, 16
  %v2074 = vshll.u32 %v1613, 16
  %v2076 = vrot.slane %v2074, 1
  %v2077 = vor.u32 %v2072, %v2076
  %v2079 = vshll.u32 %v1741, 16
  %v2081 = vrot.slane %v2079, 1
  %v2082 = vsel %vm1746, %v2077, %v2081
  %v2084 = vshrl.u32 %v1614, 16
  %v2086 = vshll.u32 %v1614, 16
  %v2088 = vrot.slane %v2086, 1
  %v2089 = vor.u32 %v2084, %v2088
  %v2091 = vshll.u32 %v1742, 16
  %v2093 = vrot.slane %v2091, 1
  %v2094 = vsel %vm1746, %v2089, %v2093
  %v2096 = vshrl.u32 %v1615, 16
  %v2098 = vshll.u32 %v1615, 16
  %v2100 = vrot.slane %v2098, 1
  %v2101 = vor.u32 %v2096, %v2100
  %v2103 = vshll.u32 %v1743, 16
  %v2105 = vrot.slane %v2103, 1
  %v2106 = vsel %vm1746, %v2101, %v2105
  %v2108 = vshrl.u32 %v1616, 16
  %v2110 = vshll.u32 %v1616, 16
  %v2112 = vrot.slane %v2110, 1
  %v2113 = vor.u32 %v2108, %v2112
  %v2115 = vshll.u32 %v1744, 16
  %v2117 = vrot.slane %v2115, 1
  %v2118 = vsel %vm1746, %v2113, %v2117
  %v2120 = vshrl.u32 %v1617, 16
  %v2122 = vshll.u32 %v1617, 16
  %v2124 = vrot.slane %v2122, 1
  %v2125 = vor.u32 %v2120, %v2124
  %v2127 = vshll.u32 %v1745, 16
  %v2129 = vrot.slane %v2127, 1
  %v2130 = vsel %vm1746, %v2125, %v2129
  %vm2163 = vcmask 1046528
  %v2164 = vrot.slane %v1586, 1
  %v2165 = vrot.slane %v1714, 1
  %v2166 = vsel %vm2163, %v2164, %v2165
  %v2167 = vrot.slane %v1587, 1
  %v2168 = vrot.slane %v1715, 1
  %v2169 = vsel %vm2163, %v2167, %v2168
  %v2170 = vrot.slane %v1588, 1
  %v2171 = vrot.slane %v1716, 1
  %v2172 = vsel %vm2163, %v2170, %v2171
  %v2173 = vrot.slane %v1589, 1
  %v2174 = vrot.slane %v1717, 1
  %v2175 = vsel %vm2163, %v2173, %v2174
  %v2176 = vrot.slane %v1590, 1
  %v2177 = vrot.slane %v1718, 1
  %v2178 = vsel %vm2163, %v2176, %v2177
  %v2179 = vrot.slane %v1591, 1
  %v2180 = vrot.slane %v1719, 1
  %v2181 = vsel %vm2163, %v2179, %v2180
  %v2182 = vrot.slane %v1592, 1
  %v2183 = vrot.slane %v1720, 1
  %v2184 = vsel %vm2163, %v2182, %v2183
  %v2185 = vrot.slane %v1593, 1
  %v2186 = vrot.slane %v1721, 1
  %v2187 = vsel %vm2163, %v2185, %v2186
  %v2188 = vrot.slane %v1594, 1
  %v2189 = vrot.slane %v1722, 1
  %v2190 = vsel %vm2163, %v2188, %v2189
  %v2191 = vrot.slane %v1595, 1
  %v2192 = vrot.slane %v1723, 1
  %v2193 = vsel %vm2163, %v2191, %v2192
  %v2194 = vrot.slane %v1596, 1
  %v2195 = vrot.slane %v1724, 1
  %v2196 = vsel %vm2163, %v2194, %v2195
  %v2197 = vrot.slane %v1597, 1
  %v2198 = vrot.slane %v1725, 1
  %v2199 = vsel %vm2163, %v2197, %v2198
  %v2200 = vrot.slane %v1598, 1
  %v2201 = vrot.slane %v1726, 1
  %v2202 = vsel %vm2163, %v2200, %v2201
  %v2203 = vrot.slane %v1599, 1
  %v2204 = vrot.slane %v1727, 1
  %v2205 = vsel %vm2163, %v2203, %v2204
  %v2206 = vrot.slane %v1600, 1
  %v2207 = vrot.slane %v1728, 1
  %v2208 = vsel %vm2163, %v2206, %v2207
  %v2209 = vrot.slane %v1601, 1
  %v2210 = vrot.slane %v1729, 1
  %v2211 = vsel %vm2163, %v2209, %v2210
  %v2212 = vrot.slane %v1602, 1
  %v2213 = vrot.slane %v1730, 1
  %v2214 = vsel %vm2163, %v2212, %v2213
  %v2215 = vrot.slane %v1603, 1
  %v2216 = vrot.slane %v1731, 1
  %v2217 = vsel %vm2163, %v2215, %v2216
  %v2218 = vrot.slane %v1604, 1
  %v2219 = vrot.slane %v1732, 1
  %v2220 = vsel %vm2163, %v2218, %v2219
  %v2221 = vrot.slane %v1605, 1
  %v2222 = vrot.slane %v1733, 1
  %v2223 = vsel %vm2163, %v2221, %v2222
  %v2224 = vrot.slane %v1606, 1
  %v2225 = vrot.slane %v1734, 1
  %v2226 = vsel %vm2163, %v2224, %v2225
  %v2227 = vrot.slane %v1607, 1
  %v2228 = vrot.slane %v1735, 1
  %v2229 = vsel %vm2163, %v2227, %v2228
  %v2230 = vrot.slane %v1608, 1
  %v2231 = vrot.slane %v1736, 1
  %v2232 = vsel %vm2163, %v2230, %v2231
  %v2233 = vrot.slane %v1609, 1
  %v2234 = vrot.slane %v1737, 1
  %v2235 = vsel %vm2163, %v2233, %v2234
  %v2236 = vrot.slane %v1610, 1
  %v2237 = vrot.slane %v1738, 1
  %v2238 = vsel %vm2163, %v2236, %v2237
  %v2239 = vrot.slane %v1611, 1
  %v2240 = vrot.slane %v1739, 1
  %v2241 = vsel %vm2163, %v2239, %v2240
  %v2242 = vrot.slane %v1612, 1
  %v2243 = vrot.slane %v1740, 1
  %v2244 = vsel %vm2163, %v2242, %v2243
  %v2245 = vrot.slane %v1613, 1
  %v2246 = vrot.slane %v1741, 1
  %v2247 = vsel %vm2163, %v2245, %v2246
  %v2248 = vrot.slane %v1614, 1
  %v2249 = vrot.slane %v1742, 1
  %v2250 = vsel %vm2163, %v2248, %v2249
  %v2251 = vrot.slane %v1615, 1
  %v2252 = vrot.slane %v1743, 1
  %v2253 = vsel %vm2163, %v2251, %v2252
  %v2254 = vrot.slane %v1616, 1
  %v2255 = vrot.slane %v1744, 1
  %v2256 = vsel %vm2163, %v2254, %v2255
  %v2257 = vrot.slane %v1617, 1
  %v2258 = vrot.slane %v1745, 1
  %v2259 = vsel %vm2163, %v2257, %v2258
  %v2292 = vld [vmem:[%s1] sm:$0xf]
  %v2293 = vld [vmem:[%s1 + $0x4] sm:$0xf]
  %v2294 = vld [vmem:[%s1 + $0x8] sm:$0xf]
  %v2295 = vld [vmem:[%s1 + $0xc] sm:$0xf]
  %v2296 = vld [vmem:[%s1 + $0x10] sm:$0xf]
  %v2297 = vld [vmem:[%s1 + $0x14] sm:$0xf]
  %v2298 = vld [vmem:[%s1 + $0x18] sm:$0xf]
  %v2299 = vld [vmem:[%s1 + $0x1c] sm:$0xf]
  %v2300 = vld [vmem:[%s1 + $0x20] sm:$0xf]
  %v2301 = vld [vmem:[%s1 + $0x24] sm:$0xf]
  %v2302 = vld [vmem:[%s1 + $0x28] sm:$0xf]
  %v2303 = vld [vmem:[%s1 + $0x2c] sm:$0xf]
  %v2304 = vld [vmem:[%s1 + $0x30] sm:$0xf]
  %v2305 = vld [vmem:[%s1 + $0x34] sm:$0xf]
  %v2306 = vld [vmem:[%s1 + $0x38] sm:$0xf]
  %v2307 = vld [vmem:[%s1 + $0x3c] sm:$0xf]
  %v2308 = vld [vmem:[%s1 + $0x40] sm:$0xf]
  %v2309 = vld [vmem:[%s1 + $0x44] sm:$0xf]
  %v2310 = vld [vmem:[%s1 + $0x48] sm:$0xf]
  %v2311 = vld [vmem:[%s1 + $0x4c] sm:$0xf]
  %v2312 = vld [vmem:[%s1 + $0x50] sm:$0xf]
  %v2313 = vld [vmem:[%s1 + $0x54] sm:$0xf]
  %v2314 = vld [vmem:[%s1 + $0x58] sm:$0xf]
  %v2315 = vld [vmem:[%s1 + $0x5c] sm:$0xf]
  %v2316 = vld [vmem:[%s1 + $0x60] sm:$0xf]
  %v2317 = vld [vmem:[%s1 + $0x64] sm:$0xf]
  %v2318 = vld [vmem:[%s1 + $0x68] sm:$0xf]
  %v2319 = vld [vmem:[%s1 + $0x6c] sm:$0xf]
  %v2320 = vld [vmem:[%s1 + $0x70] sm:$0xf]
  %v2321 = vld [vmem:[%s1 + $0x74] sm:$0xf]
  %v2322 = vld [vmem:[%s1 + $0x78] sm:$0xf]
  %v2323 = vld [vmem:[%s1 + $0x7c] sm:$0xf]
  %v2324 = vld [vmem:[%s1 + $0x80] sm:$0xf]
  %v2325 = vld [vmem:[%s1 + $0x84] sm:$0xf]
  %v2326 = vld [vmem:[%s1 + $0x88] sm:$0xf]
  %v2327 = vld [vmem:[%s1 + $0x8c] sm:$0xf]
  %v2328 = vld [vmem:[%s1 + $0x90] sm:$0xf]
  %v2329 = vld [vmem:[%s1 + $0x94] sm:$0xf]
  %v2330 = vld [vmem:[%s1 + $0x98] sm:$0xf]
  %v2331 = vld [vmem:[%s1 + $0x9c] sm:$0xf]
  %v2332 = vld [vmem:[%s1 + $0xa0] sm:$0xf]
  %v2333 = vld [vmem:[%s1 + $0xa4] sm:$0xf]
  %v2334 = vld [vmem:[%s1 + $0xa8] sm:$0xf]
  %v2335 = vld [vmem:[%s1 + $0xac] sm:$0xf]
  %v2336 = vld [vmem:[%s1 + $0xb0] sm:$0xf]
  %v2337 = vld [vmem:[%s1 + $0xb4] sm:$0xf]
  %v2338 = vld [vmem:[%s1 + $0xb8] sm:$0xf]
  %v2339 = vld [vmem:[%s1 + $0xbc] sm:$0xf]
  %v2340 = vld [vmem:[%s40] sm:$0xf]
  %v2341 = vld [vmem:[%s40 + $0x4] sm:$0xf]
  %v2342 = vld [vmem:[%s40 + $0x8] sm:$0x1]
  %v2343 = vld [vmem:[%s40 + $0xc] sm:$0xf]
  %v2344 = vld [vmem:[%s40 + $0x10] sm:$0xf]
  %v2345 = vld [vmem:[%s40 + $0x14] sm:$0x1]
  %v2346 = vld [vmem:[%s40 + $0x18] sm:$0xf]
  %v2347 = vld [vmem:[%s40 + $0x1c] sm:$0xf]
  %v2348 = vld [vmem:[%s40 + $0x20] sm:$0x1]
  %v2349 = vld [vmem:[%s40 + $0x24] sm:$0xf]
  %v2350 = vld [vmem:[%s40 + $0x28] sm:$0xf]
  %v2351 = vld [vmem:[%s40 + $0x2c] sm:$0x1]
  %v2352 = vld [vmem:[%s40 + $0x30] sm:$0xf]
  %v2353 = vld [vmem:[%s40 + $0x34] sm:$0xf]
  %v2354 = vld [vmem:[%s40 + $0x38] sm:$0x1]
  %v2355 = vld [vmem:[%s40 + $0x3c] sm:$0xf]
  %v2356 = vld [vmem:[%s40 + $0x40] sm:$0xf]
  %v2357 = vld [vmem:[%s40 + $0x44] sm:$0x1]
  %v2358 = vld [vmem:[%s40 + $0x48] sm:$0xf]
  %v2359 = vld [vmem:[%s40 + $0x4c] sm:$0xf]
  %v2360 = vld [vmem:[%s40 + $0x50] sm:$0x1]
  %v2361 = vld [vmem:[%s40 + $0x54] sm:$0xf]
  %v2362 = vld [vmem:[%s40 + $0x58] sm:$0xf]
  %v2363 = vld [vmem:[%s40 + $0x5c] sm:$0x1]
  %v2364 = vld [vmem:[%s40 + $0x60] sm:$0xf]
  %v2365 = vld [vmem:[%s40 + $0x64] sm:$0xf]
  %v2366 = vld [vmem:[%s40 + $0x68] sm:$0x1]
  %v2367 = vld [vmem:[%s40 + $0x6c] sm:$0xf]
  %v2368 = vld [vmem:[%s40 + $0x70] sm:$0xf]
  %v2369 = vld [vmem:[%s40 + $0x74] sm:$0x1]
  %v2370 = vld [vmem:[%s40 + $0x78] sm:$0xf]
  %v2371 = vld [vmem:[%s40 + $0x7c] sm:$0xf]
  %v2372 = vld [vmem:[%s40 + $0x80] sm:$0x1]
  %v2373 = vld [vmem:[%s40 + $0x84] sm:$0xf]
  %v2374 = vld [vmem:[%s40 + $0x88] sm:$0xf]
  %v2375 = vld [vmem:[%s40 + $0x8c] sm:$0x1]
  %v2376 = vld [vmem:[%s40 + $0x90] sm:$0xf]
  %v2377 = vld [vmem:[%s40 + $0x94] sm:$0xf]
  %v2378 = vld [vmem:[%s40 + $0x98] sm:$0x1]
  %v2379 = vld [vmem:[%s40 + $0x9c] sm:$0xf]
  %v2380 = vld [vmem:[%s40 + $0xa0] sm:$0xf]
  %v2381 = vld [vmem:[%s40 + $0xa4] sm:$0x1]
  %v2382 = vld [vmem:[%s40 + $0xa8] sm:$0xf]
  %v2383 = vld [vmem:[%s40 + $0xac] sm:$0xf]
  %v2384 = vld [vmem:[%s40 + $0xb0] sm:$0x1]
  %v2385 = vld [vmem:[%s40 + $0xb4] sm:$0xf]
  %v2386 = vld [vmem:[%s40 + $0xb8] sm:$0xf]
  %v2387 = vld [vmem:[%s40 + $0xbc] sm:$0x1]
  %v2388 = vld [vmem:[%s40 + $0xd8] sm:$0xf]
  %v2389 = vld [vmem:[%s40 + $0xdc] sm:$0xf]
  %v2390 = vld [vmem:[%s40 + $0xe0] sm:$0x1]
  %v2391 = vld [vmem:[%s40 + $0xe4] sm:$0xf]
  %v2392 = vld [vmem:[%s40 + $0xe8] sm:$0xf]
  %v2393 = vld [vmem:[%s40 + $0xec] sm:$0x1]
  %v2394 = vld [vmem:[%s40 + $0xf0] sm:$0xf]
  %v2395 = vld [vmem:[%s40 + $0xf4] sm:$0xf]
  %v2396 = vld [vmem:[%s40 + $0xf8] sm:$0x1]
  %v2397 = vld [vmem:[%s40 + $0xfc] sm:$0xf]
  %v2398 = vld [vmem:[%s40 + $0x100] sm:$0xf]
  %v2399 = vld [vmem:[%s40 + $0x104] sm:$0x1]
  %v2400 = vld [vmem:[%s40 + $0x108] sm:$0xf]
  %v2401 = vld [vmem:[%s40 + $0x10c] sm:$0xf]
  %v2402 = vld [vmem:[%s40 + $0x110] sm:$0x1]
  %v2403 = vld [vmem:[%s40 + $0x114] sm:$0xf]
  %v2404 = vld [vmem:[%s40 + $0x118] sm:$0xf]
  %v2405 = vld [vmem:[%s40 + $0x11c] sm:$0x1]
  %v2406 = vld [vmem:[%s40 + $0x120] sm:$0xf]
  %v2407 = vld [vmem:[%s40 + $0x124] sm:$0xf]
  %v2408 = vld [vmem:[%s40 + $0x128] sm:$0x1]
  %v2409 = vld [vmem:[%s40 + $0x12c] sm:$0xf]
  %v2410 = vld [vmem:[%s40 + $0x130] sm:$0xf]
  %v2411 = vld [vmem:[%s40 + $0x134] sm:$0x1]
  %v2412 = vld [vmem:[%s40 + $0x138] sm:$0xf]
  %v2413 = vld [vmem:[%s40 + $0x13c] sm:$0xf]
  %v2414 = vld [vmem:[%s40 + $0x140] sm:$0x1]
  %v2415 = vld [vmem:[%s40 + $0x144] sm:$0xf]
  %v2416 = vld [vmem:[%s40 + $0x148] sm:$0xf]
  %v2417 = vld [vmem:[%s40 + $0x14c] sm:$0x1]
  %v2418 = vld [vmem:[%s40 + $0x150] sm:$0xf]
  %v2419 = vld [vmem:[%s40 + $0x154] sm:$0xf]
  %v2420 = vld [vmem:[%s40 + $0x158] sm:$0x1]
  %v2421 = vld [vmem:[%s40 + $0x15c] sm:$0xf]
  %v2422 = vld [vmem:[%s40 + $0x160] sm:$0xf]
  %v2423 = vld [vmem:[%s40 + $0x164] sm:$0x1]
  %v2424 = vld [vmem:[%s40 + $0x168] sm:$0xf]
  %v2425 = vld [vmem:[%s40 + $0x16c] sm:$0xf]
  %v2426 = vld [vmem:[%s40 + $0x170] sm:$0x1]
  %v2427 = vld [vmem:[%s40 + $0x174] sm:$0xf]
  %v2428 = vld [vmem:[%s40 + $0x178] sm:$0xf]
  %v2429 = vld [vmem:[%s40 + $0x17c] sm:$0x1]
  %v2430 = vld [vmem:[%s40 + $0x180] sm:$0xf]
  %v2431 = vld [vmem:[%s40 + $0x184] sm:$0xf]
  %v2432 = vld [vmem:[%s40 + $0x188] sm:$0x1]
  %v2433 = vld [vmem:[%s40 + $0x18c] sm:$0xf]
  %v2434 = vld [vmem:[%s40 + $0x190] sm:$0xf]
  %v2435 = vld [vmem:[%s40 + $0x194] sm:$0x1]
  %v2500 = vunpack.c.l.b16 %v2340
  %v2501 = vunpack.c.l.b16 %v2341
  %v2502 = vunpack.c.l.b16 %v2343
  %v2503 = vunpack.c.l.b16 %v2344
  %v2504 = vunpack.c.l.b16 %v2346
  %v2505 = vunpack.c.l.b16 %v2347
  %v2506 = vunpack.c.l.b16 %v2349
  %v2507 = vunpack.c.l.b16 %v2350
  %v2508 = vunpack.c.l.b16 %v2352
  %v2509 = vunpack.c.l.b16 %v2353
  %v2510 = vunpack.c.l.b16 %v2355
  %v2511 = vunpack.c.l.b16 %v2356
  %v2512 = vunpack.c.l.b16 %v2358
  %v2513 = vunpack.c.l.b16 %v2359
  %v2514 = vunpack.c.l.b16 %v2361
  %v2515 = vunpack.c.l.b16 %v2362
  %v2516 = vunpack.c.l.b16 %v2364
  %v2517 = vunpack.c.l.b16 %v2365
  %v2518 = vunpack.c.l.b16 %v2367
  %v2519 = vunpack.c.l.b16 %v2368
  %v2520 = vunpack.c.l.b16 %v2370
  %v2521 = vunpack.c.l.b16 %v2371
  %v2522 = vunpack.c.l.b16 %v2373
  %v2523 = vunpack.c.l.b16 %v2374
  %v2524 = vunpack.c.l.b16 %v2376
  %v2525 = vunpack.c.l.b16 %v2377
  %v2526 = vunpack.c.l.b16 %v2379
  %v2527 = vunpack.c.l.b16 %v2380
  %v2528 = vunpack.c.l.b16 %v2382
  %v2529 = vunpack.c.l.b16 %v2383
  %v2530 = vunpack.c.l.b16 %v2385
  %v2531 = vunpack.c.l.b16 %v2386
  %v2532 = vunpack.c.l.b16 %v2388
  %v2533 = vunpack.c.l.b16 %v2389
  %v2534 = vunpack.c.l.b16 %v2391
  %v2535 = vunpack.c.l.b16 %v2392
  %v2536 = vunpack.c.l.b16 %v2394
  %v2537 = vunpack.c.l.b16 %v2395
  %v2538 = vunpack.c.l.b16 %v2397
  %v2539 = vunpack.c.l.b16 %v2398
  %v2540 = vunpack.c.l.b16 %v2400
  %v2541 = vunpack.c.l.b16 %v2401
  %v2542 = vunpack.c.l.b16 %v2403
  %v2543 = vunpack.c.l.b16 %v2404
  %v2544 = vunpack.c.l.b16 %v2406
  %v2545 = vunpack.c.l.b16 %v2407
  %v2546 = vunpack.c.l.b16 %v2409
  %v2547 = vunpack.c.l.b16 %v2410
  %v2548 = vunpack.c.l.b16 %v2412
  %v2549 = vunpack.c.l.b16 %v2413
  %v2550 = vunpack.c.l.b16 %v2415
  %v2551 = vunpack.c.l.b16 %v2416
  %v2552 = vunpack.c.l.b16 %v2418
  %v2553 = vunpack.c.l.b16 %v2419
  %v2554 = vunpack.c.l.b16 %v2421
  %v2555 = vunpack.c.l.b16 %v2422
  %v2556 = vunpack.c.l.b16 %v2424
  %v2557 = vunpack.c.l.b16 %v2425
  %v2558 = vunpack.c.l.b16 %v2427
  %v2559 = vunpack.c.l.b16 %v2428
  %v2560 = vunpack.c.l.b16 %v2430
  %v2561 = vunpack.c.l.b16 %v2431
  %v2562 = vunpack.c.l.b16 %v2433
  %v2563 = vunpack.c.l.b16 %v2434
  %v2564 = vpack.c.b16 %v2501, %v2500
  %v2565 = vpack.c.b16 %v2503, %v2502
  %v2566 = vpack.c.b16 %v2505, %v2504
  %v2567 = vpack.c.b16 %v2507, %v2506
  %v2568 = vpack.c.b16 %v2509, %v2508
  %v2569 = vpack.c.b16 %v2511, %v2510
  %v2570 = vpack.c.b16 %v2513, %v2512
  %v2571 = vpack.c.b16 %v2515, %v2514
  %v2572 = vpack.c.b16 %v2517, %v2516
  %v2573 = vpack.c.b16 %v2519, %v2518
  %v2574 = vpack.c.b16 %v2521, %v2520
  %v2575 = vpack.c.b16 %v2523, %v2522
  %v2576 = vpack.c.b16 %v2525, %v2524
  %v2577 = vpack.c.b16 %v2527, %v2526
  %v2578 = vpack.c.b16 %v2529, %v2528
  %v2579 = vpack.c.b16 %v2531, %v2530
  %v2580 = vpack.c.b16 %v2533, %v2532
  %v2581 = vpack.c.b16 %v2535, %v2534
  %v2582 = vpack.c.b16 %v2537, %v2536
  %v2583 = vpack.c.b16 %v2539, %v2538
  %v2584 = vpack.c.b16 %v2541, %v2540
  %v2585 = vpack.c.b16 %v2543, %v2542
  %v2586 = vpack.c.b16 %v2545, %v2544
  %v2587 = vpack.c.b16 %v2547, %v2546
  %v2588 = vpack.c.b16 %v2549, %v2548
  %v2589 = vpack.c.b16 %v2551, %v2550
  %v2590 = vpack.c.b16 %v2553, %v2552
  %v2591 = vpack.c.b16 %v2555, %v2554
  %v2592 = vpack.c.b16 %v2557, %v2556
  %v2593 = vpack.c.b16 %v2559, %v2558
  %v2594 = vpack.c.b16 %v2561, %v2560
  %v2595 = vpack.c.b16 %v2563, %v2562
  %v2660 = vunpack.c.l.b16 %v2342
  %v2661 = vunpack.c.l.b16 %v2345
  %v2662 = vunpack.c.l.b16 %v2348
  %v2663 = vunpack.c.l.b16 %v2351
  %v2664 = vunpack.c.l.b16 %v2354
  %v2665 = vunpack.c.l.b16 %v2357
  %v2666 = vunpack.c.l.b16 %v2360
  %v2667 = vunpack.c.l.b16 %v2363
  %v2668 = vunpack.c.l.b16 %v2366
  %v2669 = vunpack.c.l.b16 %v2369
  %v2670 = vunpack.c.l.b16 %v2372
  %v2671 = vunpack.c.l.b16 %v2375
  %v2672 = vunpack.c.l.b16 %v2378
  %v2673 = vunpack.c.l.b16 %v2381
  %v2674 = vunpack.c.l.b16 %v2384
  %v2675 = vunpack.c.l.b16 %v2387
  %v2676 = vunpack.c.l.b16 %v2390
  %v2677 = vunpack.c.l.b16 %v2393
  %v2678 = vunpack.c.l.b16 %v2396
  %v2679 = vunpack.c.l.b16 %v2399
  %v2680 = vunpack.c.l.b16 %v2402
  %v2681 = vunpack.c.l.b16 %v2405
  %v2682 = vunpack.c.l.b16 %v2408
  %v2683 = vunpack.c.l.b16 %v2411
  %v2684 = vunpack.c.l.b16 %v2414
  %v2685 = vunpack.c.l.b16 %v2417
  %v2686 = vunpack.c.l.b16 %v2420
  %v2687 = vunpack.c.l.b16 %v2423
  %v2688 = vunpack.c.l.b16 %v2426
  %v2689 = vunpack.c.l.b16 %v2429
  %v2690 = vunpack.c.l.b16 %v2432
  %v2691 = vunpack.c.l.b16 %v2435
  %v2692 = vpack.c.b16 %v2660, %v2660
  %v2693 = vpack.c.b16 %v2661, %v2661
  %v2694 = vpack.c.b16 %v2662, %v2662
  %v2695 = vpack.c.b16 %v2663, %v2663
  %v2696 = vpack.c.b16 %v2664, %v2664
  %v2697 = vpack.c.b16 %v2665, %v2665
  %v2698 = vpack.c.b16 %v2666, %v2666
  %v2699 = vpack.c.b16 %v2667, %v2667
  %v2700 = vpack.c.b16 %v2668, %v2668
  %v2701 = vpack.c.b16 %v2669, %v2669
  %v2702 = vpack.c.b16 %v2670, %v2670
  %v2703 = vpack.c.b16 %v2671, %v2671
  %v2704 = vpack.c.b16 %v2672, %v2672
  %v2705 = vpack.c.b16 %v2673, %v2673
  %v2706 = vpack.c.b16 %v2674, %v2674
  %v2707 = vpack.c.b16 %v2675, %v2675
  %v2708 = vpack.c.b16 %v2676, %v2676
  %v2709 = vpack.c.b16 %v2677, %v2677
  %v2710 = vpack.c.b16 %v2678, %v2678
  %v2711 = vpack.c.b16 %v2679, %v2679
  %v2712 = vpack.c.b16 %v2680, %v2680
  %v2713 = vpack.c.b16 %v2681, %v2681
  %v2714 = vpack.c.b16 %v2682, %v2682
  %v2715 = vpack.c.b16 %v2683, %v2683
  %v2716 = vpack.c.b16 %v2684, %v2684
  %v2717 = vpack.c.b16 %v2685, %v2685
  %v2718 = vpack.c.b16 %v2686, %v2686
  %v2719 = vpack.c.b16 %v2687, %v2687
  %v2720 = vpack.c.b16 %v2688, %v2688
  %v2721 = vpack.c.b16 %v2689, %v2689
  %v2722 = vpack.c.b16 %v2690, %v2690
  %v2723 = vpack.c.b16 %v2691, %v2691
  %v2725 = vshrl.u32 %v2564, 16
  %v2727 = vshll.u32 %v2564, 16
  %v2729 = vrot.slane %v2727, 1
  %v2730 = vor.u32 %v2725, %v2729
  %v2732 = vshll.u32 %v2692, 16
  %v2734 = vrot.slane %v2732, 1
  %v2735 = vsel %vm1746, %v2730, %v2734
  %v2737 = vshrl.u32 %v2565, 16
  %v2739 = vshll.u32 %v2565, 16
  %v2741 = vrot.slane %v2739, 1
  %v2742 = vor.u32 %v2737, %v2741
  %v2744 = vshll.u32 %v2693, 16
  %v2746 = vrot.slane %v2744, 1
  %v2747 = vsel %vm1746, %v2742, %v2746
  %v2749 = vshrl.u32 %v2566, 16
  %v2751 = vshll.u32 %v2566, 16
  %v2753 = vrot.slane %v2751, 1
  %v2754 = vor.u32 %v2749, %v2753
  %v2756 = vshll.u32 %v2694, 16
  %v2758 = vrot.slane %v2756, 1
  %v2759 = vsel %vm1746, %v2754, %v2758
  %v2761 = vshrl.u32 %v2567, 16
  %v2763 = vshll.u32 %v2567, 16
  %v2765 = vrot.slane %v2763, 1
  %v2766 = vor.u32 %v2761, %v2765
  %v2768 = vshll.u32 %v2695, 16
  %v2770 = vrot.slane %v2768, 1
  %v2771 = vsel %vm1746, %v2766, %v2770
  %v2773 = vshrl.u32 %v2568, 16
  %v2775 = vshll.u32 %v2568, 16
  %v2777 = vrot.slane %v2775, 1
  %v2778 = vor.u32 %v2773, %v2777
  %v2780 = vshll.u32 %v2696, 16
  %v2782 = vrot.slane %v2780, 1
  %v2783 = vsel %vm1746, %v2778, %v2782
  %v2785 = vshrl.u32 %v2569, 16
  %v2787 = vshll.u32 %v2569, 16
  %v2789 = vrot.slane %v2787, 1
  %v2790 = vor.u32 %v2785, %v2789
  %v2792 = vshll.u32 %v2697, 16
  %v2794 = vrot.slane %v2792, 1
  %v2795 = vsel %vm1746, %v2790, %v2794
  %v2797 = vshrl.u32 %v2570, 16
  %v2799 = vshll.u32 %v2570, 16
  %v2801 = vrot.slane %v2799, 1
  %v2802 = vor.u32 %v2797, %v2801
  %v2804 = vshll.u32 %v2698, 16
  %v2806 = vrot.slane %v2804, 1
  %v2807 = vsel %vm1746, %v2802, %v2806
  %v2809 = vshrl.u32 %v2571, 16
  %v2811 = vshll.u32 %v2571, 16
  %v2813 = vrot.slane %v2811, 1
  %v2814 = vor.u32 %v2809, %v2813
  %v2816 = vshll.u32 %v2699, 16
  %v2818 = vrot.slane %v2816, 1
  %v2819 = vsel %vm1746, %v2814, %v2818
  %v2821 = vshrl.u32 %v2572, 16
  %v2823 = vshll.u32 %v2572, 16
  %v2825 = vrot.slane %v2823, 1
  %v2826 = vor.u32 %v2821, %v2825
  %v2828 = vshll.u32 %v2700, 16
  %v2830 = vrot.slane %v2828, 1
  %v2831 = vsel %vm1746, %v2826, %v2830
  %v2833 = vshrl.u32 %v2573, 16
  %v2835 = vshll.u32 %v2573, 16
  %v2837 = vrot.slane %v2835, 1
  %v2838 = vor.u32 %v2833, %v2837
  %v2840 = vshll.u32 %v2701, 16
  %v2842 = vrot.slane %v2840, 1
  %v2843 = vsel %vm1746, %v2838, %v2842
  %v2845 = vshrl.u32 %v2574, 16
  %v2847 = vshll.u32 %v2574, 16
  %v2849 = vrot.slane %v2847, 1
  %v2850 = vor.u32 %v2845, %v2849
  %v2852 = vshll.u32 %v2702, 16
  %v2854 = vrot.slane %v2852, 1
  %v2855 = vsel %vm1746, %v2850, %v2854
  %v2857 = vshrl.u32 %v2575, 16
  %v2859 = vshll.u32 %v2575, 16
  %v2861 = vrot.slane %v2859, 1
  %v2862 = vor.u32 %v2857, %v2861
  %v2864 = vshll.u32 %v2703, 16
  %v2866 = vrot.slane %v2864, 1
  %v2867 = vsel %vm1746, %v2862, %v2866
  %v2869 = vshrl.u32 %v2576, 16
  %v2871 = vshll.u32 %v2576, 16
  %v2873 = vrot.slane %v2871, 1
  %v2874 = vor.u32 %v2869, %v2873
  %v2876 = vshll.u32 %v2704, 16
  %v2878 = vrot.slane %v2876, 1
  %v2879 = vsel %vm1746, %v2874, %v2878
  %v2881 = vshrl.u32 %v2577, 16
  %v2883 = vshll.u32 %v2577, 16
  %v2885 = vrot.slane %v2883, 1
  %v2886 = vor.u32 %v2881, %v2885
  %v2888 = vshll.u32 %v2705, 16
  %v2890 = vrot.slane %v2888, 1
  %v2891 = vsel %vm1746, %v2886, %v2890
  %v2893 = vshrl.u32 %v2578, 16
  %v2895 = vshll.u32 %v2578, 16
  %v2897 = vrot.slane %v2895, 1
  %v2898 = vor.u32 %v2893, %v2897
  %v2900 = vshll.u32 %v2706, 16
  %v2902 = vrot.slane %v2900, 1
  %v2903 = vsel %vm1746, %v2898, %v2902
  %v2905 = vshrl.u32 %v2579, 16
  %v2907 = vshll.u32 %v2579, 16
  %v2909 = vrot.slane %v2907, 1
  %v2910 = vor.u32 %v2905, %v2909
  %v2912 = vshll.u32 %v2707, 16
  %v2914 = vrot.slane %v2912, 1
  %v2915 = vsel %vm1746, %v2910, %v2914
  %v2917 = vshrl.u32 %v2580, 16
  %v2919 = vshll.u32 %v2580, 16
  %v2921 = vrot.slane %v2919, 1
  %v2922 = vor.u32 %v2917, %v2921
  %v2924 = vshll.u32 %v2708, 16
  %v2926 = vrot.slane %v2924, 1
  %v2927 = vsel %vm1746, %v2922, %v2926
  %v2929 = vshrl.u32 %v2581, 16
  %v2931 = vshll.u32 %v2581, 16
  %v2933 = vrot.slane %v2931, 1
  %v2934 = vor.u32 %v2929, %v2933
  %v2936 = vshll.u32 %v2709, 16
  %v2938 = vrot.slane %v2936, 1
  %v2939 = vsel %vm1746, %v2934, %v2938
  %v2941 = vshrl.u32 %v2582, 16
  %v2943 = vshll.u32 %v2582, 16
  %v2945 = vrot.slane %v2943, 1
  %v2946 = vor.u32 %v2941, %v2945
  %v2948 = vshll.u32 %v2710, 16
  %v2950 = vrot.slane %v2948, 1
  %v2951 = vsel %vm1746, %v2946, %v2950
  %v2953 = vshrl.u32 %v2583, 16
  %v2955 = vshll.u32 %v2583, 16
  %v2957 = vrot.slane %v2955, 1
  %v2958 = vor.u32 %v2953, %v2957
  %v2960 = vshll.u32 %v2711, 16
  %v2962 = vrot.slane %v2960, 1
  %v2963 = vsel %vm1746, %v2958, %v2962
  %v2965 = vshrl.u32 %v2584, 16
  %v2967 = vshll.u32 %v2584, 16
  %v2969 = vrot.slane %v2967, 1
  %v2970 = vor.u32 %v2965, %v2969
  %v2972 = vshll.u32 %v2712, 16
  %v2974 = vrot.slane %v2972, 1
  %v2975 = vsel %vm1746, %v2970, %v2974
  %v2977 = vshrl.u32 %v2585, 16
  %v2979 = vshll.u32 %v2585, 16
  %v2981 = vrot.slane %v2979, 1
  %v2982 = vor.u32 %v2977, %v2981
  %v2984 = vshll.u32 %v2713, 16
  %v2986 = vrot.slane %v2984, 1
  %v2987 = vsel %vm1746, %v2982, %v2986
  %v2989 = vshrl.u32 %v2586, 16
  %v2991 = vshll.u32 %v2586, 16
  %v2993 = vrot.slane %v2991, 1
  %v2994 = vor.u32 %v2989, %v2993
  %v2996 = vshll.u32 %v2714, 16
  %v2998 = vrot.slane %v2996, 1
  %v2999 = vsel %vm1746, %v2994, %v2998
  %v3001 = vshrl.u32 %v2587, 16
  %v3003 = vshll.u32 %v2587, 16
  %v3005 = vrot.slane %v3003, 1
  %v3006 = vor.u32 %v3001, %v3005
  %v3008 = vshll.u32 %v2715, 16
  %v3010 = vrot.slane %v3008, 1
  %v3011 = vsel %vm1746, %v3006, %v3010
  %v3013 = vshrl.u32 %v2588, 16
  %v3015 = vshll.u32 %v2588, 16
  %v3017 = vrot.slane %v3015, 1
  %v3018 = vor.u32 %v3013, %v3017
  %v3020 = vshll.u32 %v2716, 16
  %v3022 = vrot.slane %v3020, 1
  %v3023 = vsel %vm1746, %v3018, %v3022
  %v3025 = vshrl.u32 %v2589, 16
  %v3027 = vshll.u32 %v2589, 16
  %v3029 = vrot.slane %v3027, 1
  %v3030 = vor.u32 %v3025, %v3029
  %v3032 = vshll.u32 %v2717, 16
  %v3034 = vrot.slane %v3032, 1
  %v3035 = vsel %vm1746, %v3030, %v3034
  %v3037 = vshrl.u32 %v2590, 16
  %v3039 = vshll.u32 %v2590, 16
  %v3041 = vrot.slane %v3039, 1
  %v3042 = vor.u32 %v3037, %v3041
  %v3044 = vshll.u32 %v2718, 16
  %v3046 = vrot.slane %v3044, 1
  %v3047 = vsel %vm1746, %v3042, %v3046
  %v3049 = vshrl.u32 %v2591, 16
  %v3051 = vshll.u32 %v2591, 16
  %v3053 = vrot.slane %v3051, 1
  %v3054 = vor.u32 %v3049, %v3053
  %v3056 = vshll.u32 %v2719, 16
  %v3058 = vrot.slane %v3056, 1
  %v3059 = vsel %vm1746, %v3054, %v3058
  %v3061 = vshrl.u32 %v2592, 16
  %v3063 = vshll.u32 %v2592, 16
  %v3065 = vrot.slane %v3063, 1
  %v3066 = vor.u32 %v3061, %v3065
  %v3068 = vshll.u32 %v2720, 16
  %v3070 = vrot.slane %v3068, 1
  %v3071 = vsel %vm1746, %v3066, %v3070
  %v3073 = vshrl.u32 %v2593, 16
  %v3075 = vshll.u32 %v2593, 16
  %v3077 = vrot.slane %v3075, 1
  %v3078 = vor.u32 %v3073, %v3077
  %v3080 = vshll.u32 %v2721, 16
  %v3082 = vrot.slane %v3080, 1
  %v3083 = vsel %vm1746, %v3078, %v3082
  %v3085 = vshrl.u32 %v2594, 16
  %v3087 = vshll.u32 %v2594, 16
  %v3089 = vrot.slane %v3087, 1
  %v3090 = vor.u32 %v3085, %v3089
  %v3092 = vshll.u32 %v2722, 16
  %v3094 = vrot.slane %v3092, 1
  %v3095 = vsel %vm1746, %v3090, %v3094
  %v3097 = vshrl.u32 %v2595, 16
  %v3099 = vshll.u32 %v2595, 16
  %v3101 = vrot.slane %v3099, 1
  %v3102 = vor.u32 %v3097, %v3101
  %v3104 = vshll.u32 %v2723, 16
  %v3106 = vrot.slane %v3104, 1
  %v3107 = vsel %vm1746, %v3102, %v3106
  %v3140 = vrot.slane %v2564, 1
  %v3141 = vrot.slane %v2692, 1
  %v3142 = vsel %vm2163, %v3140, %v3141
  %v3143 = vrot.slane %v2565, 1
  %v3144 = vrot.slane %v2693, 1
  %v3145 = vsel %vm2163, %v3143, %v3144
  %v3146 = vrot.slane %v2566, 1
  %v3147 = vrot.slane %v2694, 1
  %v3148 = vsel %vm2163, %v3146, %v3147
  %v3149 = vrot.slane %v2567, 1
  %v3150 = vrot.slane %v2695, 1
  %v3151 = vsel %vm2163, %v3149, %v3150
  %v3152 = vrot.slane %v2568, 1
  %v3153 = vrot.slane %v2696, 1
  %v3154 = vsel %vm2163, %v3152, %v3153
  %v3155 = vrot.slane %v2569, 1
  %v3156 = vrot.slane %v2697, 1
  %v3157 = vsel %vm2163, %v3155, %v3156
  %v3158 = vrot.slane %v2570, 1
  %v3159 = vrot.slane %v2698, 1
  %v3160 = vsel %vm2163, %v3158, %v3159
  %v3161 = vrot.slane %v2571, 1
  %v3162 = vrot.slane %v2699, 1
  %v3163 = vsel %vm2163, %v3161, %v3162
  %v3164 = vrot.slane %v2572, 1
  %v3165 = vrot.slane %v2700, 1
  %v3166 = vsel %vm2163, %v3164, %v3165
  %v3167 = vrot.slane %v2573, 1
  %v3168 = vrot.slane %v2701, 1
  %v3169 = vsel %vm2163, %v3167, %v3168
  %v3170 = vrot.slane %v2574, 1
  %v3171 = vrot.slane %v2702, 1
  %v3172 = vsel %vm2163, %v3170, %v3171
  %v3173 = vrot.slane %v2575, 1
  %v3174 = vrot.slane %v2703, 1
  %v3175 = vsel %vm2163, %v3173, %v3174
  %v3176 = vrot.slane %v2576, 1
  %v3177 = vrot.slane %v2704, 1
  %v3178 = vsel %vm2163, %v3176, %v3177
  %v3179 = vrot.slane %v2577, 1
  %v3180 = vrot.slane %v2705, 1
  %v3181 = vsel %vm2163, %v3179, %v3180
  %v3182 = vrot.slane %v2578, 1
  %v3183 = vrot.slane %v2706, 1
  %v3184 = vsel %vm2163, %v3182, %v3183
  %v3185 = vrot.slane %v2579, 1
  %v3186 = vrot.slane %v2707, 1
  %v3187 = vsel %vm2163, %v3185, %v3186
  %v3188 = vrot.slane %v2580, 1
  %v3189 = vrot.slane %v2708, 1
  %v3190 = vsel %vm2163, %v3188, %v3189
  %v3191 = vrot.slane %v2581, 1
  %v3192 = vrot.slane %v2709, 1
  %v3193 = vsel %vm2163, %v3191, %v3192
  %v3194 = vrot.slane %v2582, 1
  %v3195 = vrot.slane %v2710, 1
  %v3196 = vsel %vm2163, %v3194, %v3195
  %v3197 = vrot.slane %v2583, 1
  %v3198 = vrot.slane %v2711, 1
  %v3199 = vsel %vm2163, %v3197, %v3198
  %v3200 = vrot.slane %v2584, 1
  %v3201 = vrot.slane %v2712, 1
  %v3202 = vsel %vm2163, %v3200, %v3201
  %v3203 = vrot.slane %v2585, 1
  %v3204 = vrot.slane %v2713, 1
  %v3205 = vsel %vm2163, %v3203, %v3204
  %v3206 = vrot.slane %v2586, 1
  %v3207 = vrot.slane %v2714, 1
  %v3208 = vsel %vm2163, %v3206, %v3207
  %v3209 = vrot.slane %v2587, 1
  %v3210 = vrot.slane %v2715, 1
  %v3211 = vsel %vm2163, %v3209, %v3210
  %v3212 = vrot.slane %v2588, 1
  %v3213 = vrot.slane %v2716, 1
  %v3214 = vsel %vm2163, %v3212, %v3213
  %v3215 = vrot.slane %v2589, 1
  %v3216 = vrot.slane %v2717, 1
  %v3217 = vsel %vm2163, %v3215, %v3216
  %v3218 = vrot.slane %v2590, 1
  %v3219 = vrot.slane %v2718, 1
  %v3220 = vsel %vm2163, %v3218, %v3219
  %v3221 = vrot.slane %v2591, 1
  %v3222 = vrot.slane %v2719, 1
  %v3223 = vsel %vm2163, %v3221, %v3222
  %v3224 = vrot.slane %v2592, 1
  %v3225 = vrot.slane %v2720, 1
  %v3226 = vsel %vm2163, %v3224, %v3225
  %v3227 = vrot.slane %v2593, 1
  %v3228 = vrot.slane %v2721, 1
  %v3229 = vsel %vm2163, %v3227, %v3228
  %v3230 = vrot.slane %v2594, 1
  %v3231 = vrot.slane %v2722, 1
  %v3232 = vsel %vm2163, %v3230, %v3231
  %v3233 = vrot.slane %v2595, 1
  %v3234 = vrot.slane %v2723, 1
  %v3235 = vsel %vm2163, %v3233, %v3234
  %v3268 = vld [vmem:[%s1 + $0xc0] sm:$0xf]
  %v3269 = vld [vmem:[%s1 + $0xc4] sm:$0xf]
  %v3270 = vld [vmem:[%s1 + $0xc8] sm:$0xf]
  %v3271 = vld [vmem:[%s1 + $0xcc] sm:$0xf]
  %v3272 = vld [vmem:[%s1 + $0xd0] sm:$0xf]
  %v3273 = vld [vmem:[%s1 + $0xd4] sm:$0xf]
  %v3274 = vld [vmem:[%s1 + $0xd8] sm:$0xf]
  %v3275 = vld [vmem:[%s1 + $0xdc] sm:$0xf]
  %v3276 = vld [vmem:[%s1 + $0xe0] sm:$0xf]
  %v3277 = vld [vmem:[%s1 + $0xe4] sm:$0xf]
  %v3278 = vld [vmem:[%s1 + $0xe8] sm:$0xf]
  %v3279 = vld [vmem:[%s1 + $0xec] sm:$0xf]
  %v3280 = vld [vmem:[%s1 + $0xf0] sm:$0xf]
  %v3281 = vld [vmem:[%s1 + $0xf4] sm:$0xf]
  %v3282 = vld [vmem:[%s1 + $0xf8] sm:$0xf]
  %v3283 = vld [vmem:[%s1 + $0xfc] sm:$0xf]
  %v3284 = vld [vmem:[%s1 + $0x100] sm:$0xf]
  %v3285 = vld [vmem:[%s1 + $0x104] sm:$0xf]
  %v3286 = vld [vmem:[%s1 + $0x108] sm:$0xf]
  %v3287 = vld [vmem:[%s1 + $0x10c] sm:$0xf]
  %v3288 = vld [vmem:[%s1 + $0x110] sm:$0xf]
  %v3289 = vld [vmem:[%s1 + $0x114] sm:$0xf]
  %v3290 = vld [vmem:[%s1 + $0x118] sm:$0xf]
  %v3291 = vld [vmem:[%s1 + $0x11c] sm:$0xf]
  %v3292 = vld [vmem:[%s1 + $0x120] sm:$0xf]
  %v3293 = vld [vmem:[%s1 + $0x124] sm:$0xf]
  %v3294 = vld [vmem:[%s1 + $0x128] sm:$0xf]
  %v3295 = vld [vmem:[%s1 + $0x12c] sm:$0xf]
  %v3296 = vld [vmem:[%s1 + $0x130] sm:$0xf]
  %v3297 = vld [vmem:[%s1 + $0x134] sm:$0xf]
  %v3298 = vld [vmem:[%s1 + $0x138] sm:$0xf]
  %v3299 = vld [vmem:[%s1 + $0x13c] sm:$0xf]
  %v3300 = vld [vmem:[%s1 + $0x140] sm:$0xf]
  %v3301 = vld [vmem:[%s1 + $0x144] sm:$0xf]
  %v3302 = vld [vmem:[%s1 + $0x148] sm:$0xf]
  %v3303 = vld [vmem:[%s1 + $0x14c] sm:$0xf]
  %v3304 = vld [vmem:[%s1 + $0x150] sm:$0xf]
  %v3305 = vld [vmem:[%s1 + $0x154] sm:$0xf]
  %v3306 = vld [vmem:[%s1 + $0x158] sm:$0xf]
  %v3307 = vld [vmem:[%s1 + $0x15c] sm:$0xf]
  %v3308 = vld [vmem:[%s1 + $0x160] sm:$0xf]
  %v3309 = vld [vmem:[%s1 + $0x164] sm:$0xf]
  %v3310 = vld [vmem:[%s1 + $0x168] sm:$0xf]
  %v3311 = vld [vmem:[%s1 + $0x16c] sm:$0xf]
  %v3312 = vld [vmem:[%s1 + $0x170] sm:$0xf]
  %v3313 = vld [vmem:[%s1 + $0x174] sm:$0xf]
  %v3314 = vld [vmem:[%s1 + $0x178] sm:$0xf]
  %v3315 = vld [vmem:[%s1 + $0x17c] sm:$0xf]
  %v3364 = vunpack.c.l.b16 %v3268
  %v3365 = vunpack.c.l.b16 %v3269
  %v3366 = vunpack.c.l.b16 %v3270
  %v3367 = vunpack.c.l.b16 %v3271
  %v3368 = vunpack.c.l.b16 %v3272
  %v3369 = vunpack.c.l.b16 %v3273
  %v3370 = vunpack.c.l.b16 %v3274
  %v3371 = vunpack.c.l.b16 %v3275
  %v3372 = vunpack.c.l.b16 %v3276
  %v3373 = vunpack.c.l.b16 %v3277
  %v3374 = vunpack.c.l.b16 %v3278
  %v3375 = vunpack.c.l.b16 %v3279
  %v3376 = vunpack.c.l.b16 %v3280
  %v3377 = vunpack.c.l.b16 %v3281
  %v3378 = vunpack.c.l.b16 %v3282
  %v3379 = vunpack.c.l.b16 %v3283
  %v3380 = vunpack.c.l.b16 %v3284
  %v3381 = vunpack.c.l.b16 %v3285
  %v3382 = vunpack.c.l.b16 %v3286
  %v3383 = vunpack.c.l.b16 %v3287
  %v3384 = vunpack.c.l.b16 %v3288
  %v3385 = vunpack.c.l.b16 %v3289
  %v3386 = vunpack.c.l.b16 %v3290
  %v3387 = vunpack.c.l.b16 %v3291
  %v3388 = vunpack.c.l.b16 %v3292
  %v3389 = vunpack.c.l.b16 %v3293
  %v3390 = vunpack.c.l.b16 %v3294
  %v3391 = vunpack.c.l.b16 %v3295
  %v3392 = vunpack.c.l.b16 %v3296
  %v3393 = vunpack.c.l.b16 %v3297
  %v3394 = vunpack.c.l.b16 %v3298
  %v3395 = vunpack.c.l.b16 %v3299
  %v3396 = vunpack.c.l.b16 %v3300
  %v3397 = vunpack.c.l.b16 %v3301
  %v3398 = vunpack.c.l.b16 %v3302
  %v3399 = vunpack.c.l.b16 %v3303
  %v3400 = vunpack.c.l.b16 %v3304
  %v3401 = vunpack.c.l.b16 %v3305
  %v3402 = vunpack.c.l.b16 %v3306
  %v3403 = vunpack.c.l.b16 %v3307
  %v3404 = vunpack.c.l.b16 %v3308
  %v3405 = vunpack.c.l.b16 %v3309
  %v3406 = vunpack.c.l.b16 %v3310
  %v3407 = vunpack.c.l.b16 %v3311
  %v3408 = vunpack.c.l.b16 %v3312
  %v3409 = vunpack.c.l.b16 %v3313
  %v3410 = vunpack.c.l.b16 %v3314
  %v3411 = vunpack.c.l.b16 %v3315
  %v3412 = vpack.c.b16 %v3365, %v3364
  %v3413 = vpack.c.b16 %v3367, %v3366
  %v3414 = vpack.c.b16 %v3369, %v3368
  %v3415 = vpack.c.b16 %v3371, %v3370
  %v3416 = vpack.c.b16 %v3373, %v3372
  %v3417 = vpack.c.b16 %v3375, %v3374
  %v3418 = vpack.c.b16 %v3377, %v3376
  %v3419 = vpack.c.b16 %v3379, %v3378
  %v3420 = vpack.c.b16 %v3381, %v3380
  %v3421 = vpack.c.b16 %v3383, %v3382
  %v3422 = vpack.c.b16 %v3385, %v3384
  %v3423 = vpack.c.b16 %v3387, %v3386
  %v3424 = vpack.c.b16 %v3389, %v3388
  %v3425 = vpack.c.b16 %v3391, %v3390
  %v3426 = vpack.c.b16 %v3393, %v3392
  %v3427 = vpack.c.b16 %v3395, %v3394
  %v3428 = vpack.c.b16 %v3397, %v3396
  %v3429 = vpack.c.b16 %v3399, %v3398
  %v3430 = vpack.c.b16 %v3401, %v3400
  %v3431 = vpack.c.b16 %v3403, %v3402
  %v3432 = vpack.c.b16 %v3405, %v3404
  %v3433 = vpack.c.b16 %v3407, %v3406
  %v3434 = vpack.c.b16 %v3409, %v3408
  %v3435 = vpack.c.b16 %v3411, %v3410
  %3460 = vmatprep.subr.bf16.mxu0 0
  %3461 = vmatpush1.bf16.msra.mxu0 %v3412
  %3462 = vmatprep.subr.bf16.mxu0 0
  %3463 = vmatpush1.bf16.msra.mxu0 %v3413
  %3464 = vmatprep.subr.bf16.mxu0 0
  %3465 = vmatpush1.bf16.msra.mxu0 %v3414
  %3466 = vmatprep.subr.bf16.mxu0 0
  %3467 = vmatpush1.bf16.msra.mxu0 %v3415
  %3468 = vmatprep.subr.bf16.mxu0 0
  %3469 = vmatpush1.bf16.msra.mxu0 %v3416
  %3470 = vmatprep.subr.bf16.mxu0 0
  %3471 = vmatpush1.bf16.msra.mxu0 %v3417
  %3472 = vmatprep.subr.bf16.mxu0 0
  %3473 = vmatpush1.bf16.msra.mxu0 %v3418
  %3474 = vmatprep.subr.bf16.mxu0 0
  %3475 = vmatpush1.bf16.msra.mxu0 %v3419
  %3476 = vmatprep.subr.bf16.mxu0 0
  %3477 = vmatpush1.bf16.msra.mxu0 %v3420
  %3478 = vmatprep.subr.bf16.mxu0 0
  %3479 = vmatpush1.bf16.msra.mxu0 %v3421
  %3480 = vmatprep.subr.bf16.mxu0 0
  %3481 = vmatpush1.bf16.msra.mxu0 %v3422
  %3482 = vmatprep.subr.bf16.mxu0 0
  %3483 = vmatpush1.bf16.msra.mxu0 %v3423
  %3484 = vmatprep.subr.bf16.mxu0 0
  %3485 = vmatpush1.bf16.msra.mxu0 %v3424
  %3486 = vmatprep.subr.bf16.mxu0 0
  %3487 = vmatpush1.bf16.msra.mxu0 %v3425
  %3488 = vmatprep.subr.bf16.mxu0 0
  %3489 = vmatpush1.bf16.msra.mxu0 %v3426
  %3490 = vmatprep.subr.bf16.mxu0 0
  %3491 = vmatpush1.bf16.msra.mxu0 %v3427
  %3492 = vmatprep.mubr.bf16.mxu0 %v2735
  %3493 = vmatmul.mubr.bf16.gmra.mrb[0].mxu0 %v2564
  %v3494 = vpop.f32.mrb[0].mxu0
  %v3495 = vadd.f32 0.0, %v3494
  %v3496 = vpop.f32.mrb[0].mxu0
  %v3497 = vpop.f32.mrb[0].mxu0
  %v3498 = vadd.f32 0.0, %v3497
  %v3499 = vpop.f32.mrb[0].mxu0
  %3500 = vmatprep.mubr.bf16.mxu0 %v2747
  %3501 = vmatmul.mubr.bf16.gmra.mrb[0].mxu0 %v2565
  %v3502 = vpop.f32.mrb[0].mxu0
  %v3503 = vadd.f32 0.0, %v3502
  %v3504 = vpop.f32.mrb[0].mxu0
  %v3505 = vpop.f32.mrb[0].mxu0
  %v3506 = vadd.f32 0.0, %v3505
  %v3507 = vpop.f32.mrb[0].mxu0
  %3508 = vmatprep.mubr.bf16.mxu0 %v2759
  %3509 = vmatmul.mubr.bf16.gmra.mrb[0].mxu0 %v2566
  %v3510 = vpop.f32.mrb[0].mxu0
  %v3511 = vadd.f32 0.0, %v3510
  %v3512 = vpop.f32.mrb[0].mxu0
  %v3513 = vpop.f32.mrb[0].mxu0
  %v3514 = vadd.f32 0.0, %v3513
  %v3515 = vpop.f32.mrb[0].mxu0
  %3516 = vmatprep.mubr.bf16.mxu0 %v2771
  %3517 = vmatmul.mubr.bf16.gmra.mrb[0].mxu0 %v2567
  %v3518 = vpop.f32.mrb[0].mxu0
  %v3519 = vadd.f32 0.0, %v3518
  %v3520 = vpop.f32.mrb[0].mxu0
  %v3521 = vpop.f32.mrb[0].mxu0
  %v3522 = vadd.f32 0.0, %v3521
  %v3523 = vpop.f32.mrb[0].mxu0
  %3524 = vmatprep.mubr.bf16.mxu0 %v2783
  %3525 = vmatmul.mubr.bf16.gmra.mrb[0].mxu0 %v2568
  %v3526 = vpop.f32.mrb[0].mxu0
  %v3527 = vadd.f32 0.0, %v3526
  %v3528 = vpop.f32.mrb[0].mxu0
  %v3529 = vpop.f32.mrb[0].mxu0
  %v3530 = vadd.f32 0.0, %v3529
  %v3531 = vpop.f32.mrb[0].mxu0
  %3532 = vmatprep.mubr.bf16.mxu0 %v2795
  %3533 = vmatmul.mubr.bf16.gmra.mrb[0].mxu0 %v2569
  %v3534 = vpop.f32.mrb[0].mxu0
  %v3535 = vadd.f32 0.0, %v3534
  %v3536 = vpop.f32.mrb[0].mxu0
  %v3537 = vpop.f32.mrb[0].mxu0
  %v3538 = vadd.f32 0.0, %v3537
  %v3539 = vpop.f32.mrb[0].mxu0
  %3540 = vmatprep.mubr.bf16.mxu0 %v2807
  %3541 = vmatmul.mubr.bf16.gmra.mrb[0].mxu0 %v2570
  %v3542 = vpop.f32.mrb[0].mxu0
  %v3543 = vadd.f32 0.0, %v3542
  %v3544 = vpop.f32.mrb[0].mxu0
  %v3545 = vpop.f32.mrb[0].mxu0
  %v3546 = vadd.f32 0.0, %v3545
  %v3547 = vpop.f32.mrb[0].mxu0
  %3548 = vmatprep.mubr.bf16.mxu0 %v2819
  %3549 = vmatmul.mubr.bf16.gmra.mrb[0].mxu0 %v2571
  %v3550 = vpop.f32.mrb[0].mxu0
  %v3551 = vadd.f32 0.0, %v3550
  %v3552 = vpop.f32.mrb[0].mxu0
  %v3553 = vpop.f32.mrb[0].mxu0
  %v3554 = vadd.f32 0.0, %v3553
  %v3555 = vpop.f32.mrb[0].mxu0
  %3556 = vmatprep.mubr.bf16.mxu0 %v2831
  %3557 = vmatmul.mubr.bf16.gmra.mrb[0].mxu0 %v2572
  %v3558 = vpop.f32.mrb[0].mxu0
  %v3559 = vadd.f32 0.0, %v3558
  %v3560 = vpop.f32.mrb[0].mxu0
  %v3561 = vpop.f32.mrb[0].mxu0
  %v3562 = vadd.f32 0.0, %v3561
  %v3563 = vpop.f32.mrb[0].mxu0
  %3564 = vmatprep.mubr.bf16.mxu0 %v2843
  %3565 = vmatmul.mubr.bf16.gmra.mrb[0].mxu0 %v2573
  %v3566 = vpop.f32.mrb[0].mxu0
  %v3567 = vadd.f32 0.0, %v3566
  %v3568 = vpop.f32.mrb[0].mxu0
  %v3569 = vpop.f32.mrb[0].mxu0
  %v3570 = vadd.f32 0.0, %v3569
  %v3571 = vpop.f32.mrb[0].mxu0
  %3572 = vmatprep.mubr.bf16.mxu0 %v2855
  %3573 = vmatmul.mubr.bf16.gmra.mrb[0].mxu0 %v2574
  %v3574 = vpop.f32.mrb[0].mxu0
  %v3575 = vadd.f32 0.0, %v3574
  %v3576 = vpop.f32.mrb[0].mxu0
  %v3577 = vpop.f32.mrb[0].mxu0
  %v3578 = vadd.f32 0.0, %v3577
  %v3579 = vpop.f32.mrb[0].mxu0
  %3580 = vmatprep.mubr.bf16.mxu0 %v2867
  %3581 = vmatmul.mubr.bf16.gmra.mrb[0].mxu0 %v2575
  %v3582 = vpop.f32.mrb[0].mxu0
  %v3583 = vadd.f32 0.0, %v3582
  %v3584 = vpop.f32.mrb[0].mxu0
  %v3585 = vpop.f32.mrb[0].mxu0
  %v3586 = vadd.f32 0.0, %v3585
  %v3587 = vpop.f32.mrb[0].mxu0
  %3588 = vmatprep.mubr.bf16.mxu0 %v2879
  %3589 = vmatmul.mubr.bf16.gmra.mrb[0].mxu0 %v2576
  %v3590 = vpop.f32.mrb[0].mxu0
  %v3591 = vadd.f32 0.0, %v3590
  %v3592 = vpop.f32.mrb[0].mxu0
  %v3593 = vpop.f32.mrb[0].mxu0
  %v3594 = vadd.f32 0.0, %v3593
  %v3595 = vpop.f32.mrb[0].mxu0
  %3596 = vmatprep.mubr.bf16.mxu0 %v2891
  %3597 = vmatmul.mubr.bf16.gmra.mrb[0].mxu0 %v2577
  %v3598 = vpop.f32.mrb[0].mxu0
  %v3599 = vadd.f32 0.0, %v3598
  %v3600 = vpop.f32.mrb[0].mxu0
  %v3601 = vpop.f32.mrb[0].mxu0
  %v3602 = vadd.f32 0.0, %v3601
  %v3603 = vpop.f32.mrb[0].mxu0
  %3604 = vmatprep.mubr.bf16.mxu0 %v2903
  %3605 = vmatmul.mubr.bf16.gmra.mrb[0].mxu0 %v2578
  %v3606 = vpop.f32.mrb[0].mxu0
  %v3607 = vadd.f32 0.0, %v3606
  %v3608 = vpop.f32.mrb[0].mxu0
  %v3609 = vpop.f32.mrb[0].mxu0
  %v3610 = vadd.f32 0.0, %v3609
  %v3611 = vpop.f32.mrb[0].mxu0
  %3612 = vmatprep.mubr.bf16.mxu0 %v2915
  %3613 = vmatmul.mubr.bf16.gmra.mrb[0].mxu0 %v2579
  %v3614 = vpop.f32.mrb[0].mxu0
  %v3615 = vadd.f32 0.0, %v3614
  %v3616 = vpop.f32.mrb[0].mxu0
  %v3617 = vpop.f32.mrb[0].mxu0
  %v3618 = vadd.f32 0.0, %v3617
  %v3619 = vpop.f32.mrb[0].mxu0
  %3620 = vmatprep.mubr.bf16.mxu0 %v2927
  %3621 = vmatmul.mubr.bf16.gmra.mrb[0].mxu0 %v2580
  %v3622 = vpop.f32.mrb[0].mxu0
  %v3623 = vadd.f32 0.0, %v3622
  %v3624 = vpop.f32.mrb[0].mxu0
  %v3625 = vpop.f32.mrb[0].mxu0
  %v3626 = vadd.f32 0.0, %v3625
  %v3627 = vpop.f32.mrb[0].mxu0
  %3628 = vmatprep.mubr.bf16.mxu0 %v2939
  %3629 = vmatmul.mubr.bf16.gmra.mrb[0].mxu0 %v2581
  %v3630 = vpop.f32.mrb[0].mxu0
  %v3631 = vadd.f32 0.0, %v3630
  %v3632 = vpop.f32.mrb[0].mxu0
  %v3633 = vpop.f32.mrb[0].mxu0
  %v3634 = vadd.f32 0.0, %v3633
  %v3635 = vpop.f32.mrb[0].mxu0
  %3636 = vmatprep.mubr.bf16.mxu0 %v2951
  %3637 = vmatmul.mubr.bf16.gmra.mrb[0].mxu0 %v2582
  %v3638 = vpop.f32.mrb[0].mxu0
  %v3639 = vadd.f32 0.0, %v3638
  %v3640 = vpop.f32.mrb[0].mxu0
  %v3641 = vpop.f32.mrb[0].mxu0
  %v3642 = vadd.f32 0.0, %v3641
  %v3643 = vpop.f32.mrb[0].mxu0
  %3644 = vmatprep.mubr.bf16.mxu0 %v2963
  %3645 = vmatmul.mubr.bf16.gmra.mrb[0].mxu0 %v2583
  %v3646 = vpop.f32.mrb[0].mxu0
  %v3647 = vadd.f32 0.0, %v3646
  %v3648 = vpop.f32.mrb[0].mxu0
  %v3649 = vpop.f32.mrb[0].mxu0
  %v3650 = vadd.f32 0.0, %v3649
  %v3651 = vpop.f32.mrb[0].mxu0
  %3652 = vmatprep.mubr.bf16.mxu0 %v2975
  %3653 = vmatmul.mubr.bf16.gmra.mrb[0].mxu0 %v2584
  %v3654 = vpop.f32.mrb[0].mxu0
  %v3655 = vadd.f32 0.0, %v3654
  %v3656 = vpop.f32.mrb[0].mxu0
  %v3657 = vpop.f32.mrb[0].mxu0
  %v3658 = vadd.f32 0.0, %v3657
  %v3659 = vpop.f32.mrb[0].mxu0
  %3660 = vmatprep.mubr.bf16.mxu0 %v2987
  %3661 = vmatmul.mubr.bf16.gmra.mrb[0].mxu0 %v2585
  %v3662 = vpop.f32.mrb[0].mxu0
  %v3663 = vadd.f32 0.0, %v3662
  %v3664 = vpop.f32.mrb[0].mxu0
  %v3665 = vpop.f32.mrb[0].mxu0
  %v3666 = vadd.f32 0.0, %v3665
  %v3667 = vpop.f32.mrb[0].mxu0
  %3668 = vmatprep.mubr.bf16.mxu0 %v2999
  %3669 = vmatmul.mubr.bf16.gmra.mrb[0].mxu0 %v2586
  %v3670 = vpop.f32.mrb[0].mxu0
  %v3671 = vadd.f32 0.0, %v3670
  %v3672 = vpop.f32.mrb[0].mxu0
  %v3673 = vpop.f32.mrb[0].mxu0
  %v3674 = vadd.f32 0.0, %v3673
  %v3675 = vpop.f32.mrb[0].mxu0
  %3676 = vmatprep.mubr.bf16.mxu0 %v3011
  %3677 = vmatmul.mubr.bf16.gmra.mrb[0].mxu0 %v2587
  %v3678 = vpop.f32.mrb[0].mxu0
  %v3679 = vadd.f32 0.0, %v3678
  %v3680 = vpop.f32.mrb[0].mxu0
  %v3681 = vpop.f32.mrb[0].mxu0
  %v3682 = vadd.f32 0.0, %v3681
  %v3683 = vpop.f32.mrb[0].mxu0
  %3684 = vmatprep.mubr.bf16.mxu0 %v3023
  %3685 = vmatmul.mubr.bf16.gmra.mrb[0].mxu0 %v2588
  %v3686 = vpop.f32.mrb[0].mxu0
  %v3687 = vadd.f32 0.0, %v3686
  %v3688 = vpop.f32.mrb[0].mxu0
  %v3689 = vpop.f32.mrb[0].mxu0
  %v3690 = vadd.f32 0.0, %v3689
  %v3691 = vpop.f32.mrb[0].mxu0
  %3692 = vmatprep.mubr.bf16.mxu0 %v3035
  %3693 = vmatmul.mubr.bf16.gmra.mrb[0].mxu0 %v2589
  %v3694 = vpop.f32.mrb[0].mxu0
  %v3695 = vadd.f32 0.0, %v3694
  %v3696 = vpop.f32.mrb[0].mxu0
  %v3697 = vpop.f32.mrb[0].mxu0
  %v3698 = vadd.f32 0.0, %v3697
  %v3699 = vpop.f32.mrb[0].mxu0
  %3700 = vmatprep.mubr.bf16.mxu0 %v3047
  %3701 = vmatmul.mubr.bf16.gmra.mrb[0].mxu0 %v2590
  %v3702 = vpop.f32.mrb[0].mxu0
  %v3703 = vadd.f32 0.0, %v3702
  %v3704 = vpop.f32.mrb[0].mxu0
  %v3705 = vpop.f32.mrb[0].mxu0
  %v3706 = vadd.f32 0.0, %v3705
  %v3707 = vpop.f32.mrb[0].mxu0
  %3708 = vmatprep.mubr.bf16.mxu0 %v3059
  %3709 = vmatmul.mubr.bf16.gmra.mrb[0].mxu0 %v2591
  %v3710 = vpop.f32.mrb[0].mxu0
  %v3711 = vadd.f32 0.0, %v3710
  %v3712 = vpop.f32.mrb[0].mxu0
  %v3713 = vpop.f32.mrb[0].mxu0
  %v3714 = vadd.f32 0.0, %v3713
  %v3715 = vpop.f32.mrb[0].mxu0
  %3716 = vmatprep.mubr.bf16.mxu0 %v3071
  %3717 = vmatmul.mubr.bf16.gmra.mrb[0].mxu0 %v2592
  %v3718 = vpop.f32.mrb[0].mxu0
  %v3719 = vadd.f32 0.0, %v3718
  %v3720 = vpop.f32.mrb[0].mxu0
  %v3721 = vpop.f32.mrb[0].mxu0
  %v3722 = vadd.f32 0.0, %v3721
  %v3723 = vpop.f32.mrb[0].mxu0
  %3724 = vmatprep.mubr.bf16.mxu0 %v3083
  %3725 = vmatmul.mubr.bf16.gmra.mrb[0].mxu0 %v2593
  %v3726 = vpop.f32.mrb[0].mxu0
  %v3727 = vadd.f32 0.0, %v3726
  %v3728 = vpop.f32.mrb[0].mxu0
  %v3729 = vpop.f32.mrb[0].mxu0
  %v3730 = vadd.f32 0.0, %v3729
  %v3731 = vpop.f32.mrb[0].mxu0
  %3732 = vmatprep.mubr.bf16.mxu0 %v3095
  %3733 = vmatmul.mubr.bf16.gmra.mrb[0].mxu0 %v2594
  %v3734 = vpop.f32.mrb[0].mxu0
  %v3735 = vadd.f32 0.0, %v3734
  %v3736 = vpop.f32.mrb[0].mxu0
  %v3737 = vpop.f32.mrb[0].mxu0
  %v3738 = vadd.f32 0.0, %v3737
  %v3739 = vpop.f32.mrb[0].mxu0
  %3740 = vmatprep.mubr.bf16.mxu0 %v3107
  %3741 = vmatmul.mubr.bf16.gmra.mrb[0].mxu0 %v2595
  %v3742 = vpop.f32.mrb[0].mxu0
  %v3743 = vadd.f32 0.0, %v3742
  %v3744 = vpop.f32.mrb[0].mxu0
  %v3745 = vpop.f32.mrb[0].mxu0
  %v3746 = vadd.f32 0.0, %v3745
  %v3747 = vpop.f32.mrb[0].mxu0
  %3748 = vdwg.mxu0
  %3749 = vmatprep.subr.bf16.mxu0 0
  %3750 = vmatpush1.bf16.msra.mxu0 %v3428
  %3751 = vmatprep.subr.bf16.mxu0 0
  %3752 = vmatpush1.bf16.msra.mxu0 %v3429
  %3753 = vmatprep.subr.bf16.mxu0 0
  %3754 = vmatpush1.bf16.msra.mxu0 %v3430
  %3755 = vmatprep.subr.bf16.mxu0 0
  %3756 = vmatpush1.bf16.msra.mxu0 %v3431
  %3757 = vmatprep.subr.bf16.mxu0 0
  %3758 = vmatpush1.bf16.msra.mxu0 %v3432
  %3759 = vmatprep.subr.bf16.mxu0 0
  %3760 = vmatpush1.bf16.msra.mxu0 %v3433
  %3761 = vmatprep.subr.bf16.mxu0 0
  %3762 = vmatpush1.bf16.msra.mxu0 %v3434
  %3763 = vmatprep.subr.bf16.mxu0 0
  %3764 = vmatpush1.bf16.msra.mxu0 %v3435
  %3765 = vmatprep.subr.bf16.mxu0 0
  %3766 = vmatpush1.bf16.msra.mxu0 0
  %3767 = vmatprep.subr.bf16.mxu0 0
  %3768 = vmatpush1.bf16.msra.mxu0 0
  %3769 = vmatprep.subr.bf16.mxu0 0
  %3770 = vmatpush1.bf16.msra.mxu0 0
  %3771 = vmatprep.subr.bf16.mxu0 0
  %3772 = vmatpush1.bf16.msra.mxu0 0
  %3773 = vmatprep.subr.bf16.mxu0 0
  %3774 = vmatpush1.bf16.msra.mxu0 0
  %3775 = vmatprep.subr.bf16.mxu0 0
  %3776 = vmatpush1.bf16.msra.mxu0 0
  %3777 = vmatprep.subr.bf16.mxu0 0
  %3778 = vmatpush1.bf16.msra.mxu0 0
  %3779 = vmatprep.subr.bf16.mxu0 0
  %3780 = vmatpush1.bf16.msra.mxu0 0
  %3781 = vmatprep.mubr.bf16.mxu0 0
  %3782 = vmatmul.mubr.bf16.gmra.mrb[0].mxu0 %v3142
  %v3783 = vpop.f32.mrb[0].mxu0
  %v3784 = vadd.f32 %v3495, %v3783
  %v3785 = vpop.f32.mrb[0].mxu0
  %v3786 = vpop.f32.mrb[0].mxu0
  %v3787 = vadd.f32 %v3498, %v3786
  %v3788 = vpop.f32.mrb[0].mxu0
  %3789 = vmatprep.mubr.bf16.mxu0 0
  %3790 = vmatmul.mubr.bf16.gmra.mrb[0].mxu0 %v3145
  %v3791 = vpop.f32.mrb[0].mxu0
  %v3792 = vadd.f32 %v3503, %v3791
  %v3793 = vpop.f32.mrb[0].mxu0
  %v3794 = vpop.f32.mrb[0].mxu0
  %v3795 = vadd.f32 %v3506, %v3794
  %v3796 = vpop.f32.mrb[0].mxu0
  %3797 = vmatprep.mubr.bf16.mxu0 0
  %3798 = vmatmul.mubr.bf16.gmra.mrb[0].mxu0 %v3148
  %v3799 = vpop.f32.mrb[0].mxu0
  %v3800 = vadd.f32 %v3511, %v3799
  %v3801 = vpop.f32.mrb[0].mxu0
  %v3802 = vpop.f32.mrb[0].mxu0
  %v3803 = vadd.f32 %v3514, %v3802
  %v3804 = vpop.f32.mrb[0].mxu0
  %3805 = vmatprep.mubr.bf16.mxu0 0
  %3806 = vmatmul.mubr.bf16.gmra.mrb[0].mxu0 %v3151
  %v3807 = vpop.f32.mrb[0].mxu0
  %v3808 = vadd.f32 %v3519, %v3807
  %v3809 = vpop.f32.mrb[0].mxu0
  %v3810 = vpop.f32.mrb[0].mxu0
  %v3811 = vadd.f32 %v3522, %v3810
  %v3812 = vpop.f32.mrb[0].mxu0
  %3813 = vmatprep.mubr.bf16.mxu0 0
  %3814 = vmatmul.mubr.bf16.gmra.mrb[0].mxu0 %v3154
  %v3815 = vpop.f32.mrb[0].mxu0
  %v3816 = vadd.f32 %v3527, %v3815
  %v3817 = vpop.f32.mrb[0].mxu0
  %v3818 = vpop.f32.mrb[0].mxu0
  %v3819 = vadd.f32 %v3530, %v3818
  %v3820 = vpop.f32.mrb[0].mxu0
  %3821 = vmatprep.mubr.bf16.mxu0 0
  %3822 = vmatmul.mubr.bf16.gmra.mrb[0].mxu0 %v3157
  %v3823 = vpop.f32.mrb[0].mxu0
  %v3824 = vadd.f32 %v3535, %v3823
  %v3825 = vpop.f32.mrb[0].mxu0
  %v3826 = vpop.f32.mrb[0].mxu0
  %v3827 = vadd.f32 %v3538, %v3826
  %v3828 = vpop.f32.mrb[0].mxu0
  %3829 = vmatprep.mubr.bf16.mxu0 0
  %3830 = vmatmul.mubr.bf16.gmra.mrb[0].mxu0 %v3160
  %v3831 = vpop.f32.mrb[0].mxu0
  %v3832 = vadd.f32 %v3543, %v3831
  %v3833 = vpop.f32.mrb[0].mxu0
  %v3834 = vpop.f32.mrb[0].mxu0
  %v3835 = vadd.f32 %v3546, %v3834
  %v3836 = vpop.f32.mrb[0].mxu0
  %3837 = vmatprep.mubr.bf16.mxu0 0
  %3838 = vmatmul.mubr.bf16.gmra.mrb[0].mxu0 %v3163
  %v3839 = vpop.f32.mrb[0].mxu0
  %v3840 = vadd.f32 %v3551, %v3839
  %v3841 = vpop.f32.mrb[0].mxu0
  %v3842 = vpop.f32.mrb[0].mxu0
  %v3843 = vadd.f32 %v3554, %v3842
  %v3844 = vpop.f32.mrb[0].mxu0
  %3845 = vmatprep.mubr.bf16.mxu0 0
  %3846 = vmatmul.mubr.bf16.gmra.mrb[0].mxu0 %v3166
  %v3847 = vpop.f32.mrb[0].mxu0
  %v3848 = vadd.f32 %v3559, %v3847
  %v3849 = vpop.f32.mrb[0].mxu0
  %v3850 = vpop.f32.mrb[0].mxu0
  %v3851 = vadd.f32 %v3562, %v3850
  %v3852 = vpop.f32.mrb[0].mxu0
  %3853 = vmatprep.mubr.bf16.mxu0 0
  %3854 = vmatmul.mubr.bf16.gmra.mrb[0].mxu0 %v3169
  %v3855 = vpop.f32.mrb[0].mxu0
  %v3856 = vadd.f32 %v3567, %v3855
  %v3857 = vpop.f32.mrb[0].mxu0
  %v3858 = vpop.f32.mrb[0].mxu0
  %v3859 = vadd.f32 %v3570, %v3858
  %v3860 = vpop.f32.mrb[0].mxu0
  %3861 = vmatprep.mubr.bf16.mxu0 0
  %3862 = vmatmul.mubr.bf16.gmra.mrb[0].mxu0 %v3172
  %v3863 = vpop.f32.mrb[0].mxu0
  %v3864 = vadd.f32 %v3575, %v3863
  %v3865 = vpop.f32.mrb[0].mxu0
  %v3866 = vpop.f32.mrb[0].mxu0
  %v3867 = vadd.f32 %v3578, %v3866
  %v3868 = vpop.f32.mrb[0].mxu0
  %3869 = vmatprep.mubr.bf16.mxu0 0
  %3870 = vmatmul.mubr.bf16.gmra.mrb[0].mxu0 %v3175
  %v3871 = vpop.f32.mrb[0].mxu0
  %v3872 = vadd.f32 %v3583, %v3871
  %v3873 = vpop.f32.mrb[0].mxu0
  %v3874 = vpop.f32.mrb[0].mxu0
  %v3875 = vadd.f32 %v3586, %v3874
  %v3876 = vpop.f32.mrb[0].mxu0
  %3877 = vmatprep.mubr.bf16.mxu0 0
  %3878 = vmatmul.mubr.bf16.gmra.mrb[0].mxu0 %v3178
  %v3879 = vpop.f32.mrb[0].mxu0
  %v3880 = vadd.f32 %v3591, %v3879
  %v3881 = vpop.f32.mrb[0].mxu0
  %v3882 = vpop.f32.mrb[0].mxu0
  %v3883 = vadd.f32 %v3594, %v3882
  %v3884 = vpop.f32.mrb[0].mxu0
  %3885 = vmatprep.mubr.bf16.mxu0 0
  %3886 = vmatmul.mubr.bf16.gmra.mrb[0].mxu0 %v3181
  %v3887 = vpop.f32.mrb[0].mxu0
  %v3888 = vadd.f32 %v3599, %v3887
  %v3889 = vpop.f32.mrb[0].mxu0
  %v3890 = vpop.f32.mrb[0].mxu0
  %v3891 = vadd.f32 %v3602, %v3890
  %v3892 = vpop.f32.mrb[0].mxu0
  %3893 = vmatprep.mubr.bf16.mxu0 0
  %3894 = vmatmul.mubr.bf16.gmra.mrb[0].mxu0 %v3184
  %v3895 = vpop.f32.mrb[0].mxu0
  %v3896 = vadd.f32 %v3607, %v3895
  %v3897 = vpop.f32.mrb[0].mxu0
  %v3898 = vpop.f32.mrb[0].mxu0
  %v3899 = vadd.f32 %v3610, %v3898
  %v3900 = vpop.f32.mrb[0].mxu0
  %3901 = vmatprep.mubr.bf16.mxu0 0
  %3902 = vmatmul.mubr.bf16.gmra.mrb[0].mxu0 %v3187
  %v3903 = vpop.f32.mrb[0].mxu0
  %v3904 = vadd.f32 %v3615, %v3903
  %v3905 = vpop.f32.mrb[0].mxu0
  %v3906 = vpop.f32.mrb[0].mxu0
  %v3907 = vadd.f32 %v3618, %v3906
  %v3908 = vpop.f32.mrb[0].mxu0
  %3909 = vmatprep.mubr.bf16.mxu0 0
  %3910 = vmatmul.mubr.bf16.gmra.mrb[0].mxu0 %v3190
  %v3911 = vpop.f32.mrb[0].mxu0
  %v3912 = vadd.f32 %v3623, %v3911
  %v3913 = vpop.f32.mrb[0].mxu0
  %v3914 = vpop.f32.mrb[0].mxu0
  %v3915 = vadd.f32 %v3626, %v3914
  %v3916 = vpop.f32.mrb[0].mxu0
  %3917 = vmatprep.mubr.bf16.mxu0 0
  %3918 = vmatmul.mubr.bf16.gmra.mrb[0].mxu0 %v3193
  %v3919 = vpop.f32.mrb[0].mxu0
  %v3920 = vadd.f32 %v3631, %v3919
  %v3921 = vpop.f32.mrb[0].mxu0
  %v3922 = vpop.f32.mrb[0].mxu0
  %v3923 = vadd.f32 %v3634, %v3922
  %v3924 = vpop.f32.mrb[0].mxu0
  %3925 = vmatprep.mubr.bf16.mxu0 0
  %3926 = vmatmul.mubr.bf16.gmra.mrb[0].mxu0 %v3196
  %v3927 = vpop.f32.mrb[0].mxu0
  %v3928 = vadd.f32 %v3639, %v3927
  %v3929 = vpop.f32.mrb[0].mxu0
  %v3930 = vpop.f32.mrb[0].mxu0
  %v3931 = vadd.f32 %v3642, %v3930
  %v3932 = vpop.f32.mrb[0].mxu0
  %3933 = vmatprep.mubr.bf16.mxu0 0
  %3934 = vmatmul.mubr.bf16.gmra.mrb[0].mxu0 %v3199
  %v3935 = vpop.f32.mrb[0].mxu0
  %v3936 = vadd.f32 %v3647, %v3935
  %v3937 = vpop.f32.mrb[0].mxu0
  %v3938 = vpop.f32.mrb[0].mxu0
  %v3939 = vadd.f32 %v3650, %v3938
  %v3940 = vpop.f32.mrb[0].mxu0
  %3941 = vmatprep.mubr.bf16.mxu0 0
  %3942 = vmatmul.mubr.bf16.gmra.mrb[0].mxu0 %v3202
  %v3943 = vpop.f32.mrb[0].mxu0
  %v3944 = vadd.f32 %v3655, %v3943
  %v3945 = vpop.f32.mrb[0].mxu0
  %v3946 = vpop.f32.mrb[0].mxu0
  %v3947 = vadd.f32 %v3658, %v3946
  %v3948 = vpop.f32.mrb[0].mxu0
  %3949 = vmatprep.mubr.bf16.mxu0 0
  %3950 = vmatmul.mubr.bf16.gmra.mrb[0].mxu0 %v3205
  %v3951 = vpop.f32.mrb[0].mxu0
  %v3952 = vadd.f32 %v3663, %v3951
  %v3953 = vpop.f32.mrb[0].mxu0
  %v3954 = vpop.f32.mrb[0].mxu0
  %v3955 = vadd.f32 %v3666, %v3954
  %v3956 = vpop.f32.mrb[0].mxu0
  %3957 = vmatprep.mubr.bf16.mxu0 0
  %3958 = vmatmul.mubr.bf16.gmra.mrb[0].mxu0 %v3208
  %v3959 = vpop.f32.mrb[0].mxu0
  %v3960 = vadd.f32 %v3671, %v3959
  %v3961 = vpop.f32.mrb[0].mxu0
  %v3962 = vpop.f32.mrb[0].mxu0
  %v3963 = vadd.f32 %v3674, %v3962
  %v3964 = vpop.f32.mrb[0].mxu0
  %3965 = vmatprep.mubr.bf16.mxu0 0
  %3966 = vmatmul.mubr.bf16.gmra.mrb[0].mxu0 %v3211
  %v3967 = vpop.f32.mrb[0].mxu0
  %v3968 = vadd.f32 %v3679, %v3967
  %v3969 = vpop.f32.mrb[0].mxu0
  %v3970 = vpop.f32.mrb[0].mxu0
  %v3971 = vadd.f32 %v3682, %v3970
  %v3972 = vpop.f32.mrb[0].mxu0
  %3973 = vmatprep.mubr.bf16.mxu0 0
  %3974 = vmatmul.mubr.bf16.gmra.mrb[0].mxu0 %v3214
  %v3975 = vpop.f32.mrb[0].mxu0
  %v3976 = vadd.f32 %v3687, %v3975
  %v3977 = vpop.f32.mrb[0].mxu0
  %v3978 = vpop.f32.mrb[0].mxu0
  %v3979 = vadd.f32 %v3690, %v3978
  %v3980 = vpop.f32.mrb[0].mxu0
  %3981 = vmatprep.mubr.bf16.mxu0 0
  %3982 = vmatmul.mubr.bf16.gmra.mrb[0].mxu0 %v3217
  %v3983 = vpop.f32.mrb[0].mxu0
  %v3984 = vadd.f32 %v3695, %v3983
  %v3985 = vpop.f32.mrb[0].mxu0
  %v3986 = vpop.f32.mrb[0].mxu0
  %v3987 = vadd.f32 %v3698, %v3986
  %v3988 = vpop.f32.mrb[0].mxu0
  %3989 = vmatprep.mubr.bf16.mxu0 0
  %3990 = vmatmul.mubr.bf16.gmra.mrb[0].mxu0 %v3220
  %v3991 = vpop.f32.mrb[0].mxu0
  %v3992 = vadd.f32 %v3703, %v3991
  %v3993 = vpop.f32.mrb[0].mxu0
  %v3994 = vpop.f32.mrb[0].mxu0
  %v3995 = vadd.f32 %v3706, %v3994
  %v3996 = vpop.f32.mrb[0].mxu0
  %3997 = vmatprep.mubr.bf16.mxu0 0
  %3998 = vmatmul.mubr.bf16.gmra.mrb[0].mxu0 %v3223
  %v3999 = vpop.f32.mrb[0].mxu0
  %v4000 = vadd.f32 %v3711, %v3999
  %v4001 = vpop.f32.mrb[0].mxu0
  %v4002 = vpop.f32.mrb[0].mxu0
  %v4003 = vadd.f32 %v3714, %v4002
  %v4004 = vpop.f32.mrb[0].mxu0
  %4005 = vmatprep.mubr.bf16.mxu0 0
  %4006 = vmatmul.mubr.bf16.gmra.mrb[0].mxu0 %v3226
  %v4007 = vpop.f32.mrb[0].mxu0
  %v4008 = vadd.f32 %v3719, %v4007
  %v4009 = vpop.f32.mrb[0].mxu0
  %v4010 = vpop.f32.mrb[0].mxu0
  %v4011 = vadd.f32 %v3722, %v4010
  %v4012 = vpop.f32.mrb[0].mxu0
  %4013 = vmatprep.mubr.bf16.mxu0 0
  %4014 = vmatmul.mubr.bf16.gmra.mrb[0].mxu0 %v3229
  %v4015 = vpop.f32.mrb[0].mxu0
  %v4016 = vadd.f32 %v3727, %v4015
  %v4017 = vpop.f32.mrb[0].mxu0
  %v4018 = vpop.f32.mrb[0].mxu0
  %v4019 = vadd.f32 %v3730, %v4018
  %v4020 = vpop.f32.mrb[0].mxu0
  %4021 = vmatprep.mubr.bf16.mxu0 0
  %4022 = vmatmul.mubr.bf16.gmra.mrb[0].mxu0 %v3232
  %v4023 = vpop.f32.mrb[0].mxu0
  %v4024 = vadd.f32 %v3735, %v4023
  %v4025 = vpop.f32.mrb[0].mxu0
  %v4026 = vpop.f32.mrb[0].mxu0
  %v4027 = vadd.f32 %v3738, %v4026
  %v4028 = vpop.f32.mrb[0].mxu0
  %4029 = vmatprep.mubr.bf16.mxu0 0
  %4030 = vmatmul.mubr.bf16.gmra.mrb[0].mxu0 %v3235
  %v4031 = vpop.f32.mrb[0].mxu0
  %v4032 = vadd.f32 %v3743, %v4031
  %v4033 = vpop.f32.mrb[0].mxu0
  %v4034 = vpop.f32.mrb[0].mxu0
  %v4035 = vadd.f32 %v3746, %v4034
  %v4036 = vpop.f32.mrb[0].mxu0
  %4037 = vdwg.mxu0
  %v4086 = vunpack.c.l.b16 %v2292
  %v4087 = vunpack.c.l.b16 %v2293
  %v4088 = vunpack.c.l.b16 %v2294
  %v4089 = vunpack.c.l.b16 %v2295
  %v4090 = vunpack.c.l.b16 %v2296
  %v4091 = vunpack.c.l.b16 %v2297
  %v4092 = vunpack.c.l.b16 %v2298
  %v4093 = vunpack.c.l.b16 %v2299
  %v4094 = vunpack.c.l.b16 %v2300
  %v4095 = vunpack.c.l.b16 %v2301
  %v4096 = vunpack.c.l.b16 %v2302
  %v4097 = vunpack.c.l.b16 %v2303
  %v4098 = vunpack.c.l.b16 %v2304
  %v4099 = vunpack.c.l.b16 %v2305
  %v4100 = vunpack.c.l.b16 %v2306
  %v4101 = vunpack.c.l.b16 %v2307
  %v4102 = vunpack.c.l.b16 %v2308
  %v4103 = vunpack.c.l.b16 %v2309
  %v4104 = vunpack.c.l.b16 %v2310
  %v4105 = vunpack.c.l.b16 %v2311
  %v4106 = vunpack.c.l.b16 %v2312
  %v4107 = vunpack.c.l.b16 %v2313
  %v4108 = vunpack.c.l.b16 %v2314
  %v4109 = vunpack.c.l.b16 %v2315
  %v4110 = vunpack.c.l.b16 %v2316
  %v4111 = vunpack.c.l.b16 %v2317
  %v4112 = vunpack.c.l.b16 %v2318
  %v4113 = vunpack.c.l.b16 %v2319
  %v4114 = vunpack.c.l.b16 %v2320
  %v4115 = vunpack.c.l.b16 %v2321
  %v4116 = vunpack.c.l.b16 %v2322
  %v4117 = vunpack.c.l.b16 %v2323
  %v4118 = vunpack.c.l.b16 %v2324
  %v4119 = vunpack.c.l.b16 %v2325
  %v4120 = vunpack.c.l.b16 %v2326
  %v4121 = vunpack.c.l.b16 %v2327
  %v4122 = vunpack.c.l.b16 %v2328
  %v4123 = vunpack.c.l.b16 %v2329
  %v4124 = vunpack.c.l.b16 %v2330
  %v4125 = vunpack.c.l.b16 %v2331
  %v4126 = vunpack.c.l.b16 %v2332
  %v4127 = vunpack.c.l.b16 %v2333
  %v4128 = vunpack.c.l.b16 %v2334
  %v4129 = vunpack.c.l.b16 %v2335
  %v4130 = vunpack.c.l.b16 %v2336
  %v4131 = vunpack.c.l.b16 %v2337
  %v4132 = vunpack.c.l.b16 %v2338
  %v4133 = vunpack.c.l.b16 %v2339
  %v4134 = vpack.c.b16 %v4087, %v4086
  %v4135 = vpack.c.b16 %v4089, %v4088
  %v4136 = vpack.c.b16 %v4091, %v4090
  %v4137 = vpack.c.b16 %v4093, %v4092
  %v4138 = vpack.c.b16 %v4095, %v4094
  %v4139 = vpack.c.b16 %v4097, %v4096
  %v4140 = vpack.c.b16 %v4099, %v4098
  %v4141 = vpack.c.b16 %v4101, %v4100
  %v4142 = vpack.c.b16 %v4103, %v4102
  %v4143 = vpack.c.b16 %v4105, %v4104
  %v4144 = vpack.c.b16 %v4107, %v4106
  %v4145 = vpack.c.b16 %v4109, %v4108
  %v4146 = vpack.c.b16 %v4111, %v4110
  %v4147 = vpack.c.b16 %v4113, %v4112
  %v4148 = vpack.c.b16 %v4115, %v4114
  %v4149 = vpack.c.b16 %v4117, %v4116
  %v4150 = vpack.c.b16 %v4119, %v4118
  %v4151 = vpack.c.b16 %v4121, %v4120
  %v4152 = vpack.c.b16 %v4123, %v4122
  %v4153 = vpack.c.b16 %v4125, %v4124
  %v4154 = vpack.c.b16 %v4127, %v4126
  %v4155 = vpack.c.b16 %v4129, %v4128
  %v4156 = vpack.c.b16 %v4131, %v4130
  %v4157 = vpack.c.b16 %v4133, %v4132
  %4182 = vmatprep.subr.bf16.mxu0 0
  %4183 = vmatpush1.bf16.msra.mxu0 %v4134
  %4184 = vmatprep.subr.bf16.mxu0 0
  %4185 = vmatpush1.bf16.msra.mxu0 %v4135
  %4186 = vmatprep.subr.bf16.mxu0 0
  %4187 = vmatpush1.bf16.msra.mxu0 %v4136
  %4188 = vmatprep.subr.bf16.mxu0 0
  %4189 = vmatpush1.bf16.msra.mxu0 %v4137
  %4190 = vmatprep.subr.bf16.mxu0 0
  %4191 = vmatpush1.bf16.msra.mxu0 %v4138
  %4192 = vmatprep.subr.bf16.mxu0 0
  %4193 = vmatpush1.bf16.msra.mxu0 %v4139
  %4194 = vmatprep.subr.bf16.mxu0 0
  %4195 = vmatpush1.bf16.msra.mxu0 %v4140
  %4196 = vmatprep.subr.bf16.mxu0 0
  %4197 = vmatpush1.bf16.msra.mxu0 %v4141
  %4198 = vmatprep.subr.bf16.mxu0 0
  %4199 = vmatpush1.bf16.msra.mxu0 %v4142
  %4200 = vmatprep.subr.bf16.mxu0 0
  %4201 = vmatpush1.bf16.msra.mxu0 %v4143
  %4202 = vmatprep.subr.bf16.mxu0 0
  %4203 = vmatpush1.bf16.msra.mxu0 %v4144
  %4204 = vmatprep.subr.bf16.mxu0 0
  %4205 = vmatpush1.bf16.msra.mxu0 %v4145
  %4206 = vmatprep.subr.bf16.mxu0 0
  %4207 = vmatpush1.bf16.msra.mxu0 %v4146
  %4208 = vmatprep.subr.bf16.mxu0 0
  %4209 = vmatpush1.bf16.msra.mxu0 %v4147
  %4210 = vmatprep.subr.bf16.mxu0 0
  %4211 = vmatpush1.bf16.msra.mxu0 %v4148
  %4212 = vmatprep.subr.bf16.mxu0 0
  %4213 = vmatpush1.bf16.msra.mxu0 %v4149
  %4214 = vmatprep.mubr.bf16.mxu0 %v1758
  %4215 = vmatmul.mubr.bf16.gmra.mrb[0].mxu0 %v1586
  %v4216 = vpop.f32.mrb[0].mxu0
  %v4217 = vadd.f32 %v3784, %v4216
  %v4218 = vpop.f32.mrb[0].mxu0
  %v4219 = vpop.f32.mrb[0].mxu0
  %v4220 = vadd.f32 %v3787, %v4219
  %v4221 = vpop.f32.mrb[0].mxu0
  %4222 = vmatprep.mubr.bf16.mxu0 %v1770
  %4223 = vmatmul.mubr.bf16.gmra.mrb[0].mxu0 %v1587
  %v4224 = vpop.f32.mrb[0].mxu0
  %v4225 = vadd.f32 %v3792, %v4224
  %v4226 = vpop.f32.mrb[0].mxu0
  %v4227 = vpop.f32.mrb[0].mxu0
  %v4228 = vadd.f32 %v3795, %v4227
  %v4229 = vpop.f32.mrb[0].mxu0
  %4230 = vmatprep.mubr.bf16.mxu0 %v1782
  %4231 = vmatmul.mubr.bf16.gmra.mrb[0].mxu0 %v1588
  %v4232 = vpop.f32.mrb[0].mxu0
  %v4233 = vadd.f32 %v3800, %v4232
  %v4234 = vpop.f32.mrb[0].mxu0
  %v4235 = vpop.f32.mrb[0].mxu0
  %v4236 = vadd.f32 %v3803, %v4235
  %v4237 = vpop.f32.mrb[0].mxu0
  %4238 = vmatprep.mubr.bf16.mxu0 %v1794
  %4239 = vmatmul.mubr.bf16.gmra.mrb[0].mxu0 %v1589
  %v4240 = vpop.f32.mrb[0].mxu0
  %v4241 = vadd.f32 %v3808, %v4240
  %v4242 = vpop.f32.mrb[0].mxu0
  %v4243 = vpop.f32.mrb[0].mxu0
  %v4244 = vadd.f32 %v3811, %v4243
  %v4245 = vpop.f32.mrb[0].mxu0
  %4246 = vmatprep.mubr.bf16.mxu0 %v1806
  %4247 = vmatmul.mubr.bf16.gmra.mrb[0].mxu0 %v1590
  %v4248 = vpop.f32.mrb[0].mxu0
  %v4249 = vadd.f32 %v3816, %v4248
  %v4250 = vpop.f32.mrb[0].mxu0
  %v4251 = vpop.f32.mrb[0].mxu0
  %v4252 = vadd.f32 %v3819, %v4251
  %v4253 = vpop.f32.mrb[0].mxu0
  %4254 = vmatprep.mubr.bf16.mxu0 %v1818
  %4255 = vmatmul.mubr.bf16.gmra.mrb[0].mxu0 %v1591
  %v4256 = vpop.f32.mrb[0].mxu0
  %v4257 = vadd.f32 %v3824, %v4256
  %v4258 = vpop.f32.mrb[0].mxu0
  %v4259 = vpop.f32.mrb[0].mxu0
  %v4260 = vadd.f32 %v3827, %v4259
  %v4261 = vpop.f32.mrb[0].mxu0
  %4262 = vmatprep.mubr.bf16.mxu0 %v1830
  %4263 = vmatmul.mubr.bf16.gmra.mrb[0].mxu0 %v1592
  %v4264 = vpop.f32.mrb[0].mxu0
  %v4265 = vadd.f32 %v3832, %v4264
  %v4266 = vpop.f32.mrb[0].mxu0
  %v4267 = vpop.f32.mrb[0].mxu0
  %v4268 = vadd.f32 %v3835, %v4267
  %v4269 = vpop.f32.mrb[0].mxu0
  %4270 = vmatprep.mubr.bf16.mxu0 %v1842
  %4271 = vmatmul.mubr.bf16.gmra.mrb[0].mxu0 %v1593
  %v4272 = vpop.f32.mrb[0].mxu0
  %v4273 = vadd.f32 %v3840, %v4272
  %v4274 = vpop.f32.mrb[0].mxu0
  %v4275 = vpop.f32.mrb[0].mxu0
  %v4276 = vadd.f32 %v3843, %v4275
  %v4277 = vpop.f32.mrb[0].mxu0
  %4278 = vmatprep.mubr.bf16.mxu0 %v1854
  %4279 = vmatmul.mubr.bf16.gmra.mrb[0].mxu0 %v1594
  %v4280 = vpop.f32.mrb[0].mxu0
  %v4281 = vadd.f32 %v3848, %v4280
  %v4282 = vpop.f32.mrb[0].mxu0
  %v4283 = vpop.f32.mrb[0].mxu0
  %v4284 = vadd.f32 %v3851, %v4283
  %v4285 = vpop.f32.mrb[0].mxu0
  %4286 = vmatprep.mubr.bf16.mxu0 %v1866
  %4287 = vmatmul.mubr.bf16.gmra.mrb[0].mxu0 %v1595
  %v4288 = vpop.f32.mrb[0].mxu0
  %v4289 = vadd.f32 %v3856, %v4288
  %v4290 = vpop.f32.mrb[0].mxu0
  %v4291 = vpop.f32.mrb[0].mxu0
  %v4292 = vadd.f32 %v3859, %v4291
  %v4293 = vpop.f32.mrb[0].mxu0
  %4294 = vmatprep.mubr.bf16.mxu0 %v1878
  %4295 = vmatmul.mubr.bf16.gmra.mrb[0].mxu0 %v1596
  %v4296 = vpop.f32.mrb[0].mxu0
  %v4297 = vadd.f32 %v3864, %v4296
  %v4298 = vpop.f32.mrb[0].mxu0
  %v4299 = vpop.f32.mrb[0].mxu0
  %v4300 = vadd.f32 %v3867, %v4299
  %v4301 = vpop.f32.mrb[0].mxu0
  %4302 = vmatprep.mubr.bf16.mxu0 %v1890
  %4303 = vmatmul.mubr.bf16.gmra.mrb[0].mxu0 %v1597
  %v4304 = vpop.f32.mrb[0].mxu0
  %v4305 = vadd.f32 %v3872, %v4304
  %v4306 = vpop.f32.mrb[0].mxu0
  %v4307 = vpop.f32.mrb[0].mxu0
  %v4308 = vadd.f32 %v3875, %v4307
  %v4309 = vpop.f32.mrb[0].mxu0
  %4310 = vmatprep.mubr.bf16.mxu0 %v1902
  %4311 = vmatmul.mubr.bf16.gmra.mrb[0].mxu0 %v1598
  %v4312 = vpop.f32.mrb[0].mxu0
  %v4313 = vadd.f32 %v3880, %v4312
  %v4314 = vpop.f32.mrb[0].mxu0
  %v4315 = vpop.f32.mrb[0].mxu0
  %v4316 = vadd.f32 %v3883, %v4315
  %v4317 = vpop.f32.mrb[0].mxu0
  %4318 = vmatprep.mubr.bf16.mxu0 %v1914
  %4319 = vmatmul.mubr.bf16.gmra.mrb[0].mxu0 %v1599
  %v4320 = vpop.f32.mrb[0].mxu0
  %v4321 = vadd.f32 %v3888, %v4320
  %v4322 = vpop.f32.mrb[0].mxu0
  %v4323 = vpop.f32.mrb[0].mxu0
  %v4324 = vadd.f32 %v3891, %v4323
  %v4325 = vpop.f32.mrb[0].mxu0
  %4326 = vmatprep.mubr.bf16.mxu0 %v1926
  %4327 = vmatmul.mubr.bf16.gmra.mrb[0].mxu0 %v1600
  %v4328 = vpop.f32.mrb[0].mxu0
  %v4329 = vadd.f32 %v3896, %v4328
  %v4330 = vpop.f32.mrb[0].mxu0
  %v4331 = vpop.f32.mrb[0].mxu0
  %v4332 = vadd.f32 %v3899, %v4331
  %v4333 = vpop.f32.mrb[0].mxu0
  %4334 = vmatprep.mubr.bf16.mxu0 %v1938
  %4335 = vmatmul.mubr.bf16.gmra.mrb[0].mxu0 %v1601
  %v4336 = vpop.f32.mrb[0].mxu0
  %v4337 = vadd.f32 %v3904, %v4336
  %v4338 = vpop.f32.mrb[0].mxu0
  %v4339 = vpop.f32.mrb[0].mxu0
  %v4340 = vadd.f32 %v3907, %v4339
  %v4341 = vpop.f32.mrb[0].mxu0
  %4342 = vmatprep.mubr.bf16.mxu0 %v1950
  %4343 = vmatmul.mubr.bf16.gmra.mrb[0].mxu0 %v1602
  %v4344 = vpop.f32.mrb[0].mxu0
  %v4345 = vadd.f32 %v3912, %v4344
  %v4346 = vpop.f32.mrb[0].mxu0
  %v4347 = vpop.f32.mrb[0].mxu0
  %v4348 = vadd.f32 %v3915, %v4347
  %v4349 = vpop.f32.mrb[0].mxu0
  %4350 = vmatprep.mubr.bf16.mxu0 %v1962
  %4351 = vmatmul.mubr.bf16.gmra.mrb[0].mxu0 %v1603
  %v4352 = vpop.f32.mrb[0].mxu0
  %v4353 = vadd.f32 %v3920, %v4352
  %v4354 = vpop.f32.mrb[0].mxu0
  %v4355 = vpop.f32.mrb[0].mxu0
  %v4356 = vadd.f32 %v3923, %v4355
  %v4357 = vpop.f32.mrb[0].mxu0
  %4358 = vmatprep.mubr.bf16.mxu0 %v1974
  %4359 = vmatmul.mubr.bf16.gmra.mrb[0].mxu0 %v1604
  %v4360 = vpop.f32.mrb[0].mxu0
  %v4361 = vadd.f32 %v3928, %v4360
  %v4362 = vpop.f32.mrb[0].mxu0
  %v4363 = vpop.f32.mrb[0].mxu0
  %v4364 = vadd.f32 %v3931, %v4363
  %v4365 = vpop.f32.mrb[0].mxu0
  %4366 = vmatprep.mubr.bf16.mxu0 %v1986
  %4367 = vmatmul.mubr.bf16.gmra.mrb[0].mxu0 %v1605
  %v4368 = vpop.f32.mrb[0].mxu0
  %v4369 = vadd.f32 %v3936, %v4368
  %v4370 = vpop.f32.mrb[0].mxu0
  %v4371 = vpop.f32.mrb[0].mxu0
  %v4372 = vadd.f32 %v3939, %v4371
  %v4373 = vpop.f32.mrb[0].mxu0
  %4374 = vmatprep.mubr.bf16.mxu0 %v1998
  %4375 = vmatmul.mubr.bf16.gmra.mrb[0].mxu0 %v1606
  %v4376 = vpop.f32.mrb[0].mxu0
  %v4377 = vadd.f32 %v3944, %v4376
  %v4378 = vpop.f32.mrb[0].mxu0
  %v4379 = vpop.f32.mrb[0].mxu0
  %v4380 = vadd.f32 %v3947, %v4379
  %v4381 = vpop.f32.mrb[0].mxu0
  %4382 = vmatprep.mubr.bf16.mxu0 %v2010
  %4383 = vmatmul.mubr.bf16.gmra.mrb[0].mxu0 %v1607
  %v4384 = vpop.f32.mrb[0].mxu0
  %v4385 = vadd.f32 %v3952, %v4384
  %v4386 = vpop.f32.mrb[0].mxu0
  %v4387 = vpop.f32.mrb[0].mxu0
  %v4388 = vadd.f32 %v3955, %v4387
  %v4389 = vpop.f32.mrb[0].mxu0
  %4390 = vmatprep.mubr.bf16.mxu0 %v2022
  %4391 = vmatmul.mubr.bf16.gmra.mrb[0].mxu0 %v1608
  %v4392 = vpop.f32.mrb[0].mxu0
  %v4393 = vadd.f32 %v3960, %v4392
  %v4394 = vpop.f32.mrb[0].mxu0
  %v4395 = vpop.f32.mrb[0].mxu0
  %v4396 = vadd.f32 %v3963, %v4395
  %v4397 = vpop.f32.mrb[0].mxu0
  %4398 = vmatprep.mubr.bf16.mxu0 %v2034
  %4399 = vmatmul.mubr.bf16.gmra.mrb[0].mxu0 %v1609
  %v4400 = vpop.f32.mrb[0].mxu0
  %v4401 = vadd.f32 %v3968, %v4400
  %v4402 = vpop.f32.mrb[0].mxu0
  %v4403 = vpop.f32.mrb[0].mxu0
  %v4404 = vadd.f32 %v3971, %v4403
  %v4405 = vpop.f32.mrb[0].mxu0
  %4406 = vmatprep.mubr.bf16.mxu0 %v2046
  %4407 = vmatmul.mubr.bf16.gmra.mrb[0].mxu0 %v1610
  %v4408 = vpop.f32.mrb[0].mxu0
  %v4409 = vadd.f32 %v3976, %v4408
  %v4410 = vpop.f32.mrb[0].mxu0
  %v4411 = vpop.f32.mrb[0].mxu0
  %v4412 = vadd.f32 %v3979, %v4411
  %v4413 = vpop.f32.mrb[0].mxu0
  %4414 = vmatprep.mubr.bf16.mxu0 %v2058
  %4415 = vmatmul.mubr.bf16.gmra.mrb[0].mxu0 %v1611
  %v4416 = vpop.f32.mrb[0].mxu0
  %v4417 = vadd.f32 %v3984, %v4416
  %v4418 = vpop.f32.mrb[0].mxu0
  %v4419 = vpop.f32.mrb[0].mxu0
  %v4420 = vadd.f32 %v3987, %v4419
  %v4421 = vpop.f32.mrb[0].mxu0
  %4422 = vmatprep.mubr.bf16.mxu0 %v2070
  %4423 = vmatmul.mubr.bf16.gmra.mrb[0].mxu0 %v1612
  %v4424 = vpop.f32.mrb[0].mxu0
  %v4425 = vadd.f32 %v3992, %v4424
  %v4426 = vpop.f32.mrb[0].mxu0
  %v4427 = vpop.f32.mrb[0].mxu0
  %v4428 = vadd.f32 %v3995, %v4427
  %v4429 = vpop.f32.mrb[0].mxu0
  %4430 = vmatprep.mubr.bf16.mxu0 %v2082
  %4431 = vmatmul.mubr.bf16.gmra.mrb[0].mxu0 %v1613
  %v4432 = vpop.f32.mrb[0].mxu0
  %v4433 = vadd.f32 %v4000, %v4432
  %v4434 = vpop.f32.mrb[0].mxu0
  %v4435 = vpop.f32.mrb[0].mxu0
  %v4436 = vadd.f32 %v4003, %v4435
  %v4437 = vpop.f32.mrb[0].mxu0
  %4438 = vmatprep.mubr.bf16.mxu0 %v2094
  %4439 = vmatmul.mubr.bf16.gmra.mrb[0].mxu0 %v1614
  %v4440 = vpop.f32.mrb[0].mxu0
  %v4441 = vadd.f32 %v4008, %v4440
  %v4442 = vpop.f32.mrb[0].mxu0
  %v4443 = vpop.f32.mrb[0].mxu0
  %v4444 = vadd.f32 %v4011, %v4443
  %v4445 = vpop.f32.mrb[0].mxu0
  %4446 = vmatprep.mubr.bf16.mxu0 %v2106
  %4447 = vmatmul.mubr.bf16.gmra.mrb[0].mxu0 %v1615
  %v4448 = vpop.f32.mrb[0].mxu0
  %v4449 = vadd.f32 %v4016, %v4448
  %v4450 = vpop.f32.mrb[0].mxu0
  %v4451 = vpop.f32.mrb[0].mxu0
  %v4452 = vadd.f32 %v4019, %v4451
  %v4453 = vpop.f32.mrb[0].mxu0
  %4454 = vmatprep.mubr.bf16.mxu0 %v2118
  %4455 = vmatmul.mubr.bf16.gmra.mrb[0].mxu0 %v1616
  %v4456 = vpop.f32.mrb[0].mxu0
  %v4457 = vadd.f32 %v4024, %v4456
  %v4458 = vpop.f32.mrb[0].mxu0
  %v4459 = vpop.f32.mrb[0].mxu0
  %v4460 = vadd.f32 %v4027, %v4459
  %v4461 = vpop.f32.mrb[0].mxu0
  %4462 = vmatprep.mubr.bf16.mxu0 %v2130
  %4463 = vmatmul.mubr.bf16.gmra.mrb[0].mxu0 %v1617
  %v4464 = vpop.f32.mrb[0].mxu0
  %v4465 = vadd.f32 %v4032, %v4464
  %v4466 = vpop.f32.mrb[0].mxu0
  %v4467 = vpop.f32.mrb[0].mxu0
  %v4468 = vadd.f32 %v4035, %v4467
  %v4469 = vpop.f32.mrb[0].mxu0
  %4470 = vdwg.mxu0
  %4471 = vmatprep.subr.bf16.mxu0 0
  %4472 = vmatpush1.bf16.msra.mxu0 %v4150
  %4473 = vmatprep.subr.bf16.mxu0 0
  %4474 = vmatpush1.bf16.msra.mxu0 %v4151
  %4475 = vmatprep.subr.bf16.mxu0 0
  %4476 = vmatpush1.bf16.msra.mxu0 %v4152
  %4477 = vmatprep.subr.bf16.mxu0 0
  %4478 = vmatpush1.bf16.msra.mxu0 %v4153
  %4479 = vmatprep.subr.bf16.mxu0 0
  %4480 = vmatpush1.bf16.msra.mxu0 %v4154
  %4481 = vmatprep.subr.bf16.mxu0 0
  %4482 = vmatpush1.bf16.msra.mxu0 %v4155
  %4483 = vmatprep.subr.bf16.mxu0 0
  %4484 = vmatpush1.bf16.msra.mxu0 %v4156
  %4485 = vmatprep.subr.bf16.mxu0 0
  %4486 = vmatpush1.bf16.msra.mxu0 %v4157
  %4487 = vmatprep.subr.bf16.mxu0 0
  %4488 = vmatpush1.bf16.msra.mxu0 0
  %4489 = vmatprep.subr.bf16.mxu0 0
  %4490 = vmatpush1.bf16.msra.mxu0 0
  %4491 = vmatprep.subr.bf16.mxu0 0
  %4492 = vmatpush1.bf16.msra.mxu0 0
  %4493 = vmatprep.subr.bf16.mxu0 0
  %4494 = vmatpush1.bf16.msra.mxu0 0
  %4495 = vmatprep.subr.bf16.mxu0 0
  %4496 = vmatpush1.bf16.msra.mxu0 0
  %4497 = vmatprep.subr.bf16.mxu0 0
  %4498 = vmatpush1.bf16.msra.mxu0 0
  %4499 = vmatprep.subr.bf16.mxu0 0
  %4500 = vmatpush1.bf16.msra.mxu0 0
  %4501 = vmatprep.subr.bf16.mxu0 0
  %4502 = vmatpush1.bf16.msra.mxu0 0
  %4503 = vmatprep.mubr.bf16.mxu0 0
  %4504 = vmatmul.mubr.bf16.gmra.mrb[0].mxu0 %v2166
  %v4505 = vpop.f32.mrb[0].mxu0
  %v4506 = vadd.f32 %v4217, %v4505
  %v4507 = vpop.f32.mrb[0].mxu0
  %v4508 = vpop.f32.mrb[0].mxu0
  %v4509 = vadd.f32 %v4220, %v4508
  %v4510 = vpop.f32.mrb[0].mxu0
  %4511 = vmatprep.mubr.bf16.mxu0 0
  %4512 = vmatmul.mubr.bf16.gmra.mrb[0].mxu0 %v2169
  %v4513 = vpop.f32.mrb[0].mxu0
  %v4514 = vadd.f32 %v4225, %v4513
  %v4515 = vpop.f32.mrb[0].mxu0
  %v4516 = vpop.f32.mrb[0].mxu0
  %v4517 = vadd.f32 %v4228, %v4516
  %v4518 = vpop.f32.mrb[0].mxu0
  %4519 = vmatprep.mubr.bf16.mxu0 0
  %4520 = vmatmul.mubr.bf16.gmra.mrb[0].mxu0 %v2172
  %v4521 = vpop.f32.mrb[0].mxu0
  %v4522 = vadd.f32 %v4233, %v4521
  %v4523 = vpop.f32.mrb[0].mxu0
  %v4524 = vpop.f32.mrb[0].mxu0
  %v4525 = vadd.f32 %v4236, %v4524
  %v4526 = vpop.f32.mrb[0].mxu0
  %4527 = vmatprep.mubr.bf16.mxu0 0
  %4528 = vmatmul.mubr.bf16.gmra.mrb[0].mxu0 %v2175
  %v4529 = vpop.f32.mrb[0].mxu0
  %v4530 = vadd.f32 %v4241, %v4529
  %v4531 = vpop.f32.mrb[0].mxu0
  %v4532 = vpop.f32.mrb[0].mxu0
  %v4533 = vadd.f32 %v4244, %v4532
  %v4534 = vpop.f32.mrb[0].mxu0
  %4535 = vmatprep.mubr.bf16.mxu0 0
  %4536 = vmatmul.mubr.bf16.gmra.mrb[0].mxu0 %v2178
  %v4537 = vpop.f32.mrb[0].mxu0
  %v4538 = vadd.f32 %v4249, %v4537
  %v4539 = vpop.f32.mrb[0].mxu0
  %v4540 = vpop.f32.mrb[0].mxu0
  %v4541 = vadd.f32 %v4252, %v4540
  %v4542 = vpop.f32.mrb[0].mxu0
  %4543 = vmatprep.mubr.bf16.mxu0 0
  %4544 = vmatmul.mubr.bf16.gmra.mrb[0].mxu0 %v2181
  %v4545 = vpop.f32.mrb[0].mxu0
  %v4546 = vadd.f32 %v4257, %v4545
  %v4547 = vpop.f32.mrb[0].mxu0
  %v4548 = vpop.f32.mrb[0].mxu0
  %v4549 = vadd.f32 %v4260, %v4548
  %v4550 = vpop.f32.mrb[0].mxu0
  %4551 = vmatprep.mubr.bf16.mxu0 0
  %4552 = vmatmul.mubr.bf16.gmra.mrb[0].mxu0 %v2184
  %v4553 = vpop.f32.mrb[0].mxu0
  %v4554 = vadd.f32 %v4265, %v4553
  %v4555 = vpop.f32.mrb[0].mxu0
  %v4556 = vpop.f32.mrb[0].mxu0
  %v4557 = vadd.f32 %v4268, %v4556
  %v4558 = vpop.f32.mrb[0].mxu0
  %4559 = vmatprep.mubr.bf16.mxu0 0
  %4560 = vmatmul.mubr.bf16.gmra.mrb[0].mxu0 %v2187
  %v4561 = vpop.f32.mrb[0].mxu0
  %v4562 = vadd.f32 %v4273, %v4561
  %v4563 = vpop.f32.mrb[0].mxu0
  %v4564 = vpop.f32.mrb[0].mxu0
  %v4565 = vadd.f32 %v4276, %v4564
  %v4566 = vpop.f32.mrb[0].mxu0
  %4567 = vmatprep.mubr.bf16.mxu0 0
  %4568 = vmatmul.mubr.bf16.gmra.mrb[0].mxu0 %v2190
  %v4569 = vpop.f32.mrb[0].mxu0
  %v4570 = vadd.f32 %v4281, %v4569
  %v4571 = vpop.f32.mrb[0].mxu0
  %v4572 = vpop.f32.mrb[0].mxu0
  %v4573 = vadd.f32 %v4284, %v4572
  %v4574 = vpop.f32.mrb[0].mxu0
  %4575 = vmatprep.mubr.bf16.mxu0 0
  %4576 = vmatmul.mubr.bf16.gmra.mrb[0].mxu0 %v2193
  %v4577 = vpop.f32.mrb[0].mxu0
  %v4578 = vadd.f32 %v4289, %v4577
  %v4579 = vpop.f32.mrb[0].mxu0
  %v4580 = vpop.f32.mrb[0].mxu0
  %v4581 = vadd.f32 %v4292, %v4580
  %v4582 = vpop.f32.mrb[0].mxu0
  %4583 = vmatprep.mubr.bf16.mxu0 0
  %4584 = vmatmul.mubr.bf16.gmra.mrb[0].mxu0 %v2196
  %v4585 = vpop.f32.mrb[0].mxu0
  %v4586 = vadd.f32 %v4297, %v4585
  %v4587 = vpop.f32.mrb[0].mxu0
  %v4588 = vpop.f32.mrb[0].mxu0
  %v4589 = vadd.f32 %v4300, %v4588
  %v4590 = vpop.f32.mrb[0].mxu0
  %4591 = vmatprep.mubr.bf16.mxu0 0
  %4592 = vmatmul.mubr.bf16.gmra.mrb[0].mxu0 %v2199
  %v4593 = vpop.f32.mrb[0].mxu0
  %v4594 = vadd.f32 %v4305, %v4593
  %v4595 = vpop.f32.mrb[0].mxu0
  %v4596 = vpop.f32.mrb[0].mxu0
  %v4597 = vadd.f32 %v4308, %v4596
  %v4598 = vpop.f32.mrb[0].mxu0
  %4599 = vmatprep.mubr.bf16.mxu0 0
  %4600 = vmatmul.mubr.bf16.gmra.mrb[0].mxu0 %v2202
  %v4601 = vpop.f32.mrb[0].mxu0
  %v4602 = vadd.f32 %v4313, %v4601
  %v4603 = vpop.f32.mrb[0].mxu0
  %v4604 = vpop.f32.mrb[0].mxu0
  %v4605 = vadd.f32 %v4316, %v4604
  %v4606 = vpop.f32.mrb[0].mxu0
  %4607 = vmatprep.mubr.bf16.mxu0 0
  %4608 = vmatmul.mubr.bf16.gmra.mrb[0].mxu0 %v2205
  %v4609 = vpop.f32.mrb[0].mxu0
  %v4610 = vadd.f32 %v4321, %v4609
  %v4611 = vpop.f32.mrb[0].mxu0
  %v4612 = vpop.f32.mrb[0].mxu0
  %v4613 = vadd.f32 %v4324, %v4612
  %v4614 = vpop.f32.mrb[0].mxu0
  %4615 = vmatprep.mubr.bf16.mxu0 0
  %4616 = vmatmul.mubr.bf16.gmra.mrb[0].mxu0 %v2208
  %v4617 = vpop.f32.mrb[0].mxu0
  %v4618 = vadd.f32 %v4329, %v4617
  %v4619 = vpop.f32.mrb[0].mxu0
  %v4620 = vpop.f32.mrb[0].mxu0
  %v4621 = vadd.f32 %v4332, %v4620
  %v4622 = vpop.f32.mrb[0].mxu0
  %4623 = vmatprep.mubr.bf16.mxu0 0
  %4624 = vmatmul.mubr.bf16.gmra.mrb[0].mxu0 %v2211
  %v4625 = vpop.f32.mrb[0].mxu0
  %v4626 = vadd.f32 %v4337, %v4625
  %v4627 = vpop.f32.mrb[0].mxu0
  %v4628 = vpop.f32.mrb[0].mxu0
  %v4629 = vadd.f32 %v4340, %v4628
  %v4630 = vpop.f32.mrb[0].mxu0
  %4631 = vmatprep.mubr.bf16.mxu0 0
  %4632 = vmatmul.mubr.bf16.gmra.mrb[0].mxu0 %v2214
  %v4633 = vpop.f32.mrb[0].mxu0
  %v4634 = vadd.f32 %v4345, %v4633
  %v4635 = vpop.f32.mrb[0].mxu0
  %v4636 = vpop.f32.mrb[0].mxu0
  %v4637 = vadd.f32 %v4348, %v4636
  %v4638 = vpop.f32.mrb[0].mxu0
  %4639 = vmatprep.mubr.bf16.mxu0 0
  %4640 = vmatmul.mubr.bf16.gmra.mrb[0].mxu0 %v2217
  %v4641 = vpop.f32.mrb[0].mxu0
  %v4642 = vadd.f32 %v4353, %v4641
  %v4643 = vpop.f32.mrb[0].mxu0
  %v4644 = vpop.f32.mrb[0].mxu0
  %v4645 = vadd.f32 %v4356, %v4644
  %v4646 = vpop.f32.mrb[0].mxu0
  %4647 = vmatprep.mubr.bf16.mxu0 0
  %4648 = vmatmul.mubr.bf16.gmra.mrb[0].mxu0 %v2220
  %v4649 = vpop.f32.mrb[0].mxu0
  %v4650 = vadd.f32 %v4361, %v4649
  %v4651 = vpop.f32.mrb[0].mxu0
  %v4652 = vpop.f32.mrb[0].mxu0
  %v4653 = vadd.f32 %v4364, %v4652
  %v4654 = vpop.f32.mrb[0].mxu0
  %4655 = vmatprep.mubr.bf16.mxu0 0
  %4656 = vmatmul.mubr.bf16.gmra.mrb[0].mxu0 %v2223
  %v4657 = vpop.f32.mrb[0].mxu0
  %v4658 = vadd.f32 %v4369, %v4657
  %v4659 = vpop.f32.mrb[0].mxu0
  %v4660 = vpop.f32.mrb[0].mxu0
  %v4661 = vadd.f32 %v4372, %v4660
  %v4662 = vpop.f32.mrb[0].mxu0
  %4663 = vmatprep.mubr.bf16.mxu0 0
  %4664 = vmatmul.mubr.bf16.gmra.mrb[0].mxu0 %v2226
  %v4665 = vpop.f32.mrb[0].mxu0
  %v4666 = vadd.f32 %v4377, %v4665
  %v4667 = vpop.f32.mrb[0].mxu0
  %v4668 = vpop.f32.mrb[0].mxu0
  %v4669 = vadd.f32 %v4380, %v4668
  %v4670 = vpop.f32.mrb[0].mxu0
  %4671 = vmatprep.mubr.bf16.mxu0 0
  %4672 = vmatmul.mubr.bf16.gmra.mrb[0].mxu0 %v2229
  %v4673 = vpop.f32.mrb[0].mxu0
  %v4674 = vadd.f32 %v4385, %v4673
  %v4675 = vpop.f32.mrb[0].mxu0
  %v4676 = vpop.f32.mrb[0].mxu0
  %v4677 = vadd.f32 %v4388, %v4676
  %v4678 = vpop.f32.mrb[0].mxu0
  %4679 = vmatprep.mubr.bf16.mxu0 0
  %4680 = vmatmul.mubr.bf16.gmra.mrb[0].mxu0 %v2232
  %v4681 = vpop.f32.mrb[0].mxu0
  %v4682 = vadd.f32 %v4393, %v4681
  %v4683 = vpop.f32.mrb[0].mxu0
  %v4684 = vpop.f32.mrb[0].mxu0
  %v4685 = vadd.f32 %v4396, %v4684
  %v4686 = vpop.f32.mrb[0].mxu0
  %4687 = vmatprep.mubr.bf16.mxu0 0
  %4688 = vmatmul.mubr.bf16.gmra.mrb[0].mxu0 %v2235
  %v4689 = vpop.f32.mrb[0].mxu0
  %v4690 = vadd.f32 %v4401, %v4689
  %v4691 = vpop.f32.mrb[0].mxu0
  %v4692 = vpop.f32.mrb[0].mxu0
  %v4693 = vadd.f32 %v4404, %v4692
  %v4694 = vpop.f32.mrb[0].mxu0
  %4695 = vmatprep.mubr.bf16.mxu0 0
  %4696 = vmatmul.mubr.bf16.gmra.mrb[0].mxu0 %v2238
  %v4697 = vpop.f32.mrb[0].mxu0
  %v4698 = vadd.f32 %v4409, %v4697
  %v4699 = vpop.f32.mrb[0].mxu0
  %v4700 = vpop.f32.mrb[0].mxu0
  %v4701 = vadd.f32 %v4412, %v4700
  %v4702 = vpop.f32.mrb[0].mxu0
  %4703 = vmatprep.mubr.bf16.mxu0 0
  %4704 = vmatmul.mubr.bf16.gmra.mrb[0].mxu0 %v2241
  %v4705 = vpop.f32.mrb[0].mxu0
  %v4706 = vadd.f32 %v4417, %v4705
  %v4707 = vpop.f32.mrb[0].mxu0
  %v4708 = vpop.f32.mrb[0].mxu0
  %v4709 = vadd.f32 %v4420, %v4708
  %v4710 = vpop.f32.mrb[0].mxu0
  %4711 = vmatprep.mubr.bf16.mxu0 0
  %4712 = vmatmul.mubr.bf16.gmra.mrb[0].mxu0 %v2244
  %v4713 = vpop.f32.mrb[0].mxu0
  %v4714 = vadd.f32 %v4425, %v4713
  %v4715 = vpop.f32.mrb[0].mxu0
  %v4716 = vpop.f32.mrb[0].mxu0
  %v4717 = vadd.f32 %v4428, %v4716
  %v4718 = vpop.f32.mrb[0].mxu0
  %4719 = vmatprep.mubr.bf16.mxu0 0
  %4720 = vmatmul.mubr.bf16.gmra.mrb[0].mxu0 %v2247
  %v4721 = vpop.f32.mrb[0].mxu0
  %v4722 = vadd.f32 %v4433, %v4721
  %v4723 = vpop.f32.mrb[0].mxu0
  %v4724 = vpop.f32.mrb[0].mxu0
  %v4725 = vadd.f32 %v4436, %v4724
  %v4726 = vpop.f32.mrb[0].mxu0
  %4727 = vmatprep.mubr.bf16.mxu0 0
  %4728 = vmatmul.mubr.bf16.gmra.mrb[0].mxu0 %v2250
  %v4729 = vpop.f32.mrb[0].mxu0
  %v4730 = vadd.f32 %v4441, %v4729
  %v4731 = vpop.f32.mrb[0].mxu0
  %v4732 = vpop.f32.mrb[0].mxu0
  %v4733 = vadd.f32 %v4444, %v4732
  %v4734 = vpop.f32.mrb[0].mxu0
  %4735 = vmatprep.mubr.bf16.mxu0 0
  %4736 = vmatmul.mubr.bf16.gmra.mrb[0].mxu0 %v2253
  %v4737 = vpop.f32.mrb[0].mxu0
  %v4738 = vadd.f32 %v4449, %v4737
  %v4739 = vpop.f32.mrb[0].mxu0
  %v4740 = vpop.f32.mrb[0].mxu0
  %v4741 = vadd.f32 %v4452, %v4740
  %v4742 = vpop.f32.mrb[0].mxu0
  %4743 = vmatprep.mubr.bf16.mxu0 0
  %4744 = vmatmul.mubr.bf16.gmra.mrb[0].mxu0 %v2256
  %v4745 = vpop.f32.mrb[0].mxu0
  %v4746 = vadd.f32 %v4457, %v4745
  %v4747 = vpop.f32.mrb[0].mxu0
  %v4748 = vpop.f32.mrb[0].mxu0
  %v4749 = vadd.f32 %v4460, %v4748
  %v4750 = vpop.f32.mrb[0].mxu0
  %4751 = vmatprep.mubr.bf16.mxu0 0
  %4752 = vmatmul.mubr.bf16.gmra.mrb[0].mxu0 %v2259
  %v4753 = vpop.f32.mrb[0].mxu0
  %v4754 = vadd.f32 %v4465, %v4753
  %v4755 = vpop.f32.mrb[0].mxu0
  %v4756 = vpop.f32.mrb[0].mxu0
  %v4757 = vadd.f32 %v4468, %v4756
  %v4758 = vpop.f32.mrb[0].mxu0
  %4759 = vdwg.mxu0
  %s4760 = scalar_lea.vmem [#allocation2], 24
  %v4761 = vld [vmem:[%s4760] sm:$0xf]
  %v4762 = vld [vmem:[%s4760 + $0x4] sm:$0xf]
  %v4763 = vld [vmem:[%s4760 + $0x8] sm:$0x1]
  %v4764 = vld [vmem:[%s4760 + $0xc] sm:$0xf]
  %v4765 = vld [vmem:[%s4760 + $0x10] sm:$0xf]
  %v4766 = vld [vmem:[%s4760 + $0x14] sm:$0x1]
  %v4767 = vld [vmem:[%s4760 + $0x18] sm:$0xf]
  %v4768 = vld [vmem:[%s4760 + $0x1c] sm:$0xf]
  %v4769 = vld [vmem:[%s4760 + $0x20] sm:$0x1]
  %v4770 = vld [vmem:[%s4760 + $0x24] sm:$0xf]
  %v4771 = vld [vmem:[%s4760 + $0x28] sm:$0xf]
  %v4772 = vld [vmem:[%s4760 + $0x2c] sm:$0x1]
  %v4773 = vld [vmem:[%s4760 + $0x30] sm:$0xf]
  %v4774 = vld [vmem:[%s4760 + $0x34] sm:$0xf]
  %v4775 = vld [vmem:[%s4760 + $0x38] sm:$0x1]
  %v4776 = vld [vmem:[%s4760 + $0x3c] sm:$0xf]
  %v4777 = vld [vmem:[%s4760 + $0x40] sm:$0xf]
  %v4778 = vld [vmem:[%s4760 + $0x44] sm:$0x1]
  %v4779 = vld [vmem:[%s4760 + $0x48] sm:$0xf]
  %v4780 = vld [vmem:[%s4760 + $0x4c] sm:$0xf]
  %v4781 = vld [vmem:[%s4760 + $0x50] sm:$0x1]
  %v4782 = vld [vmem:[%s4760 + $0x54] sm:$0xf]
  %v4783 = vld [vmem:[%s4760 + $0x58] sm:$0xf]
  %v4784 = vld [vmem:[%s4760 + $0x5c] sm:$0x1]
  %v4785 = vld [vmem:[%s4760 + $0x60] sm:$0xf]
  %v4786 = vld [vmem:[%s4760 + $0x64] sm:$0xf]
  %v4787 = vld [vmem:[%s4760 + $0x68] sm:$0x1]
  %v4788 = vld [vmem:[%s4760 + $0x6c] sm:$0xf]
  %v4789 = vld [vmem:[%s4760 + $0x70] sm:$0xf]
  %v4790 = vld [vmem:[%s4760 + $0x74] sm:$0x1]
  %v4791 = vld [vmem:[%s4760 + $0x78] sm:$0xf]
  %v4792 = vld [vmem:[%s4760 + $0x7c] sm:$0xf]
  %v4793 = vld [vmem:[%s4760 + $0x80] sm:$0x1]
  %v4794 = vld [vmem:[%s4760 + $0x84] sm:$0xf]
  %v4795 = vld [vmem:[%s4760 + $0x88] sm:$0xf]
  %v4796 = vld [vmem:[%s4760 + $0x8c] sm:$0x1]
  %v4797 = vld [vmem:[%s4760 + $0x90] sm:$0xf]
  %v4798 = vld [vmem:[%s4760 + $0x94] sm:$0xf]
  %v4799 = vld [vmem:[%s4760 + $0x98] sm:$0x1]
  %v4800 = vld [vmem:[%s4760 + $0x9c] sm:$0xf]
  %v4801 = vld [vmem:[%s4760 + $0xa0] sm:$0xf]
  %v4802 = vld [vmem:[%s4760 + $0xa4] sm:$0x1]
  %v4803 = vld [vmem:[%s4760 + $0xa8] sm:$0xf]
  %v4804 = vld [vmem:[%s4760 + $0xac] sm:$0xf]
  %v4805 = vld [vmem:[%s4760 + $0xb0] sm:$0x1]
  %v4806 = vld [vmem:[%s4760 + $0xb4] sm:$0xf]
  %v4807 = vld [vmem:[%s4760 + $0xb8] sm:$0xf]
  %v4808 = vld [vmem:[%s4760 + $0xbc] sm:$0x1]
  %v4809 = vld [vmem:[%s4760 + $0xd8] sm:$0xf]
  %v4810 = vld [vmem:[%s4760 + $0xdc] sm:$0xf]
  %v4811 = vld [vmem:[%s4760 + $0xe0] sm:$0x1]
  %v4812 = vld [vmem:[%s4760 + $0xe4] sm:$0xf]
  %v4813 = vld [vmem:[%s4760 + $0xe8] sm:$0xf]
  %v4814 = vld [vmem:[%s4760 + $0xec] sm:$0x1]
  %v4815 = vld [vmem:[%s4760 + $0xf0] sm:$0xf]
  %v4816 = vld [vmem:[%s4760 + $0xf4] sm:$0xf]
  %v4817 = vld [vmem:[%s4760 + $0xf8] sm:$0x1]
  %v4818 = vld [vmem:[%s4760 + $0xfc] sm:$0xf]
  %v4819 = vld [vmem:[%s4760 + $0x100] sm:$0xf]
  %v4820 = vld [vmem:[%s4760 + $0x104] sm:$0x1]
  %v4821 = vld [vmem:[%s4760 + $0x108] sm:$0xf]
  %v4822 = vld [vmem:[%s4760 + $0x10c] sm:$0xf]
  %v4823 = vld [vmem:[%s4760 + $0x110] sm:$0x1]
  %v4824 = vld [vmem:[%s4760 + $0x114] sm:$0xf]
  %v4825 = vld [vmem:[%s4760 + $0x118] sm:$0xf]
  %v4826 = vld [vmem:[%s4760 + $0x11c] sm:$0x1]
  %v4827 = vld [vmem:[%s4760 + $0x120] sm:$0xf]
  %v4828 = vld [vmem:[%s4760 + $0x124] sm:$0xf]
  %v4829 = vld [vmem:[%s4760 + $0x128] sm:$0x1]
  %v4830 = vld [vmem:[%s4760 + $0x12c] sm:$0xf]
  %v4831 = vld [vmem:[%s4760 + $0x130] sm:$0xf]
  %v4832 = vld [vmem:[%s4760 + $0x134] sm:$0x1]
  %v4833 = vld [vmem:[%s4760 + $0x138] sm:$0xf]
  %v4834 = vld [vmem:[%s4760 + $0x13c] sm:$0xf]
  %v4835 = vld [vmem:[%s4760 + $0x140] sm:$0x1]
  %v4836 = vld [vmem:[%s4760 + $0x144] sm:$0xf]
  %v4837 = vld [vmem:[%s4760 + $0x148] sm:$0xf]
  %v4838 = vld [vmem:[%s4760 + $0x14c] sm:$0x1]
  %v4839 = vld [vmem:[%s4760 + $0x150] sm:$0xf]
  %v4840 = vld [vmem:[%s4760 + $0x154] sm:$0xf]
  %v4841 = vld [vmem:[%s4760 + $0x158] sm:$0x1]
  %v4842 = vld [vmem:[%s4760 + $0x15c] sm:$0xf]
  %v4843 = vld [vmem:[%s4760 + $0x160] sm:$0xf]
  %v4844 = vld [vmem:[%s4760 + $0x164] sm:$0x1]
  %v4845 = vld [vmem:[%s4760 + $0x168] sm:$0xf]
  %v4846 = vld [vmem:[%s4760 + $0x16c] sm:$0xf]
  %v4847 = vld [vmem:[%s4760 + $0x170] sm:$0x1]
  %v4848 = vld [vmem:[%s4760 + $0x174] sm:$0xf]
  %v4849 = vld [vmem:[%s4760 + $0x178] sm:$0xf]
  %v4850 = vld [vmem:[%s4760 + $0x17c] sm:$0x1]
  %v4851 = vld [vmem:[%s4760 + $0x180] sm:$0xf]
  %v4852 = vld [vmem:[%s4760 + $0x184] sm:$0xf]
  %v4853 = vld [vmem:[%s4760 + $0x188] sm:$0x1]
  %v4854 = vld [vmem:[%s4760 + $0x18c] sm:$0xf]
  %v4855 = vld [vmem:[%s4760 + $0x190] sm:$0xf]
  %v4856 = vld [vmem:[%s4760 + $0x194] sm:$0x1]
  %v4921 = vunpack.c.l.b16 %v4761
  %v4922 = vunpack.c.l.b16 %v4762
  %v4923 = vunpack.c.l.b16 %v4764
  %v4924 = vunpack.c.l.b16 %v4765
  %v4925 = vunpack.c.l.b16 %v4767
  %v4926 = vunpack.c.l.b16 %v4768
  %v4927 = vunpack.c.l.b16 %v4770
  %v4928 = vunpack.c.l.b16 %v4771
  %v4929 = vunpack.c.l.b16 %v4773
  %v4930 = vunpack.c.l.b16 %v4774
  %v4931 = vunpack.c.l.b16 %v4776
  %v4932 = vunpack.c.l.b16 %v4777
  %v4933 = vunpack.c.l.b16 %v4779
  %v4934 = vunpack.c.l.b16 %v4780
  %v4935 = vunpack.c.l.b16 %v4782
  %v4936 = vunpack.c.l.b16 %v4783
  %v4937 = vunpack.c.l.b16 %v4785
  %v4938 = vunpack.c.l.b16 %v4786
  %v4939 = vunpack.c.l.b16 %v4788
  %v4940 = vunpack.c.l.b16 %v4789
  %v4941 = vunpack.c.l.b16 %v4791
  %v4942 = vunpack.c.l.b16 %v4792
  %v4943 = vunpack.c.l.b16 %v4794
  %v4944 = vunpack.c.l.b16 %v4795
  %v4945 = vunpack.c.l.b16 %v4797
  %v4946 = vunpack.c.l.b16 %v4798
  %v4947 = vunpack.c.l.b16 %v4800
  %v4948 = vunpack.c.l.b16 %v4801
  %v4949 = vunpack.c.l.b16 %v4803
  %v4950 = vunpack.c.l.b16 %v4804
  %v4951 = vunpack.c.l.b16 %v4806
  %v4952 = vunpack.c.l.b16 %v4807
  %v4953 = vunpack.c.l.b16 %v4809
  %v4954 = vunpack.c.l.b16 %v4810
  %v4955 = vunpack.c.l.b16 %v4812
  %v4956 = vunpack.c.l.b16 %v4813
  %v4957 = vunpack.c.l.b16 %v4815
  %v4958 = vunpack.c.l.b16 %v4816
  %v4959 = vunpack.c.l.b16 %v4818
  %v4960 = vunpack.c.l.b16 %v4819
  %v4961 = vunpack.c.l.b16 %v4821
  %v4962 = vunpack.c.l.b16 %v4822
  %v4963 = vunpack.c.l.b16 %v4824
  %v4964 = vunpack.c.l.b16 %v4825
  %v4965 = vunpack.c.l.b16 %v4827
  %v4966 = vunpack.c.l.b16 %v4828
  %v4967 = vunpack.c.l.b16 %v4830
  %v4968 = vunpack.c.l.b16 %v4831
  %v4969 = vunpack.c.l.b16 %v4833
  %v4970 = vunpack.c.l.b16 %v4834
  %v4971 = vunpack.c.l.b16 %v4836
  %v4972 = vunpack.c.l.b16 %v4837
  %v4973 = vunpack.c.l.b16 %v4839
  %v4974 = vunpack.c.l.b16 %v4840
  %v4975 = vunpack.c.l.b16 %v4842
  %v4976 = vunpack.c.l.b16 %v4843
  %v4977 = vunpack.c.l.b16 %v4845
  %v4978 = vunpack.c.l.b16 %v4846
  %v4979 = vunpack.c.l.b16 %v4848
  %v4980 = vunpack.c.l.b16 %v4849
  %v4981 = vunpack.c.l.b16 %v4851
  %v4982 = vunpack.c.l.b16 %v4852
  %v4983 = vunpack.c.l.b16 %v4854
  %v4984 = vunpack.c.l.b16 %v4855
  %v4985 = vpack.c.b16 %v4922, %v4921
  %v4986 = vpack.c.b16 %v4924, %v4923
  %v4987 = vpack.c.b16 %v4926, %v4925
  %v4988 = vpack.c.b16 %v4928, %v4927
  %v4989 = vpack.c.b16 %v4930, %v4929
  %v4990 = vpack.c.b16 %v4932, %v4931
  %v4991 = vpack.c.b16 %v4934, %v4933
  %v4992 = vpack.c.b16 %v4936, %v4935
  %v4993 = vpack.c.b16 %v4938, %v4937
  %v4994 = vpack.c.b16 %v4940, %v4939
  %v4995 = vpack.c.b16 %v4942, %v4941
  %v4996 = vpack.c.b16 %v4944, %v4943
  %v4997 = vpack.c.b16 %v4946, %v4945
  %v4998 = vpack.c.b16 %v4948, %v4947
  %v4999 = vpack.c.b16 %v4950, %v4949
  %v5000 = vpack.c.b16 %v4952, %v4951
  %v5001 = vpack.c.b16 %v4954, %v4953
  %v5002 = vpack.c.b16 %v4956, %v4955
  %v5003 = vpack.c.b16 %v4958, %v4957
  %v5004 = vpack.c.b16 %v4960, %v4959
  %v5005 = vpack.c.b16 %v4962, %v4961
  %v5006 = vpack.c.b16 %v4964, %v4963
  %v5007 = vpack.c.b16 %v4966, %v4965
  %v5008 = vpack.c.b16 %v4968, %v4967
  %v5009 = vpack.c.b16 %v4970, %v4969
  %v5010 = vpack.c.b16 %v4972, %v4971
  %v5011 = vpack.c.b16 %v4974, %v4973
  %v5012 = vpack.c.b16 %v4976, %v4975
  %v5013 = vpack.c.b16 %v4978, %v4977
  %v5014 = vpack.c.b16 %v4980, %v4979
  %v5015 = vpack.c.b16 %v4982, %v4981
  %v5016 = vpack.c.b16 %v4984, %v4983
  %v5081 = vunpack.c.l.b16 %v4763
  %v5082 = vunpack.c.l.b16 %v4766
  %v5083 = vunpack.c.l.b16 %v4769
  %v5084 = vunpack.c.l.b16 %v4772
  %v5085 = vunpack.c.l.b16 %v4775
  %v5086 = vunpack.c.l.b16 %v4778
  %v5087 = vunpack.c.l.b16 %v4781
  %v5088 = vunpack.c.l.b16 %v4784
  %v5089 = vunpack.c.l.b16 %v4787
  %v5090 = vunpack.c.l.b16 %v4790
  %v5091 = vunpack.c.l.b16 %v4793
  %v5092 = vunpack.c.l.b16 %v4796
  %v5093 = vunpack.c.l.b16 %v4799
  %v5094 = vunpack.c.l.b16 %v4802
  %v5095 = vunpack.c.l.b16 %v4805
  %v5096 = vunpack.c.l.b16 %v4808
  %v5097 = vunpack.c.l.b16 %v4811
  %v5098 = vunpack.c.l.b16 %v4814
  %v5099 = vunpack.c.l.b16 %v4817
  %v5100 = vunpack.c.l.b16 %v4820
  %v5101 = vunpack.c.l.b16 %v4823
  %v5102 = vunpack.c.l.b16 %v4826
  %v5103 = vunpack.c.l.b16 %v4829
  %v5104 = vunpack.c.l.b16 %v4832
  %v5105 = vunpack.c.l.b16 %v4835
  %v5106 = vunpack.c.l.b16 %v4838
  %v5107 = vunpack.c.l.b16 %v4841
  %v5108 = vunpack.c.l.b16 %v4844
  %v5109 = vunpack.c.l.b16 %v4847
  %v5110 = vunpack.c.l.b16 %v4850
  %v5111 = vunpack.c.l.b16 %v4853
  %v5112 = vunpack.c.l.b16 %v4856
  %v5113 = vpack.c.b16 %v5081, %v5081
  %v5114 = vpack.c.b16 %v5082, %v5082
  %v5115 = vpack.c.b16 %v5083, %v5083
  %v5116 = vpack.c.b16 %v5084, %v5084
  %v5117 = vpack.c.b16 %v5085, %v5085
  %v5118 = vpack.c.b16 %v5086, %v5086
  %v5119 = vpack.c.b16 %v5087, %v5087
  %v5120 = vpack.c.b16 %v5088, %v5088
  %v5121 = vpack.c.b16 %v5089, %v5089
  %v5122 = vpack.c.b16 %v5090, %v5090
  %v5123 = vpack.c.b16 %v5091, %v5091
  %v5124 = vpack.c.b16 %v5092, %v5092
  %v5125 = vpack.c.b16 %v5093, %v5093
  %v5126 = vpack.c.b16 %v5094, %v5094
  %v5127 = vpack.c.b16 %v5095, %v5095
  %v5128 = vpack.c.b16 %v5096, %v5096
  %v5129 = vpack.c.b16 %v5097, %v5097
  %v5130 = vpack.c.b16 %v5098, %v5098
  %v5131 = vpack.c.b16 %v5099, %v5099
  %v5132 = vpack.c.b16 %v5100, %v5100
  %v5133 = vpack.c.b16 %v5101, %v5101
  %v5134 = vpack.c.b16 %v5102, %v5102
  %v5135 = vpack.c.b16 %v5103, %v5103
  %v5136 = vpack.c.b16 %v5104, %v5104
  %v5137 = vpack.c.b16 %v5105, %v5105
  %v5138 = vpack.c.b16 %v5106, %v5106
  %v5139 = vpack.c.b16 %v5107, %v5107
  %v5140 = vpack.c.b16 %v5108, %v5108
  %v5141 = vpack.c.b16 %v5109, %v5109
  %v5142 = vpack.c.b16 %v5110, %v5110
  %v5143 = vpack.c.b16 %v5111, %v5111
  %v5144 = vpack.c.b16 %v5112, %v5112
  %v5146 = vshrl.u32 %v4985, 16
  %v5148 = vshll.u32 %v4985, 16
  %v5150 = vrot.slane %v5148, 1
  %v5151 = vor.u32 %v5146, %v5150
  %v5153 = vshll.u32 %v5113, 16
  %v5155 = vrot.slane %v5153, 1
  %v5156 = vsel %vm1746, %v5151, %v5155
  %v5158 = vshrl.u32 %v4986, 16
  %v5160 = vshll.u32 %v4986, 16
  %v5162 = vrot.slane %v5160, 1
  %v5163 = vor.u32 %v5158, %v5162
  %v5165 = vshll.u32 %v5114, 16
  %v5167 = vrot.slane %v5165, 1
  %v5168 = vsel %vm1746, %v5163, %v5167
  %v5170 = vshrl.u32 %v4987, 16
  %v5172 = vshll.u32 %v4987, 16
  %v5174 = vrot.slane %v5172, 1
  %v5175 = vor.u32 %v5170, %v5174
  %v5177 = vshll.u32 %v5115, 16
  %v5179 = vrot.slane %v5177, 1
  %v5180 = vsel %vm1746, %v5175, %v5179
  %v5182 = vshrl.u32 %v4988, 16
  %v5184 = vshll.u32 %v4988, 16
  %v5186 = vrot.slane %v5184, 1
  %v5187 = vor.u32 %v5182, %v5186
  %v5189 = vshll.u32 %v5116, 16
  %v5191 = vrot.slane %v5189, 1
  %v5192 = vsel %vm1746, %v5187, %v5191
  %v5194 = vshrl.u32 %v4989, 16
  %v5196 = vshll.u32 %v4989, 16
  %v5198 = vrot.slane %v5196, 1
  %v5199 = vor.u32 %v5194, %v5198
  %v5201 = vshll.u32 %v5117, 16
  %v5203 = vrot.slane %v5201, 1
  %v5204 = vsel %vm1746, %v5199, %v5203
  %v5206 = vshrl.u32 %v4990, 16
  %v5208 = vshll.u32 %v4990, 16
  %v5210 = vrot.slane %v5208, 1
  %v5211 = vor.u32 %v5206, %v5210
  %v5213 = vshll.u32 %v5118, 16
  %v5215 = vrot.slane %v5213, 1
  %v5216 = vsel %vm1746, %v5211, %v5215
  %v5218 = vshrl.u32 %v4991, 16
  %v5220 = vshll.u32 %v4991, 16
  %v5222 = vrot.slane %v5220, 1
  %v5223 = vor.u32 %v5218, %v5222
  %v5225 = vshll.u32 %v5119, 16
  %v5227 = vrot.slane %v5225, 1
  %v5228 = vsel %vm1746, %v5223, %v5227
  %v5230 = vshrl.u32 %v4992, 16
  %v5232 = vshll.u32 %v4992, 16
  %v5234 = vrot.slane %v5232, 1
  %v5235 = vor.u32 %v5230, %v5234
  %v5237 = vshll.u32 %v5120, 16
  %v5239 = vrot.slane %v5237, 1
  %v5240 = vsel %vm1746, %v5235, %v5239
  %v5242 = vshrl.u32 %v4993, 16
  %v5244 = vshll.u32 %v4993, 16
  %v5246 = vrot.slane %v5244, 1
  %v5247 = vor.u32 %v5242, %v5246
  %v5249 = vshll.u32 %v5121, 16
  %v5251 = vrot.slane %v5249, 1
  %v5252 = vsel %vm1746, %v5247, %v5251
  %v5254 = vshrl.u32 %v4994, 16
  %v5256 = vshll.u32 %v4994, 16
  %v5258 = vrot.slane %v5256, 1
  %v5259 = vor.u32 %v5254, %v5258
  %v5261 = vshll.u32 %v5122, 16
  %v5263 = vrot.slane %v5261, 1
  %v5264 = vsel %vm1746, %v5259, %v5263
  %v5266 = vshrl.u32 %v4995, 16
  %v5268 = vshll.u32 %v4995, 16
  %v5270 = vrot.slane %v5268, 1
  %v5271 = vor.u32 %v5266, %v5270
  %v5273 = vshll.u32 %v5123, 16
  %v5275 = vrot.slane %v5273, 1
  %v5276 = vsel %vm1746, %v5271, %v5275
  %v5278 = vshrl.u32 %v4996, 16
  %v5280 = vshll.u32 %v4996, 16
  %v5282 = vrot.slane %v5280, 1
  %v5283 = vor.u32 %v5278, %v5282
  %v5285 = vshll.u32 %v5124, 16
  %v5287 = vrot.slane %v5285, 1
  %v5288 = vsel %vm1746, %v5283, %v5287
  %v5290 = vshrl.u32 %v4997, 16
  %v5292 = vshll.u32 %v4997, 16
  %v5294 = vrot.slane %v5292, 1
  %v5295 = vor.u32 %v5290, %v5294
  %v5297 = vshll.u32 %v5125, 16
  %v5299 = vrot.slane %v5297, 1
  %v5300 = vsel %vm1746, %v5295, %v5299
  %v5302 = vshrl.u32 %v4998, 16
  %v5304 = vshll.u32 %v4998, 16
  %v5306 = vrot.slane %v5304, 1
  %v5307 = vor.u32 %v5302, %v5306
  %v5309 = vshll.u32 %v5126, 16
  %v5311 = vrot.slane %v5309, 1
  %v5312 = vsel %vm1746, %v5307, %v5311
  %v5314 = vshrl.u32 %v4999, 16
  %v5316 = vshll.u32 %v4999, 16
  %v5318 = vrot.slane %v5316, 1
  %v5319 = vor.u32 %v5314, %v5318
  %v5321 = vshll.u32 %v5127, 16
  %v5323 = vrot.slane %v5321, 1
  %v5324 = vsel %vm1746, %v5319, %v5323
  %v5326 = vshrl.u32 %v5000, 16
  %v5328 = vshll.u32 %v5000, 16
  %v5330 = vrot.slane %v5328, 1
  %v5331 = vor.u32 %v5326, %v5330
  %v5333 = vshll.u32 %v5128, 16
  %v5335 = vrot.slane %v5333, 1
  %v5336 = vsel %vm1746, %v5331, %v5335
  %v5338 = vshrl.u32 %v5001, 16
  %v5340 = vshll.u32 %v5001, 16
  %v5342 = vrot.slane %v5340, 1
  %v5343 = vor.u32 %v5338, %v5342
  %v5345 = vshll.u32 %v5129, 16
  %v5347 = vrot.slane %v5345, 1
  %v5348 = vsel %vm1746, %v5343, %v5347
  %v5350 = vshrl.u32 %v5002, 16
  %v5352 = vshll.u32 %v5002, 16
  %v5354 = vrot.slane %v5352, 1
  %v5355 = vor.u32 %v5350, %v5354
  %v5357 = vshll.u32 %v5130, 16
  %v5359 = vrot.slane %v5357, 1
  %v5360 = vsel %vm1746, %v5355, %v5359
  %v5362 = vshrl.u32 %v5003, 16
  %v5364 = vshll.u32 %v5003, 16
  %v5366 = vrot.slane %v5364, 1
  %v5367 = vor.u32 %v5362, %v5366
  %v5369 = vshll.u32 %v5131, 16
  %v5371 = vrot.slane %v5369, 1
  %v5372 = vsel %vm1746, %v5367, %v5371
  %v5374 = vshrl.u32 %v5004, 16
  %v5376 = vshll.u32 %v5004, 16
  %v5378 = vrot.slane %v5376, 1
  %v5379 = vor.u32 %v5374, %v5378
  %v5381 = vshll.u32 %v5132, 16
  %v5383 = vrot.slane %v5381, 1
  %v5384 = vsel %vm1746, %v5379, %v5383
  %v5386 = vshrl.u32 %v5005, 16
  %v5388 = vshll.u32 %v5005, 16
  %v5390 = vrot.slane %v5388, 1
  %v5391 = vor.u32 %v5386, %v5390
  %v5393 = vshll.u32 %v5133, 16
  %v5395 = vrot.slane %v5393, 1
  %v5396 = vsel %vm1746, %v5391, %v5395
  %v5398 = vshrl.u32 %v5006, 16
  %v5400 = vshll.u32 %v5006, 16
  %v5402 = vrot.slane %v5400, 1
  %v5403 = vor.u32 %v5398, %v5402
  %v5405 = vshll.u32 %v5134, 16
  %v5407 = vrot.slane %v5405, 1
  %v5408 = vsel %vm1746, %v5403, %v5407
  %v5410 = vshrl.u32 %v5007, 16
  %v5412 = vshll.u32 %v5007, 16
  %v5414 = vrot.slane %v5412, 1
  %v5415 = vor.u32 %v5410, %v5414
  %v5417 = vshll.u32 %v5135, 16
  %v5419 = vrot.slane %v5417, 1
  %v5420 = vsel %vm1746, %v5415, %v5419
  %v5422 = vshrl.u32 %v5008, 16
  %v5424 = vshll.u32 %v5008, 16
  %v5426 = vrot.slane %v5424, 1
  %v5427 = vor.u32 %v5422, %v5426
  %v5429 = vshll.u32 %v5136, 16
  %v5431 = vrot.slane %v5429, 1
  %v5432 = vsel %vm1746, %v5427, %v5431
  %v5434 = vshrl.u32 %v5009, 16
  %v5436 = vshll.u32 %v5009, 16
  %v5438 = vrot.slane %v5436, 1
  %v5439 = vor.u32 %v5434, %v5438
  %v5441 = vshll.u32 %v5137, 16
  %v5443 = vrot.slane %v5441, 1
  %v5444 = vsel %vm1746, %v5439, %v5443
  %v5446 = vshrl.u32 %v5010, 16
  %v5448 = vshll.u32 %v5010, 16
  %v5450 = vrot.slane %v5448, 1
  %v5451 = vor.u32 %v5446, %v5450
  %v5453 = vshll.u32 %v5138, 16
  %v5455 = vrot.slane %v5453, 1
  %v5456 = vsel %vm1746, %v5451, %v5455
  %v5458 = vshrl.u32 %v5011, 16
  %v5460 = vshll.u32 %v5011, 16
  %v5462 = vrot.slane %v5460, 1
  %v5463 = vor.u32 %v5458, %v5462
  %v5465 = vshll.u32 %v5139, 16
  %v5467 = vrot.slane %v5465, 1
  %v5468 = vsel %vm1746, %v5463, %v5467
  %v5470 = vshrl.u32 %v5012, 16
  %v5472 = vshll.u32 %v5012, 16
  %v5474 = vrot.slane %v5472, 1
  %v5475 = vor.u32 %v5470, %v5474
  %v5477 = vshll.u32 %v5140, 16
  %v5479 = vrot.slane %v5477, 1
  %v5480 = vsel %vm1746, %v5475, %v5479
  %v5482 = vshrl.u32 %v5013, 16
  %v5484 = vshll.u32 %v5013, 16
  %v5486 = vrot.slane %v5484, 1
  %v5487 = vor.u32 %v5482, %v5486
  %v5489 = vshll.u32 %v5141, 16
  %v5491 = vrot.slane %v5489, 1
  %v5492 = vsel %vm1746, %v5487, %v5491
  %v5494 = vshrl.u32 %v5014, 16
  %v5496 = vshll.u32 %v5014, 16
  %v5498 = vrot.slane %v5496, 1
  %v5499 = vor.u32 %v5494, %v5498
  %v5501 = vshll.u32 %v5142, 16
  %v5503 = vrot.slane %v5501, 1
  %v5504 = vsel %vm1746, %v5499, %v5503
  %v5506 = vshrl.u32 %v5015, 16
  %v5508 = vshll.u32 %v5015, 16
  %v5510 = vrot.slane %v5508, 1
  %v5511 = vor.u32 %v5506, %v5510
  %v5513 = vshll.u32 %v5143, 16
  %v5515 = vrot.slane %v5513, 1
  %v5516 = vsel %vm1746, %v5511, %v5515
  %v5518 = vshrl.u32 %v5016, 16
  %v5520 = vshll.u32 %v5016, 16
  %v5522 = vrot.slane %v5520, 1
  %v5523 = vor.u32 %v5518, %v5522
  %v5525 = vshll.u32 %v5144, 16
  %v5527 = vrot.slane %v5525, 1
  %v5528 = vsel %vm1746, %v5523, %v5527
  %v5561 = vrot.slane %v4985, 1
  %v5562 = vrot.slane %v5113, 1
  %v5563 = vsel %vm2163, %v5561, %v5562
  %v5564 = vrot.slane %v4986, 1
  %v5565 = vrot.slane %v5114, 1
  %v5566 = vsel %vm2163, %v5564, %v5565
  %v5567 = vrot.slane %v4987, 1
  %v5568 = vrot.slane %v5115, 1
  %v5569 = vsel %vm2163, %v5567, %v5568
  %v5570 = vrot.slane %v4988, 1
  %v5571 = vrot.slane %v5116, 1
  %v5572 = vsel %vm2163, %v5570, %v5571
  %v5573 = vrot.slane %v4989, 1
  %v5574 = vrot.slane %v5117, 1
  %v5575 = vsel %vm2163, %v5573, %v5574
  %v5576 = vrot.slane %v4990, 1
  %v5577 = vrot.slane %v5118, 1
  %v5578 = vsel %vm2163, %v5576, %v5577
  %v5579 = vrot.slane %v4991, 1
  %v5580 = vrot.slane %v5119, 1
  %v5581 = vsel %vm2163, %v5579, %v5580
  %v5582 = vrot.slane %v4992, 1
  %v5583 = vrot.slane %v5120, 1
  %v5584 = vsel %vm2163, %v5582, %v5583
  %v5585 = vrot.slane %v4993, 1
  %v5586 = vrot.slane %v5121, 1
  %v5587 = vsel %vm2163, %v5585, %v5586
  %v5588 = vrot.slane %v4994, 1
  %v5589 = vrot.slane %v5122, 1
  %v5590 = vsel %vm2163, %v5588, %v5589
  %v5591 = vrot.slane %v4995, 1
  %v5592 = vrot.slane %v5123, 1
  %v5593 = vsel %vm2163, %v5591, %v5592
  %v5594 = vrot.slane %v4996, 1
  %v5595 = vrot.slane %v5124, 1
  %v5596 = vsel %vm2163, %v5594, %v5595
  %v5597 = vrot.slane %v4997, 1
  %v5598 = vrot.slane %v5125, 1
  %v5599 = vsel %vm2163, %v5597, %v5598
  %v5600 = vrot.slane %v4998, 1
  %v5601 = vrot.slane %v5126, 1
  %v5602 = vsel %vm2163, %v5600, %v5601
  %v5603 = vrot.slane %v4999, 1
  %v5604 = vrot.slane %v5127, 1
  %v5605 = vsel %vm2163, %v5603, %v5604
  %v5606 = vrot.slane %v5000, 1
  %v5607 = vrot.slane %v5128, 1
  %v5608 = vsel %vm2163, %v5606, %v5607
  %v5609 = vrot.slane %v5001, 1
  %v5610 = vrot.slane %v5129, 1
  %v5611 = vsel %vm2163, %v5609, %v5610
  %v5612 = vrot.slane %v5002, 1
  %v5613 = vrot.slane %v5130, 1
  %v5614 = vsel %vm2163, %v5612, %v5613
  %v5615 = vrot.slane %v5003, 1
  %v5616 = vrot.slane %v5131, 1
  %v5617 = vsel %vm2163, %v5615, %v5616
  %v5618 = vrot.slane %v5004, 1
  %v5619 = vrot.slane %v5132, 1
  %v5620 = vsel %vm2163, %v5618, %v5619
  %v5621 = vrot.slane %v5005, 1
  %v5622 = vrot.slane %v5133, 1
  %v5623 = vsel %vm2163, %v5621, %v5622
  %v5624 = vrot.slane %v5006, 1
  %v5625 = vrot.slane %v5134, 1
  %v5626 = vsel %vm2163, %v5624, %v5625
  %v5627 = vrot.slane %v5007, 1
  %v5628 = vrot.slane %v5135, 1
  %v5629 = vsel %vm2163, %v5627, %v5628
  %v5630 = vrot.slane %v5008, 1
  %v5631 = vrot.slane %v5136, 1
  %v5632 = vsel %vm2163, %v5630, %v5631
  %v5633 = vrot.slane %v5009, 1
  %v5634 = vrot.slane %v5137, 1
  %v5635 = vsel %vm2163, %v5633, %v5634
  %v5636 = vrot.slane %v5010, 1
  %v5637 = vrot.slane %v5138, 1
  %v5638 = vsel %vm2163, %v5636, %v5637
  %v5639 = vrot.slane %v5011, 1
  %v5640 = vrot.slane %v5139, 1
  %v5641 = vsel %vm2163, %v5639, %v5640
  %v5642 = vrot.slane %v5012, 1
  %v5643 = vrot.slane %v5140, 1
  %v5644 = vsel %vm2163, %v5642, %v5643
  %v5645 = vrot.slane %v5013, 1
  %v5646 = vrot.slane %v5141, 1
  %v5647 = vsel %vm2163, %v5645, %v5646
  %v5648 = vrot.slane %v5014, 1
  %v5649 = vrot.slane %v5142, 1
  %v5650 = vsel %vm2163, %v5648, %v5649
  %v5651 = vrot.slane %v5015, 1
  %v5652 = vrot.slane %v5143, 1
  %v5653 = vsel %vm2163, %v5651, %v5652
  %v5654 = vrot.slane %v5016, 1
  %v5655 = vrot.slane %v5144, 1
  %v5656 = vsel %vm2163, %v5654, %v5655
  %v5689 = vld [vmem:[%s1 + $0x180] sm:$0xf]
  %v5690 = vld [vmem:[%s1 + $0x184] sm:$0xf]
  %v5691 = vld [vmem:[%s1 + $0x188] sm:$0xf]
  %v5692 = vld [vmem:[%s1 + $0x18c] sm:$0xf]
  %v5693 = vld [vmem:[%s1 + $0x190] sm:$0xf]
  %v5694 = vld [vmem:[%s1 + $0x194] sm:$0xf]
  %v5695 = vld [vmem:[%s1 + $0x198] sm:$0xf]
  %v5696 = vld [vmem:[%s1 + $0x19c] sm:$0xf]
  %v5697 = vld [vmem:[%s1 + $0x1a0] sm:$0xf]
  %v5698 = vld [vmem:[%s1 + $0x1a4] sm:$0xf]
  %v5699 = vld [vmem:[%s1 + $0x1a8] sm:$0xf]
  %v5700 = vld [vmem:[%s1 + $0x1ac] sm:$0xf]
  %v5701 = vld [vmem:[%s1 + $0x1b0] sm:$0xf]
  %v5702 = vld [vmem:[%s1 + $0x1b4] sm:$0xf]
  %v5703 = vld [vmem:[%s1 + $0x1b8] sm:$0xf]
  %v5704 = vld [vmem:[%s1 + $0x1bc] sm:$0xf]
  %v5705 = vld [vmem:[%s1 + $0x1c0] sm:$0xf]
  %v5706 = vld [vmem:[%s1 + $0x1c4] sm:$0xf]
  %v5707 = vld [vmem:[%s1 + $0x1c8] sm:$0xf]
  %v5708 = vld [vmem:[%s1 + $0x1cc] sm:$0xf]
  %v5709 = vld [vmem:[%s1 + $0x1d0] sm:$0xf]
  %v5710 = vld [vmem:[%s1 + $0x1d4] sm:$0xf]
  %v5711 = vld [vmem:[%s1 + $0x1d8] sm:$0xf]
  %v5712 = vld [vmem:[%s1 + $0x1dc] sm:$0xf]
  %v5713 = vld [vmem:[%s1 + $0x1e0] sm:$0xf]
  %v5714 = vld [vmem:[%s1 + $0x1e4] sm:$0xf]
  %v5715 = vld [vmem:[%s1 + $0x1e8] sm:$0xf]
  %v5716 = vld [vmem:[%s1 + $0x1ec] sm:$0xf]
  %v5717 = vld [vmem:[%s1 + $0x1f0] sm:$0xf]
  %v5718 = vld [vmem:[%s1 + $0x1f4] sm:$0xf]
  %v5719 = vld [vmem:[%s1 + $0x1f8] sm:$0xf]
  %v5720 = vld [vmem:[%s1 + $0x1fc] sm:$0xf]
  %v5721 = vld [vmem:[%s1 + $0x200] sm:$0xf]
  %v5722 = vld [vmem:[%s1 + $0x204] sm:$0xf]
  %v5723 = vld [vmem:[%s1 + $0x208] sm:$0xf]
  %v5724 = vld [vmem:[%s1 + $0x20c] sm:$0xf]
  %v5725 = vld [vmem:[%s1 + $0x210] sm:$0xf]
  %v5726 = vld [vmem:[%s1 + $0x214] sm:$0xf]
  %v5727 = vld [vmem:[%s1 + $0x218] sm:$0xf]
  %v5728 = vld [vmem:[%s1 + $0x21c] sm:$0xf]
  %v5729 = vld [vmem:[%s1 + $0x220] sm:$0xf]
  %v5730 = vld [vmem:[%s1 + $0x224] sm:$0xf]
  %v5731 = vld [vmem:[%s1 + $0x228] sm:$0xf]
  %v5732 = vld [vmem:[%s1 + $0x22c] sm:$0xf]
  %v5733 = vld [vmem:[%s1 + $0x230] sm:$0xf]
  %v5734 = vld [vmem:[%s1 + $0x234] sm:$0xf]
  %v5735 = vld [vmem:[%s1 + $0x238] sm:$0xf]
  %v5736 = vld [vmem:[%s1 + $0x23c] sm:$0xf]
  %v5785 = vunpack.c.l.b16 %v5689
  %v5786 = vunpack.c.l.b16 %v5690
  %v5787 = vunpack.c.l.b16 %v5691
  %v5788 = vunpack.c.l.b16 %v5692
  %v5789 = vunpack.c.l.b16 %v5693
  %v5790 = vunpack.c.l.b16 %v5694
  %v5791 = vunpack.c.l.b16 %v5695
  %v5792 = vunpack.c.l.b16 %v5696
  %v5793 = vunpack.c.l.b16 %v5697
  %v5794 = vunpack.c.l.b16 %v5698
  %v5795 = vunpack.c.l.b16 %v5699
  %v5796 = vunpack.c.l.b16 %v5700
  %v5797 = vunpack.c.l.b16 %v5701
  %v5798 = vunpack.c.l.b16 %v5702
  %v5799 = vunpack.c.l.b16 %v5703
  %v5800 = vunpack.c.l.b16 %v5704
  %v5801 = vunpack.c.l.b16 %v5705
  %v5802 = vunpack.c.l.b16 %v5706
  %v5803 = vunpack.c.l.b16 %v5707
  %v5804 = vunpack.c.l.b16 %v5708
  %v5805 = vunpack.c.l.b16 %v5709
  %v5806 = vunpack.c.l.b16 %v5710
  %v5807 = vunpack.c.l.b16 %v5711
  %v5808 = vunpack.c.l.b16 %v5712
  %v5809 = vunpack.c.l.b16 %v5713
  %v5810 = vunpack.c.l.b16 %v5714
  %v5811 = vunpack.c.l.b16 %v5715
  %v5812 = vunpack.c.l.b16 %v5716
  %v5813 = vunpack.c.l.b16 %v5717
  %v5814 = vunpack.c.l.b16 %v5718
  %v5815 = vunpack.c.l.b16 %v5719
  %v5816 = vunpack.c.l.b16 %v5720
  %v5817 = vunpack.c.l.b16 %v5721
  %v5818 = vunpack.c.l.b16 %v5722
  %v5819 = vunpack.c.l.b16 %v5723
  %v5820 = vunpack.c.l.b16 %v5724
  %v5821 = vunpack.c.l.b16 %v5725
  %v5822 = vunpack.c.l.b16 %v5726
  %v5823 = vunpack.c.l.b16 %v5727
  %v5824 = vunpack.c.l.b16 %v5728
  %v5825 = vunpack.c.l.b16 %v5729
  %v5826 = vunpack.c.l.b16 %v5730
  %v5827 = vunpack.c.l.b16 %v5731
  %v5828 = vunpack.c.l.b16 %v5732
  %v5829 = vunpack.c.l.b16 %v5733
  %v5830 = vunpack.c.l.b16 %v5734
  %v5831 = vunpack.c.l.b16 %v5735
  %v5832 = vunpack.c.l.b16 %v5736
  %v5833 = vpack.c.b16 %v5786, %v5785
  %v5834 = vpack.c.b16 %v5788, %v5787
  %v5835 = vpack.c.b16 %v5790, %v5789
  %v5836 = vpack.c.b16 %v5792, %v5791
  %v5837 = vpack.c.b16 %v5794, %v5793
  %v5838 = vpack.c.b16 %v5796, %v5795
  %v5839 = vpack.c.b16 %v5798, %v5797
  %v5840 = vpack.c.b16 %v5800, %v5799
  %v5841 = vpack.c.b16 %v5802, %v5801
  %v5842 = vpack.c.b16 %v5804, %v5803
  %v5843 = vpack.c.b16 %v5806, %v5805
  %v5844 = vpack.c.b16 %v5808, %v5807
  %v5845 = vpack.c.b16 %v5810, %v5809
  %v5846 = vpack.c.b16 %v5812, %v5811
  %v5847 = vpack.c.b16 %v5814, %v5813
  %v5848 = vpack.c.b16 %v5816, %v5815
  %v5849 = vpack.c.b16 %v5818, %v5817
  %v5850 = vpack.c.b16 %v5820, %v5819
  %v5851 = vpack.c.b16 %v5822, %v5821
  %v5852 = vpack.c.b16 %v5824, %v5823
  %v5853 = vpack.c.b16 %v5826, %v5825
  %v5854 = vpack.c.b16 %v5828, %v5827
  %v5855 = vpack.c.b16 %v5830, %v5829
  %v5856 = vpack.c.b16 %v5832, %v5831
  %5881 = vmatprep.subr.bf16.mxu0 0
  %5882 = vmatpush1.bf16.msra.mxu0 %v5833
  %5883 = vmatprep.subr.bf16.mxu0 0
  %5884 = vmatpush1.bf16.msra.mxu0 %v5834
  %5885 = vmatprep.subr.bf16.mxu0 0
  %5886 = vmatpush1.bf16.msra.mxu0 %v5835
  %5887 = vmatprep.subr.bf16.mxu0 0
  %5888 = vmatpush1.bf16.msra.mxu0 %v5836
  %5889 = vmatprep.subr.bf16.mxu0 0
  %5890 = vmatpush1.bf16.msra.mxu0 %v5837
  %5891 = vmatprep.subr.bf16.mxu0 0
  %5892 = vmatpush1.bf16.msra.mxu0 %v5838
  %5893 = vmatprep.subr.bf16.mxu0 0
  %5894 = vmatpush1.bf16.msra.mxu0 %v5839
  %5895 = vmatprep.subr.bf16.mxu0 0
  %5896 = vmatpush1.bf16.msra.mxu0 %v5840
  %5897 = vmatprep.subr.bf16.mxu0 0
  %5898 = vmatpush1.bf16.msra.mxu0 %v5841
  %5899 = vmatprep.subr.bf16.mxu0 0
  %5900 = vmatpush1.bf16.msra.mxu0 %v5842
  %5901 = vmatprep.subr.bf16.mxu0 0
  %5902 = vmatpush1.bf16.msra.mxu0 %v5843
  %5903 = vmatprep.subr.bf16.mxu0 0
  %5904 = vmatpush1.bf16.msra.mxu0 %v5844
  %5905 = vmatprep.subr.bf16.mxu0 0
  %5906 = vmatpush1.bf16.msra.mxu0 %v5845
  %5907 = vmatprep.subr.bf16.mxu0 0
  %5908 = vmatpush1.bf16.msra.mxu0 %v5846
  %5909 = vmatprep.subr.bf16.mxu0 0
  %5910 = vmatpush1.bf16.msra.mxu0 %v5847
  %5911 = vmatprep.subr.bf16.mxu0 0
  %5912 = vmatpush1.bf16.msra.mxu0 %v5848
  %5913 = vmatprep.mubr.bf16.mxu0 %v5156
  %5914 = vmatmul.mubr.bf16.gmra.mrb[0].mxu0 %v4985
  %v5915 = vpop.f32.mrb[0].mxu0
  %v5916 = vadd.f32 0.0, %v5915
  %v5917 = vpop.f32.mrb[0].mxu0
  %v5918 = vpop.f32.mrb[0].mxu0
  %v5919 = vadd.f32 0.0, %v5918
  %v5920 = vpop.f32.mrb[0].mxu0
  %5921 = vmatprep.mubr.bf16.mxu0 %v5168
  %5922 = vmatmul.mubr.bf16.gmra.mrb[0].mxu0 %v4986
  %v5923 = vpop.f32.mrb[0].mxu0
  %v5924 = vadd.f32 0.0, %v5923
  %v5925 = vpop.f32.mrb[0].mxu0
  %v5926 = vpop.f32.mrb[0].mxu0
  %v5927 = vadd.f32 0.0, %v5926
  %v5928 = vpop.f32.mrb[0].mxu0
  %5929 = vmatprep.mubr.bf16.mxu0 %v5180
  %5930 = vmatmul.mubr.bf16.gmra.mrb[0].mxu0 %v4987
  %v5931 = vpop.f32.mrb[0].mxu0
  %v5932 = vadd.f32 0.0, %v5931
  %v5933 = vpop.f32.mrb[0].mxu0
  %v5934 = vpop.f32.mrb[0].mxu0
  %v5935 = vadd.f32 0.0, %v5934
  %v5936 = vpop.f32.mrb[0].mxu0
  %5937 = vmatprep.mubr.bf16.mxu0 %v5192
  %5938 = vmatmul.mubr.bf16.gmra.mrb[0].mxu0 %v4988
  %v5939 = vpop.f32.mrb[0].mxu0
  %v5940 = vadd.f32 0.0, %v5939
  %v5941 = vpop.f32.mrb[0].mxu0
  %v5942 = vpop.f32.mrb[0].mxu0
  %v5943 = vadd.f32 0.0, %v5942
  %v5944 = vpop.f32.mrb[0].mxu0
  %5945 = vmatprep.mubr.bf16.mxu0 %v5204
  %5946 = vmatmul.mubr.bf16.gmra.mrb[0].mxu0 %v4989
  %v5947 = vpop.f32.mrb[0].mxu0
  %v5948 = vadd.f32 0.0, %v5947
  %v5949 = vpop.f32.mrb[0].mxu0
  %v5950 = vpop.f32.mrb[0].mxu0
  %v5951 = vadd.f32 0.0, %v5950
  %v5952 = vpop.f32.mrb[0].mxu0
  %5953 = vmatprep.mubr.bf16.mxu0 %v5216
  %5954 = vmatmul.mubr.bf16.gmra.mrb[0].mxu0 %v4990
  %v5955 = vpop.f32.mrb[0].mxu0
  %v5956 = vadd.f32 0.0, %v5955
  %v5957 = vpop.f32.mrb[0].mxu0
  %v5958 = vpop.f32.mrb[0].mxu0
  %v5959 = vadd.f32 0.0, %v5958
  %v5960 = vpop.f32.mrb[0].mxu0
  %5961 = vmatprep.mubr.bf16.mxu0 %v5228
  %5962 = vmatmul.mubr.bf16.gmra.mrb[0].mxu0 %v4991
  %v5963 = vpop.f32.mrb[0].mxu0
  %v5964 = vadd.f32 0.0, %v5963
  %v5965 = vpop.f32.mrb[0].mxu0
  %v5966 = vpop.f32.mrb[0].mxu0
  %v5967 = vadd.f32 0.0, %v5966
  %v5968 = vpop.f32.mrb[0].mxu0
  %5969 = vmatprep.mubr.bf16.mxu0 %v5240
  %5970 = vmatmul.mubr.bf16.gmra.mrb[0].mxu0 %v4992
  %v5971 = vpop.f32.mrb[0].mxu0
  %v5972 = vadd.f32 0.0, %v5971
  %v5973 = vpop.f32.mrb[0].mxu0
  %v5974 = vpop.f32.mrb[0].mxu0
  %v5975 = vadd.f32 0.0, %v5974
  %v5976 = vpop.f32.mrb[0].mxu0
  %5977 = vmatprep.mubr.bf16.mxu0 %v5252
  %5978 = vmatmul.mubr.bf16.gmra.mrb[0].mxu0 %v4993
  %v5979 = vpop.f32.mrb[0].mxu0
  %v5980 = vadd.f32 0.0, %v5979
  %v5981 = vpop.f32.mrb[0].mxu0
  %v5982 = vpop.f32.mrb[0].mxu0
  %v5983 = vadd.f32 0.0, %v5982
  %v5984 = vpop.f32.mrb[0].mxu0
  %5985 = vmatprep.mubr.bf16.mxu0 %v5264
  %5986 = vmatmul.mubr.bf16.gmra.mrb[0].mxu0 %v4994
  %v5987 = vpop.f32.mrb[0].mxu0
  %v5988 = vadd.f32 0.0, %v5987
  %v5989 = vpop.f32.mrb[0].mxu0
  %v5990 = vpop.f32.mrb[0].mxu0
  %v5991 = vadd.f32 0.0, %v5990
  %v5992 = vpop.f32.mrb[0].mxu0
  %5993 = vmatprep.mubr.bf16.mxu0 %v5276
  %5994 = vmatmul.mubr.bf16.gmra.mrb[0].mxu0 %v4995
  %v5995 = vpop.f32.mrb[0].mxu0
  %v5996 = vadd.f32 0.0, %v5995
  %v5997 = vpop.f32.mrb[0].mxu0
  %v5998 = vpop.f32.mrb[0].mxu0
  %v5999 = vadd.f32 0.0, %v5998
  %v6000 = vpop.f32.mrb[0].mxu0
  %6001 = vmatprep.mubr.bf16.mxu0 %v5288
  %6002 = vmatmul.mubr.bf16.gmra.mrb[0].mxu0 %v4996
  %v6003 = vpop.f32.mrb[0].mxu0
  %v6004 = vadd.f32 0.0, %v6003
  %v6005 = vpop.f32.mrb[0].mxu0
  %v6006 = vpop.f32.mrb[0].mxu0
  %v6007 = vadd.f32 0.0, %v6006
  %v6008 = vpop.f32.mrb[0].mxu0
  %6009 = vmatprep.mubr.bf16.mxu0 %v5300
  %6010 = vmatmul.mubr.bf16.gmra.mrb[0].mxu0 %v4997
  %v6011 = vpop.f32.mrb[0].mxu0
  %v6012 = vadd.f32 0.0, %v6011
  %v6013 = vpop.f32.mrb[0].mxu0
  %v6014 = vpop.f32.mrb[0].mxu0
  %v6015 = vadd.f32 0.0, %v6014
  %v6016 = vpop.f32.mrb[0].mxu0
  %6017 = vmatprep.mubr.bf16.mxu0 %v5312
  %6018 = vmatmul.mubr.bf16.gmra.mrb[0].mxu0 %v4998
  %v6019 = vpop.f32.mrb[0].mxu0
  %v6020 = vadd.f32 0.0, %v6019
  %v6021 = vpop.f32.mrb[0].mxu0
  %v6022 = vpop.f32.mrb[0].mxu0
  %v6023 = vadd.f32 0.0, %v6022
  %v6024 = vpop.f32.mrb[0].mxu0
  %6025 = vmatprep.mubr.bf16.mxu0 %v5324
  %6026 = vmatmul.mubr.bf16.gmra.mrb[0].mxu0 %v4999
  %v6027 = vpop.f32.mrb[0].mxu0
  %v6028 = vadd.f32 0.0, %v6027
  %v6029 = vpop.f32.mrb[0].mxu0
  %v6030 = vpop.f32.mrb[0].mxu0
  %v6031 = vadd.f32 0.0, %v6030
  %v6032 = vpop.f32.mrb[0].mxu0
  %6033 = vmatprep.mubr.bf16.mxu0 %v5336
  %6034 = vmatmul.mubr.bf16.gmra.mrb[0].mxu0 %v5000
  %v6035 = vpop.f32.mrb[0].mxu0
  %v6036 = vadd.f32 0.0, %v6035
  %v6037 = vpop.f32.mrb[0].mxu0
  %v6038 = vpop.f32.mrb[0].mxu0
  %v6039 = vadd.f32 0.0, %v6038
  %v6040 = vpop.f32.mrb[0].mxu0
  %6041 = vmatprep.mubr.bf16.mxu0 %v5348
  %6042 = vmatmul.mubr.bf16.gmra.mrb[0].mxu0 %v5001
  %v6043 = vpop.f32.mrb[0].mxu0
  %v6044 = vadd.f32 0.0, %v6043
  %v6045 = vpop.f32.mrb[0].mxu0
  %v6046 = vpop.f32.mrb[0].mxu0
  %v6047 = vadd.f32 0.0, %v6046
  %v6048 = vpop.f32.mrb[0].mxu0
  %6049 = vmatprep.mubr.bf16.mxu0 %v5360
  %6050 = vmatmul.mubr.bf16.gmra.mrb[0].mxu0 %v5002
  %v6051 = vpop.f32.mrb[0].mxu0
  %v6052 = vadd.f32 0.0, %v6051
  %v6053 = vpop.f32.mrb[0].mxu0
  %v6054 = vpop.f32.mrb[0].mxu0
  %v6055 = vadd.f32 0.0, %v6054
  %v6056 = vpop.f32.mrb[0].mxu0
  %6057 = vmatprep.mubr.bf16.mxu0 %v5372
  %6058 = vmatmul.mubr.bf16.gmra.mrb[0].mxu0 %v5003
  %v6059 = vpop.f32.mrb[0].mxu0
  %v6060 = vadd.f32 0.0, %v6059
  %v6061 = vpop.f32.mrb[0].mxu0
  %v6062 = vpop.f32.mrb[0].mxu0
  %v6063 = vadd.f32 0.0, %v6062
  %v6064 = vpop.f32.mrb[0].mxu0
  %6065 = vmatprep.mubr.bf16.mxu0 %v5384
  %6066 = vmatmul.mubr.bf16.gmra.mrb[0].mxu0 %v5004
  %v6067 = vpop.f32.mrb[0].mxu0
  %v6068 = vadd.f32 0.0, %v6067
  %v6069 = vpop.f32.mrb[0].mxu0
  %v6070 = vpop.f32.mrb[0].mxu0
  %v6071 = vadd.f32 0.0, %v6070
  %v6072 = vpop.f32.mrb[0].mxu0
  %6073 = vmatprep.mubr.bf16.mxu0 %v5396
  %6074 = vmatmul.mubr.bf16.gmra.mrb[0].mxu0 %v5005
  %v6075 = vpop.f32.mrb[0].mxu0
  %v6076 = vadd.f32 0.0, %v6075
  %v6077 = vpop.f32.mrb[0].mxu0
  %v6078 = vpop.f32.mrb[0].mxu0
  %v6079 = vadd.f32 0.0, %v6078
  %v6080 = vpop.f32.mrb[0].mxu0
  %6081 = vmatprep.mubr.bf16.mxu0 %v5408
  %6082 = vmatmul.mubr.bf16.gmra.mrb[0].mxu0 %v5006
  %v6083 = vpop.f32.mrb[0].mxu0
  %v6084 = vadd.f32 0.0, %v6083
  %v6085 = vpop.f32.mrb[0].mxu0
  %v6086 = vpop.f32.mrb[0].mxu0
  %v6087 = vadd.f32 0.0, %v6086
  %v6088 = vpop.f32.mrb[0].mxu0
  %6089 = vmatprep.mubr.bf16.mxu0 %v5420
  %6090 = vmatmul.mubr.bf16.gmra.mrb[0].mxu0 %v5007
  %v6091 = vpop.f32.mrb[0].mxu0
  %v6092 = vadd.f32 0.0, %v6091
  %v6093 = vpop.f32.mrb[0].mxu0
  %v6094 = vpop.f32.mrb[0].mxu0
  %v6095 = vadd.f32 0.0, %v6094
  %v6096 = vpop.f32.mrb[0].mxu0
  %6097 = vmatprep.mubr.bf16.mxu0 %v5432
  %6098 = vmatmul.mubr.bf16.gmra.mrb[0].mxu0 %v5008
  %v6099 = vpop.f32.mrb[0].mxu0
  %v6100 = vadd.f32 0.0, %v6099
  %v6101 = vpop.f32.mrb[0].mxu0
  %v6102 = vpop.f32.mrb[0].mxu0
  %v6103 = vadd.f32 0.0, %v6102
  %v6104 = vpop.f32.mrb[0].mxu0
  %6105 = vmatprep.mubr.bf16.mxu0 %v5444
  %6106 = vmatmul.mubr.bf16.gmra.mrb[0].mxu0 %v5009
  %v6107 = vpop.f32.mrb[0].mxu0
  %v6108 = vadd.f32 0.0, %v6107
  %v6109 = vpop.f32.mrb[0].mxu0
  %v6110 = vpop.f32.mrb[0].mxu0
  %v6111 = vadd.f32 0.0, %v6110
  %v6112 = vpop.f32.mrb[0].mxu0
  %6113 = vmatprep.mubr.bf16.mxu0 %v5456
  %6114 = vmatmul.mubr.bf16.gmra.mrb[0].mxu0 %v5010
  %v6115 = vpop.f32.mrb[0].mxu0
  %v6116 = vadd.f32 0.0, %v6115
  %v6117 = vpop.f32.mrb[0].mxu0
  %v6118 = vpop.f32.mrb[0].mxu0
  %v6119 = vadd.f32 0.0, %v6118
  %v6120 = vpop.f32.mrb[0].mxu0
  %6121 = vmatprep.mubr.bf16.mxu0 %v5468
  %6122 = vmatmul.mubr.bf16.gmra.mrb[0].mxu0 %v5011
  %v6123 = vpop.f32.mrb[0].mxu0
  %v6124 = vadd.f32 0.0, %v6123
  %v6125 = vpop.f32.mrb[0].mxu0
  %v6126 = vpop.f32.mrb[0].mxu0
  %v6127 = vadd.f32 0.0, %v6126
  %v6128 = vpop.f32.mrb[0].mxu0
  %6129 = vmatprep.mubr.bf16.mxu0 %v5480
  %6130 = vmatmul.mubr.bf16.gmra.mrb[0].mxu0 %v5012
  %v6131 = vpop.f32.mrb[0].mxu0
  %v6132 = vadd.f32 0.0, %v6131
  %v6133 = vpop.f32.mrb[0].mxu0
  %v6134 = vpop.f32.mrb[0].mxu0
  %v6135 = vadd.f32 0.0, %v6134
  %v6136 = vpop.f32.mrb[0].mxu0
  %6137 = vmatprep.mubr.bf16.mxu0 %v5492
  %6138 = vmatmul.mubr.bf16.gmra.mrb[0].mxu0 %v5013
  %v6139 = vpop.f32.mrb[0].mxu0
  %v6140 = vadd.f32 0.0, %v6139
  %v6141 = vpop.f32.mrb[0].mxu0
  %v6142 = vpop.f32.mrb[0].mxu0
  %v6143 = vadd.f32 0.0, %v6142
  %v6144 = vpop.f32.mrb[0].mxu0
  %6145 = vmatprep.mubr.bf16.mxu0 %v5504
  %6146 = vmatmul.mubr.bf16.gmra.mrb[0].mxu0 %v5014
  %v6147 = vpop.f32.mrb[0].mxu0
  %v6148 = vadd.f32 0.0, %v6147
  %v6149 = vpop.f32.mrb[0].mxu0
  %v6150 = vpop.f32.mrb[0].mxu0
  %v6151 = vadd.f32 0.0, %v6150
  %v6152 = vpop.f32.mrb[0].mxu0
  %6153 = vmatprep.mubr.bf16.mxu0 %v5516
  %6154 = vmatmul.mubr.bf16.gmra.mrb[0].mxu0 %v5015
  %v6155 = vpop.f32.mrb[0].mxu0
  %v6156 = vadd.f32 0.0, %v6155
  %v6157 = vpop.f32.mrb[0].mxu0
  %v6158 = vpop.f32.mrb[0].mxu0
  %v6159 = vadd.f32 0.0, %v6158
  %v6160 = vpop.f32.mrb[0].mxu0
  %6161 = vmatprep.mubr.bf16.mxu0 %v5528
  %6162 = vmatmul.mubr.bf16.gmra.mrb[0].mxu0 %v5016
  %v6163 = vpop.f32.mrb[0].mxu0
  %v6164 = vadd.f32 0.0, %v6163
  %v6165 = vpop.f32.mrb[0].mxu0
  %v6166 = vpop.f32.mrb[0].mxu0
  %v6167 = vadd.f32 0.0, %v6166
  %v6168 = vpop.f32.mrb[0].mxu0
  %6169 = vdwg.mxu0
  %6170 = vmatprep.subr.bf16.mxu0 0
  %6171 = vmatpush1.bf16.msra.mxu0 %v5849
  %6172 = vmatprep.subr.bf16.mxu0 0
  %6173 = vmatpush1.bf16.msra.mxu0 %v5850
  %6174 = vmatprep.subr.bf16.mxu0 0
  %6175 = vmatpush1.bf16.msra.mxu0 %v5851
  %6176 = vmatprep.subr.bf16.mxu0 0
  %6177 = vmatpush1.bf16.msra.mxu0 %v5852
  %6178 = vmatprep.subr.bf16.mxu0 0
  %6179 = vmatpush1.bf16.msra.mxu0 %v5853
  %6180 = vmatprep.subr.bf16.mxu0 0
  %6181 = vmatpush1.bf16.msra.mxu0 %v5854
  %6182 = vmatprep.subr.bf16.mxu0 0
  %6183 = vmatpush1.bf16.msra.mxu0 %v5855
  %6184 = vmatprep.subr.bf16.mxu0 0
  %6185 = vmatpush1.bf16.msra.mxu0 %v5856
  %6186 = vmatprep.subr.bf16.mxu0 0
  %6187 = vmatpush1.bf16.msra.mxu0 0
  %6188 = vmatprep.subr.bf16.mxu0 0
  %6189 = vmatpush1.bf16.msra.mxu0 0
  %6190 = vmatprep.subr.bf16.mxu0 0
  %6191 = vmatpush1.bf16.msra.mxu0 0
  %6192 = vmatprep.subr.bf16.mxu0 0
  %6193 = vmatpush1.bf16.msra.mxu0 0
  %6194 = vmatprep.subr.bf16.mxu0 0
  %6195 = vmatpush1.bf16.msra.mxu0 0
  %6196 = vmatprep.subr.bf16.mxu0 0
  %6197 = vmatpush1.bf16.msra.mxu0 0
  %6198 = vmatprep.subr.bf16.mxu0 0
  %6199 = vmatpush1.bf16.msra.mxu0 0
  %6200 = vmatprep.subr.bf16.mxu0 0
  %6201 = vmatpush1.bf16.msra.mxu0 0
  %6202 = vmatprep.mubr.bf16.mxu0 0
  %6203 = vmatmul.mubr.bf16.gmra.mrb[0].mxu0 %v5563
  %v6204 = vpop.f32.mrb[0].mxu0
  %v6205 = vadd.f32 %v5916, %v6204
  %v6206 = vpop.f32.mrb[0].mxu0
  %v6207 = vpop.f32.mrb[0].mxu0
  %v6208 = vadd.f32 %v5919, %v6207
  %v6209 = vpop.f32.mrb[0].mxu0
  %6210 = vmatprep.mubr.bf16.mxu0 0
  %6211 = vmatmul.mubr.bf16.gmra.mrb[0].mxu0 %v5566
  %v6212 = vpop.f32.mrb[0].mxu0
  %v6213 = vadd.f32 %v5924, %v6212
  %v6214 = vpop.f32.mrb[0].mxu0
  %v6215 = vpop.f32.mrb[0].mxu0
  %v6216 = vadd.f32 %v5927, %v6215
  %v6217 = vpop.f32.mrb[0].mxu0
  %6218 = vmatprep.mubr.bf16.mxu0 0
  %6219 = vmatmul.mubr.bf16.gmra.mrb[0].mxu0 %v5569
  %v6220 = vpop.f32.mrb[0].mxu0
  %v6221 = vadd.f32 %v5932, %v6220
  %v6222 = vpop.f32.mrb[0].mxu0
  %v6223 = vpop.f32.mrb[0].mxu0
  %v6224 = vadd.f32 %v5935, %v6223
  %v6225 = vpop.f32.mrb[0].mxu0
  %6226 = vmatprep.mubr.bf16.mxu0 0
  %6227 = vmatmul.mubr.bf16.gmra.mrb[0].mxu0 %v5572
  %v6228 = vpop.f32.mrb[0].mxu0
  %v6229 = vadd.f32 %v5940, %v6228
  %v6230 = vpop.f32.mrb[0].mxu0
  %v6231 = vpop.f32.mrb[0].mxu0
  %v6232 = vadd.f32 %v5943, %v6231
  %v6233 = vpop.f32.mrb[0].mxu0
  %6234 = vmatprep.mubr.bf16.mxu0 0
  %6235 = vmatmul.mubr.bf16.gmra.mrb[0].mxu0 %v5575
  %v6236 = vpop.f32.mrb[0].mxu0
  %v6237 = vadd.f32 %v5948, %v6236
  %v6238 = vpop.f32.mrb[0].mxu0
  %v6239 = vpop.f32.mrb[0].mxu0
  %v6240 = vadd.f32 %v5951, %v6239
  %v6241 = vpop.f32.mrb[0].mxu0
  %6242 = vmatprep.mubr.bf16.mxu0 0
  %6243 = vmatmul.mubr.bf16.gmra.mrb[0].mxu0 %v5578
  %v6244 = vpop.f32.mrb[0].mxu0
  %v6245 = vadd.f32 %v5956, %v6244
  %v6246 = vpop.f32.mrb[0].mxu0
  %v6247 = vpop.f32.mrb[0].mxu0
  %v6248 = vadd.f32 %v5959, %v6247
  %v6249 = vpop.f32.mrb[0].mxu0
  %6250 = vmatprep.mubr.bf16.mxu0 0
  %6251 = vmatmul.mubr.bf16.gmra.mrb[0].mxu0 %v5581
  %v6252 = vpop.f32.mrb[0].mxu0
  %v6253 = vadd.f32 %v5964, %v6252
  %v6254 = vpop.f32.mrb[0].mxu0
  %v6255 = vpop.f32.mrb[0].mxu0
  %v6256 = vadd.f32 %v5967, %v6255
  %v6257 = vpop.f32.mrb[0].mxu0
  %6258 = vmatprep.mubr.bf16.mxu0 0
  %6259 = vmatmul.mubr.bf16.gmra.mrb[0].mxu0 %v5584
  %v6260 = vpop.f32.mrb[0].mxu0
  %v6261 = vadd.f32 %v5972, %v6260
  %v6262 = vpop.f32.mrb[0].mxu0
  %v6263 = vpop.f32.mrb[0].mxu0
  %v6264 = vadd.f32 %v5975, %v6263
  %v6265 = vpop.f32.mrb[0].mxu0
  %6266 = vmatprep.mubr.bf16.mxu0 0
  %6267 = vmatmul.mubr.bf16.gmra.mrb[0].mxu0 %v5587
  %v6268 = vpop.f32.mrb[0].mxu0
  %v6269 = vadd.f32 %v5980, %v6268
  %v6270 = vpop.f32.mrb[0].mxu0
  %v6271 = vpop.f32.mrb[0].mxu0
  %v6272 = vadd.f32 %v5983, %v6271
  %v6273 = vpop.f32.mrb[0].mxu0
  %6274 = vmatprep.mubr.bf16.mxu0 0
  %6275 = vmatmul.mubr.bf16.gmra.mrb[0].mxu0 %v5590
  %v6276 = vpop.f32.mrb[0].mxu0
  %v6277 = vadd.f32 %v5988, %v6276
  %v6278 = vpop.f32.mrb[0].mxu0
  %v6279 = vpop.f32.mrb[0].mxu0
  %v6280 = vadd.f32 %v5991, %v6279
  %v6281 = vpop.f32.mrb[0].mxu0
  %6282 = vmatprep.mubr.bf16.mxu0 0
  %6283 = vmatmul.mubr.bf16.gmra.mrb[0].mxu0 %v5593
  %v6284 = vpop.f32.mrb[0].mxu0
  %v6285 = vadd.f32 %v5996, %v6284
  %v6286 = vpop.f32.mrb[0].mxu0
  %v6287 = vpop.f32.mrb[0].mxu0
  %v6288 = vadd.f32 %v5999, %v6287
  %v6289 = vpop.f32.mrb[0].mxu0
  %6290 = vmatprep.mubr.bf16.mxu0 0
  %6291 = vmatmul.mubr.bf16.gmra.mrb[0].mxu0 %v5596
  %v6292 = vpop.f32.mrb[0].mxu0
  %v6293 = vadd.f32 %v6004, %v6292
  %v6294 = vpop.f32.mrb[0].mxu0
  %v6295 = vpop.f32.mrb[0].mxu0
  %v6296 = vadd.f32 %v6007, %v6295
  %v6297 = vpop.f32.mrb[0].mxu0
  %6298 = vmatprep.mubr.bf16.mxu0 0
  %6299 = vmatmul.mubr.bf16.gmra.mrb[0].mxu0 %v5599
  %v6300 = vpop.f32.mrb[0].mxu0
  %v6301 = vadd.f32 %v6012, %v6300
  %v6302 = vpop.f32.mrb[0].mxu0
  %v6303 = vpop.f32.mrb[0].mxu0
  %v6304 = vadd.f32 %v6015, %v6303
  %v6305 = vpop.f32.mrb[0].mxu0
  %6306 = vmatprep.mubr.bf16.mxu0 0
  %6307 = vmatmul.mubr.bf16.gmra.mrb[0].mxu0 %v5602
  %v6308 = vpop.f32.mrb[0].mxu0
  %v6309 = vadd.f32 %v6020, %v6308
  %v6310 = vpop.f32.mrb[0].mxu0
  %v6311 = vpop.f32.mrb[0].mxu0
  %v6312 = vadd.f32 %v6023, %v6311
  %v6313 = vpop.f32.mrb[0].mxu0
  %6314 = vmatprep.mubr.bf16.mxu0 0
  %6315 = vmatmul.mubr.bf16.gmra.mrb[0].mxu0 %v5605
  %v6316 = vpop.f32.mrb[0].mxu0
  %v6317 = vadd.f32 %v6028, %v6316
  %v6318 = vpop.f32.mrb[0].mxu0
  %v6319 = vpop.f32.mrb[0].mxu0
  %v6320 = vadd.f32 %v6031, %v6319
  %v6321 = vpop.f32.mrb[0].mxu0
  %6322 = vmatprep.mubr.bf16.mxu0 0
  %6323 = vmatmul.mubr.bf16.gmra.mrb[0].mxu0 %v5608
  %v6324 = vpop.f32.mrb[0].mxu0
  %v6325 = vadd.f32 %v6036, %v6324
  %v6326 = vpop.f32.mrb[0].mxu0
  %v6327 = vpop.f32.mrb[0].mxu0
  %v6328 = vadd.f32 %v6039, %v6327
  %v6329 = vpop.f32.mrb[0].mxu0
  %6330 = vmatprep.mubr.bf16.mxu0 0
  %6331 = vmatmul.mubr.bf16.gmra.mrb[0].mxu0 %v5611
  %v6332 = vpop.f32.mrb[0].mxu0
  %v6333 = vadd.f32 %v6044, %v6332
  %v6334 = vpop.f32.mrb[0].mxu0
  %v6335 = vpop.f32.mrb[0].mxu0
  %v6336 = vadd.f32 %v6047, %v6335
  %v6337 = vpop.f32.mrb[0].mxu0
  %6338 = vmatprep.mubr.bf16.mxu0 0
  %6339 = vmatmul.mubr.bf16.gmra.mrb[0].mxu0 %v5614
  %v6340 = vpop.f32.mrb[0].mxu0
  %v6341 = vadd.f32 %v6052, %v6340
  %v6342 = vpop.f32.mrb[0].mxu0
  %v6343 = vpop.f32.mrb[0].mxu0
  %v6344 = vadd.f32 %v6055, %v6343
  %v6345 = vpop.f32.mrb[0].mxu0
  %6346 = vmatprep.mubr.bf16.mxu0 0
  %6347 = vmatmul.mubr.bf16.gmra.mrb[0].mxu0 %v5617
  %v6348 = vpop.f32.mrb[0].mxu0
  %v6349 = vadd.f32 %v6060, %v6348
  %v6350 = vpop.f32.mrb[0].mxu0
  %v6351 = vpop.f32.mrb[0].mxu0
  %v6352 = vadd.f32 %v6063, %v6351
  %v6353 = vpop.f32.mrb[0].mxu0
  %6354 = vmatprep.mubr.bf16.mxu0 0
  %6355 = vmatmul.mubr.bf16.gmra.mrb[0].mxu0 %v5620
  %v6356 = vpop.f32.mrb[0].mxu0
  %v6357 = vadd.f32 %v6068, %v6356
  %v6358 = vpop.f32.mrb[0].mxu0
  %v6359 = vpop.f32.mrb[0].mxu0
  %v6360 = vadd.f32 %v6071, %v6359
  %v6361 = vpop.f32.mrb[0].mxu0
  %6362 = vmatprep.mubr.bf16.mxu0 0
  %6363 = vmatmul.mubr.bf16.gmra.mrb[0].mxu0 %v5623
  %v6364 = vpop.f32.mrb[0].mxu0
  %v6365 = vadd.f32 %v6076, %v6364
  %v6366 = vpop.f32.mrb[0].mxu0
  %v6367 = vpop.f32.mrb[0].mxu0
  %v6368 = vadd.f32 %v6079, %v6367
  %v6369 = vpop.f32.mrb[0].mxu0
  %6370 = vmatprep.mubr.bf16.mxu0 0
  %6371 = vmatmul.mubr.bf16.gmra.mrb[0].mxu0 %v5626
  %v6372 = vpop.f32.mrb[0].mxu0
  %v6373 = vadd.f32 %v6084, %v6372
  %v6374 = vpop.f32.mrb[0].mxu0
  %v6375 = vpop.f32.mrb[0].mxu0
  %v6376 = vadd.f32 %v6087, %v6375
  %v6377 = vpop.f32.mrb[0].mxu0
  %6378 = vmatprep.mubr.bf16.mxu0 0
  %6379 = vmatmul.mubr.bf16.gmra.mrb[0].mxu0 %v5629
  %v6380 = vpop.f32.mrb[0].mxu0
  %v6381 = vadd.f32 %v6092, %v6380
  %v6382 = vpop.f32.mrb[0].mxu0
  %v6383 = vpop.f32.mrb[0].mxu0
  %v6384 = vadd.f32 %v6095, %v6383
  %v6385 = vpop.f32.mrb[0].mxu0
  %6386 = vmatprep.mubr.bf16.mxu0 0
  %6387 = vmatmul.mubr.bf16.gmra.mrb[0].mxu0 %v5632
  %v6388 = vpop.f32.mrb[0].mxu0
  %v6389 = vadd.f32 %v6100, %v6388
  %v6390 = vpop.f32.mrb[0].mxu0
  %v6391 = vpop.f32.mrb[0].mxu0
  %v6392 = vadd.f32 %v6103, %v6391
  %v6393 = vpop.f32.mrb[0].mxu0
  %6394 = vmatprep.mubr.bf16.mxu0 0
  %6395 = vmatmul.mubr.bf16.gmra.mrb[0].mxu0 %v5635
  %v6396 = vpop.f32.mrb[0].mxu0
  %v6397 = vadd.f32 %v6108, %v6396
  %v6398 = vpop.f32.mrb[0].mxu0
  %v6399 = vpop.f32.mrb[0].mxu0
  %v6400 = vadd.f32 %v6111, %v6399
  %v6401 = vpop.f32.mrb[0].mxu0
  %6402 = vmatprep.mubr.bf16.mxu0 0
  %6403 = vmatmul.mubr.bf16.gmra.mrb[0].mxu0 %v5638
  %v6404 = vpop.f32.mrb[0].mxu0
  %v6405 = vadd.f32 %v6116, %v6404
  %v6406 = vpop.f32.mrb[0].mxu0
  %v6407 = vpop.f32.mrb[0].mxu0
  %v6408 = vadd.f32 %v6119, %v6407
  %v6409 = vpop.f32.mrb[0].mxu0
  %6410 = vmatprep.mubr.bf16.mxu0 0
  %6411 = vmatmul.mubr.bf16.gmra.mrb[0].mxu0 %v5641
  %v6412 = vpop.f32.mrb[0].mxu0
  %v6413 = vadd.f32 %v6124, %v6412
  %v6414 = vpop.f32.mrb[0].mxu0
  %v6415 = vpop.f32.mrb[0].mxu0
  %v6416 = vadd.f32 %v6127, %v6415
  %v6417 = vpop.f32.mrb[0].mxu0
  %6418 = vmatprep.mubr.bf16.mxu0 0
  %6419 = vmatmul.mubr.bf16.gmra.mrb[0].mxu0 %v5644
  %v6420 = vpop.f32.mrb[0].mxu0
  %v6421 = vadd.f32 %v6132, %v6420
  %v6422 = vpop.f32.mrb[0].mxu0
  %v6423 = vpop.f32.mrb[0].mxu0
  %v6424 = vadd.f32 %v6135, %v6423
  %v6425 = vpop.f32.mrb[0].mxu0
  %6426 = vmatprep.mubr.bf16.mxu0 0
  %6427 = vmatmul.mubr.bf16.gmra.mrb[0].mxu0 %v5647
  %v6428 = vpop.f32.mrb[0].mxu0
  %v6429 = vadd.f32 %v6140, %v6428
  %v6430 = vpop.f32.mrb[0].mxu0
  %v6431 = vpop.f32.mrb[0].mxu0
  %v6432 = vadd.f32 %v6143, %v6431
  %v6433 = vpop.f32.mrb[0].mxu0
  %6434 = vmatprep.mubr.bf16.mxu0 0
  %6435 = vmatmul.mubr.bf16.gmra.mrb[0].mxu0 %v5650
  %v6436 = vpop.f32.mrb[0].mxu0
  %v6437 = vadd.f32 %v6148, %v6436
  %v6438 = vpop.f32.mrb[0].mxu0
  %v6439 = vpop.f32.mrb[0].mxu0
  %v6440 = vadd.f32 %v6151, %v6439
  %v6441 = vpop.f32.mrb[0].mxu0
  %6442 = vmatprep.mubr.bf16.mxu0 0
  %6443 = vmatmul.mubr.bf16.gmra.mrb[0].mxu0 %v5653
  %v6444 = vpop.f32.mrb[0].mxu0
  %v6445 = vadd.f32 %v6156, %v6444
  %v6446 = vpop.f32.mrb[0].mxu0
  %v6447 = vpop.f32.mrb[0].mxu0
  %v6448 = vadd.f32 %v6159, %v6447
  %v6449 = vpop.f32.mrb[0].mxu0
  %6450 = vmatprep.mubr.bf16.mxu0 0
  %6451 = vmatmul.mubr.bf16.gmra.mrb[0].mxu0 %v5656
  %v6452 = vpop.f32.mrb[0].mxu0
  %v6453 = vadd.f32 %v6164, %v6452
  %v6454 = vpop.f32.mrb[0].mxu0
  %v6455 = vpop.f32.mrb[0].mxu0
  %v6456 = vadd.f32 %v6167, %v6455
  %v6457 = vpop.f32.mrb[0].mxu0
  %6458 = vdwg.mxu0
  %v6459 = vadd.f32 %v4506, %v6205
  %v6460 = vadd.f32 %v4509, %v6208
  %v6461 = vadd.f32 %v4514, %v6213
  %v6462 = vadd.f32 %v4517, %v6216
  %v6463 = vadd.f32 %v4522, %v6221
  %v6464 = vadd.f32 %v4525, %v6224
  %v6465 = vadd.f32 %v4530, %v6229
  %v6466 = vadd.f32 %v4533, %v6232
  %v6467 = vadd.f32 %v4538, %v6237
  %v6468 = vadd.f32 %v4541, %v6240
  %v6469 = vadd.f32 %v4546, %v6245
  %v6470 = vadd.f32 %v4549, %v6248
  %v6471 = vadd.f32 %v4554, %v6253
  %v6472 = vadd.f32 %v4557, %v6256
  %v6473 = vadd.f32 %v4562, %v6261
  %v6474 = vadd.f32 %v4565, %v6264
  %v6475 = vadd.f32 %v4570, %v6269
  %v6476 = vadd.f32 %v4573, %v6272
  %v6477 = vadd.f32 %v4578, %v6277
  %v6478 = vadd.f32 %v4581, %v6280
  %v6479 = vadd.f32 %v4586, %v6285
  %v6480 = vadd.f32 %v4589, %v6288
  %v6481 = vadd.f32 %v4594, %v6293
  %v6482 = vadd.f32 %v4597, %v6296
  %v6483 = vadd.f32 %v4602, %v6301
  %v6484 = vadd.f32 %v4605, %v6304
  %v6485 = vadd.f32 %v4610, %v6309
  %v6486 = vadd.f32 %v4613, %v6312
  %v6487 = vadd.f32 %v4618, %v6317
  %v6488 = vadd.f32 %v4621, %v6320
  %v6489 = vadd.f32 %v4626, %v6325
  %v6490 = vadd.f32 %v4629, %v6328
  %v6491 = vadd.f32 %v4634, %v6333
  %v6492 = vadd.f32 %v4637, %v6336
  %v6493 = vadd.f32 %v4642, %v6341
  %v6494 = vadd.f32 %v4645, %v6344
  %v6495 = vadd.f32 %v4650, %v6349
  %v6496 = vadd.f32 %v4653, %v6352
  %v6497 = vadd.f32 %v4658, %v6357
  %v6498 = vadd.f32 %v4661, %v6360
  %v6499 = vadd.f32 %v4666, %v6365
  %v6500 = vadd.f32 %v4669, %v6368
  %v6501 = vadd.f32 %v4674, %v6373
  %v6502 = vadd.f32 %v4677, %v6376
  %v6503 = vadd.f32 %v4682, %v6381
  %v6504 = vadd.f32 %v4685, %v6384
  %v6505 = vadd.f32 %v4690, %v6389
  %v6506 = vadd.f32 %v4693, %v6392
  %v6507 = vadd.f32 %v4698, %v6397
  %v6508 = vadd.f32 %v4701, %v6400
  %v6509 = vadd.f32 %v4706, %v6405
  %v6510 = vadd.f32 %v4709, %v6408
  %v6511 = vadd.f32 %v4714, %v6413
  %v6512 = vadd.f32 %v4717, %v6416
  %v6513 = vadd.f32 %v4722, %v6421
  %v6514 = vadd.f32 %v4725, %v6424
  %v6515 = vadd.f32 %v4730, %v6429
  %v6516 = vadd.f32 %v4733, %v6432
  %v6517 = vadd.f32 %v4738, %v6437
  %v6518 = vadd.f32 %v4741, %v6440
  %v6519 = vadd.f32 %v4746, %v6445
  %v6520 = vadd.f32 %v4749, %v6448
  %v6521 = vadd.f32 %v4754, %v6453
  %v6522 = vadd.f32 %v4757, %v6456
  %v6523 = vadd.f32 %v6459, %v6460
  %v6524 = vadd.f32 %v6523, %v6461
  %v6525 = vadd.f32 %v6524, %v6462
  %v6526 = vadd.f32 %v6525, %v6463
  %v6527 = vadd.f32 %v6526, %v6464
  %v6528 = vadd.f32 %v6527, %v6465
  %v6529 = vadd.f32 %v6528, %v6466
  %v6530 = vadd.f32 %v6529, %v6467
  %v6531 = vadd.f32 %v6530, %v6468
  %v6532 = vadd.f32 %v6531, %v6469
  %v6533 = vadd.f32 %v6532, %v6470
  %v6534 = vadd.f32 %v6533, %v6471
  %v6535 = vadd.f32 %v6534, %v6472
  %v6536 = vadd.f32 %v6535, %v6473
  %v6537 = vadd.f32 %v6536, %v6474
  %v6538 = vadd.f32 %v6537, %v6475
  %v6539 = vadd.f32 %v6538, %v6476
  %v6540 = vadd.f32 %v6539, %v6477
  %v6541 = vadd.f32 %v6540, %v6478
  %v6542 = vadd.f32 %v6541, %v6479
  %v6543 = vadd.f32 %v6542, %v6480
  %v6544 = vadd.f32 %v6543, %v6481
  %v6545 = vadd.f32 %v6544, %v6482
  %v6546 = vadd.f32 %v6545, %v6483
  %v6547 = vadd.f32 %v6546, %v6484
  %v6548 = vadd.f32 %v6547, %v6485
  %v6549 = vadd.f32 %v6548, %v6486
  %v6550 = vadd.f32 %v6549, %v6487
  %v6551 = vadd.f32 %v6550, %v6488
  %v6552 = vadd.f32 %v6551, %v6489
  %v6553 = vadd.f32 %v6552, %v6490
  %v6554 = vadd.f32 %v6553, %v6491
  %v6555 = vadd.f32 %v6554, %v6492
  %v6556 = vadd.f32 %v6555, %v6493
  %v6557 = vadd.f32 %v6556, %v6494
  %v6558 = vadd.f32 %v6557, %v6495
  %v6559 = vadd.f32 %v6558, %v6496
  %v6560 = vadd.f32 %v6559, %v6497
  %v6561 = vadd.f32 %v6560, %v6498
  %v6562 = vadd.f32 %v6561, %v6499
  %v6563 = vadd.f32 %v6562, %v6500
  %v6564 = vadd.f32 %v6563, %v6501
  %v6565 = vadd.f32 %v6564, %v6502
  %v6566 = vadd.f32 %v6565, %v6503
  %v6567 = vadd.f32 %v6566, %v6504
  %v6568 = vadd.f32 %v6567, %v6505
  %v6569 = vadd.f32 %v6568, %v6506
  %v6570 = vadd.f32 %v6569, %v6507
  %v6571 = vadd.f32 %v6570, %v6508
  %v6572 = vadd.f32 %v6571, %v6509
  %v6573 = vadd.f32 %v6572, %v6510
  %v6574 = vadd.f32 %v6573, %v6511
  %v6575 = vadd.f32 %v6574, %v6512
  %v6576 = vadd.f32 %v6575, %v6513
  %v6577 = vadd.f32 %v6576, %v6514
  %v6578 = vadd.f32 %v6577, %v6515
  %v6579 = vadd.f32 %v6578, %v6516
  %v6580 = vadd.f32 %v6579, %v6517
  %v6581 = vadd.f32 %v6580, %v6518
  %v6582 = vadd.f32 %v6581, %v6519
  %v6583 = vadd.f32 %v6582, %v6520
  %v6584 = vadd.f32 %v6583, %v6521
  %v6585 = vadd.f32 %v6584, %v6522
  %v6586 = vrot.slane %v6585, 4
  %v6587 = vadd.f32 %v6585, %v6586
  %v6588 = vrot.slane %v6587, 2
  %v6589 = vadd.f32 %v6587, %v6588
  %v6590 = vrot.slane %v6589, 1
  %v6591 = vadd.f32 %v6589, %v6590
  %v6592 = vmul.f32 %v6591, 0.001953125
  %v6593 = vmul.f32 %v6459, %v6459
  %v6594 = vmul.f32 %v6460, %v6460
  %v6595 = vmul.f32 %v6461, %v6461
  %v6596 = vmul.f32 %v6462, %v6462
  %v6597 = vmul.f32 %v6463, %v6463
  %v6598 = vmul.f32 %v6464, %v6464
  %v6599 = vmul.f32 %v6465, %v6465
  %v6600 = vmul.f32 %v6466, %v6466
  %v6601 = vmul.f32 %v6467, %v6467
  %v6602 = vmul.f32 %v6468, %v6468
  %v6603 = vmul.f32 %v6469, %v6469
  %v6604 = vmul.f32 %v6470, %v6470
  %v6605 = vmul.f32 %v6471, %v6471
  %v6606 = vmul.f32 %v6472, %v6472
  %v6607 = vmul.f32 %v6473, %v6473
  %v6608 = vmul.f32 %v6474, %v6474
  %v6609 = vmul.f32 %v6475, %v6475
  %v6610 = vmul.f32 %v6476, %v6476
  %v6611 = vmul.f32 %v6477, %v6477
  %v6612 = vmul.f32 %v6478, %v6478
  %v6613 = vmul.f32 %v6479, %v6479
  %v6614 = vmul.f32 %v6480, %v6480
  %v6615 = vmul.f32 %v6481, %v6481
  %v6616 = vmul.f32 %v6482, %v6482
  %v6617 = vmul.f32 %v6483, %v6483
  %v6618 = vmul.f32 %v6484, %v6484
  %v6619 = vmul.f32 %v6485, %v6485
  %v6620 = vmul.f32 %v6486, %v6486
  %v6621 = vmul.f32 %v6487, %v6487
  %v6622 = vmul.f32 %v6488, %v6488
  %v6623 = vmul.f32 %v6489, %v6489
  %v6624 = vmul.f32 %v6490, %v6490
  %v6625 = vmul.f32 %v6491, %v6491
  %v6626 = vmul.f32 %v6492, %v6492
  %v6627 = vmul.f32 %v6493, %v6493
  %v6628 = vmul.f32 %v6494, %v6494
  %v6629 = vmul.f32 %v6495, %v6495
  %v6630 = vmul.f32 %v6496, %v6496
  %v6631 = vmul.f32 %v6497, %v6497
  %v6632 = vmul.f32 %v6498, %v6498
  %v6633 = vmul.f32 %v6499, %v6499
  %v6634 = vmul.f32 %v6500, %v6500
  %v6635 = vmul.f32 %v6501, %v6501
  %v6636 = vmul.f32 %v6502, %v6502
  %v6637 = vmul.f32 %v6503, %v6503
  %v6638 = vmul.f32 %v6504, %v6504
  %v6639 = vmul.f32 %v6505, %v6505
  %v6640 = vmul.f32 %v6506, %v6506
  %v6641 = vmul.f32 %v6507, %v6507
  %v6642 = vmul.f32 %v6508, %v6508
  %v6643 = vmul.f32 %v6509, %v6509
  %v6644 = vmul.f32 %v6510, %v6510
  %v6645 = vmul.f32 %v6511, %v6511
  %v6646 = vmul.f32 %v6512, %v6512
  %v6647 = vmul.f32 %v6513, %v6513
  %v6648 = vmul.f32 %v6514, %v6514
  %v6649 = vmul.f32 %v6515, %v6515
  %v6650 = vmul.f32 %v6516, %v6516
  %v6651 = vmul.f32 %v6517, %v6517
  %v6652 = vmul.f32 %v6518, %v6518
  %v6653 = vmul.f32 %v6519, %v6519
  %v6654 = vmul.f32 %v6520, %v6520
  %v6655 = vmul.f32 %v6521, %v6521
  %v6656 = vmul.f32 %v6522, %v6522
  %v6657 = vadd.f32 %v6593, %v6594
  %v6658 = vadd.f32 %v6657, %v6595
  %v6659 = vadd.f32 %v6658, %v6596
  %v6660 = vadd.f32 %v6659, %v6597
  %v6661 = vadd.f32 %v6660, %v6598
  %v6662 = vadd.f32 %v6661, %v6599
  %v6663 = vadd.f32 %v6662, %v6600
  %v6664 = vadd.f32 %v6663, %v6601
  %v6665 = vadd.f32 %v6664, %v6602
  %v6666 = vadd.f32 %v6665, %v6603
  %v6667 = vadd.f32 %v6666, %v6604
  %v6668 = vadd.f32 %v6667, %v6605
  %v6669 = vadd.f32 %v6668, %v6606
  %v6670 = vadd.f32 %v6669, %v6607
  %v6671 = vadd.f32 %v6670, %v6608
  %v6672 = vadd.f32 %v6671, %v6609
  %v6673 = vadd.f32 %v6672, %v6610
  %v6674 = vadd.f32 %v6673, %v6611
  %v6675 = vadd.f32 %v6674, %v6612
  %v6676 = vadd.f32 %v6675, %v6613
  %v6677 = vadd.f32 %v6676, %v6614
  %v6678 = vadd.f32 %v6677, %v6615
  %v6679 = vadd.f32 %v6678, %v6616
  %v6680 = vadd.f32 %v6679, %v6617
  %v6681 = vadd.f32 %v6680, %v6618
  %v6682 = vadd.f32 %v6681, %v6619
  %v6683 = vadd.f32 %v6682, %v6620
  %v6684 = vadd.f32 %v6683, %v6621
  %v6685 = vadd.f32 %v6684, %v6622
  %v6686 = vadd.f32 %v6685, %v6623
  %v6687 = vadd.f32 %v6686, %v6624
  %v6688 = vadd.f32 %v6687, %v6625
  %v6689 = vadd.f32 %v6688, %v6626
  %v6690 = vadd.f32 %v6689, %v6627
  %v6691 = vadd.f32 %v6690, %v6628
  %v6692 = vadd.f32 %v6691, %v6629
  %v6693 = vadd.f32 %v6692, %v6630
  %v6694 = vadd.f32 %v6693, %v6631
  %v6695 = vadd.f32 %v6694, %v6632
  %v6696 = vadd.f32 %v6695, %v6633
  %v6697 = vadd.f32 %v6696, %v6634
  %v6698 = vadd.f32 %v6697, %v6635
  %v6699 = vadd.f32 %v6698, %v6636
  %v6700 = vadd.f32 %v6699, %v6637
  %v6701 = vadd.f32 %v6700, %v6638
  %v6702 = vadd.f32 %v6701, %v6639
  %v6703 = vadd.f32 %v6702, %v6640
  %v6704 = vadd.f32 %v6703, %v6641
  %v6705 = vadd.f32 %v6704, %v6642
  %v6706 = vadd.f32 %v6705, %v6643
  %v6707 = vadd.f32 %v6706, %v6644
  %v6708 = vadd.f32 %v6707, %v6645
  %v6709 = vadd.f32 %v6708, %v6646
  %v6710 = vadd.f32 %v6709, %v6647
  %v6711 = vadd.f32 %v6710, %v6648
  %v6712 = vadd.f32 %v6711, %v6649
  %v6713 = vadd.f32 %v6712, %v6650
  %v6714 = vadd.f32 %v6713, %v6651
  %v6715 = vadd.f32 %v6714, %v6652
  %v6716 = vadd.f32 %v6715, %v6653
  %v6717 = vadd.f32 %v6716, %v6654
  %v6718 = vadd.f32 %v6717, %v6655
  %v6719 = vadd.f32 %v6718, %v6656
  %v6720 = vrot.slane %v6719, 4
  %v6721 = vadd.f32 %v6719, %v6720
  %v6722 = vrot.slane %v6721, 2
  %v6723 = vadd.f32 %v6721, %v6722
  %v6724 = vrot.slane %v6723, 1
  %v6725 = vadd.f32 %v6723, %v6724
  %v6726 = vmul.f32 %v6725, 0.001953125
  %v6727 = vmul.f32 %v6592, %v6592
  %v6728 = vsub.f32 %v6726, %v6727
  %v6729 = vld [vmem:[%s2] sm:$0x1]
  %v6730 = vadd.f32 %v6728, 1e-05
  %v6731 = vrsqrt.pop %v6730
  %v6732 = vmul.f32 %v6729, %v6731
  %v6733 = vld [vmem:[%s3] sm:$0x1]
  %v6734 = vmul.f32 %v6592, %v6732
  %v6735 = vsub.f32 %v6733, %v6734
  %v6737 = vlaneseq
  %v6738 = vshrl.u32 %v6737, 7
  %v6739 = vsub.s32 0, %v6738
  %v6740 = vrot.slane %v6732, %v6739
  %v6742 = vmul.f32 %v6459, %v6740
  %v6743 = vmul.f32 %v6460, %v6740
  %v6744 = vmul.f32 %v6461, %v6740
  %v6745 = vmul.f32 %v6462, %v6740
  %v6746 = vmul.f32 %v6463, %v6740
  %v6747 = vmul.f32 %v6464, %v6740
  %v6748 = vmul.f32 %v6465, %v6740
  %v6749 = vmul.f32 %v6466, %v6740
  %v6750 = vmul.f32 %v6467, %v6740
  %v6751 = vmul.f32 %v6468, %v6740
  %v6752 = vmul.f32 %v6469, %v6740
  %v6753 = vmul.f32 %v6470, %v6740
  %v6754 = vmul.f32 %v6471, %v6740
  %v6755 = vmul.f32 %v6472, %v6740
  %v6756 = vmul.f32 %v6473, %v6740
  %v6757 = vmul.f32 %v6474, %v6740
  %v6758 = vmul.f32 %v6475, %v6740
  %v6759 = vmul.f32 %v6476, %v6740
  %v6760 = vmul.f32 %v6477, %v6740
  %v6761 = vmul.f32 %v6478, %v6740
  %v6762 = vmul.f32 %v6479, %v6740
  %v6763 = vmul.f32 %v6480, %v6740
  %v6764 = vmul.f32 %v6481, %v6740
  %v6765 = vmul.f32 %v6482, %v6740
  %v6766 = vmul.f32 %v6483, %v6740
  %v6767 = vmul.f32 %v6484, %v6740
  %v6768 = vmul.f32 %v6485, %v6740
  %v6769 = vmul.f32 %v6486, %v6740
  %v6770 = vmul.f32 %v6487, %v6740
  %v6771 = vmul.f32 %v6488, %v6740
  %v6772 = vmul.f32 %v6489, %v6740
  %v6773 = vmul.f32 %v6490, %v6740
  %v6774 = vmul.f32 %v6491, %v6740
  %v6775 = vmul.f32 %v6492, %v6740
  %v6776 = vmul.f32 %v6493, %v6740
  %v6777 = vmul.f32 %v6494, %v6740
  %v6778 = vmul.f32 %v6495, %v6740
  %v6779 = vmul.f32 %v6496, %v6740
  %v6780 = vmul.f32 %v6497, %v6740
  %v6781 = vmul.f32 %v6498, %v6740
  %v6782 = vmul.f32 %v6499, %v6740
  %v6783 = vmul.f32 %v6500, %v6740
  %v6784 = vmul.f32 %v6501, %v6740
  %v6785 = vmul.f32 %v6502, %v6740
  %v6786 = vmul.f32 %v6503, %v6740
  %v6787 = vmul.f32 %v6504, %v6740
  %v6788 = vmul.f32 %v6505, %v6740
  %v6789 = vmul.f32 %v6506, %v6740
  %v6790 = vmul.f32 %v6507, %v6740
  %v6791 = vmul.f32 %v6508, %v6740
  %v6792 = vmul.f32 %v6509, %v6740
  %v6793 = vmul.f32 %v6510, %v6740
  %v6794 = vmul.f32 %v6511, %v6740
  %v6795 = vmul.f32 %v6512, %v6740
  %v6796 = vmul.f32 %v6513, %v6740
  %v6797 = vmul.f32 %v6514, %v6740
  %v6798 = vmul.f32 %v6515, %v6740
  %v6799 = vmul.f32 %v6516, %v6740
  %v6800 = vmul.f32 %v6517, %v6740
  %v6801 = vmul.f32 %v6518, %v6740
  %v6802 = vmul.f32 %v6519, %v6740
  %v6803 = vmul.f32 %v6520, %v6740
  %v6804 = vmul.f32 %v6521, %v6740
  %v6805 = vmul.f32 %v6522, %v6740
  %v6807 = vlaneseq
  %v6808 = vshrl.u32 %v6807, 7
  %v6809 = vsub.s32 0, %v6808
  %v6810 = vrot.slane %v6735, %v6809
  %v6812 = vadd.f32 %v6742, %v6810
  %v6813 = vadd.f32 %v6743, %v6810
  %v6814 = vadd.f32 %v6744, %v6810
  %v6815 = vadd.f32 %v6745, %v6810
  %v6816 = vadd.f32 %v6746, %v6810
  %v6817 = vadd.f32 %v6747, %v6810
  %v6818 = vadd.f32 %v6748, %v6810
  %v6819 = vadd.f32 %v6749, %v6810
  %v6820 = vadd.f32 %v6750, %v6810
  %v6821 = vadd.f32 %v6751, %v6810
  %v6822 = vadd.f32 %v6752, %v6810
  %v6823 = vadd.f32 %v6753, %v6810
  %v6824 = vadd.f32 %v6754, %v6810
  %v6825 = vadd.f32 %v6755, %v6810
  %v6826 = vadd.f32 %v6756, %v6810
  %v6827 = vadd.f32 %v6757, %v6810
  %v6828 = vadd.f32 %v6758, %v6810
  %v6829 = vadd.f32 %v6759, %v6810
  %v6830 = vadd.f32 %v6760, %v6810
  %v6831 = vadd.f32 %v6761, %v6810
  %v6832 = vadd.f32 %v6762, %v6810
  %v6833 = vadd.f32 %v6763, %v6810
  %v6834 = vadd.f32 %v6764, %v6810
  %v6835 = vadd.f32 %v6765, %v6810
  %v6836 = vadd.f32 %v6766, %v6810
  %v6837 = vadd.f32 %v6767, %v6810
  %v6838 = vadd.f32 %v6768, %v6810
  %v6839 = vadd.f32 %v6769, %v6810
  %v6840 = vadd.f32 %v6770, %v6810
  %v6841 = vadd.f32 %v6771, %v6810
  %v6842 = vadd.f32 %v6772, %v6810
  %v6843 = vadd.f32 %v6773, %v6810
  %v6844 = vadd.f32 %v6774, %v6810
  %v6845 = vadd.f32 %v6775, %v6810
  %v6846 = vadd.f32 %v6776, %v6810
  %v6847 = vadd.f32 %v6777, %v6810
  %v6848 = vadd.f32 %v6778, %v6810
  %v6849 = vadd.f32 %v6779, %v6810
  %v6850 = vadd.f32 %v6780, %v6810
  %v6851 = vadd.f32 %v6781, %v6810
  %v6852 = vadd.f32 %v6782, %v6810
  %v6853 = vadd.f32 %v6783, %v6810
  %v6854 = vadd.f32 %v6784, %v6810
  %v6855 = vadd.f32 %v6785, %v6810
  %v6856 = vadd.f32 %v6786, %v6810
  %v6857 = vadd.f32 %v6787, %v6810
  %v6858 = vadd.f32 %v6788, %v6810
  %v6859 = vadd.f32 %v6789, %v6810
  %v6860 = vadd.f32 %v6790, %v6810
  %v6861 = vadd.f32 %v6791, %v6810
  %v6862 = vadd.f32 %v6792, %v6810
  %v6863 = vadd.f32 %v6793, %v6810
  %v6864 = vadd.f32 %v6794, %v6810
  %v6865 = vadd.f32 %v6795, %v6810
  %v6866 = vadd.f32 %v6796, %v6810
  %v6867 = vadd.f32 %v6797, %v6810
  %v6868 = vadd.f32 %v6798, %v6810
  %v6869 = vadd.f32 %v6799, %v6810
  %v6870 = vadd.f32 %v6800, %v6810
  %v6871 = vadd.f32 %v6801, %v6810
  %v6872 = vadd.f32 %v6802, %v6810
  %v6873 = vadd.f32 %v6803, %v6810
  %v6874 = vadd.f32 %v6804, %v6810
  %v6875 = vadd.f32 %v6805, %v6810
  %v6876 = vmax.f32 %v6812, 0.0
  %v6877 = vmax.f32 %v6813, 0.0
  %v6878 = vmax.f32 %v6814, 0.0
  %v6879 = vmax.f32 %v6815, 0.0
  %v6880 = vmax.f32 %v6816, 0.0
  %v6881 = vmax.f32 %v6817, 0.0
  %v6882 = vmax.f32 %v6818, 0.0
  %v6883 = vmax.f32 %v6819, 0.0
  %v6884 = vmax.f32 %v6820, 0.0
  %v6885 = vmax.f32 %v6821, 0.0
  %v6886 = vmax.f32 %v6822, 0.0
  %v6887 = vmax.f32 %v6823, 0.0
  %v6888 = vmax.f32 %v6824, 0.0
  %v6889 = vmax.f32 %v6825, 0.0
  %v6890 = vmax.f32 %v6826, 0.0
  %v6891 = vmax.f32 %v6827, 0.0
  %v6892 = vmax.f32 %v6828, 0.0
  %v6893 = vmax.f32 %v6829, 0.0
  %v6894 = vmax.f32 %v6830, 0.0
  %v6895 = vmax.f32 %v6831, 0.0
  %v6896 = vmax.f32 %v6832, 0.0
  %v6897 = vmax.f32 %v6833, 0.0
  %v6898 = vmax.f32 %v6834, 0.0
  %v6899 = vmax.f32 %v6835, 0.0
  %v6900 = vmax.f32 %v6836, 0.0
  %v6901 = vmax.f32 %v6837, 0.0
  %v6902 = vmax.f32 %v6838, 0.0
  %v6903 = vmax.f32 %v6839, 0.0
  %v6904 = vmax.f32 %v6840, 0.0
  %v6905 = vmax.f32 %v6841, 0.0
  %v6906 = vmax.f32 %v6842, 0.0
  %v6907 = vmax.f32 %v6843, 0.0
  %v6908 = vmax.f32 %v6844, 0.0
  %v6909 = vmax.f32 %v6845, 0.0
  %v6910 = vmax.f32 %v6846, 0.0
  %v6911 = vmax.f32 %v6847, 0.0
  %v6912 = vmax.f32 %v6848, 0.0
  %v6913 = vmax.f32 %v6849, 0.0
  %v6914 = vmax.f32 %v6850, 0.0
  %v6915 = vmax.f32 %v6851, 0.0
  %v6916 = vmax.f32 %v6852, 0.0
  %v6917 = vmax.f32 %v6853, 0.0
  %v6918 = vmax.f32 %v6854, 0.0
  %v6919 = vmax.f32 %v6855, 0.0
  %v6920 = vmax.f32 %v6856, 0.0
  %v6921 = vmax.f32 %v6857, 0.0
  %v6922 = vmax.f32 %v6858, 0.0
  %v6923 = vmax.f32 %v6859, 0.0
  %v6924 = vmax.f32 %v6860, 0.0
  %v6925 = vmax.f32 %v6861, 0.0
  %v6926 = vmax.f32 %v6862, 0.0
  %v6927 = vmax.f32 %v6863, 0.0
  %v6928 = vmax.f32 %v6864, 0.0
  %v6929 = vmax.f32 %v6865, 0.0
  %v6930 = vmax.f32 %v6866, 0.0
  %v6931 = vmax.f32 %v6867, 0.0
  %v6932 = vmax.f32 %v6868, 0.0
  %v6933 = vmax.f32 %v6869, 0.0
  %v6934 = vmax.f32 %v6870, 0.0
  %v6935 = vmax.f32 %v6871, 0.0
  %v6936 = vmax.f32 %v6872, 0.0
  %v6937 = vmax.f32 %v6873, 0.0
  %v6938 = vmax.f32 %v6874, 0.0
  %v6939 = vmax.f32 %v6875, 0.0
  %v6940 = vpack.c.bf16 %v6877, %v6876
  %v6941 = vpack.c.bf16 %v6879, %v6878
  %v6942 = vpack.c.bf16 %v6881, %v6880
  %v6943 = vpack.c.bf16 %v6883, %v6882
  %v6944 = vpack.c.bf16 %v6885, %v6884
  %v6945 = vpack.c.bf16 %v6887, %v6886
  %v6946 = vpack.c.bf16 %v6889, %v6888
  %v6947 = vpack.c.bf16 %v6891, %v6890
  %v6948 = vpack.c.bf16 %v6893, %v6892
  %v6949 = vpack.c.bf16 %v6895, %v6894
  %v6950 = vpack.c.bf16 %v6897, %v6896
  %v6951 = vpack.c.bf16 %v6899, %v6898
  %v6952 = vpack.c.bf16 %v6901, %v6900
  %v6953 = vpack.c.bf16 %v6903, %v6902
  %v6954 = vpack.c.bf16 %v6905, %v6904
  %v6955 = vpack.c.bf16 %v6907, %v6906
  %v6956 = vpack.c.bf16 %v6909, %v6908
  %v6957 = vpack.c.bf16 %v6911, %v6910
  %v6958 = vpack.c.bf16 %v6913, %v6912
  %v6959 = vpack.c.bf16 %v6915, %v6914
  %v6960 = vpack.c.bf16 %v6917, %v6916
  %v6961 = vpack.c.bf16 %v6919, %v6918
  %v6962 = vpack.c.bf16 %v6921, %v6920
  %v6963 = vpack.c.bf16 %v6923, %v6922
  %v6964 = vpack.c.bf16 %v6925, %v6924
  %v6965 = vpack.c.bf16 %v6927, %v6926
  %v6966 = vpack.c.bf16 %v6929, %v6928
  %v6967 = vpack.c.bf16 %v6931, %v6930
  %v6968 = vpack.c.bf16 %v6933, %v6932
  %v6969 = vpack.c.bf16 %v6935, %v6934
  %v6970 = vpack.c.bf16 %v6937, %v6936
  %v6971 = vpack.c.bf16 %v6939, %v6938
  %v7004 = vunpack.c.l.b16 %v6940
  %v7005 = vunpack.c.h.b16 %v6940
  %v7006 = vunpack.c.l.b16 %v6941
  %v7007 = vunpack.c.h.b16 %v6941
  %v7008 = vunpack.c.l.b16 %v6942
  %v7009 = vunpack.c.h.b16 %v6942
  %v7010 = vunpack.c.l.b16 %v6943
  %v7011 = vunpack.c.h.b16 %v6943
  %v7012 = vunpack.c.l.b16 %v6944
  %v7013 = vunpack.c.h.b16 %v6944
  %v7014 = vunpack.c.l.b16 %v6945
  %v7015 = vunpack.c.h.b16 %v6945
  %v7016 = vunpack.c.l.b16 %v6946
  %v7017 = vunpack.c.h.b16 %v6946
  %v7018 = vunpack.c.l.b16 %v6947
  %v7019 = vunpack.c.h.b16 %v6947
  %v7020 = vunpack.c.l.b16 %v6948
  %v7021 = vunpack.c.h.b16 %v6948
  %v7022 = vunpack.c.l.b16 %v6949
  %v7023 = vunpack.c.h.b16 %v6949
  %v7024 = vunpack.c.l.b16 %v6950
  %v7025 = vunpack.c.h.b16 %v6950
  %v7026 = vunpack.c.l.b16 %v6951
  %v7027 = vunpack.c.h.b16 %v6951
  %v7028 = vunpack.c.l.b16 %v6952
  %v7029 = vunpack.c.h.b16 %v6952
  %v7030 = vunpack.c.l.b16 %v6953
  %v7031 = vunpack.c.h.b16 %v6953
  %v7032 = vunpack.c.l.b16 %v6954
  %v7033 = vunpack.c.h.b16 %v6954
  %v7034 = vunpack.c.l.b16 %v6955
  %v7035 = vunpack.c.h.b16 %v6955
  %v7036 = vunpack.c.l.b16 %v6956
  %v7037 = vunpack.c.h.b16 %v6956
  %v7038 = vunpack.c.l.b16 %v6957
  %v7039 = vunpack.c.h.b16 %v6957
  %v7040 = vunpack.c.l.b16 %v6958
  %v7041 = vunpack.c.h.b16 %v6958
  %v7042 = vunpack.c.l.b16 %v6959
  %v7043 = vunpack.c.h.b16 %v6959
  %v7044 = vunpack.c.l.b16 %v6960
  %v7045 = vunpack.c.h.b16 %v6960
  %v7046 = vunpack.c.l.b16 %v6961
  %v7047 = vunpack.c.h.b16 %v6961
  %v7048 = vunpack.c.l.b16 %v6962
  %v7049 = vunpack.c.h.b16 %v6962
  %v7050 = vunpack.c.l.b16 %v6963
  %v7051 = vunpack.c.h.b16 %v6963
  %v7052 = vunpack.c.l.b16 %v6964
  %v7053 = vunpack.c.h.b16 %v6964
  %v7054 = vunpack.c.l.b16 %v6965
  %v7055 = vunpack.c.h.b16 %v6965
  %v7056 = vunpack.c.l.b16 %v6966
  %v7057 = vunpack.c.h.b16 %v6966
  %v7058 = vunpack.c.l.b16 %v6967
  %v7059 = vunpack.c.h.b16 %v6967
  %v7060 = vunpack.c.l.b16 %v6968
  %v7061 = vunpack.c.h.b16 %v6968
  %v7062 = vunpack.c.l.b16 %v6969
  %v7063 = vunpack.c.h.b16 %v6969
  %v7064 = vunpack.c.l.b16 %v6970
  %v7065 = vunpack.c.h.b16 %v6970
  %v7066 = vunpack.c.l.b16 %v6971
  %v7067 = vunpack.c.h.b16 %v6971
  %v7068 = vpack.c.b16 %v7004, %v7004
  %v7069 = vpack.c.b16 %v7005, %v7005
  %v7070 = vpack.c.b16 %v7006, %v7006
  %v7071 = vpack.c.b16 %v7007, %v7007
  %v7072 = vpack.c.b16 %v7008, %v7008
  %v7073 = vpack.c.b16 %v7009, %v7009
  %v7074 = vpack.c.b16 %v7010, %v7010
  %v7075 = vpack.c.b16 %v7011, %v7011
  %v7076 = vpack.c.b16 %v7012, %v7012
  %v7077 = vpack.c.b16 %v7013, %v7013
  %v7078 = vpack.c.b16 %v7014, %v7014
  %v7079 = vpack.c.b16 %v7015, %v7015
  %v7080 = vpack.c.b16 %v7016, %v7016
  %v7081 = vpack.c.b16 %v7017, %v7017
  %v7082 = vpack.c.b16 %v7018, %v7018
  %v7083 = vpack.c.b16 %v7019, %v7019
  %v7084 = vpack.c.b16 %v7020, %v7020
  %v7085 = vpack.c.b16 %v7021, %v7021
  %v7086 = vpack.c.b16 %v7022, %v7022
  %v7087 = vpack.c.b16 %v7023, %v7023
  %v7088 = vpack.c.b16 %v7024, %v7024
  %v7089 = vpack.c.b16 %v7025, %v7025
  %v7090 = vpack.c.b16 %v7026, %v7026
  %v7091 = vpack.c.b16 %v7027, %v7027
  %v7092 = vpack.c.b16 %v7028, %v7028
  %v7093 = vpack.c.b16 %v7029, %v7029
  %v7094 = vpack.c.b16 %v7030, %v7030
  %v7095 = vpack.c.b16 %v7031, %v7031
  %v7096 = vpack.c.b16 %v7032, %v7032
  %v7097 = vpack.c.b16 %v7033, %v7033
  %v7098 = vpack.c.b16 %v7034, %v7034
  %v7099 = vpack.c.b16 %v7035, %v7035
  %v7100 = vpack.c.b16 %v7036, %v7036
  %v7101 = vpack.c.b16 %v7037, %v7037
  %v7102 = vpack.c.b16 %v7038, %v7038
  %v7103 = vpack.c.b16 %v7039, %v7039
  %v7104 = vpack.c.b16 %v7040, %v7040
  %v7105 = vpack.c.b16 %v7041, %v7041
  %v7106 = vpack.c.b16 %v7042, %v7042
  %v7107 = vpack.c.b16 %v7043, %v7043
  %v7108 = vpack.c.b16 %v7044, %v7044
  %v7109 = vpack.c.b16 %v7045, %v7045
  %v7110 = vpack.c.b16 %v7046, %v7046
  %v7111 = vpack.c.b16 %v7047, %v7047
  %v7112 = vpack.c.b16 %v7048, %v7048
  %v7113 = vpack.c.b16 %v7049, %v7049
  %v7114 = vpack.c.b16 %v7050, %v7050
  %v7115 = vpack.c.b16 %v7051, %v7051
  %v7116 = vpack.c.b16 %v7052, %v7052
  %v7117 = vpack.c.b16 %v7053, %v7053
  %v7118 = vpack.c.b16 %v7054, %v7054
  %v7119 = vpack.c.b16 %v7055, %v7055
  %v7120 = vpack.c.b16 %v7056, %v7056
  %v7121 = vpack.c.b16 %v7057, %v7057
  %v7122 = vpack.c.b16 %v7058, %v7058
  %v7123 = vpack.c.b16 %v7059, %v7059
  %v7124 = vpack.c.b16 %v7060, %v7060
  %v7125 = vpack.c.b16 %v7061, %v7061
  %v7126 = vpack.c.b16 %v7062, %v7062
  %v7127 = vpack.c.b16 %v7063, %v7063
  %v7128 = vpack.c.b16 %v7064, %v7064
  %v7129 = vpack.c.b16 %v7065, %v7065
  %v7130 = vpack.c.b16 %v7066, %v7066
  %v7131 = vpack.c.b16 %v7067, %v7067
  %v7133 = vshrl.u32 %v7068, 16
  %v7135 = vrot.slane %v7133, 7
  %v7136 = vshll.u32 %v7068, 16
  %v7138 = vor.u32 %v7135, %v7136
  %v7139 = vrot.slane %v7135, 4
  %v7141 = vshrl.u32 %v7069, 16
  %v7143 = vrot.slane %v7141, 7
  %v7144 = vshll.u32 %v7069, 16
  %v7146 = vor.u32 %v7143, %v7144
  %v7147 = vsel %vm495, %v7139, %v7146
  %v7148 = vrot.slane %v7143, 4
  %v7150 = vshrl.u32 %v7070, 16
  %v7152 = vrot.slane %v7150, 7
  %v7153 = vshll.u32 %v7070, 16
  %v7155 = vor.u32 %v7152, %v7153
  %v7156 = vrot.slane %v7152, 4
  %v7158 = vshrl.u32 %v7071, 16
  %v7160 = vrot.slane %v7158, 7
  %v7161 = vshll.u32 %v7071, 16
  %v7163 = vor.u32 %v7160, %v7161
  %v7164 = vsel %vm495, %v7156, %v7163
  %v7165 = vrot.slane %v7160, 4
  %v7167 = vshrl.u32 %v7072, 16
  %v7169 = vrot.slane %v7167, 7
  %v7170 = vshll.u32 %v7072, 16
  %v7172 = vor.u32 %v7169, %v7170
  %v7173 = vrot.slane %v7169, 4
  %v7175 = vshrl.u32 %v7073, 16
  %v7177 = vrot.slane %v7175, 7
  %v7178 = vshll.u32 %v7073, 16
  %v7180 = vor.u32 %v7177, %v7178
  %v7181 = vsel %vm495, %v7173, %v7180
  %v7182 = vrot.slane %v7177, 4
  %v7184 = vshrl.u32 %v7074, 16
  %v7186 = vrot.slane %v7184, 7
  %v7187 = vshll.u32 %v7074, 16
  %v7189 = vor.u32 %v7186, %v7187
  %v7190 = vrot.slane %v7186, 4
  %v7192 = vshrl.u32 %v7075, 16
  %v7194 = vrot.slane %v7192, 7
  %v7195 = vshll.u32 %v7075, 16
  %v7197 = vor.u32 %v7194, %v7195
  %v7198 = vsel %vm495, %v7190, %v7197
  %v7199 = vrot.slane %v7194, 4
  %v7201 = vshrl.u32 %v7076, 16
  %v7203 = vrot.slane %v7201, 7
  %v7204 = vshll.u32 %v7076, 16
  %v7206 = vor.u32 %v7203, %v7204
  %v7207 = vrot.slane %v7203, 4
  %v7209 = vshrl.u32 %v7077, 16
  %v7211 = vrot.slane %v7209, 7
  %v7212 = vshll.u32 %v7077, 16
  %v7214 = vor.u32 %v7211, %v7212
  %v7215 = vsel %vm495, %v7207, %v7214
  %v7216 = vrot.slane %v7211, 4
  %v7218 = vshrl.u32 %v7078, 16
  %v7220 = vrot.slane %v7218, 7
  %v7221 = vshll.u32 %v7078, 16
  %v7223 = vor.u32 %v7220, %v7221
  %v7224 = vrot.slane %v7220, 4
  %v7226 = vshrl.u32 %v7079, 16
  %v7228 = vrot.slane %v7226, 7
  %v7229 = vshll.u32 %v7079, 16
  %v7231 = vor.u32 %v7228, %v7229
  %v7232 = vsel %vm495, %v7224, %v7231
  %v7233 = vrot.slane %v7228, 4
  %v7235 = vshrl.u32 %v7080, 16
  %v7237 = vrot.slane %v7235, 7
  %v7238 = vshll.u32 %v7080, 16
  %v7240 = vor.u32 %v7237, %v7238
  %v7241 = vrot.slane %v7237, 4
  %v7243 = vshrl.u32 %v7081, 16
  %v7245 = vrot.slane %v7243, 7
  %v7246 = vshll.u32 %v7081, 16
  %v7248 = vor.u32 %v7245, %v7246
  %v7249 = vsel %vm495, %v7241, %v7248
  %v7250 = vrot.slane %v7245, 4
  %v7252 = vshrl.u32 %v7082, 16
  %v7254 = vrot.slane %v7252, 7
  %v7255 = vshll.u32 %v7082, 16
  %v7257 = vor.u32 %v7254, %v7255
  %v7258 = vrot.slane %v7254, 4
  %v7260 = vshrl.u32 %v7083, 16
  %v7262 = vrot.slane %v7260, 7
  %v7263 = vshll.u32 %v7083, 16
  %v7265 = vor.u32 %v7262, %v7263
  %v7266 = vsel %vm495, %v7258, %v7265
  %v7267 = vrot.slane %v7262, 4
  %v7269 = vshrl.u32 %v7084, 16
  %v7271 = vrot.slane %v7269, 7
  %v7272 = vshll.u32 %v7084, 16
  %v7274 = vor.u32 %v7271, %v7272
  %v7275 = vrot.slane %v7271, 4
  %v7277 = vshrl.u32 %v7085, 16
  %v7279 = vrot.slane %v7277, 7
  %v7280 = vshll.u32 %v7085, 16
  %v7282 = vor.u32 %v7279, %v7280
  %v7283 = vsel %vm495, %v7275, %v7282
  %v7284 = vrot.slane %v7279, 4
  %v7286 = vshrl.u32 %v7086, 16
  %v7288 = vrot.slane %v7286, 7
  %v7289 = vshll.u32 %v7086, 16
  %v7291 = vor.u32 %v7288, %v7289
  %v7292 = vrot.slane %v7288, 4
  %v7294 = vshrl.u32 %v7087, 16
  %v7296 = vrot.slane %v7294, 7
  %v7297 = vshll.u32 %v7087, 16
  %v7299 = vor.u32 %v7296, %v7297
  %v7300 = vsel %vm495, %v7292, %v7299
  %v7301 = vrot.slane %v7296, 4
  %v7303 = vshrl.u32 %v7088, 16
  %v7305 = vrot.slane %v7303, 7
  %v7306 = vshll.u32 %v7088, 16
  %v7308 = vor.u32 %v7305, %v7306
  %v7309 = vrot.slane %v7305, 4
  %v7311 = vshrl.u32 %v7089, 16
  %v7313 = vrot.slane %v7311, 7
  %v7314 = vshll.u32 %v7089, 16
  %v7316 = vor.u32 %v7313, %v7314
  %v7317 = vsel %vm495, %v7309, %v7316
  %v7318 = vrot.slane %v7313, 4
  %v7320 = vshrl.u32 %v7090, 16
  %v7322 = vrot.slane %v7320, 7
  %v7323 = vshll.u32 %v7090, 16
  %v7325 = vor.u32 %v7322, %v7323
  %v7326 = vrot.slane %v7322, 4
  %v7328 = vshrl.u32 %v7091, 16
  %v7330 = vrot.slane %v7328, 7
  %v7331 = vshll.u32 %v7091, 16
  %v7333 = vor.u32 %v7330, %v7331
  %v7334 = vsel %vm495, %v7326, %v7333
  %v7335 = vrot.slane %v7330, 4
  %v7337 = vshrl.u32 %v7092, 16
  %v7339 = vrot.slane %v7337, 7
  %v7340 = vshll.u32 %v7092, 16
  %v7342 = vor.u32 %v7339, %v7340
  %v7343 = vrot.slane %v7339, 4
  %v7345 = vshrl.u32 %v7093, 16
  %v7347 = vrot.slane %v7345, 7
  %v7348 = vshll.u32 %v7093, 16
  %v7350 = vor.u32 %v7347, %v7348
  %v7351 = vsel %vm495, %v7343, %v7350
  %v7352 = vrot.slane %v7347, 4
  %v7354 = vshrl.u32 %v7094, 16
  %v7356 = vrot.slane %v7354, 7
  %v7357 = vshll.u32 %v7094, 16
  %v7359 = vor.u32 %v7356, %v7357
  %v7360 = vrot.slane %v7356, 4
  %v7362 = vshrl.u32 %v7095, 16
  %v7364 = vrot.slane %v7362, 7
  %v7365 = vshll.u32 %v7095, 16
  %v7367 = vor.u32 %v7364, %v7365
  %v7368 = vsel %vm495, %v7360, %v7367
  %v7369 = vrot.slane %v7364, 4
  %v7371 = vshrl.u32 %v7096, 16
  %v7373 = vrot.slane %v7371, 7
  %v7374 = vshll.u32 %v7096, 16
  %v7376 = vor.u32 %v7373, %v7374
  %v7377 = vrot.slane %v7373, 4
  %v7379 = vshrl.u32 %v7097, 16
  %v7381 = vrot.slane %v7379, 7
  %v7382 = vshll.u32 %v7097, 16
  %v7384 = vor.u32 %v7381, %v7382
  %v7385 = vsel %vm495, %v7377, %v7384
  %v7386 = vrot.slane %v7381, 4
  %v7388 = vshrl.u32 %v7098, 16
  %v7390 = vrot.slane %v7388, 7
  %v7391 = vshll.u32 %v7098, 16
  %v7393 = vor.u32 %v7390, %v7391
  %v7394 = vrot.slane %v7390, 4
  %v7396 = vshrl.u32 %v7099, 16
  %v7398 = vrot.slane %v7396, 7
  %v7399 = vshll.u32 %v7099, 16
  %v7401 = vor.u32 %v7398, %v7399
  %v7402 = vsel %vm495, %v7394, %v7401
  %v7403 = vrot.slane %v7398, 4
  %v7405 = vshrl.u32 %v7100, 16
  %v7407 = vrot.slane %v7405, 7
  %v7408 = vshll.u32 %v7100, 16
  %v7410 = vor.u32 %v7407, %v7408
  %v7411 = vrot.slane %v7407, 4
  %v7413 = vshrl.u32 %v7101, 16
  %v7415 = vrot.slane %v7413, 7
  %v7416 = vshll.u32 %v7101, 16
  %v7418 = vor.u32 %v7415, %v7416
  %v7419 = vsel %vm495, %v7411, %v7418
  %v7420 = vrot.slane %v7415, 4
  %v7422 = vshrl.u32 %v7102, 16
  %v7424 = vrot.slane %v7422, 7
  %v7425 = vshll.u32 %v7102, 16
  %v7427 = vor.u32 %v7424, %v7425
  %v7428 = vrot.slane %v7424, 4
  %v7430 = vshrl.u32 %v7103, 16
  %v7432 = vrot.slane %v7430, 7
  %v7433 = vshll.u32 %v7103, 16
  %v7435 = vor.u32 %v7432, %v7433
  %v7436 = vsel %vm495, %v7428, %v7435
  %v7437 = vrot.slane %v7432, 4
  %v7439 = vshrl.u32 %v7104, 16
  %v7441 = vrot.slane %v7439, 7
  %v7442 = vshll.u32 %v7104, 16
  %v7444 = vor.u32 %v7441, %v7442
  %v7445 = vrot.slane %v7441, 4
  %v7447 = vshrl.u32 %v7105, 16
  %v7449 = vrot.slane %v7447, 7
  %v7450 = vshll.u32 %v7105, 16
  %v7452 = vor.u32 %v7449, %v7450
  %v7453 = vsel %vm495, %v7445, %v7452
  %v7454 = vrot.slane %v7449, 4
  %v7456 = vshrl.u32 %v7106, 16
  %v7458 = vrot.slane %v7456, 7
  %v7459 = vshll.u32 %v7106, 16
  %v7461 = vor.u32 %v7458, %v7459
  %v7462 = vrot.slane %v7458, 4
  %v7464 = vshrl.u32 %v7107, 16
  %v7466 = vrot.slane %v7464, 7
  %v7467 = vshll.u32 %v7107, 16
  %v7469 = vor.u32 %v7466, %v7467
  %v7470 = vsel %vm495, %v7462, %v7469
  %v7471 = vrot.slane %v7466, 4
  %v7473 = vshrl.u32 %v7108, 16
  %v7475 = vrot.slane %v7473, 7
  %v7476 = vshll.u32 %v7108, 16
  %v7478 = vor.u32 %v7475, %v7476
  %v7479 = vrot.slane %v7475, 4
  %v7481 = vshrl.u32 %v7109, 16
  %v7483 = vrot.slane %v7481, 7
  %v7484 = vshll.u32 %v7109, 16
  %v7486 = vor.u32 %v7483, %v7484
  %v7487 = vsel %vm495, %v7479, %v7486
  %v7488 = vrot.slane %v7483, 4
  %v7490 = vshrl.u32 %v7110, 16
  %v7492 = vrot.slane %v7490, 7
  %v7493 = vshll.u32 %v7110, 16
  %v7495 = vor.u32 %v7492, %v7493
  %v7496 = vrot.slane %v7492, 4
  %v7498 = vshrl.u32 %v7111, 16
  %v7500 = vrot.slane %v7498, 7
  %v7501 = vshll.u32 %v7111, 16
  %v7503 = vor.u32 %v7500, %v7501
  %v7504 = vsel %vm495, %v7496, %v7503
  %v7505 = vrot.slane %v7500, 4
  %v7507 = vshrl.u32 %v7112, 16
  %v7509 = vrot.slane %v7507, 7
  %v7510 = vshll.u32 %v7112, 16
  %v7512 = vor.u32 %v7509, %v7510
  %v7513 = vrot.slane %v7509, 4
  %v7515 = vshrl.u32 %v7113, 16
  %v7517 = vrot.slane %v7515, 7
  %v7518 = vshll.u32 %v7113, 16
  %v7520 = vor.u32 %v7517, %v7518
  %v7521 = vsel %vm495, %v7513, %v7520
  %v7522 = vrot.slane %v7517, 4
  %v7524 = vshrl.u32 %v7114, 16
  %v7526 = vrot.slane %v7524, 7
  %v7527 = vshll.u32 %v7114, 16
  %v7529 = vor.u32 %v7526, %v7527
  %v7530 = vrot.slane %v7526, 4
  %v7532 = vshrl.u32 %v7115, 16
  %v7534 = vrot.slane %v7532, 7
  %v7535 = vshll.u32 %v7115, 16
  %v7537 = vor.u32 %v7534, %v7535
  %v7538 = vsel %vm495, %v7530, %v7537
  %v7539 = vrot.slane %v7534, 4
  %v7541 = vshrl.u32 %v7116, 16
  %v7543 = vrot.slane %v7541, 7
  %v7544 = vshll.u32 %v7116, 16
  %v7546 = vor.u32 %v7543, %v7544
  %v7547 = vrot.slane %v7543, 4
  %v7549 = vshrl.u32 %v7117, 16
  %v7551 = vrot.slane %v7549, 7
  %v7552 = vshll.u32 %v7117, 16
  %v7554 = vor.u32 %v7551, %v7552
  %v7555 = vsel %vm495, %v7547, %v7554
  %v7556 = vrot.slane %v7551, 4
  %v7558 = vshrl.u32 %v7118, 16
  %v7560 = vrot.slane %v7558, 7
  %v7561 = vshll.u32 %v7118, 16
  %v7563 = vor.u32 %v7560, %v7561
  %v7564 = vrot.slane %v7560, 4
  %v7566 = vshrl.u32 %v7119, 16
  %v7568 = vrot.slane %v7566, 7
  %v7569 = vshll.u32 %v7119, 16
  %v7571 = vor.u32 %v7568, %v7569
  %v7572 = vsel %vm495, %v7564, %v7571
  %v7573 = vrot.slane %v7568, 4
  %v7575 = vshrl.u32 %v7120, 16
  %v7577 = vrot.slane %v7575, 7
  %v7578 = vshll.u32 %v7120, 16
  %v7580 = vor.u32 %v7577, %v7578
  %v7581 = vrot.slane %v7577, 4
  %v7583 = vshrl.u32 %v7121, 16
  %v7585 = vrot.slane %v7583, 7
  %v7586 = vshll.u32 %v7121, 16
  %v7588 = vor.u32 %v7585, %v7586
  %v7589 = vsel %vm495, %v7581, %v7588
  %v7590 = vrot.slane %v7585, 4
  %v7592 = vshrl.u32 %v7122, 16
  %v7594 = vrot.slane %v7592, 7
  %v7595 = vshll.u32 %v7122, 16
  %v7597 = vor.u32 %v7594, %v7595
  %v7598 = vrot.slane %v7594, 4
  %v7600 = vshrl.u32 %v7123, 16
  %v7602 = vrot.slane %v7600, 7
  %v7603 = vshll.u32 %v7123, 16
  %v7605 = vor.u32 %v7602, %v7603
  %v7606 = vsel %vm495, %v7598, %v7605
  %v7607 = vrot.slane %v7602, 4
  %v7609 = vshrl.u32 %v7124, 16
  %v7611 = vrot.slane %v7609, 7
  %v7612 = vshll.u32 %v7124, 16
  %v7614 = vor.u32 %v7611, %v7612
  %v7615 = vrot.slane %v7611, 4
  %v7617 = vshrl.u32 %v7125, 16
  %v7619 = vrot.slane %v7617, 7
  %v7620 = vshll.u32 %v7125, 16
  %v7622 = vor.u32 %v7619, %v7620
  %v7623 = vsel %vm495, %v7615, %v7622
  %v7624 = vrot.slane %v7619, 4
  %v7626 = vshrl.u32 %v7126, 16
  %v7628 = vrot.slane %v7626, 7
  %v7629 = vshll.u32 %v7126, 16
  %v7631 = vor.u32 %v7628, %v7629
  %v7632 = vrot.slane %v7628, 4
  %v7634 = vshrl.u32 %v7127, 16
  %v7636 = vrot.slane %v7634, 7
  %v7637 = vshll.u32 %v7127, 16
  %v7639 = vor.u32 %v7636, %v7637
  %v7640 = vsel %vm495, %v7632, %v7639
  %v7641 = vrot.slane %v7636, 4
  %v7643 = vshrl.u32 %v7128, 16
  %v7645 = vrot.slane %v7643, 7
  %v7646 = vshll.u32 %v7128, 16
  %v7648 = vor.u32 %v7645, %v7646
  %v7649 = vrot.slane %v7645, 4
  %v7651 = vshrl.u32 %v7129, 16
  %v7653 = vrot.slane %v7651, 7
  %v7654 = vshll.u32 %v7129, 16
  %v7656 = vor.u32 %v7653, %v7654
  %v7657 = vsel %vm495, %v7649, %v7656
  %v7658 = vrot.slane %v7653, 4
  %v7660 = vshrl.u32 %v7130, 16
  %v7662 = vrot.slane %v7660, 7
  %v7663 = vshll.u32 %v7130, 16
  %v7665 = vor.u32 %v7662, %v7663
  %v7666 = vrot.slane %v7662, 4
  %v7668 = vshrl.u32 %v7131, 16
  %v7670 = vrot.slane %v7668, 7
  %v7671 = vshll.u32 %v7131, 16
  %v7673 = vor.u32 %v7670, %v7671
  %v7674 = vsel %vm495, %v7666, %v7673
  %v7675 = vrot.slane %v7670, 4
  %v7772 = vsel %vm1137, %v7138, %v2340
  %7773 = vst [vmem:[%s40] sm:$0xf] %v7772
  %7774 = vst [vmem:[%s40 + $0x4] sm:$0xf] %v7147
  %v7775 = vld [vmem:[%s40 + $0x8] sm:$0x1]
  %v7776 = vsel %vm43, %v7148, %v7775
  %7777 = vst [vmem:[%s40 + $0x8] sm:$0x1] %v7776
  %v7778 = vld [vmem:[%s40 + $0xc] sm:$0xf]
  %v7779 = vsel %vm1137, %v7155, %v7778
  %7780 = vst [vmem:[%s40 + $0xc] sm:$0xf] %v7779
  %7781 = vst [vmem:[%s40 + $0x10] sm:$0xf] %v7164
  %v7782 = vld [vmem:[%s40 + $0x14] sm:$0x1]
  %v7783 = vsel %vm43, %v7165, %v7782
  %7784 = vst [vmem:[%s40 + $0x14] sm:$0x1] %v7783
  %v7785 = vld [vmem:[%s40 + $0x18] sm:$0xf]
  %v7786 = vsel %vm1137, %v7172, %v7785
  %7787 = vst [vmem:[%s40 + $0x18] sm:$0xf] %v7786
  %7788 = vst [vmem:[%s40 + $0x1c] sm:$0xf] %v7181
  %v7789 = vld [vmem:[%s40 + $0x20] sm:$0x1]
  %v7790 = vsel %vm43, %v7182, %v7789
  %7791 = vst [vmem:[%s40 + $0x20] sm:$0x1] %v7790
  %v7792 = vld [vmem:[%s40 + $0x24] sm:$0xf]
  %v7793 = vsel %vm1137, %v7189, %v7792
  %7794 = vst [vmem:[%s40 + $0x24] sm:$0xf] %v7793
  %7795 = vst [vmem:[%s40 + $0x28] sm:$0xf] %v7198
  %v7796 = vld [vmem:[%s40 + $0x2c] sm:$0x1]
  %v7797 = vsel %vm43, %v7199, %v7796
  %7798 = vst [vmem:[%s40 + $0x2c] sm:$0x1] %v7797
  %v7799 = vld [vmem:[%s40 + $0x30] sm:$0xf]
  %v7800 = vsel %vm1137, %v7206, %v7799
  %7801 = vst [vmem:[%s40 + $0x30] sm:$0xf] %v7800
  %7802 = vst [vmem:[%s40 + $0x34] sm:$0xf] %v7215
  %v7803 = vld [vmem:[%s40 + $0x38] sm:$0x1]
  %v7804 = vsel %vm43, %v7216, %v7803
  %7805 = vst [vmem:[%s40 + $0x38] sm:$0x1] %v7804
  %v7806 = vld [vmem:[%s40 + $0x3c] sm:$0xf]
  %v7807 = vsel %vm1137, %v7223, %v7806
  %7808 = vst [vmem:[%s40 + $0x3c] sm:$0xf] %v7807
  %7809 = vst [vmem:[%s40 + $0x40] sm:$0xf] %v7232
  %v7810 = vld [vmem:[%s40 + $0x44] sm:$0x1]
  %v7811 = vsel %vm43, %v7233, %v7810
  %7812 = vst [vmem:[%s40 + $0x44] sm:$0x1] %v7811
  %v7813 = vld [vmem:[%s40 + $0x48] sm:$0xf]
  %v7814 = vsel %vm1137, %v7240, %v7813
  %7815 = vst [vmem:[%s40 + $0x48] sm:$0xf] %v7814
  %7816 = vst [vmem:[%s40 + $0x4c] sm:$0xf] %v7249
  %v7817 = vld [vmem:[%s40 + $0x50] sm:$0x1]
  %v7818 = vsel %vm43, %v7250, %v7817
  %7819 = vst [vmem:[%s40 + $0x50] sm:$0x1] %v7818
  %v7820 = vld [vmem:[%s40 + $0x54] sm:$0xf]
  %v7821 = vsel %vm1137, %v7257, %v7820
  %7822 = vst [vmem:[%s40 + $0x54] sm:$0xf] %v7821
  %7823 = vst [vmem:[%s40 + $0x58] sm:$0xf] %v7266
  %v7824 = vld [vmem:[%s40 + $0x5c] sm:$0x1]
  %v7825 = vsel %vm43, %v7267, %v7824
  %7826 = vst [vmem:[%s40 + $0x5c] sm:$0x1] %v7825
  %v7827 = vld [vmem:[%s40 + $0x60] sm:$0xf]
  %v7828 = vsel %vm1137, %v7274, %v7827
  %7829 = vst [vmem:[%s40 + $0x60] sm:$0xf] %v7828
  %7830 = vst [vmem:[%s40 + $0x64] sm:$0xf] %v7283
  %v7831 = vld [vmem:[%s40 + $0x68] sm:$0x1]
  %v7832 = vsel %vm43, %v7284, %v7831
  %7833 = vst [vmem:[%s40 + $0x68] sm:$0x1] %v7832
  %v7834 = vld [vmem:[%s40 + $0x6c] sm:$0xf]
  %v7835 = vsel %vm1137, %v7291, %v7834
  %7836 = vst [vmem:[%s40 + $0x6c] sm:$0xf] %v7835
  %7837 = vst [vmem:[%s40 + $0x70] sm:$0xf] %v7300
  %v7838 = vld [vmem:[%s40 + $0x74] sm:$0x1]
  %v7839 = vsel %vm43, %v7301, %v7838
  %7840 = vst [vmem:[%s40 + $0x74] sm:$0x1] %v7839
  %v7841 = vld [vmem:[%s40 + $0x78] sm:$0xf]
  %v7842 = vsel %vm1137, %v7308, %v7841
  %7843 = vst [vmem:[%s40 + $0x78] sm:$0xf] %v7842
  %7844 = vst [vmem:[%s40 + $0x7c] sm:$0xf] %v7317
  %v7845 = vld [vmem:[%s40 + $0x80] sm:$0x1]
  %v7846 = vsel %vm43, %v7318, %v7845
  %7847 = vst [vmem:[%s40 + $0x80] sm:$0x1] %v7846
  %v7848 = vld [vmem:[%s40 + $0x84] sm:$0xf]
  %v7849 = vsel %vm1137, %v7325, %v7848
  %7850 = vst [vmem:[%s40 + $0x84] sm:$0xf] %v7849
  %7851 = vst [vmem:[%s40 + $0x88] sm:$0xf] %v7334
  %v7852 = vld [vmem:[%s40 + $0x8c] sm:$0x1]
  %v7853 = vsel %vm43, %v7335, %v7852
  %7854 = vst [vmem:[%s40 + $0x8c] sm:$0x1] %v7853
  %v7855 = vld [vmem:[%s40 + $0x90] sm:$0xf]
  %v7856 = vsel %vm1137, %v7342, %v7855
  %7857 = vst [vmem:[%s40 + $0x90] sm:$0xf] %v7856
  %7858 = vst [vmem:[%s40 + $0x94] sm:$0xf] %v7351
  %v7859 = vld [vmem:[%s40 + $0x98] sm:$0x1]
  %v7860 = vsel %vm43, %v7352, %v7859
  %7861 = vst [vmem:[%s40 + $0x98] sm:$0x1] %v7860
  %v7862 = vld [vmem:[%s40 + $0x9c] sm:$0xf]
  %v7863 = vsel %vm1137, %v7359, %v7862
  %7864 = vst [vmem:[%s40 + $0x9c] sm:$0xf] %v7863
  %7865 = vst [vmem:[%s40 + $0xa0] sm:$0xf] %v7368
  %v7866 = vld [vmem:[%s40 + $0xa4] sm:$0x1]
  %v7867 = vsel %vm43, %v7369, %v7866
  %7868 = vst [vmem:[%s40 + $0xa4] sm:$0x1] %v7867
  %v7869 = vld [vmem:[%s40 + $0xa8] sm:$0xf]
  %v7870 = vsel %vm1137, %v7376, %v7869
  %7871 = vst [vmem:[%s40 + $0xa8] sm:$0xf] %v7870
  %7872 = vst [vmem:[%s40 + $0xac] sm:$0xf] %v7385
  %v7873 = vld [vmem:[%s40 + $0xb0] sm:$0x1]
  %v7874 = vsel %vm43, %v7386, %v7873
  %7875 = vst [vmem:[%s40 + $0xb0] sm:$0x1] %v7874
  %v7876 = vld [vmem:[%s40 + $0xb4] sm:$0xf]
  %v7877 = vsel %vm1137, %v7393, %v7876
  %7878 = vst [vmem:[%s40 + $0xb4] sm:$0xf] %v7877
  %7879 = vst [vmem:[%s40 + $0xb8] sm:$0xf] %v7402
  %v7880 = vld [vmem:[%s40 + $0xbc] sm:$0x1]
  %v7881 = vsel %vm43, %v7403, %v7880
  %7882 = vst [vmem:[%s40 + $0xbc] sm:$0x1] %v7881
  %v7883 = vld [vmem:[%s40 + $0xd8] sm:$0xf]
  %v7884 = vsel %vm1137, %v7410, %v7883
  %7885 = vst [vmem:[%s40 + $0xd8] sm:$0xf] %v7884
  %7886 = vst [vmem:[%s40 + $0xdc] sm:$0xf] %v7419
  %v7887 = vld [vmem:[%s40 + $0xe0] sm:$0x1]
  %v7888 = vsel %vm43, %v7420, %v7887
  %7889 = vst [vmem:[%s40 + $0xe0] sm:$0x1] %v7888
  %v7890 = vld [vmem:[%s40 + $0xe4] sm:$0xf]
  %v7891 = vsel %vm1137, %v7427, %v7890
  %7892 = vst [vmem:[%s40 + $0xe4] sm:$0xf] %v7891
  %7893 = vst [vmem:[%s40 + $0xe8] sm:$0xf] %v7436
  %v7894 = vld [vmem:[%s40 + $0xec] sm:$0x1]
  %v7895 = vsel %vm43, %v7437, %v7894
  %7896 = vst [vmem:[%s40 + $0xec] sm:$0x1] %v7895
  %v7897 = vld [vmem:[%s40 + $0xf0] sm:$0xf]
  %v7898 = vsel %vm1137, %v7444, %v7897
  %7899 = vst [vmem:[%s40 + $0xf0] sm:$0xf] %v7898
  %7900 = vst [vmem:[%s40 + $0xf4] sm:$0xf] %v7453
  %v7901 = vld [vmem:[%s40 + $0xf8] sm:$0x1]
  %v7902 = vsel %vm43, %v7454, %v7901
  %7903 = vst [vmem:[%s40 + $0xf8] sm:$0x1] %v7902
  %v7904 = vld [vmem:[%s40 + $0xfc] sm:$0xf]
  %v7905 = vsel %vm1137, %v7461, %v7904
  %7906 = vst [vmem:[%s40 + $0xfc] sm:$0xf] %v7905
  %7907 = vst [vmem:[%s40 + $0x100] sm:$0xf] %v7470
  %v7908 = vld [vmem:[%s40 + $0x104] sm:$0x1]
  %v7909 = vsel %vm43, %v7471, %v7908
  %7910 = vst [vmem:[%s40 + $0x104] sm:$0x1] %v7909
  %v7911 = vld [vmem:[%s40 + $0x108] sm:$0xf]
  %v7912 = vsel %vm1137, %v7478, %v7911
  %7913 = vst [vmem:[%s40 + $0x108] sm:$0xf] %v7912
  %7914 = vst [vmem:[%s40 + $0x10c] sm:$0xf] %v7487
  %v7915 = vld [vmem:[%s40 + $0x110] sm:$0x1]
  %v7916 = vsel %vm43, %v7488, %v7915
  %7917 = vst [vmem:[%s40 + $0x110] sm:$0x1] %v7916
  %v7918 = vld [vmem:[%s40 + $0x114] sm:$0xf]
  %v7919 = vsel %vm1137, %v7495, %v7918
  %7920 = vst [vmem:[%s40 + $0x114] sm:$0xf] %v7919
  %7921 = vst [vmem:[%s40 + $0x118] sm:$0xf] %v7504
  %v7922 = vld [vmem:[%s40 + $0x11c] sm:$0x1]
  %v7923 = vsel %vm43, %v7505, %v7922
  %7924 = vst [vmem:[%s40 + $0x11c] sm:$0x1] %v7923
  %v7925 = vld [vmem:[%s40 + $0x120] sm:$0xf]
  %v7926 = vsel %vm1137, %v7512, %v7925
  %7927 = vst [vmem:[%s40 + $0x120] sm:$0xf] %v7926
  %7928 = vst [vmem:[%s40 + $0x124] sm:$0xf] %v7521
  %v7929 = vld [vmem:[%s40 + $0x128] sm:$0x1]
  %v7930 = vsel %vm43, %v7522, %v7929
  %7931 = vst [vmem:[%s40 + $0x128] sm:$0x1] %v7930
  %v7932 = vld [vmem:[%s40 + $0x12c] sm:$0xf]
  %v7933 = vsel %vm1137, %v7529, %v7932
  %7934 = vst [vmem:[%s40 + $0x12c] sm:$0xf] %v7933
  %7935 = vst [vmem:[%s40 + $0x130] sm:$0xf] %v7538
  %v7936 = vld [vmem:[%s40 + $0x134] sm:$0x1]
  %v7937 = vsel %vm43, %v7539, %v7936
  %7938 = vst [vmem:[%s40 + $0x134] sm:$0x1] %v7937
  %v7939 = vld [vmem:[%s40 + $0x138] sm:$0xf]
  %v7940 = vsel %vm1137, %v7546, %v7939
  %7941 = vst [vmem:[%s40 + $0x138] sm:$0xf] %v7940
  %7942 = vst [vmem:[%s40 + $0x13c] sm:$0xf] %v7555
  %v7943 = vld [vmem:[%s40 + $0x140] sm:$0x1]
  %v7944 = vsel %vm43, %v7556, %v7943
  %7945 = vst [vmem:[%s40 + $0x140] sm:$0x1] %v7944
  %v7946 = vld [vmem:[%s40 + $0x144] sm:$0xf]
  %v7947 = vsel %vm1137, %v7563, %v7946
  %7948 = vst [vmem:[%s40 + $0x144] sm:$0xf] %v7947
  %7949 = vst [vmem:[%s40 + $0x148] sm:$0xf] %v7572
  %v7950 = vld [vmem:[%s40 + $0x14c] sm:$0x1]
  %v7951 = vsel %vm43, %v7573, %v7950
  %7952 = vst [vmem:[%s40 + $0x14c] sm:$0x1] %v7951
  %v7953 = vld [vmem:[%s40 + $0x150] sm:$0xf]
  %v7954 = vsel %vm1137, %v7580, %v7953
  %7955 = vst [vmem:[%s40 + $0x150] sm:$0xf] %v7954
  %7956 = vst [vmem:[%s40 + $0x154] sm:$0xf] %v7589
  %v7957 = vld [vmem:[%s40 + $0x158] sm:$0x1]
  %v7958 = vsel %vm43, %v7590, %v7957
  %7959 = vst [vmem:[%s40 + $0x158] sm:$0x1] %v7958
  %v7960 = vld [vmem:[%s40 + $0x15c] sm:$0xf]
  %v7961 = vsel %vm1137, %v7597, %v7960
  %7962 = vst [vmem:[%s40 + $0x15c] sm:$0xf] %v7961
  %7963 = vst [vmem:[%s40 + $0x160] sm:$0xf] %v7606
  %v7964 = vld [vmem:[%s40 + $0x164] sm:$0x1]
  %v7965 = vsel %vm43, %v7607, %v7964
  %7966 = vst [vmem:[%s40 + $0x164] sm:$0x1] %v7965
  %v7967 = vld [vmem:[%s40 + $0x168] sm:$0xf]
  %v7968 = vsel %vm1137, %v7614, %v7967
  %7969 = vst [vmem:[%s40 + $0x168] sm:$0xf] %v7968
  %7970 = vst [vmem:[%s40 + $0x16c] sm:$0xf] %v7623
  %v7971 = vld [vmem:[%s40 + $0x170] sm:$0x1]
  %v7972 = vsel %vm43, %v7624, %v7971
  %7973 = vst [vmem:[%s40 + $0x170] sm:$0x1] %v7972
  %v7974 = vld [vmem:[%s40 + $0x174] sm:$0xf]
  %v7975 = vsel %vm1137, %v7631, %v7974
  %7976 = vst [vmem:[%s40 + $0x174] sm:$0xf] %v7975
  %7977 = vst [vmem:[%s40 + $0x178] sm:$0xf] %v7640
  %v7978 = vld [vmem:[%s40 + $0x17c] sm:$0x1]
  %v7979 = vsel %vm43, %v7641, %v7978
  %7980 = vst [vmem:[%s40 + $0x17c] sm:$0x1] %v7979
  %v7981 = vld [vmem:[%s40 + $0x180] sm:$0xf]
  %v7982 = vsel %vm1137, %v7648, %v7981
  %7983 = vst [vmem:[%s40 + $0x180] sm:$0xf] %v7982
  %7984 = vst [vmem:[%s40 + $0x184] sm:$0xf] %v7657
  %v7985 = vld [vmem:[%s40 + $0x188] sm:$0x1]
  %v7986 = vsel %vm43, %v7658, %v7985
  %7987 = vst [vmem:[%s40 + $0x188] sm:$0x1] %v7986
  %v7988 = vld [vmem:[%s40 + $0x18c] sm:$0xf]
  %v7989 = vsel %vm1137, %v7665, %v7988
  %7990 = vst [vmem:[%s40 + $0x18c] sm:$0xf] %v7989
  %7991 = vst [vmem:[%s40 + $0x190] sm:$0xf] %v7674
  %v7992 = vld [vmem:[%s40 + $0x194] sm:$0x1]
  %v7993 = vsel %vm43, %v7675, %v7992
  %7994 = vst [vmem:[%s40 + $0x194] sm:$0x1] %v7993
  %v7995 = vld [vmem:[#allocation2] sm:$0xf]
  %v7996 = vld [vmem:[#allocation2 + $0x4] sm:$0xf]
  %v7997 = vld [vmem:[#allocation2 + $0x8] sm:$0x1]
  %v7998 = vld [vmem:[#allocation2 + $0xc] sm:$0xf]
  %v7999 = vld [vmem:[#allocation2 + $0x10] sm:$0xf]
  %v8000 = vld [vmem:[#allocation2 + $0x14] sm:$0x1]
  %v8001 = vld [vmem:[#allocation2 + $0x18] sm:$0xf]
  %v8002 = vld [vmem:[#allocation2 + $0x1c] sm:$0xf]
  %v8003 = vld [vmem:[#allocation2 + $0x20] sm:$0x1]
  %v8004 = vld [vmem:[#allocation2 + $0x24] sm:$0xf]
  %v8005 = vld [vmem:[#allocation2 + $0x28] sm:$0xf]
  %v8006 = vld [vmem:[#allocation2 + $0x2c] sm:$0x1]
  %v8007 = vld [vmem:[#allocation2 + $0x30] sm:$0xf]
  %v8008 = vld [vmem:[#allocation2 + $0x34] sm:$0xf]
  %v8009 = vld [vmem:[#allocation2 + $0x38] sm:$0x1]
  %v8010 = vld [vmem:[#allocation2 + $0x3c] sm:$0xf]
  %v8011 = vld [vmem:[#allocation2 + $0x40] sm:$0xf]
  %v8012 = vld [vmem:[#allocation2 + $0x44] sm:$0x1]
  %v8013 = vld [vmem:[#allocation2 + $0x48] sm:$0xf]
  %v8014 = vld [vmem:[#allocation2 + $0x4c] sm:$0xf]
  %v8015 = vld [vmem:[#allocation2 + $0x50] sm:$0x1]
  %v8016 = vld [vmem:[#allocation2 + $0x54] sm:$0xf]
  %v8017 = vld [vmem:[#allocation2 + $0x58] sm:$0xf]
  %v8018 = vld [vmem:[#allocation2 + $0x5c] sm:$0x1]
  %v8019 = vld [vmem:[#allocation2 + $0x60] sm:$0xf]
  %v8020 = vld [vmem:[#allocation2 + $0x64] sm:$0xf]
  %v8021 = vld [vmem:[#allocation2 + $0x68] sm:$0x1]
  %v8022 = vld [vmem:[#allocation2 + $0x6c] sm:$0xf]
  %v8023 = vld [vmem:[#allocation2 + $0x70] sm:$0xf]
  %v8024 = vld [vmem:[#allocation2 + $0x74] sm:$0x1]
  %v8025 = vld [vmem:[#allocation2 + $0x78] sm:$0xf]
  %v8026 = vld [vmem:[#allocation2 + $0x7c] sm:$0xf]
  %v8027 = vld [vmem:[#allocation2 + $0x80] sm:$0x1]
  %v8028 = vld [vmem:[#allocation2 + $0x84] sm:$0xf]
  %v8029 = vld [vmem:[#allocation2 + $0x88] sm:$0xf]
  %v8030 = vld [vmem:[#allocation2 + $0x8c] sm:$0x1]
  %v8031 = vld [vmem:[#allocation2 + $0x90] sm:$0xf]
  %v8032 = vld [vmem:[#allocation2 + $0x94] sm:$0xf]
  %v8033 = vld [vmem:[#allocation2 + $0x98] sm:$0x1]
  %v8034 = vld [vmem:[#allocation2 + $0x9c] sm:$0xf]
  %v8035 = vld [vmem:[#allocation2 + $0xa0] sm:$0xf]
  %v8036 = vld [vmem:[#allocation2 + $0xa4] sm:$0x1]
  %v8037 = vld [vmem:[#allocation2 + $0xa8] sm:$0xf]
  %v8038 = vld [vmem:[#allocation2 + $0xac] sm:$0xf]
  %v8039 = vld [vmem:[#allocation2 + $0xb0] sm:$0x1]
  %v8040 = vld [vmem:[#allocation2 + $0xb4] sm:$0xf]
  %v8041 = vld [vmem:[#allocation2 + $0xb8] sm:$0xf]
  %v8042 = vld [vmem:[#allocation2 + $0xbc] sm:$0x1]
  %v8043 = vld [vmem:[#allocation2 + $0xd8] sm:$0xf]
  %v8044 = vld [vmem:[#allocation2 + $0xdc] sm:$0xf]
  %v8045 = vld [vmem:[#allocation2 + $0xe0] sm:$0x1]
  %v8046 = vld [vmem:[#allocation2 + $0xe4] sm:$0xf]
  %v8047 = vld [vmem:[#allocation2 + $0xe8] sm:$0xf]
  %v8048 = vld [vmem:[#allocation2 + $0xec] sm:$0x1]
  %v8049 = vld [vmem:[#allocation2 + $0xf0] sm:$0xf]
  %v8050 = vld [vmem:[#allocation2 + $0xf4] sm:$0xf]
  %v8051 = vld [vmem:[#allocation2 + $0xf8] sm:$0x1]
  %v8052 = vld [vmem:[#allocation2 + $0xfc] sm:$0xf]
  %v8053 = vld [vmem:[#allocation2 + $0x100] sm:$0xf]
  %v8054 = vld [vmem:[#allocation2 + $0x104] sm:$0x1]
  %v8055 = vld [vmem:[#allocation2 + $0x108] sm:$0xf]
  %v8056 = vld [vmem:[#allocation2 + $0x10c] sm:$0xf]
  %v8057 = vld [vmem:[#allocation2 + $0x110] sm:$0x1]
  %v8058 = vld [vmem:[#allocation2 + $0x114] sm:$0xf]
  %v8059 = vld [vmem:[#allocation2 + $0x118] sm:$0xf]
  %v8060 = vld [vmem:[#allocation2 + $0x11c] sm:$0x1]
  %v8061 = vld [vmem:[#allocation2 + $0x120] sm:$0xf]
  %v8062 = vld [vmem:[#allocation2 + $0x124] sm:$0xf]
  %v8063 = vld [vmem:[#allocation2 + $0x128] sm:$0x1]
  %v8064 = vld [vmem:[#allocation2 + $0x12c] sm:$0xf]
  %v8065 = vld [vmem:[#allocation2 + $0x130] sm:$0xf]
  %v8066 = vld [vmem:[#allocation2 + $0x134] sm:$0x1]
  %v8067 = vld [vmem:[#allocation2 + $0x138] sm:$0xf]
  %v8068 = vld [vmem:[#allocation2 + $0x13c] sm:$0xf]
  %v8069 = vld [vmem:[#allocation2 + $0x140] sm:$0x1]
  %v8070 = vld [vmem:[#allocation2 + $0x144] sm:$0xf]
  %v8071 = vld [vmem:[#allocation2 + $0x148] sm:$0xf]
  %v8072 = vld [vmem:[#allocation2 + $0x14c] sm:$0x1]
  %v8073 = vld [vmem:[#allocation2 + $0x150] sm:$0xf]
  %v8074 = vld [vmem:[#allocation2 + $0x154] sm:$0xf]
  %v8075 = vld [vmem:[#allocation2 + $0x158] sm:$0x1]
  %v8076 = vld [vmem:[#allocation2 + $0x15c] sm:$0xf]
  %v8077 = vld [vmem:[#allocation2 + $0x160] sm:$0xf]
  %v8078 = vld [vmem:[#allocation2 + $0x164] sm:$0x1]
  %v8079 = vld [vmem:[#allocation2 + $0x168] sm:$0xf]
  %v8080 = vld [vmem:[#allocation2 + $0x16c] sm:$0xf]
  %v8081 = vld [vmem:[#allocation2 + $0x170] sm:$0x1]
  %v8082 = vld [vmem:[#allocation2 + $0x174] sm:$0xf]
  %v8083 = vld [vmem:[#allocation2 + $0x178] sm:$0xf]
  %v8084 = vld [vmem:[#allocation2 + $0x17c] sm:$0x1]
  %v8085 = vld [vmem:[#allocation2 + $0x180] sm:$0xf]
  %v8086 = vld [vmem:[#allocation2 + $0x184] sm:$0xf]
  %v8087 = vld [vmem:[#allocation2 + $0x188] sm:$0x1]
  %v8088 = vld [vmem:[#allocation2 + $0x18c] sm:$0xf]
  %v8089 = vld [vmem:[#allocation2 + $0x190] sm:$0xf]
  %v8090 = vld [vmem:[#allocation2 + $0x194] sm:$0x1]
  %v8155 = vunpack.c.l.b16 %v7995
  %v8156 = vunpack.c.l.b16 %v7996
  %v8157 = vunpack.c.l.b16 %v7998
  %v8158 = vunpack.c.l.b16 %v7999
  %v8159 = vunpack.c.l.b16 %v8001
  %v8160 = vunpack.c.l.b16 %v8002
  %v8161 = vunpack.c.l.b16 %v8004
  %v8162 = vunpack.c.l.b16 %v8005
  %v8163 = vunpack.c.l.b16 %v8007
  %v8164 = vunpack.c.l.b16 %v8008
  %v8165 = vunpack.c.l.b16 %v8010
  %v8166 = vunpack.c.l.b16 %v8011
  %v8167 = vunpack.c.l.b16 %v8013
  %v8168 = vunpack.c.l.b16 %v8014
  %v8169 = vunpack.c.l.b16 %v8016
  %v8170 = vunpack.c.l.b16 %v8017
  %v8171 = vunpack.c.l.b16 %v8019
  %v8172 = vunpack.c.l.b16 %v8020
  %v8173 = vunpack.c.l.b16 %v8022
  %v8174 = vunpack.c.l.b16 %v8023
  %v8175 = vunpack.c.l.b16 %v8025
  %v8176 = vunpack.c.l.b16 %v8026
  %v8177 = vunpack.c.l.b16 %v8028
  %v8178 = vunpack.c.l.b16 %v8029
  %v8179 = vunpack.c.l.b16 %v8031
  %v8180 = vunpack.c.l.b16 %v8032
  %v8181 = vunpack.c.l.b16 %v8034
  %v8182 = vunpack.c.l.b16 %v8035
  %v8183 = vunpack.c.l.b16 %v8037
  %v8184 = vunpack.c.l.b16 %v8038
  %v8185 = vunpack.c.l.b16 %v8040
  %v8186 = vunpack.c.l.b16 %v8041
  %v8187 = vunpack.c.l.b16 %v8043
  %v8188 = vunpack.c.l.b16 %v8044
  %v8189 = vunpack.c.l.b16 %v8046
  %v8190 = vunpack.c.l.b16 %v8047
  %v8191 = vunpack.c.l.b16 %v8049
  %v8192 = vunpack.c.l.b16 %v8050
  %v8193 = vunpack.c.l.b16 %v8052
  %v8194 = vunpack.c.l.b16 %v8053
  %v8195 = vunpack.c.l.b16 %v8055
  %v8196 = vunpack.c.l.b16 %v8056
  %v8197 = vunpack.c.l.b16 %v8058
  %v8198 = vunpack.c.l.b16 %v8059
  %v8199 = vunpack.c.l.b16 %v8061
  %v8200 = vunpack.c.l.b16 %v8062
  %v8201 = vunpack.c.l.b16 %v8064
  %v8202 = vunpack.c.l.b16 %v8065
  %v8203 = vunpack.c.l.b16 %v8067
  %v8204 = vunpack.c.l.b16 %v8068
  %v8205 = vunpack.c.l.b16 %v8070
  %v8206 = vunpack.c.l.b16 %v8071
  %v8207 = vunpack.c.l.b16 %v8073
  %v8208 = vunpack.c.l.b16 %v8074
  %v8209 = vunpack.c.l.b16 %v8076
  %v8210 = vunpack.c.l.b16 %v8077
  %v8211 = vunpack.c.l.b16 %v8079
  %v8212 = vunpack.c.l.b16 %v8080
  %v8213 = vunpack.c.l.b16 %v8082
  %v8214 = vunpack.c.l.b16 %v8083
  %v8215 = vunpack.c.l.b16 %v8085
  %v8216 = vunpack.c.l.b16 %v8086
  %v8217 = vunpack.c.l.b16 %v8088
  %v8218 = vunpack.c.l.b16 %v8089
  %v8219 = vpack.c.b16 %v8156, %v8155
  %v8220 = vpack.c.b16 %v8158, %v8157
  %v8221 = vpack.c.b16 %v8160, %v8159
  %v8222 = vpack.c.b16 %v8162, %v8161
  %v8223 = vpack.c.b16 %v8164, %v8163
  %v8224 = vpack.c.b16 %v8166, %v8165
  %v8225 = vpack.c.b16 %v8168, %v8167
  %v8226 = vpack.c.b16 %v8170, %v8169
  %v8227 = vpack.c.b16 %v8172, %v8171
  %v8228 = vpack.c.b16 %v8174, %v8173
  %v8229 = vpack.c.b16 %v8176, %v8175
  %v8230 = vpack.c.b16 %v8178, %v8177
  %v8231 = vpack.c.b16 %v8180, %v8179
  %v8232 = vpack.c.b16 %v8182, %v8181
  %v8233 = vpack.c.b16 %v8184, %v8183
  %v8234 = vpack.c.b16 %v8186, %v8185
  %v8235 = vpack.c.b16 %v8188, %v8187
  %v8236 = vpack.c.b16 %v8190, %v8189
  %v8237 = vpack.c.b16 %v8192, %v8191
  %v8238 = vpack.c.b16 %v8194, %v8193
  %v8239 = vpack.c.b16 %v8196, %v8195
  %v8240 = vpack.c.b16 %v8198, %v8197
  %v8241 = vpack.c.b16 %v8200, %v8199
  %v8242 = vpack.c.b16 %v8202, %v8201
  %v8243 = vpack.c.b16 %v8204, %v8203
  %v8244 = vpack.c.b16 %v8206, %v8205
  %v8245 = vpack.c.b16 %v8208, %v8207
  %v8246 = vpack.c.b16 %v8210, %v8209
  %v8247 = vpack.c.b16 %v8212, %v8211
  %v8248 = vpack.c.b16 %v8214, %v8213
  %v8249 = vpack.c.b16 %v8216, %v8215
  %v8250 = vpack.c.b16 %v8218, %v8217
  %v8315 = vunpack.c.l.b16 %v7997
  %v8316 = vunpack.c.l.b16 %v8000
  %v8317 = vunpack.c.l.b16 %v8003
  %v8318 = vunpack.c.l.b16 %v8006
  %v8319 = vunpack.c.l.b16 %v8009
  %v8320 = vunpack.c.l.b16 %v8012
  %v8321 = vunpack.c.l.b16 %v8015
  %v8322 = vunpack.c.l.b16 %v8018
  %v8323 = vunpack.c.l.b16 %v8021
  %v8324 = vunpack.c.l.b16 %v8024
  %v8325 = vunpack.c.l.b16 %v8027
  %v8326 = vunpack.c.l.b16 %v8030
  %v8327 = vunpack.c.l.b16 %v8033
  %v8328 = vunpack.c.l.b16 %v8036
  %v8329 = vunpack.c.l.b16 %v8039
  %v8330 = vunpack.c.l.b16 %v8042
  %v8331 = vunpack.c.l.b16 %v8045
  %v8332 = vunpack.c.l.b16 %v8048
  %v8333 = vunpack.c.l.b16 %v8051
  %v8334 = vunpack.c.l.b16 %v8054
  %v8335 = vunpack.c.l.b16 %v8057
  %v8336 = vunpack.c.l.b16 %v8060
  %v8337 = vunpack.c.l.b16 %v8063
  %v8338 = vunpack.c.l.b16 %v8066
  %v8339 = vunpack.c.l.b16 %v8069
  %v8340 = vunpack.c.l.b16 %v8072
  %v8341 = vunpack.c.l.b16 %v8075
  %v8342 = vunpack.c.l.b16 %v8078
  %v8343 = vunpack.c.l.b16 %v8081
  %v8344 = vunpack.c.l.b16 %v8084
  %v8345 = vunpack.c.l.b16 %v8087
  %v8346 = vunpack.c.l.b16 %v8090
  %v8347 = vpack.c.b16 %v8315, %v8315
  %v8348 = vpack.c.b16 %v8316, %v8316
  %v8349 = vpack.c.b16 %v8317, %v8317
  %v8350 = vpack.c.b16 %v8318, %v8318
  %v8351 = vpack.c.b16 %v8319, %v8319
  %v8352 = vpack.c.b16 %v8320, %v8320
  %v8353 = vpack.c.b16 %v8321, %v8321
  %v8354 = vpack.c.b16 %v8322, %v8322
  %v8355 = vpack.c.b16 %v8323, %v8323
  %v8356 = vpack.c.b16 %v8324, %v8324
  %v8357 = vpack.c.b16 %v8325, %v8325
  %v8358 = vpack.c.b16 %v8326, %v8326
  %v8359 = vpack.c.b16 %v8327, %v8327
  %v8360 = vpack.c.b16 %v8328, %v8328
  %v8361 = vpack.c.b16 %v8329, %v8329
  %v8362 = vpack.c.b16 %v8330, %v8330
  %v8363 = vpack.c.b16 %v8331, %v8331
  %v8364 = vpack.c.b16 %v8332, %v8332
  %v8365 = vpack.c.b16 %v8333, %v8333
  %v8366 = vpack.c.b16 %v8334, %v8334
  %v8367 = vpack.c.b16 %v8335, %v8335
  %v8368 = vpack.c.b16 %v8336, %v8336
  %v8369 = vpack.c.b16 %v8337, %v8337
  %v8370 = vpack.c.b16 %v8338, %v8338
  %v8371 = vpack.c.b16 %v8339, %v8339
  %v8372 = vpack.c.b16 %v8340, %v8340
  %v8373 = vpack.c.b16 %v8341, %v8341
  %v8374 = vpack.c.b16 %v8342, %v8342
  %v8375 = vpack.c.b16 %v8343, %v8343
  %v8376 = vpack.c.b16 %v8344, %v8344
  %v8377 = vpack.c.b16 %v8345, %v8345
  %v8378 = vpack.c.b16 %v8346, %v8346
  %v8380 = vshrl.u32 %v8219, 16
  %v8382 = vshll.u32 %v8219, 16
  %v8384 = vrot.slane %v8382, 1
  %v8385 = vor.u32 %v8380, %v8384
  %v8387 = vshll.u32 %v8347, 16
  %v8389 = vrot.slane %v8387, 1
  %v8390 = vsel %vm1746, %v8385, %v8389
  %v8392 = vshrl.u32 %v8220, 16
  %v8394 = vshll.u32 %v8220, 16
  %v8396 = vrot.slane %v8394, 1
  %v8397 = vor.u32 %v8392, %v8396
  %v8399 = vshll.u32 %v8348, 16
  %v8401 = vrot.slane %v8399, 1
  %v8402 = vsel %vm1746, %v8397, %v8401
  %v8404 = vshrl.u32 %v8221, 16
  %v8406 = vshll.u32 %v8221, 16
  %v8408 = vrot.slane %v8406, 1
  %v8409 = vor.u32 %v8404, %v8408
  %v8411 = vshll.u32 %v8349, 16
  %v8413 = vrot.slane %v8411, 1
  %v8414 = vsel %vm1746, %v8409, %v8413
  %v8416 = vshrl.u32 %v8222, 16
  %v8418 = vshll.u32 %v8222, 16
  %v8420 = vrot.slane %v8418, 1
  %v8421 = vor.u32 %v8416, %v8420
  %v8423 = vshll.u32 %v8350, 16
  %v8425 = vrot.slane %v8423, 1
  %v8426 = vsel %vm1746, %v8421, %v8425
  %v8428 = vshrl.u32 %v8223, 16
  %v8430 = vshll.u32 %v8223, 16
  %v8432 = vrot.slane %v8430, 1
  %v8433 = vor.u32 %v8428, %v8432
  %v8435 = vshll.u32 %v8351, 16
  %v8437 = vrot.slane %v8435, 1
  %v8438 = vsel %vm1746, %v8433, %v8437
  %v8440 = vshrl.u32 %v8224, 16
  %v8442 = vshll.u32 %v8224, 16
  %v8444 = vrot.slane %v8442, 1
  %v8445 = vor.u32 %v8440, %v8444
  %v8447 = vshll.u32 %v8352, 16
  %v8449 = vrot.slane %v8447, 1
  %v8450 = vsel %vm1746, %v8445, %v8449
  %v8452 = vshrl.u32 %v8225, 16
  %v8454 = vshll.u32 %v8225, 16
  %v8456 = vrot.slane %v8454, 1
  %v8457 = vor.u32 %v8452, %v8456
  %v8459 = vshll.u32 %v8353, 16
  %v8461 = vrot.slane %v8459, 1
  %v8462 = vsel %vm1746, %v8457, %v8461
  %v8464 = vshrl.u32 %v8226, 16
  %v8466 = vshll.u32 %v8226, 16
  %v8468 = vrot.slane %v8466, 1
  %v8469 = vor.u32 %v8464, %v8468
  %v8471 = vshll.u32 %v8354, 16
  %v8473 = vrot.slane %v8471, 1
  %v8474 = vsel %vm1746, %v8469, %v8473
  %v8476 = vshrl.u32 %v8227, 16
  %v8478 = vshll.u32 %v8227, 16
  %v8480 = vrot.slane %v8478, 1
  %v8481 = vor.u32 %v8476, %v8480
  %v8483 = vshll.u32 %v8355, 16
  %v8485 = vrot.slane %v8483, 1
  %v8486 = vsel %vm1746, %v8481, %v8485
  %v8488 = vshrl.u32 %v8228, 16
  %v8490 = vshll.u32 %v8228, 16
  %v8492 = vrot.slane %v8490, 1
  %v8493 = vor.u32 %v8488, %v8492
  %v8495 = vshll.u32 %v8356, 16
  %v8497 = vrot.slane %v8495, 1
  %v8498 = vsel %vm1746, %v8493, %v8497
  %v8500 = vshrl.u32 %v8229, 16
  %v8502 = vshll.u32 %v8229, 16
  %v8504 = vrot.slane %v8502, 1
  %v8505 = vor.u32 %v8500, %v8504
  %v8507 = vshll.u32 %v8357, 16
  %v8509 = vrot.slane %v8507, 1
  %v8510 = vsel %vm1746, %v8505, %v8509
  %v8512 = vshrl.u32 %v8230, 16
  %v8514 = vshll.u32 %v8230, 16
  %v8516 = vrot.slane %v8514, 1
  %v8517 = vor.u32 %v8512, %v8516
  %v8519 = vshll.u32 %v8358, 16
  %v8521 = vrot.slane %v8519, 1
  %v8522 = vsel %vm1746, %v8517, %v8521
  %v8524 = vshrl.u32 %v8231, 16
  %v8526 = vshll.u32 %v8231, 16
  %v8528 = vrot.slane %v8526, 1
  %v8529 = vor.u32 %v8524, %v8528
  %v8531 = vshll.u32 %v8359, 16
  %v8533 = vrot.slane %v8531, 1
  %v8534 = vsel %vm1746, %v8529, %v8533
  %v8536 = vshrl.u32 %v8232, 16
  %v8538 = vshll.u32 %v8232, 16
  %v8540 = vrot.slane %v8538, 1
  %v8541 = vor.u32 %v8536, %v8540
  %v8543 = vshll.u32 %v8360, 16
  %v8545 = vrot.slane %v8543, 1
  %v8546 = vsel %vm1746, %v8541, %v8545
  %v8548 = vshrl.u32 %v8233, 16
  %v8550 = vshll.u32 %v8233, 16
  %v8552 = vrot.slane %v8550, 1
  %v8553 = vor.u32 %v8548, %v8552
  %v8555 = vshll.u32 %v8361, 16
  %v8557 = vrot.slane %v8555, 1
  %v8558 = vsel %vm1746, %v8553, %v8557
  %v8560 = vshrl.u32 %v8234, 16
  %v8562 = vshll.u32 %v8234, 16
  %v8564 = vrot.slane %v8562, 1
  %v8565 = vor.u32 %v8560, %v8564
  %v8567 = vshll.u32 %v8362, 16
  %v8569 = vrot.slane %v8567, 1
  %v8570 = vsel %vm1746, %v8565, %v8569
  %v8572 = vshrl.u32 %v8235, 16
  %v8574 = vshll.u32 %v8235, 16
  %v8576 = vrot.slane %v8574, 1
  %v8577 = vor.u32 %v8572, %v8576
  %v8579 = vshll.u32 %v8363, 16
  %v8581 = vrot.slane %v8579, 1
  %v8582 = vsel %vm1746, %v8577, %v8581
  %v8584 = vshrl.u32 %v8236, 16
  %v8586 = vshll.u32 %v8236, 16
  %v8588 = vrot.slane %v8586, 1
  %v8589 = vor.u32 %v8584, %v8588
  %v8591 = vshll.u32 %v8364, 16
  %v8593 = vrot.slane %v8591, 1
  %v8594 = vsel %vm1746, %v8589, %v8593
  %v8596 = vshrl.u32 %v8237, 16
  %v8598 = vshll.u32 %v8237, 16
  %v8600 = vrot.slane %v8598, 1
  %v8601 = vor.u32 %v8596, %v8600
  %v8603 = vshll.u32 %v8365, 16
  %v8605 = vrot.slane %v8603, 1
  %v8606 = vsel %vm1746, %v8601, %v8605
  %v8608 = vshrl.u32 %v8238, 16
  %v8610 = vshll.u32 %v8238, 16
  %v8612 = vrot.slane %v8610, 1
  %v8613 = vor.u32 %v8608, %v8612
  %v8615 = vshll.u32 %v8366, 16
  %v8617 = vrot.slane %v8615, 1
  %v8618 = vsel %vm1746, %v8613, %v8617
  %v8620 = vshrl.u32 %v8239, 16
  %v8622 = vshll.u32 %v8239, 16
  %v8624 = vrot.slane %v8622, 1
  %v8625 = vor.u32 %v8620, %v8624
  %v8627 = vshll.u32 %v8367, 16
  %v8629 = vrot.slane %v8627, 1
  %v8630 = vsel %vm1746, %v8625, %v8629
  %v8632 = vshrl.u32 %v8240, 16
  %v8634 = vshll.u32 %v8240, 16
  %v8636 = vrot.slane %v8634, 1
  %v8637 = vor.u32 %v8632, %v8636
  %v8639 = vshll.u32 %v8368, 16
  %v8641 = vrot.slane %v8639, 1
  %v8642 = vsel %vm1746, %v8637, %v8641
  %v8644 = vshrl.u32 %v8241, 16
  %v8646 = vshll.u32 %v8241, 16
  %v8648 = vrot.slane %v8646, 1
  %v8649 = vor.u32 %v8644, %v8648
  %v8651 = vshll.u32 %v8369, 16
  %v8653 = vrot.slane %v8651, 1
  %v8654 = vsel %vm1746, %v8649, %v8653
  %v8656 = vshrl.u32 %v8242, 16
  %v8658 = vshll.u32 %v8242, 16
  %v8660 = vrot.slane %v8658, 1
  %v8661 = vor.u32 %v8656, %v8660
  %v8663 = vshll.u32 %v8370, 16
  %v8665 = vrot.slane %v8663, 1
  %v8666 = vsel %vm1746, %v8661, %v8665
  %v8668 = vshrl.u32 %v8243, 16
  %v8670 = vshll.u32 %v8243, 16
  %v8672 = vrot.slane %v8670, 1
  %v8673 = vor.u32 %v8668, %v8672
  %v8675 = vshll.u32 %v8371, 16
  %v8677 = vrot.slane %v8675, 1
  %v8678 = vsel %vm1746, %v8673, %v8677
  %v8680 = vshrl.u32 %v8244, 16
  %v8682 = vshll.u32 %v8244, 16
  %v8684 = vrot.slane %v8682, 1
  %v8685 = vor.u32 %v8680, %v8684
  %v8687 = vshll.u32 %v8372, 16
  %v8689 = vrot.slane %v8687, 1
  %v8690 = vsel %vm1746, %v8685, %v8689
  %v8692 = vshrl.u32 %v8245, 16
  %v8694 = vshll.u32 %v8245, 16
  %v8696 = vrot.slane %v8694, 1
  %v8697 = vor.u32 %v8692, %v8696
  %v8699 = vshll.u32 %v8373, 16
  %v8701 = vrot.slane %v8699, 1
  %v8702 = vsel %vm1746, %v8697, %v8701
  %v8704 = vshrl.u32 %v8246, 16
  %v8706 = vshll.u32 %v8246, 16
  %v8708 = vrot.slane %v8706, 1
  %v8709 = vor.u32 %v8704, %v8708
  %v8711 = vshll.u32 %v8374, 16
  %v8713 = vrot.slane %v8711, 1
  %v8714 = vsel %vm1746, %v8709, %v8713
  %v8716 = vshrl.u32 %v8247, 16
  %v8718 = vshll.u32 %v8247, 16
  %v8720 = vrot.slane %v8718, 1
  %v8721 = vor.u32 %v8716, %v8720
  %v8723 = vshll.u32 %v8375, 16
  %v8725 = vrot.slane %v8723, 1
  %v8726 = vsel %vm1746, %v8721, %v8725
  %v8728 = vshrl.u32 %v8248, 16
  %v8730 = vshll.u32 %v8248, 16
  %v8732 = vrot.slane %v8730, 1
  %v8733 = vor.u32 %v8728, %v8732
  %v8735 = vshll.u32 %v8376, 16
  %v8737 = vrot.slane %v8735, 1
  %v8738 = vsel %vm1746, %v8733, %v8737
  %v8740 = vshrl.u32 %v8249, 16
  %v8742 = vshll.u32 %v8249, 16
  %v8744 = vrot.slane %v8742, 1
  %v8745 = vor.u32 %v8740, %v8744
  %v8747 = vshll.u32 %v8377, 16
  %v8749 = vrot.slane %v8747, 1
  %v8750 = vsel %vm1746, %v8745, %v8749
  %v8752 = vshrl.u32 %v8250, 16
  %v8754 = vshll.u32 %v8250, 16
  %v8756 = vrot.slane %v8754, 1
  %v8757 = vor.u32 %v8752, %v8756
  %v8759 = vshll.u32 %v8378, 16
  %v8761 = vrot.slane %v8759, 1
  %v8762 = vsel %vm1746, %v8757, %v8761
  %v8795 = vrot.slane %v8219, 1
  %v8796 = vrot.slane %v8347, 1
  %v8797 = vsel %vm2163, %v8795, %v8796
  %v8798 = vrot.slane %v8220, 1
  %v8799 = vrot.slane %v8348, 1
  %v8800 = vsel %vm2163, %v8798, %v8799
  %v8801 = vrot.slane %v8221, 1
  %v8802 = vrot.slane %v8349, 1
  %v8803 = vsel %vm2163, %v8801, %v8802
  %v8804 = vrot.slane %v8222, 1
  %v8805 = vrot.slane %v8350, 1
  %v8806 = vsel %vm2163, %v8804, %v8805
  %v8807 = vrot.slane %v8223, 1
  %v8808 = vrot.slane %v8351, 1
  %v8809 = vsel %vm2163, %v8807, %v8808
  %v8810 = vrot.slane %v8224, 1
  %v8811 = vrot.slane %v8352, 1
  %v8812 = vsel %vm2163, %v8810, %v8811
  %v8813 = vrot.slane %v8225, 1
  %v8814 = vrot.slane %v8353, 1
  %v8815 = vsel %vm2163, %v8813, %v8814
  %v8816 = vrot.slane %v8226, 1
  %v8817 = vrot.slane %v8354, 1
  %v8818 = vsel %vm2163, %v8816, %v8817
  %v8819 = vrot.slane %v8227, 1
  %v8820 = vrot.slane %v8355, 1
  %v8821 = vsel %vm2163, %v8819, %v8820
  %v8822 = vrot.slane %v8228, 1
  %v8823 = vrot.slane %v8356, 1
  %v8824 = vsel %vm2163, %v8822, %v8823
  %v8825 = vrot.slane %v8229, 1
  %v8826 = vrot.slane %v8357, 1
  %v8827 = vsel %vm2163, %v8825, %v8826
  %v8828 = vrot.slane %v8230, 1
  %v8829 = vrot.slane %v8358, 1
  %v8830 = vsel %vm2163, %v8828, %v8829
  %v8831 = vrot.slane %v8231, 1
  %v8832 = vrot.slane %v8359, 1
  %v8833 = vsel %vm2163, %v8831, %v8832
  %v8834 = vrot.slane %v8232, 1
  %v8835 = vrot.slane %v8360, 1
  %v8836 = vsel %vm2163, %v8834, %v8835
  %v8837 = vrot.slane %v8233, 1
  %v8838 = vrot.slane %v8361, 1
  %v8839 = vsel %vm2163, %v8837, %v8838
  %v8840 = vrot.slane %v8234, 1
  %v8841 = vrot.slane %v8362, 1
  %v8842 = vsel %vm2163, %v8840, %v8841
  %v8843 = vrot.slane %v8235, 1
  %v8844 = vrot.slane %v8363, 1
  %v8845 = vsel %vm2163, %v8843, %v8844
  %v8846 = vrot.slane %v8236, 1
  %v8847 = vrot.slane %v8364, 1
  %v8848 = vsel %vm2163, %v8846, %v8847
  %v8849 = vrot.slane %v8237, 1
  %v8850 = vrot.slane %v8365, 1
  %v8851 = vsel %vm2163, %v8849, %v8850
  %v8852 = vrot.slane %v8238, 1
  %v8853 = vrot.slane %v8366, 1
  %v8854 = vsel %vm2163, %v8852, %v8853
  %v8855 = vrot.slane %v8239, 1
  %v8856 = vrot.slane %v8367, 1
  %v8857 = vsel %vm2163, %v8855, %v8856
  %v8858 = vrot.slane %v8240, 1
  %v8859 = vrot.slane %v8368, 1
  %v8860 = vsel %vm2163, %v8858, %v8859
  %v8861 = vrot.slane %v8241, 1
  %v8862 = vrot.slane %v8369, 1
  %v8863 = vsel %vm2163, %v8861, %v8862
  %v8864 = vrot.slane %v8242, 1
  %v8865 = vrot.slane %v8370, 1
  %v8866 = vsel %vm2163, %v8864, %v8865
  %v8867 = vrot.slane %v8243, 1
  %v8868 = vrot.slane %v8371, 1
  %v8869 = vsel %vm2163, %v8867, %v8868
  %v8870 = vrot.slane %v8244, 1
  %v8871 = vrot.slane %v8372, 1
  %v8872 = vsel %vm2163, %v8870, %v8871
  %v8873 = vrot.slane %v8245, 1
  %v8874 = vrot.slane %v8373, 1
  %v8875 = vsel %vm2163, %v8873, %v8874
  %v8876 = vrot.slane %v8246, 1
  %v8877 = vrot.slane %v8374, 1
  %v8878 = vsel %vm2163, %v8876, %v8877
  %v8879 = vrot.slane %v8247, 1
  %v8880 = vrot.slane %v8375, 1
  %v8881 = vsel %vm2163, %v8879, %v8880
  %v8882 = vrot.slane %v8248, 1
  %v8883 = vrot.slane %v8376, 1
  %v8884 = vsel %vm2163, %v8882, %v8883
  %v8885 = vrot.slane %v8249, 1
  %v8886 = vrot.slane %v8377, 1
  %v8887 = vsel %vm2163, %v8885, %v8886
  %v8888 = vrot.slane %v8250, 1
  %v8889 = vrot.slane %v8378, 1
  %v8890 = vsel %vm2163, %v8888, %v8889
  %v8923 = vld [vmem:[%s4] sm:$0xf]
  %v8924 = vld [vmem:[%s4 + $0x4] sm:$0xf]
  %v8925 = vld [vmem:[%s4 + $0x8] sm:$0xf]
  %v8926 = vld [vmem:[%s4 + $0xc] sm:$0xf]
  %v8927 = vld [vmem:[%s4 + $0x10] sm:$0xf]
  %v8928 = vld [vmem:[%s4 + $0x14] sm:$0xf]
  %v8929 = vld [vmem:[%s4 + $0x18] sm:$0xf]
  %v8930 = vld [vmem:[%s4 + $0x1c] sm:$0xf]
  %v8931 = vld [vmem:[%s4 + $0x20] sm:$0xf]
  %v8932 = vld [vmem:[%s4 + $0x24] sm:$0xf]
  %v8933 = vld [vmem:[%s4 + $0x28] sm:$0xf]
  %v8934 = vld [vmem:[%s4 + $0x2c] sm:$0xf]
  %v8935 = vld [vmem:[%s4 + $0x30] sm:$0xf]
  %v8936 = vld [vmem:[%s4 + $0x34] sm:$0xf]
  %v8937 = vld [vmem:[%s4 + $0x38] sm:$0xf]
  %v8938 = vld [vmem:[%s4 + $0x3c] sm:$0xf]
  %v8939 = vld [vmem:[%s4 + $0x40] sm:$0xf]
  %v8940 = vld [vmem:[%s4 + $0x44] sm:$0xf]
  %v8941 = vld [vmem:[%s4 + $0x48] sm:$0xf]
  %v8942 = vld [vmem:[%s4 + $0x4c] sm:$0xf]
  %v8943 = vld [vmem:[%s4 + $0x50] sm:$0xf]
  %v8944 = vld [vmem:[%s4 + $0x54] sm:$0xf]
  %v8945 = vld [vmem:[%s4 + $0x58] sm:$0xf]
  %v8946 = vld [vmem:[%s4 + $0x5c] sm:$0xf]
  %v8947 = vld [vmem:[%s4 + $0x60] sm:$0xf]
  %v8948 = vld [vmem:[%s4 + $0x64] sm:$0xf]
  %v8949 = vld [vmem:[%s4 + $0x68] sm:$0xf]
  %v8950 = vld [vmem:[%s4 + $0x6c] sm:$0xf]
  %v8951 = vld [vmem:[%s4 + $0x70] sm:$0xf]
  %v8952 = vld [vmem:[%s4 + $0x74] sm:$0xf]
  %v8953 = vld [vmem:[%s4 + $0x78] sm:$0xf]
  %v8954 = vld [vmem:[%s4 + $0x7c] sm:$0xf]
  %v8955 = vld [vmem:[%s4 + $0x80] sm:$0xf]
  %v8956 = vld [vmem:[%s4 + $0x84] sm:$0xf]
  %v8957 = vld [vmem:[%s4 + $0x88] sm:$0xf]
  %v8958 = vld [vmem:[%s4 + $0x8c] sm:$0xf]
  %v8959 = vld [vmem:[%s4 + $0x90] sm:$0xf]
  %v8960 = vld [vmem:[%s4 + $0x94] sm:$0xf]
  %v8961 = vld [vmem:[%s4 + $0x98] sm:$0xf]
  %v8962 = vld [vmem:[%s4 + $0x9c] sm:$0xf]
  %v8963 = vld [vmem:[%s4 + $0xa0] sm:$0xf]
  %v8964 = vld [vmem:[%s4 + $0xa4] sm:$0xf]
  %v8965 = vld [vmem:[%s4 + $0xa8] sm:$0xf]
  %v8966 = vld [vmem:[%s4 + $0xac] sm:$0xf]
  %v8967 = vld [vmem:[%s4 + $0xb0] sm:$0xf]
  %v8968 = vld [vmem:[%s4 + $0xb4] sm:$0xf]
  %v8969 = vld [vmem:[%s4 + $0xb8] sm:$0xf]
  %v8970 = vld [vmem:[%s4 + $0xbc] sm:$0xf]
  %v8971 = vld [vmem:[%s40] sm:$0xf]
  %v8972 = vld [vmem:[%s40 + $0x4] sm:$0xf]
  %v8973 = vld [vmem:[%s40 + $0x8] sm:$0x1]
  %v8974 = vld [vmem:[%s40 + $0xc] sm:$0xf]
  %v8975 = vld [vmem:[%s40 + $0x10] sm:$0xf]
  %v8976 = vld [vmem:[%s40 + $0x14] sm:$0x1]
  %v8977 = vld [vmem:[%s40 + $0x18] sm:$0xf]
  %v8978 = vld [vmem:[%s40 + $0x1c] sm:$0xf]
  %v8979 = vld [vmem:[%s40 + $0x20] sm:$0x1]
  %v8980 = vld [vmem:[%s40 + $0x24] sm:$0xf]
  %v8981 = vld [vmem:[%s40 + $0x28] sm:$0xf]
  %v8982 = vld [vmem:[%s40 + $0x2c] sm:$0x1]
  %v8983 = vld [vmem:[%s40 + $0x30] sm:$0xf]
  %v8984 = vld [vmem:[%s40 + $0x34] sm:$0xf]
  %v8985 = vld [vmem:[%s40 + $0x38] sm:$0x1]
  %v8986 = vld [vmem:[%s40 + $0x3c] sm:$0xf]
  %v8987 = vld [vmem:[%s40 + $0x40] sm:$0xf]
  %v8988 = vld [vmem:[%s40 + $0x44] sm:$0x1]
  %v8989 = vld [vmem:[%s40 + $0x48] sm:$0xf]
  %v8990 = vld [vmem:[%s40 + $0x4c] sm:$0xf]
  %v8991 = vld [vmem:[%s40 + $0x50] sm:$0x1]
  %v8992 = vld [vmem:[%s40 + $0x54] sm:$0xf]
  %v8993 = vld [vmem:[%s40 + $0x58] sm:$0xf]
  %v8994 = vld [vmem:[%s40 + $0x5c] sm:$0x1]
  %v8995 = vld [vmem:[%s40 + $0x60] sm:$0xf]
  %v8996 = vld [vmem:[%s40 + $0x64] sm:$0xf]
  %v8997 = vld [vmem:[%s40 + $0x68] sm:$0x1]
  %v8998 = vld [vmem:[%s40 + $0x6c] sm:$0xf]
  %v8999 = vld [vmem:[%s40 + $0x70] sm:$0xf]
  %v9000 = vld [vmem:[%s40 + $0x74] sm:$0x1]
  %v9001 = vld [vmem:[%s40 + $0x78] sm:$0xf]
  %v9002 = vld [vmem:[%s40 + $0x7c] sm:$0xf]
  %v9003 = vld [vmem:[%s40 + $0x80] sm:$0x1]
  %v9004 = vld [vmem:[%s40 + $0x84] sm:$0xf]
  %v9005 = vld [vmem:[%s40 + $0x88] sm:$0xf]
  %v9006 = vld [vmem:[%s40 + $0x8c] sm:$0x1]
  %v9007 = vld [vmem:[%s40 + $0x90] sm:$0xf]
  %v9008 = vld [vmem:[%s40 + $0x94] sm:$0xf]
  %v9009 = vld [vmem:[%s40 + $0x98] sm:$0x1]
  %v9010 = vld [vmem:[%s40 + $0x9c] sm:$0xf]
  %v9011 = vld [vmem:[%s40 + $0xa0] sm:$0xf]
  %v9012 = vld [vmem:[%s40 + $0xa4] sm:$0x1]
  %v9013 = vld [vmem:[%s40 + $0xa8] sm:$0xf]
  %v9014 = vld [vmem:[%s40 + $0xac] sm:$0xf]
  %v9015 = vld [vmem:[%s40 + $0xb0] sm:$0x1]
  %v9016 = vld [vmem:[%s40 + $0xb4] sm:$0xf]
  %v9017 = vld [vmem:[%s40 + $0xb8] sm:$0xf]
  %v9018 = vld [vmem:[%s40 + $0xbc] sm:$0x1]
  %v9019 = vld [vmem:[%s40 + $0xd8] sm:$0xf]
  %v9020 = vld [vmem:[%s40 + $0xdc] sm:$0xf]
  %v9021 = vld [vmem:[%s40 + $0xe0] sm:$0x1]
  %v9022 = vld [vmem:[%s40 + $0xe4] sm:$0xf]
  %v9023 = vld [vmem:[%s40 + $0xe8] sm:$0xf]
  %v9024 = vld [vmem:[%s40 + $0xec] sm:$0x1]
  %v9025 = vld [vmem:[%s40 + $0xf0] sm:$0xf]
  %v9026 = vld [vmem:[%s40 + $0xf4] sm:$0xf]
  %v9027 = vld [vmem:[%s40 + $0xf8] sm:$0x1]
  %v9028 = vld [vmem:[%s40 + $0xfc] sm:$0xf]
  %v9029 = vld [vmem:[%s40 + $0x100] sm:$0xf]
  %v9030 = vld [vmem:[%s40 + $0x104] sm:$0x1]
  %v9031 = vld [vmem:[%s40 + $0x108] sm:$0xf]
  %v9032 = vld [vmem:[%s40 + $0x10c] sm:$0xf]
  %v9033 = vld [vmem:[%s40 + $0x110] sm:$0x1]
  %v9034 = vld [vmem:[%s40 + $0x114] sm:$0xf]
  %v9035 = vld [vmem:[%s40 + $0x118] sm:$0xf]
  %v9036 = vld [vmem:[%s40 + $0x11c] sm:$0x1]
  %v9037 = vld [vmem:[%s40 + $0x120] sm:$0xf]
  %v9038 = vld [vmem:[%s40 + $0x124] sm:$0xf]
  %v9039 = vld [vmem:[%s40 + $0x128] sm:$0x1]
  %v9040 = vld [vmem:[%s40 + $0x12c] sm:$0xf]
  %v9041 = vld [vmem:[%s40 + $0x130] sm:$0xf]
  %v9042 = vld [vmem:[%s40 + $0x134] sm:$0x1]
  %v9043 = vld [vmem:[%s40 + $0x138] sm:$0xf]
  %v9044 = vld [vmem:[%s40 + $0x13c] sm:$0xf]
  %v9045 = vld [vmem:[%s40 + $0x140] sm:$0x1]
  %v9046 = vld [vmem:[%s40 + $0x144] sm:$0xf]
  %v9047 = vld [vmem:[%s40 + $0x148] sm:$0xf]
  %v9048 = vld [vmem:[%s40 + $0x14c] sm:$0x1]
  %v9049 = vld [vmem:[%s40 + $0x150] sm:$0xf]
  %v9050 = vld [vmem:[%s40 + $0x154] sm:$0xf]
  %v9051 = vld [vmem:[%s40 + $0x158] sm:$0x1]
  %v9052 = vld [vmem:[%s40 + $0x15c] sm:$0xf]
  %v9053 = vld [vmem:[%s40 + $0x160] sm:$0xf]
  %v9054 = vld [vmem:[%s40 + $0x164] sm:$0x1]
  %v9055 = vld [vmem:[%s40 + $0x168] sm:$0xf]
  %v9056 = vld [vmem:[%s40 + $0x16c] sm:$0xf]
  %v9057 = vld [vmem:[%s40 + $0x170] sm:$0x1]
  %v9058 = vld [vmem:[%s40 + $0x174] sm:$0xf]
  %v9059 = vld [vmem:[%s40 + $0x178] sm:$0xf]
  %v9060 = vld [vmem:[%s40 + $0x17c] sm:$0x1]
  %v9061 = vld [vmem:[%s40 + $0x180] sm:$0xf]
  %v9062 = vld [vmem:[%s40 + $0x184] sm:$0xf]
  %v9063 = vld [vmem:[%s40 + $0x188] sm:$0x1]
  %v9064 = vld [vmem:[%s40 + $0x18c] sm:$0xf]
  %v9065 = vld [vmem:[%s40 + $0x190] sm:$0xf]
  %v9066 = vld [vmem:[%s40 + $0x194] sm:$0x1]
  %v9131 = vunpack.c.l.b16 %v8971
  %v9132 = vunpack.c.l.b16 %v8972
  %v9133 = vunpack.c.l.b16 %v8974
  %v9134 = vunpack.c.l.b16 %v8975
  %v9135 = vunpack.c.l.b16 %v8977
  %v9136 = vunpack.c.l.b16 %v8978
  %v9137 = vunpack.c.l.b16 %v8980
  %v9138 = vunpack.c.l.b16 %v8981
  %v9139 = vunpack.c.l.b16 %v8983
  %v9140 = vunpack.c.l.b16 %v8984
  %v9141 = vunpack.c.l.b16 %v8986
  %v9142 = vunpack.c.l.b16 %v8987
  %v9143 = vunpack.c.l.b16 %v8989
  %v9144 = vunpack.c.l.b16 %v8990
  %v9145 = vunpack.c.l.b16 %v8992
  %v9146 = vunpack.c.l.b16 %v8993
  %v9147 = vunpack.c.l.b16 %v8995
  %v9148 = vunpack.c.l.b16 %v8996
  %v9149 = vunpack.c.l.b16 %v8998
  %v9150 = vunpack.c.l.b16 %v8999
  %v9151 = vunpack.c.l.b16 %v9001
  %v9152 = vunpack.c.l.b16 %v9002
  %v9153 = vunpack.c.l.b16 %v9004
  %v9154 = vunpack.c.l.b16 %v9005
  %v9155 = vunpack.c.l.b16 %v9007
  %v9156 = vunpack.c.l.b16 %v9008
  %v9157 = vunpack.c.l.b16 %v9010
  %v9158 = vunpack.c.l.b16 %v9011
  %v9159 = vunpack.c.l.b16 %v9013
  %v9160 = vunpack.c.l.b16 %v9014
  %v9161 = vunpack.c.l.b16 %v9016
  %v9162 = vunpack.c.l.b16 %v9017
  %v9163 = vunpack.c.l.b16 %v9019
  %v9164 = vunpack.c.l.b16 %v9020
  %v9165 = vunpack.c.l.b16 %v9022
  %v9166 = vunpack.c.l.b16 %v9023
  %v9167 = vunpack.c.l.b16 %v9025
  %v9168 = vunpack.c.l.b16 %v9026
  %v9169 = vunpack.c.l.b16 %v9028
  %v9170 = vunpack.c.l.b16 %v9029
  %v9171 = vunpack.c.l.b16 %v9031
  %v9172 = vunpack.c.l.b16 %v9032
  %v9173 = vunpack.c.l.b16 %v9034
  %v9174 = vunpack.c.l.b16 %v9035
  %v9175 = vunpack.c.l.b16 %v9037
  %v9176 = vunpack.c.l.b16 %v9038
  %v9177 = vunpack.c.l.b16 %v9040
  %v9178 = vunpack.c.l.b16 %v9041
  %v9179 = vunpack.c.l.b16 %v9043
  %v9180 = vunpack.c.l.b16 %v9044
  %v9181 = vunpack.c.l.b16 %v9046
  %v9182 = vunpack.c.l.b16 %v9047
  %v9183 = vunpack.c.l.b16 %v9049
  %v9184 = vunpack.c.l.b16 %v9050
  %v9185 = vunpack.c.l.b16 %v9052
  %v9186 = vunpack.c.l.b16 %v9053
  %v9187 = vunpack.c.l.b16 %v9055
  %v9188 = vunpack.c.l.b16 %v9056
  %v9189 = vunpack.c.l.b16 %v9058
  %v9190 = vunpack.c.l.b16 %v9059
  %v9191 = vunpack.c.l.b16 %v9061
  %v9192 = vunpack.c.l.b16 %v9062
  %v9193 = vunpack.c.l.b16 %v9064
  %v9194 = vunpack.c.l.b16 %v9065
  %v9195 = vpack.c.b16 %v9132, %v9131
  %v9196 = vpack.c.b16 %v9134, %v9133
  %v9197 = vpack.c.b16 %v9136, %v9135
  %v9198 = vpack.c.b16 %v9138, %v9137
  %v9199 = vpack.c.b16 %v9140, %v9139
  %v9200 = vpack.c.b16 %v9142, %v9141
  %v9201 = vpack.c.b16 %v9144, %v9143
  %v9202 = vpack.c.b16 %v9146, %v9145
  %v9203 = vpack.c.b16 %v9148, %v9147
  %v9204 = vpack.c.b16 %v9150, %v9149
  %v9205 = vpack.c.b16 %v9152, %v9151
  %v9206 = vpack.c.b16 %v9154, %v9153
  %v9207 = vpack.c.b16 %v9156, %v9155
  %v9208 = vpack.c.b16 %v9158, %v9157
  %v9209 = vpack.c.b16 %v9160, %v9159
  %v9210 = vpack.c.b16 %v9162, %v9161
  %v9211 = vpack.c.b16 %v9164, %v9163
  %v9212 = vpack.c.b16 %v9166, %v9165
  %v9213 = vpack.c.b16 %v9168, %v9167
  %v9214 = vpack.c.b16 %v9170, %v9169
  %v9215 = vpack.c.b16 %v9172, %v9171
  %v9216 = vpack.c.b16 %v9174, %v9173
  %v9217 = vpack.c.b16 %v9176, %v9175
  %v9218 = vpack.c.b16 %v9178, %v9177
  %v9219 = vpack.c.b16 %v9180, %v9179
  %v9220 = vpack.c.b16 %v9182, %v9181
  %v9221 = vpack.c.b16 %v9184, %v9183
  %v9222 = vpack.c.b16 %v9186, %v9185
  %v9223 = vpack.c.b16 %v9188, %v9187
  %v9224 = vpack.c.b16 %v9190, %v9189
  %v9225 = vpack.c.b16 %v9192, %v9191
  %v9226 = vpack.c.b16 %v9194, %v9193
  %v9291 = vunpack.c.l.b16 %v8973
  %v9292 = vunpack.c.l.b16 %v8976
  %v9293 = vunpack.c.l.b16 %v8979
  %v9294 = vunpack.c.l.b16 %v8982
  %v9295 = vunpack.c.l.b16 %v8985
  %v9296 = vunpack.c.l.b16 %v8988
  %v9297 = vunpack.c.l.b16 %v8991
  %v9298 = vunpack.c.l.b16 %v8994
  %v9299 = vunpack.c.l.b16 %v8997
  %v9300 = vunpack.c.l.b16 %v9000
  %v9301 = vunpack.c.l.b16 %v9003
  %v9302 = vunpack.c.l.b16 %v9006
  %v9303 = vunpack.c.l.b16 %v9009
  %v9304 = vunpack.c.l.b16 %v9012
  %v9305 = vunpack.c.l.b16 %v9015
  %v9306 = vunpack.c.l.b16 %v9018
  %v9307 = vunpack.c.l.b16 %v9021
  %v9308 = vunpack.c.l.b16 %v9024
  %v9309 = vunpack.c.l.b16 %v9027
  %v9310 = vunpack.c.l.b16 %v9030
  %v9311 = vunpack.c.l.b16 %v9033
  %v9312 = vunpack.c.l.b16 %v9036
  %v9313 = vunpack.c.l.b16 %v9039
  %v9314 = vunpack.c.l.b16 %v9042
  %v9315 = vunpack.c.l.b16 %v9045
  %v9316 = vunpack.c.l.b16 %v9048
  %v9317 = vunpack.c.l.b16 %v9051
  %v9318 = vunpack.c.l.b16 %v9054
  %v9319 = vunpack.c.l.b16 %v9057
  %v9320 = vunpack.c.l.b16 %v9060
  %v9321 = vunpack.c.l.b16 %v9063
  %v9322 = vunpack.c.l.b16 %v9066
  %v9323 = vpack.c.b16 %v9291, %v9291
  %v9324 = vpack.c.b16 %v9292, %v9292
  %v9325 = vpack.c.b16 %v9293, %v9293
  %v9326 = vpack.c.b16 %v9294, %v9294
  %v9327 = vpack.c.b16 %v9295, %v9295
  %v9328 = vpack.c.b16 %v9296, %v9296
  %v9329 = vpack.c.b16 %v9297, %v9297
  %v9330 = vpack.c.b16 %v9298, %v9298
  %v9331 = vpack.c.b16 %v9299, %v9299
  %v9332 = vpack.c.b16 %v9300, %v9300
  %v9333 = vpack.c.b16 %v9301, %v9301
  %v9334 = vpack.c.b16 %v9302, %v9302
  %v9335 = vpack.c.b16 %v9303, %v9303
  %v9336 = vpack.c.b16 %v9304, %v9304
  %v9337 = vpack.c.b16 %v9305, %v9305
  %v9338 = vpack.c.b16 %v9306, %v9306
  %v9339 = vpack.c.b16 %v9307, %v9307
  %v9340 = vpack.c.b16 %v9308, %v9308
  %v9341 = vpack.c.b16 %v9309, %v9309
  %v9342 = vpack.c.b16 %v9310, %v9310
  %v9343 = vpack.c.b16 %v9311, %v9311
  %v9344 = vpack.c.b16 %v9312, %v9312
  %v9345 = vpack.c.b16 %v9313, %v9313
  %v9346 = vpack.c.b16 %v9314, %v9314
  %v9347 = vpack.c.b16 %v9315, %v9315
  %v9348 = vpack.c.b16 %v9316, %v9316
  %v9349 = vpack.c.b16 %v9317, %v9317
  %v9350 = vpack.c.b16 %v9318, %v9318
  %v9351 = vpack.c.b16 %v9319, %v9319
  %v9352 = vpack.c.b16 %v9320, %v9320
  %v9353 = vpack.c.b16 %v9321, %v9321
  %v9354 = vpack.c.b16 %v9322, %v9322
  %v9356 = vshrl.u32 %v9195, 16
  %v9358 = vshll.u32 %v9195, 16
  %v9360 = vrot.slane %v9358, 1
  %v9361 = vor.u32 %v9356, %v9360
  %v9363 = vshll.u32 %v9323, 16
  %v9365 = vrot.slane %v9363, 1
  %v9366 = vsel %vm1746, %v9361, %v9365
  %v9368 = vshrl.u32 %v9196, 16
  %v9370 = vshll.u32 %v9196, 16
  %v9372 = vrot.slane %v9370, 1
  %v9373 = vor.u32 %v9368, %v9372
  %v9375 = vshll.u32 %v9324, 16
  %v9377 = vrot.slane %v9375, 1
  %v9378 = vsel %vm1746, %v9373, %v9377
  %v9380 = vshrl.u32 %v9197, 16
  %v9382 = vshll.u32 %v9197, 16
  %v9384 = vrot.slane %v9382, 1
  %v9385 = vor.u32 %v9380, %v9384
  %v9387 = vshll.u32 %v9325, 16
  %v9389 = vrot.slane %v9387, 1
  %v9390 = vsel %vm1746, %v9385, %v9389
  %v9392 = vshrl.u32 %v9198, 16
  %v9394 = vshll.u32 %v9198, 16
  %v9396 = vrot.slane %v9394, 1
  %v9397 = vor.u32 %v9392, %v9396
  %v9399 = vshll.u32 %v9326, 16
  %v9401 = vrot.slane %v9399, 1
  %v9402 = vsel %vm1746, %v9397, %v9401
  %v9404 = vshrl.u32 %v9199, 16
  %v9406 = vshll.u32 %v9199, 16
  %v9408 = vrot.slane %v9406, 1
  %v9409 = vor.u32 %v9404, %v9408
  %v9411 = vshll.u32 %v9327, 16
  %v9413 = vrot.slane %v9411, 1
  %v9414 = vsel %vm1746, %v9409, %v9413
  %v9416 = vshrl.u32 %v9200, 16
  %v9418 = vshll.u32 %v9200, 16
  %v9420 = vrot.slane %v9418, 1
  %v9421 = vor.u32 %v9416, %v9420
  %v9423 = vshll.u32 %v9328, 16
  %v9425 = vrot.slane %v9423, 1
  %v9426 = vsel %vm1746, %v9421, %v9425
  %v9428 = vshrl.u32 %v9201, 16
  %v9430 = vshll.u32 %v9201, 16
  %v9432 = vrot.slane %v9430, 1
  %v9433 = vor.u32 %v9428, %v9432
  %v9435 = vshll.u32 %v9329, 16
  %v9437 = vrot.slane %v9435, 1
  %v9438 = vsel %vm1746, %v9433, %v9437
  %v9440 = vshrl.u32 %v9202, 16
  %v9442 = vshll.u32 %v9202, 16
  %v9444 = vrot.slane %v9442, 1
  %v9445 = vor.u32 %v9440, %v9444
  %v9447 = vshll.u32 %v9330, 16
  %v9449 = vrot.slane %v9447, 1
  %v9450 = vsel %vm1746, %v9445, %v9449
  %v9452 = vshrl.u32 %v9203, 16
  %v9454 = vshll.u32 %v9203, 16
  %v9456 = vrot.slane %v9454, 1
  %v9457 = vor.u32 %v9452, %v9456
  %v9459 = vshll.u32 %v9331, 16
  %v9461 = vrot.slane %v9459, 1
  %v9462 = vsel %vm1746, %v9457, %v9461
  %v9464 = vshrl.u32 %v9204, 16
  %v9466 = vshll.u32 %v9204, 16
  %v9468 = vrot.slane %v9466, 1
  %v9469 = vor.u32 %v9464, %v9468
  %v9471 = vshll.u32 %v9332, 16
  %v9473 = vrot.slane %v9471, 1
  %v9474 = vsel %vm1746, %v9469, %v9473
  %v9476 = vshrl.u32 %v9205, 16
  %v9478 = vshll.u32 %v9205, 16
  %v9480 = vrot.slane %v9478, 1
  %v9481 = vor.u32 %v9476, %v9480
  %v9483 = vshll.u32 %v9333, 16
  %v9485 = vrot.slane %v9483, 1
  %v9486 = vsel %vm1746, %v9481, %v9485
  %v9488 = vshrl.u32 %v9206, 16
  %v9490 = vshll.u32 %v9206, 16
  %v9492 = vrot.slane %v9490, 1
  %v9493 = vor.u32 %v9488, %v9492
  %v9495 = vshll.u32 %v9334, 16
  %v9497 = vrot.slane %v9495, 1
  %v9498 = vsel %vm1746, %v9493, %v9497
  %v9500 = vshrl.u32 %v9207, 16
  %v9502 = vshll.u32 %v9207, 16
  %v9504 = vrot.slane %v9502, 1
  %v9505 = vor.u32 %v9500, %v9504
  %v9507 = vshll.u32 %v9335, 16
  %v9509 = vrot.slane %v9507, 1
  %v9510 = vsel %vm1746, %v9505, %v9509
  %v9512 = vshrl.u32 %v9208, 16
  %v9514 = vshll.u32 %v9208, 16
  %v9516 = vrot.slane %v9514, 1
  %v9517 = vor.u32 %v9512, %v9516
  %v9519 = vshll.u32 %v9336, 16
  %v9521 = vrot.slane %v9519, 1
  %v9522 = vsel %vm1746, %v9517, %v9521
  %v9524 = vshrl.u32 %v9209, 16
  %v9526 = vshll.u32 %v9209, 16
  %v9528 = vrot.slane %v9526, 1
  %v9529 = vor.u32 %v9524, %v9528
  %v9531 = vshll.u32 %v9337, 16
  %v9533 = vrot.slane %v9531, 1
  %v9534 = vsel %vm1746, %v9529, %v9533
  %v9536 = vshrl.u32 %v9210, 16
  %v9538 = vshll.u32 %v9210, 16
  %v9540 = vrot.slane %v9538, 1
  %v9541 = vor.u32 %v9536, %v9540
  %v9543 = vshll.u32 %v9338, 16
  %v9545 = vrot.slane %v9543, 1
  %v9546 = vsel %vm1746, %v9541, %v9545
  %v9548 = vshrl.u32 %v9211, 16
  %v9550 = vshll.u32 %v9211, 16
  %v9552 = vrot.slane %v9550, 1
  %v9553 = vor.u32 %v9548, %v9552
  %v9555 = vshll.u32 %v9339, 16
  %v9557 = vrot.slane %v9555, 1
  %v9558 = vsel %vm1746, %v9553, %v9557
  %v9560 = vshrl.u32 %v9212, 16
  %v9562 = vshll.u32 %v9212, 16
  %v9564 = vrot.slane %v9562, 1
  %v9565 = vor.u32 %v9560, %v9564
  %v9567 = vshll.u32 %v9340, 16
  %v9569 = vrot.slane %v9567, 1
  %v9570 = vsel %vm1746, %v9565, %v9569
  %v9572 = vshrl.u32 %v9213, 16
  %v9574 = vshll.u32 %v9213, 16
  %v9576 = vrot.slane %v9574, 1
  %v9577 = vor.u32 %v9572, %v9576
  %v9579 = vshll.u32 %v9341, 16
  %v9581 = vrot.slane %v9579, 1
  %v9582 = vsel %vm1746, %v9577, %v9581
  %v9584 = vshrl.u32 %v9214, 16
  %v9586 = vshll.u32 %v9214, 16
  %v9588 = vrot.slane %v9586, 1
  %v9589 = vor.u32 %v9584, %v9588
  %v9591 = vshll.u32 %v9342, 16
  %v9593 = vrot.slane %v9591, 1
  %v9594 = vsel %vm1746, %v9589, %v9593
  %v9596 = vshrl.u32 %v9215, 16
  %v9598 = vshll.u32 %v9215, 16
  %v9600 = vrot.slane %v9598, 1
  %v9601 = vor.u32 %v9596, %v9600
  %v9603 = vshll.u32 %v9343, 16
  %v9605 = vrot.slane %v9603, 1
  %v9606 = vsel %vm1746, %v9601, %v9605
  %v9608 = vshrl.u32 %v9216, 16
  %v9610 = vshll.u32 %v9216, 16
  %v9612 = vrot.slane %v9610, 1
  %v9613 = vor.u32 %v9608, %v9612
  %v9615 = vshll.u32 %v9344, 16
  %v9617 = vrot.slane %v9615, 1
  %v9618 = vsel %vm1746, %v9613, %v9617
  %v9620 = vshrl.u32 %v9217, 16
  %v9622 = vshll.u32 %v9217, 16
  %v9624 = vrot.slane %v9622, 1
  %v9625 = vor.u32 %v9620, %v9624
  %v9627 = vshll.u32 %v9345, 16
  %v9629 = vrot.slane %v9627, 1
  %v9630 = vsel %vm1746, %v9625, %v9629
  %v9632 = vshrl.u32 %v9218, 16
  %v9634 = vshll.u32 %v9218, 16
  %v9636 = vrot.slane %v9634, 1
  %v9637 = vor.u32 %v9632, %v9636
  %v9639 = vshll.u32 %v9346, 16
  %v9641 = vrot.slane %v9639, 1
  %v9642 = vsel %vm1746, %v9637, %v9641
  %v9644 = vshrl.u32 %v9219, 16
  %v9646 = vshll.u32 %v9219, 16
  %v9648 = vrot.slane %v9646, 1
  %v9649 = vor.u32 %v9644, %v9648
  %v9651 = vshll.u32 %v9347, 16
  %v9653 = vrot.slane %v9651, 1
  %v9654 = vsel %vm1746, %v9649, %v9653
  %v9656 = vshrl.u32 %v9220, 16
  %v9658 = vshll.u32 %v9220, 16
  %v9660 = vrot.slane %v9658, 1
  %v9661 = vor.u32 %v9656, %v9660
  %v9663 = vshll.u32 %v9348, 16
  %v9665 = vrot.slane %v9663, 1
  %v9666 = vsel %vm1746, %v9661, %v9665
  %v9668 = vshrl.u32 %v9221, 16
  %v9670 = vshll.u32 %v9221, 16
  %v9672 = vrot.slane %v9670, 1
  %v9673 = vor.u32 %v9668, %v9672
  %v9675 = vshll.u32 %v9349, 16
  %v9677 = vrot.slane %v9675, 1
  %v9678 = vsel %vm1746, %v9673, %v9677
  %v9680 = vshrl.u32 %v9222, 16
  %v9682 = vshll.u32 %v9222, 16
  %v9684 = vrot.slane %v9682, 1
  %v9685 = vor.u32 %v9680, %v9684
  %v9687 = vshll.u32 %v9350, 16
  %v9689 = vrot.slane %v9687, 1
  %v9690 = vsel %vm1746, %v9685, %v9689
  %v9692 = vshrl.u32 %v9223, 16
  %v9694 = vshll.u32 %v9223, 16
  %v9696 = vrot.slane %v9694, 1
  %v9697 = vor.u32 %v9692, %v9696
  %v9699 = vshll.u32 %v9351, 16
  %v9701 = vrot.slane %v9699, 1
  %v9702 = vsel %vm1746, %v9697, %v9701
  %v9704 = vshrl.u32 %v9224, 16
  %v9706 = vshll.u32 %v9224, 16
  %v9708 = vrot.slane %v9706, 1
  %v9709 = vor.u32 %v9704, %v9708
  %v9711 = vshll.u32 %v9352, 16
  %v9713 = vrot.slane %v9711, 1
  %v9714 = vsel %vm1746, %v9709, %v9713
  %v9716 = vshrl.u32 %v9225, 16
  %v9718 = vshll.u32 %v9225, 16
  %v9720 = vrot.slane %v9718, 1
  %v9721 = vor.u32 %v9716, %v9720
  %v9723 = vshll.u32 %v9353, 16
  %v9725 = vrot.slane %v9723, 1
  %v9726 = vsel %vm1746, %v9721, %v9725
  %v9728 = vshrl.u32 %v9226, 16
  %v9730 = vshll.u32 %v9226, 16
  %v9732 = vrot.slane %v9730, 1
  %v9733 = vor.u32 %v9728, %v9732
  %v9735 = vshll.u32 %v9354, 16
  %v9737 = vrot.slane %v9735, 1
  %v9738 = vsel %vm1746, %v9733, %v9737
  %v9771 = vrot.slane %v9195, 1
  %v9772 = vrot.slane %v9323, 1
  %v9773 = vsel %vm2163, %v9771, %v9772
  %v9774 = vrot.slane %v9196, 1
  %v9775 = vrot.slane %v9324, 1
  %v9776 = vsel %vm2163, %v9774, %v9775
  %v9777 = vrot.slane %v9197, 1
  %v9778 = vrot.slane %v9325, 1
  %v9779 = vsel %vm2163, %v9777, %v9778
  %v9780 = vrot.slane %v9198, 1
  %v9781 = vrot.slane %v9326, 1
  %v9782 = vsel %vm2163, %v9780, %v9781
  %v9783 = vrot.slane %v9199, 1
  %v9784 = vrot.slane %v9327, 1
  %v9785 = vsel %vm2163, %v9783, %v9784
  %v9786 = vrot.slane %v9200, 1
  %v9787 = vrot.slane %v9328, 1
  %v9788 = vsel %vm2163, %v9786, %v9787
  %v9789 = vrot.slane %v9201, 1
  %v9790 = vrot.slane %v9329, 1
  %v9791 = vsel %vm2163, %v9789, %v9790
  %v9792 = vrot.slane %v9202, 1
  %v9793 = vrot.slane %v9330, 1
  %v9794 = vsel %vm2163, %v9792, %v9793
  %v9795 = vrot.slane %v9203, 1
  %v9796 = vrot.slane %v9331, 1
  %v9797 = vsel %vm2163, %v9795, %v9796
  %v9798 = vrot.slane %v9204, 1
  %v9799 = vrot.slane %v9332, 1
  %v9800 = vsel %vm2163, %v9798, %v9799
  %v9801 = vrot.slane %v9205, 1
  %v9802 = vrot.slane %v9333, 1
  %v9803 = vsel %vm2163, %v9801, %v9802
  %v9804 = vrot.slane %v9206, 1
  %v9805 = vrot.slane %v9334, 1
  %v9806 = vsel %vm2163, %v9804, %v9805
  %v9807 = vrot.slane %v9207, 1
  %v9808 = vrot.slane %v9335, 1
  %v9809 = vsel %vm2163, %v9807, %v9808
  %v9810 = vrot.slane %v9208, 1
  %v9811 = vrot.slane %v9336, 1
  %v9812 = vsel %vm2163, %v9810, %v9811
  %v9813 = vrot.slane %v9209, 1
  %v9814 = vrot.slane %v9337, 1
  %v9815 = vsel %vm2163, %v9813, %v9814
  %v9816 = vrot.slane %v9210, 1
  %v9817 = vrot.slane %v9338, 1
  %v9818 = vsel %vm2163, %v9816, %v9817
  %v9819 = vrot.slane %v9211, 1
  %v9820 = vrot.slane %v9339, 1
  %v9821 = vsel %vm2163, %v9819, %v9820
  %v9822 = vrot.slane %v9212, 1
  %v9823 = vrot.slane %v9340, 1
  %v9824 = vsel %vm2163, %v9822, %v9823
  %v9825 = vrot.slane %v9213, 1
  %v9826 = vrot.slane %v9341, 1
  %v9827 = vsel %vm2163, %v9825, %v9826
  %v9828 = vrot.slane %v9214, 1
  %v9829 = vrot.slane %v9342, 1
  %v9830 = vsel %vm2163, %v9828, %v9829
  %v9831 = vrot.slane %v9215, 1
  %v9832 = vrot.slane %v9343, 1
  %v9833 = vsel %vm2163, %v9831, %v9832
  %v9834 = vrot.slane %v9216, 1
  %v9835 = vrot.slane %v9344, 1
  %v9836 = vsel %vm2163, %v9834, %v9835
  %v9837 = vrot.slane %v9217, 1
  %v9838 = vrot.slane %v9345, 1
  %v9839 = vsel %vm2163, %v9837, %v9838
  %v9840 = vrot.slane %v9218, 1
  %v9841 = vrot.slane %v9346, 1
  %v9842 = vsel %vm2163, %v9840, %v9841
  %v9843 = vrot.slane %v9219, 1
  %v9844 = vrot.slane %v9347, 1
  %v9845 = vsel %vm2163, %v9843, %v9844
  %v9846 = vrot.slane %v9220, 1
  %v9847 = vrot.slane %v9348, 1
  %v9848 = vsel %vm2163, %v9846, %v9847
  %v9849 = vrot.slane %v9221, 1
  %v9850 = vrot.slane %v9349, 1
  %v9851 = vsel %vm2163, %v9849, %v9850
  %v9852 = vrot.slane %v9222, 1
  %v9853 = vrot.slane %v9350, 1
  %v9854 = vsel %vm2163, %v9852, %v9853
  %v9855 = vrot.slane %v9223, 1
  %v9856 = vrot.slane %v9351, 1
  %v9857 = vsel %vm2163, %v9855, %v9856
  %v9858 = vrot.slane %v9224, 1
  %v9859 = vrot.slane %v9352, 1
  %v9860 = vsel %vm2163, %v9858, %v9859
  %v9861 = vrot.slane %v9225, 1
  %v9862 = vrot.slane %v9353, 1
  %v9863 = vsel %vm2163, %v9861, %v9862
  %v9864 = vrot.slane %v9226, 1
  %v9865 = vrot.slane %v9354, 1
  %v9866 = vsel %vm2163, %v9864, %v9865
  %v9899 = vld [vmem:[%s4 + $0xc0] sm:$0xf]
  %v9900 = vld [vmem:[%s4 + $0xc4] sm:$0xf]
  %v9901 = vld [vmem:[%s4 + $0xc8] sm:$0xf]
  %v9902 = vld [vmem:[%s4 + $0xcc] sm:$0xf]
  %v9903 = vld [vmem:[%s4 + $0xd0] sm:$0xf]
  %v9904 = vld [vmem:[%s4 + $0xd4] sm:$0xf]
  %v9905 = vld [vmem:[%s4 + $0xd8] sm:$0xf]
  %v9906 = vld [vmem:[%s4 + $0xdc] sm:$0xf]
  %v9907 = vld [vmem:[%s4 + $0xe0] sm:$0xf]
  %v9908 = vld [vmem:[%s4 + $0xe4] sm:$0xf]
  %v9909 = vld [vmem:[%s4 + $0xe8] sm:$0xf]
  %v9910 = vld [vmem:[%s4 + $0xec] sm:$0xf]
  %v9911 = vld [vmem:[%s4 + $0xf0] sm:$0xf]
  %v9912 = vld [vmem:[%s4 + $0xf4] sm:$0xf]
  %v9913 = vld [vmem:[%s4 + $0xf8] sm:$0xf]
  %v9914 = vld [vmem:[%s4 + $0xfc] sm:$0xf]
  %v9915 = vld [vmem:[%s4 + $0x100] sm:$0xf]
  %v9916 = vld [vmem:[%s4 + $0x104] sm:$0xf]
  %v9917 = vld [vmem:[%s4 + $0x108] sm:$0xf]
  %v9918 = vld [vmem:[%s4 + $0x10c] sm:$0xf]
  %v9919 = vld [vmem:[%s4 + $0x110] sm:$0xf]
  %v9920 = vld [vmem:[%s4 + $0x114] sm:$0xf]
  %v9921 = vld [vmem:[%s4 + $0x118] sm:$0xf]
  %v9922 = vld [vmem:[%s4 + $0x11c] sm:$0xf]
  %v9923 = vld [vmem:[%s4 + $0x120] sm:$0xf]
  %v9924 = vld [vmem:[%s4 + $0x124] sm:$0xf]
  %v9925 = vld [vmem:[%s4 + $0x128] sm:$0xf]
  %v9926 = vld [vmem:[%s4 + $0x12c] sm:$0xf]
  %v9927 = vld [vmem:[%s4 + $0x130] sm:$0xf]
  %v9928 = vld [vmem:[%s4 + $0x134] sm:$0xf]
  %v9929 = vld [vmem:[%s4 + $0x138] sm:$0xf]
  %v9930 = vld [vmem:[%s4 + $0x13c] sm:$0xf]
  %v9931 = vld [vmem:[%s4 + $0x140] sm:$0xf]
  %v9932 = vld [vmem:[%s4 + $0x144] sm:$0xf]
  %v9933 = vld [vmem:[%s4 + $0x148] sm:$0xf]
  %v9934 = vld [vmem:[%s4 + $0x14c] sm:$0xf]
  %v9935 = vld [vmem:[%s4 + $0x150] sm:$0xf]
  %v9936 = vld [vmem:[%s4 + $0x154] sm:$0xf]
  %v9937 = vld [vmem:[%s4 + $0x158] sm:$0xf]
  %v9938 = vld [vmem:[%s4 + $0x15c] sm:$0xf]
  %v9939 = vld [vmem:[%s4 + $0x160] sm:$0xf]
  %v9940 = vld [vmem:[%s4 + $0x164] sm:$0xf]
  %v9941 = vld [vmem:[%s4 + $0x168] sm:$0xf]
  %v9942 = vld [vmem:[%s4 + $0x16c] sm:$0xf]
  %v9943 = vld [vmem:[%s4 + $0x170] sm:$0xf]
  %v9944 = vld [vmem:[%s4 + $0x174] sm:$0xf]
  %v9945 = vld [vmem:[%s4 + $0x178] sm:$0xf]
  %v9946 = vld [vmem:[%s4 + $0x17c] sm:$0xf]
  %v9995 = vunpack.c.l.b16 %v9899
  %v9996 = vunpack.c.l.b16 %v9900
  %v9997 = vunpack.c.l.b16 %v9901
  %v9998 = vunpack.c.l.b16 %v9902
  %v9999 = vunpack.c.l.b16 %v9903
  %v10000 = vunpack.c.l.b16 %v9904
  %v10001 = vunpack.c.l.b16 %v9905
  %v10002 = vunpack.c.l.b16 %v9906
  %v10003 = vunpack.c.l.b16 %v9907
  %v10004 = vunpack.c.l.b16 %v9908
  %v10005 = vunpack.c.l.b16 %v9909
  %v10006 = vunpack.c.l.b16 %v9910
  %v10007 = vunpack.c.l.b16 %v9911
  %v10008 = vunpack.c.l.b16 %v9912
  %v10009 = vunpack.c.l.b16 %v9913
  %v10010 = vunpack.c.l.b16 %v9914
  %v10011 = vunpack.c.l.b16 %v9915
  %v10012 = vunpack.c.l.b16 %v9916
  %v10013 = vunpack.c.l.b16 %v9917
  %v10014 = vunpack.c.l.b16 %v9918
  %v10015 = vunpack.c.l.b16 %v9919
  %v10016 = vunpack.c.l.b16 %v9920
  %v10017 = vunpack.c.l.b16 %v9921
  %v10018 = vunpack.c.l.b16 %v9922
  %v10019 = vunpack.c.l.b16 %v9923
  %v10020 = vunpack.c.l.b16 %v9924
  %v10021 = vunpack.c.l.b16 %v9925
  %v10022 = vunpack.c.l.b16 %v9926
  %v10023 = vunpack.c.l.b16 %v9927
  %v10024 = vunpack.c.l.b16 %v9928
  %v10025 = vunpack.c.l.b16 %v9929
  %v10026 = vunpack.c.l.b16 %v9930
  %v10027 = vunpack.c.l.b16 %v9931
  %v10028 = vunpack.c.l.b16 %v9932
  %v10029 = vunpack.c.l.b16 %v9933
  %v10030 = vunpack.c.l.b16 %v9934
  %v10031 = vunpack.c.l.b16 %v9935
  %v10032 = vunpack.c.l.b16 %v9936
  %v10033 = vunpack.c.l.b16 %v9937
  %v10034 = vunpack.c.l.b16 %v9938
  %v10035 = vunpack.c.l.b16 %v9939
  %v10036 = vunpack.c.l.b16 %v9940
  %v10037 = vunpack.c.l.b16 %v9941
  %v10038 = vunpack.c.l.b16 %v9942
  %v10039 = vunpack.c.l.b16 %v9943
  %v10040 = vunpack.c.l.b16 %v9944
  %v10041 = vunpack.c.l.b16 %v9945
  %v10042 = vunpack.c.l.b16 %v9946
  %v10043 = vpack.c.b16 %v9996, %v9995
  %v10044 = vpack.c.b16 %v9998, %v9997
  %v10045 = vpack.c.b16 %v10000, %v9999
  %v10046 = vpack.c.b16 %v10002, %v10001
  %v10047 = vpack.c.b16 %v10004, %v10003
  %v10048 = vpack.c.b16 %v10006, %v10005
  %v10049 = vpack.c.b16 %v10008, %v10007
  %v10050 = vpack.c.b16 %v10010, %v10009
  %v10051 = vpack.c.b16 %v10012, %v10011
  %v10052 = vpack.c.b16 %v10014, %v10013
  %v10053 = vpack.c.b16 %v10016, %v10015
  %v10054 = vpack.c.b16 %v10018, %v10017
  %v10055 = vpack.c.b16 %v10020, %v10019
  %v10056 = vpack.c.b16 %v10022, %v10021
  %v10057 = vpack.c.b16 %v10024, %v10023
  %v10058 = vpack.c.b16 %v10026, %v10025
  %v10059 = vpack.c.b16 %v10028, %v10027
  %v10060 = vpack.c.b16 %v10030, %v10029
  %v10061 = vpack.c.b16 %v10032, %v10031
  %v10062 = vpack.c.b16 %v10034, %v10033
  %v10063 = vpack.c.b16 %v10036, %v10035
  %v10064 = vpack.c.b16 %v10038, %v10037
  %v10065 = vpack.c.b16 %v10040, %v10039
  %v10066 = vpack.c.b16 %v10042, %v10041
  %10091 = vmatprep.subr.bf16.mxu0 0
  %10092 = vmatpush1.bf16.msra.mxu0 %v10043
  %10093 = vmatprep.subr.bf16.mxu0 0
  %10094 = vmatpush1.bf16.msra.mxu0 %v10044
  %10095 = vmatprep.subr.bf16.mxu0 0
  %10096 = vmatpush1.bf16.msra.mxu0 %v10045
  %10097 = vmatprep.subr.bf16.mxu0 0
  %10098 = vmatpush1.bf16.msra.mxu0 %v10046
  %10099 = vmatprep.subr.bf16.mxu0 0
  %10100 = vmatpush1.bf16.msra.mxu0 %v10047
  %10101 = vmatprep.subr.bf16.mxu0 0
  %10102 = vmatpush1.bf16.msra.mxu0 %v10048
  %10103 = vmatprep.subr.bf16.mxu0 0
  %10104 = vmatpush1.bf16.msra.mxu0 %v10049
  %10105 = vmatprep.subr.bf16.mxu0 0
  %10106 = vmatpush1.bf16.msra.mxu0 %v10050
  %10107 = vmatprep.subr.bf16.mxu0 0
  %10108 = vmatpush1.bf16.msra.mxu0 %v10051
  %10109 = vmatprep.subr.bf16.mxu0 0
  %10110 = vmatpush1.bf16.msra.mxu0 %v10052
  %10111 = vmatprep.subr.bf16.mxu0 0
  %10112 = vmatpush1.bf16.msra.mxu0 %v10053
  %10113 = vmatprep.subr.bf16.mxu0 0
  %10114 = vmatpush1.bf16.msra.mxu0 %v10054
  %10115 = vmatprep.subr.bf16.mxu0 0
  %10116 = vmatpush1.bf16.msra.mxu0 %v10055
  %10117 = vmatprep.subr.bf16.mxu0 0
  %10118 = vmatpush1.bf16.msra.mxu0 %v10056
  %10119 = vmatprep.subr.bf16.mxu0 0
  %10120 = vmatpush1.bf16.msra.mxu0 %v10057
  %10121 = vmatprep.subr.bf16.mxu0 0
  %10122 = vmatpush1.bf16.msra.mxu0 %v10058
  %10123 = vmatprep.mubr.bf16.mxu0 %v9366
  %10124 = vmatmul.mubr.bf16.gmra.mrb[0].mxu0 %v9195
  %v10125 = vpop.f32.mrb[0].mxu0
  %v10126 = vadd.f32 0.0, %v10125
  %v10127 = vpop.f32.mrb[0].mxu0
  %v10128 = vpop.f32.mrb[0].mxu0
  %v10129 = vadd.f32 0.0, %v10128
  %v10130 = vpop.f32.mrb[0].mxu0
  %10131 = vmatprep.mubr.bf16.mxu0 %v9378
  %10132 = vmatmul.mubr.bf16.gmra.mrb[0].mxu0 %v9196
  %v10133 = vpop.f32.mrb[0].mxu0
  %v10134 = vadd.f32 0.0, %v10133
  %v10135 = vpop.f32.mrb[0].mxu0
  %v10136 = vpop.f32.mrb[0].mxu0
  %v10137 = vadd.f32 0.0, %v10136
  %v10138 = vpop.f32.mrb[0].mxu0
  %10139 = vmatprep.mubr.bf16.mxu0 %v9390
  %10140 = vmatmul.mubr.bf16.gmra.mrb[0].mxu0 %v9197
  %v10141 = vpop.f32.mrb[0].mxu0
  %v10142 = vadd.f32 0.0, %v10141
  %v10143 = vpop.f32.mrb[0].mxu0
  %v10144 = vpop.f32.mrb[0].mxu0
  %v10145 = vadd.f32 0.0, %v10144
  %v10146 = vpop.f32.mrb[0].mxu0
  %10147 = vmatprep.mubr.bf16.mxu0 %v9402
  %10148 = vmatmul.mubr.bf16.gmra.mrb[0].mxu0 %v9198
  %v10149 = vpop.f32.mrb[0].mxu0
  %v10150 = vadd.f32 0.0, %v10149
  %v10151 = vpop.f32.mrb[0].mxu0
  %v10152 = vpop.f32.mrb[0].mxu0
  %v10153 = vadd.f32 0.0, %v10152
  %v10154 = vpop.f32.mrb[0].mxu0
  %10155 = vmatprep.mubr.bf16.mxu0 %v9414
  %10156 = vmatmul.mubr.bf16.gmra.mrb[0].mxu0 %v9199
  %v10157 = vpop.f32.mrb[0].mxu0
  %v10158 = vadd.f32 0.0, %v10157
  %v10159 = vpop.f32.mrb[0].mxu0
  %v10160 = vpop.f32.mrb[0].mxu0
  %v10161 = vadd.f32 0.0, %v10160
  %v10162 = vpop.f32.mrb[0].mxu0
  %10163 = vmatprep.mubr.bf16.mxu0 %v9426
  %10164 = vmatmul.mubr.bf16.gmra.mrb[0].mxu0 %v9200
  %v10165 = vpop.f32.mrb[0].mxu0
  %v10166 = vadd.f32 0.0, %v10165
  %v10167 = vpop.f32.mrb[0].mxu0
  %v10168 = vpop.f32.mrb[0].mxu0
  %v10169 = vadd.f32 0.0, %v10168
  %v10170 = vpop.f32.mrb[0].mxu0
  %10171 = vmatprep.mubr.bf16.mxu0 %v9438
  %10172 = vmatmul.mubr.bf16.gmra.mrb[0].mxu0 %v9201
  %v10173 = vpop.f32.mrb[0].mxu0
  %v10174 = vadd.f32 0.0, %v10173
  %v10175 = vpop.f32.mrb[0].mxu0
  %v10176 = vpop.f32.mrb[0].mxu0
  %v10177 = vadd.f32 0.0, %v10176
  %v10178 = vpop.f32.mrb[0].mxu0
  %10179 = vmatprep.mubr.bf16.mxu0 %v9450
  %10180 = vmatmul.mubr.bf16.gmra.mrb[0].mxu0 %v9202
  %v10181 = vpop.f32.mrb[0].mxu0
  %v10182 = vadd.f32 0.0, %v10181
  %v10183 = vpop.f32.mrb[0].mxu0
  %v10184 = vpop.f32.mrb[0].mxu0
  %v10185 = vadd.f32 0.0, %v10184
  %v10186 = vpop.f32.mrb[0].mxu0
  %10187 = vmatprep.mubr.bf16.mxu0 %v9462
  %10188 = vmatmul.mubr.bf16.gmra.mrb[0].mxu0 %v9203
  %v10189 = vpop.f32.mrb[0].mxu0
  %v10190 = vadd.f32 0.0, %v10189
  %v10191 = vpop.f32.mrb[0].mxu0
  %v10192 = vpop.f32.mrb[0].mxu0
  %v10193 = vadd.f32 0.0, %v10192
  %v10194 = vpop.f32.mrb[0].mxu0
  %10195 = vmatprep.mubr.bf16.mxu0 %v9474
  %10196 = vmatmul.mubr.bf16.gmra.mrb[0].mxu0 %v9204
  %v10197 = vpop.f32.mrb[0].mxu0
  %v10198 = vadd.f32 0.0, %v10197
  %v10199 = vpop.f32.mrb[0].mxu0
  %v10200 = vpop.f32.mrb[0].mxu0
  %v10201 = vadd.f32 0.0, %v10200
  %v10202 = vpop.f32.mrb[0].mxu0
  %10203 = vmatprep.mubr.bf16.mxu0 %v9486
  %10204 = vmatmul.mubr.bf16.gmra.mrb[0].mxu0 %v9205
  %v10205 = vpop.f32.mrb[0].mxu0
  %v10206 = vadd.f32 0.0, %v10205
  %v10207 = vpop.f32.mrb[0].mxu0
  %v10208 = vpop.f32.mrb[0].mxu0
  %v10209 = vadd.f32 0.0, %v10208
  %v10210 = vpop.f32.mrb[0].mxu0
  %10211 = vmatprep.mubr.bf16.mxu0 %v9498
  %10212 = vmatmul.mubr.bf16.gmra.mrb[0].mxu0 %v9206
  %v10213 = vpop.f32.mrb[0].mxu0
  %v10214 = vadd.f32 0.0, %v10213
  %v10215 = vpop.f32.mrb[0].mxu0
  %v10216 = vpop.f32.mrb[0].mxu0
  %v10217 = vadd.f32 0.0, %v10216
  %v10218 = vpop.f32.mrb[0].mxu0
  %10219 = vmatprep.mubr.bf16.mxu0 %v9510
  %10220 = vmatmul.mubr.bf16.gmra.mrb[0].mxu0 %v9207
  %v10221 = vpop.f32.mrb[0].mxu0
  %v10222 = vadd.f32 0.0, %v10221
  %v10223 = vpop.f32.mrb[0].mxu0
  %v10224 = vpop.f32.mrb[0].mxu0
  %v10225 = vadd.f32 0.0, %v10224
  %v10226 = vpop.f32.mrb[0].mxu0
  %10227 = vmatprep.mubr.bf16.mxu0 %v9522
  %10228 = vmatmul.mubr.bf16.gmra.mrb[0].mxu0 %v9208
  %v10229 = vpop.f32.mrb[0].mxu0
  %v10230 = vadd.f32 0.0, %v10229
  %v10231 = vpop.f32.mrb[0].mxu0
  %v10232 = vpop.f32.mrb[0].mxu0
  %v10233 = vadd.f32 0.0, %v10232
  %v10234 = vpop.f32.mrb[0].mxu0
  %10235 = vmatprep.mubr.bf16.mxu0 %v9534
  %10236 = vmatmul.mubr.bf16.gmra.mrb[0].mxu0 %v9209
  %v10237 = vpop.f32.mrb[0].mxu0
  %v10238 = vadd.f32 0.0, %v10237
  %v10239 = vpop.f32.mrb[0].mxu0
  %v10240 = vpop.f32.mrb[0].mxu0
  %v10241 = vadd.f32 0.0, %v10240
  %v10242 = vpop.f32.mrb[0].mxu0
  %10243 = vmatprep.mubr.bf16.mxu0 %v9546
  %10244 = vmatmul.mubr.bf16.gmra.mrb[0].mxu0 %v9210
  %v10245 = vpop.f32.mrb[0].mxu0
  %v10246 = vadd.f32 0.0, %v10245
  %v10247 = vpop.f32.mrb[0].mxu0
  %v10248 = vpop.f32.mrb[0].mxu0
  %v10249 = vadd.f32 0.0, %v10248
  %v10250 = vpop.f32.mrb[0].mxu0
  %10251 = vmatprep.mubr.bf16.mxu0 %v9558
  %10252 = vmatmul.mubr.bf16.gmra.mrb[0].mxu0 %v9211
  %v10253 = vpop.f32.mrb[0].mxu0
  %v10254 = vadd.f32 0.0, %v10253
  %v10255 = vpop.f32.mrb[0].mxu0
  %v10256 = vpop.f32.mrb[0].mxu0
  %v10257 = vadd.f32 0.0, %v10256
  %v10258 = vpop.f32.mrb[0].mxu0
  %10259 = vmatprep.mubr.bf16.mxu0 %v9570
  %10260 = vmatmul.mubr.bf16.gmra.mrb[0].mxu0 %v9212
  %v10261 = vpop.f32.mrb[0].mxu0
  %v10262 = vadd.f32 0.0, %v10261
  %v10263 = vpop.f32.mrb[0].mxu0
  %v10264 = vpop.f32.mrb[0].mxu0
  %v10265 = vadd.f32 0.0, %v10264
  %v10266 = vpop.f32.mrb[0].mxu0
  %10267 = vmatprep.mubr.bf16.mxu0 %v9582
  %10268 = vmatmul.mubr.bf16.gmra.mrb[0].mxu0 %v9213
  %v10269 = vpop.f32.mrb[0].mxu0
  %v10270 = vadd.f32 0.0, %v10269
  %v10271 = vpop.f32.mrb[0].mxu0
  %v10272 = vpop.f32.mrb[0].mxu0
  %v10273 = vadd.f32 0.0, %v10272
  %v10274 = vpop.f32.mrb[0].mxu0
  %10275 = vmatprep.mubr.bf16.mxu0 %v9594
  %10276 = vmatmul.mubr.bf16.gmra.mrb[0].mxu0 %v9214
  %v10277 = vpop.f32.mrb[0].mxu0
  %v10278 = vadd.f32 0.0, %v10277
  %v10279 = vpop.f32.mrb[0].mxu0
  %v10280 = vpop.f32.mrb[0].mxu0
  %v10281 = vadd.f32 0.0, %v10280
  %v10282 = vpop.f32.mrb[0].mxu0
  %10283 = vmatprep.mubr.bf16.mxu0 %v9606
  %10284 = vmatmul.mubr.bf16.gmra.mrb[0].mxu0 %v9215
  %v10285 = vpop.f32.mrb[0].mxu0
  %v10286 = vadd.f32 0.0, %v10285
  %v10287 = vpop.f32.mrb[0].mxu0
  %v10288 = vpop.f32.mrb[0].mxu0
  %v10289 = vadd.f32 0.0, %v10288
  %v10290 = vpop.f32.mrb[0].mxu0
  %10291 = vmatprep.mubr.bf16.mxu0 %v9618
  %10292 = vmatmul.mubr.bf16.gmra.mrb[0].mxu0 %v9216
  %v10293 = vpop.f32.mrb[0].mxu0
  %v10294 = vadd.f32 0.0, %v10293
  %v10295 = vpop.f32.mrb[0].mxu0
  %v10296 = vpop.f32.mrb[0].mxu0
  %v10297 = vadd.f32 0.0, %v10296
  %v10298 = vpop.f32.mrb[0].mxu0
  %10299 = vmatprep.mubr.bf16.mxu0 %v9630
  %10300 = vmatmul.mubr.bf16.gmra.mrb[0].mxu0 %v9217
  %v10301 = vpop.f32.mrb[0].mxu0
  %v10302 = vadd.f32 0.0, %v10301
  %v10303 = vpop.f32.mrb[0].mxu0
  %v10304 = vpop.f32.mrb[0].mxu0
  %v10305 = vadd.f32 0.0, %v10304
  %v10306 = vpop.f32.mrb[0].mxu0
  %10307 = vmatprep.mubr.bf16.mxu0 %v9642
  %10308 = vmatmul.mubr.bf16.gmra.mrb[0].mxu0 %v9218
  %v10309 = vpop.f32.mrb[0].mxu0
  %v10310 = vadd.f32 0.0, %v10309
  %v10311 = vpop.f32.mrb[0].mxu0
  %v10312 = vpop.f32.mrb[0].mxu0
  %v10313 = vadd.f32 0.0, %v10312
  %v10314 = vpop.f32.mrb[0].mxu0
  %10315 = vmatprep.mubr.bf16.mxu0 %v9654
  %10316 = vmatmul.mubr.bf16.gmra.mrb[0].mxu0 %v9219
  %v10317 = vpop.f32.mrb[0].mxu0
  %v10318 = vadd.f32 0.0, %v10317
  %v10319 = vpop.f32.mrb[0].mxu0
  %v10320 = vpop.f32.mrb[0].mxu0
  %v10321 = vadd.f32 0.0, %v10320
  %v10322 = vpop.f32.mrb[0].mxu0
  %10323 = vmatprep.mubr.bf16.mxu0 %v9666
  %10324 = vmatmul.mubr.bf16.gmra.mrb[0].mxu0 %v9220
  %v10325 = vpop.f32.mrb[0].mxu0
  %v10326 = vadd.f32 0.0, %v10325
  %v10327 = vpop.f32.mrb[0].mxu0
  %v10328 = vpop.f32.mrb[0].mxu0
  %v10329 = vadd.f32 0.0, %v10328
  %v10330 = vpop.f32.mrb[0].mxu0
  %10331 = vmatprep.mubr.bf16.mxu0 %v9678
  %10332 = vmatmul.mubr.bf16.gmra.mrb[0].mxu0 %v9221
  %v10333 = vpop.f32.mrb[0].mxu0
  %v10334 = vadd.f32 0.0, %v10333
  %v10335 = vpop.f32.mrb[0].mxu0
  %v10336 = vpop.f32.mrb[0].mxu0
  %v10337 = vadd.f32 0.0, %v10336
  %v10338 = vpop.f32.mrb[0].mxu0
  %10339 = vmatprep.mubr.bf16.mxu0 %v9690
  %10340 = vmatmul.mubr.bf16.gmra.mrb[0].mxu0 %v9222
  %v10341 = vpop.f32.mrb[0].mxu0
  %v10342 = vadd.f32 0.0, %v10341
  %v10343 = vpop.f32.mrb[0].mxu0
  %v10344 = vpop.f32.mrb[0].mxu0
  %v10345 = vadd.f32 0.0, %v10344
  %v10346 = vpop.f32.mrb[0].mxu0
  %10347 = vmatprep.mubr.bf16.mxu0 %v9702
  %10348 = vmatmul.mubr.bf16.gmra.mrb[0].mxu0 %v9223
  %v10349 = vpop.f32.mrb[0].mxu0
  %v10350 = vadd.f32 0.0, %v10349
  %v10351 = vpop.f32.mrb[0].mxu0
  %v10352 = vpop.f32.mrb[0].mxu0
  %v10353 = vadd.f32 0.0, %v10352
  %v10354 = vpop.f32.mrb[0].mxu0
  %10355 = vmatprep.mubr.bf16.mxu0 %v9714
  %10356 = vmatmul.mubr.bf16.gmra.mrb[0].mxu0 %v9224
  %v10357 = vpop.f32.mrb[0].mxu0
  %v10358 = vadd.f32 0.0, %v10357
  %v10359 = vpop.f32.mrb[0].mxu0
  %v10360 = vpop.f32.mrb[0].mxu0
  %v10361 = vadd.f32 0.0, %v10360
  %v10362 = vpop.f32.mrb[0].mxu0
  %10363 = vmatprep.mubr.bf16.mxu0 %v9726
  %10364 = vmatmul.mubr.bf16.gmra.mrb[0].mxu0 %v9225
  %v10365 = vpop.f32.mrb[0].mxu0
  %v10366 = vadd.f32 0.0, %v10365
  %v10367 = vpop.f32.mrb[0].mxu0
  %v10368 = vpop.f32.mrb[0].mxu0
  %v10369 = vadd.f32 0.0, %v10368
  %v10370 = vpop.f32.mrb[0].mxu0
  %10371 = vmatprep.mubr.bf16.mxu0 %v9738
  %10372 = vmatmul.mubr.bf16.gmra.mrb[0].mxu0 %v9226
  %v10373 = vpop.f32.mrb[0].mxu0
  %v10374 = vadd.f32 0.0, %v10373
  %v10375 = vpop.f32.mrb[0].mxu0
  %v10376 = vpop.f32.mrb[0].mxu0
  %v10377 = vadd.f32 0.0, %v10376
  %v10378 = vpop.f32.mrb[0].mxu0
  %10379 = vdwg.mxu0
  %10380 = vmatprep.subr.bf16.mxu0 0
  %10381 = vmatpush1.bf16.msra.mxu0 %v10059
  %10382 = vmatprep.subr.bf16.mxu0 0
  %10383 = vmatpush1.bf16.msra.mxu0 %v10060
  %10384 = vmatprep.subr.bf16.mxu0 0
  %10385 = vmatpush1.bf16.msra.mxu0 %v10061
  %10386 = vmatprep.subr.bf16.mxu0 0
  %10387 = vmatpush1.bf16.msra.mxu0 %v10062
  %10388 = vmatprep.subr.bf16.mxu0 0
  %10389 = vmatpush1.bf16.msra.mxu0 %v10063
  %10390 = vmatprep.subr.bf16.mxu0 0
  %10391 = vmatpush1.bf16.msra.mxu0 %v10064
  %10392 = vmatprep.subr.bf16.mxu0 0
  %10393 = vmatpush1.bf16.msra.mxu0 %v10065
  %10394 = vmatprep.subr.bf16.mxu0 0
  %10395 = vmatpush1.bf16.msra.mxu0 %v10066
  %10396 = vmatprep.subr.bf16.mxu0 0
  %10397 = vmatpush1.bf16.msra.mxu0 0
  %10398 = vmatprep.subr.bf16.mxu0 0
  %10399 = vmatpush1.bf16.msra.mxu0 0
  %10400 = vmatprep.subr.bf16.mxu0 0
  %10401 = vmatpush1.bf16.msra.mxu0 0
  %10402 = vmatprep.subr.bf16.mxu0 0
  %10403 = vmatpush1.bf16.msra.mxu0 0
  %10404 = vmatprep.subr.bf16.mxu0 0
  %10405 = vmatpush1.bf16.msra.mxu0 0
  %10406 = vmatprep.subr.bf16.mxu0 0
  %10407 = vmatpush1.bf16.msra.mxu0 0
  %10408 = vmatprep.subr.bf16.mxu0 0
  %10409 = vmatpush1.bf16.msra.mxu0 0
  %10410 = vmatprep.subr.bf16.mxu0 0
  %10411 = vmatpush1.bf16.msra.mxu0 0
  %10412 = vmatprep.mubr.bf16.mxu0 0
  %10413 = vmatmul.mubr.bf16.gmra.mrb[0].mxu0 %v9773
  %v10414 = vpop.f32.mrb[0].mxu0
  %v10415 = vadd.f32 %v10126, %v10414
  %v10416 = vpop.f32.mrb[0].mxu0
  %v10417 = vpop.f32.mrb[0].mxu0
  %v10418 = vadd.f32 %v10129, %v10417
  %v10419 = vpop.f32.mrb[0].mxu0
  %10420 = vmatprep.mubr.bf16.mxu0 0
  %10421 = vmatmul.mubr.bf16.gmra.mrb[0].mxu0 %v9776
  %v10422 = vpop.f32.mrb[0].mxu0
  %v10423 = vadd.f32 %v10134, %v10422
  %v10424 = vpop.f32.mrb[0].mxu0
  %v10425 = vpop.f32.mrb[0].mxu0
  %v10426 = vadd.f32 %v10137, %v10425
  %v10427 = vpop.f32.mrb[0].mxu0
  %10428 = vmatprep.mubr.bf16.mxu0 0
  %10429 = vmatmul.mubr.bf16.gmra.mrb[0].mxu0 %v9779
  %v10430 = vpop.f32.mrb[0].mxu0
  %v10431 = vadd.f32 %v10142, %v10430
  %v10432 = vpop.f32.mrb[0].mxu0
  %v10433 = vpop.f32.mrb[0].mxu0
  %v10434 = vadd.f32 %v10145, %v10433
  %v10435 = vpop.f32.mrb[0].mxu0
  %10436 = vmatprep.mubr.bf16.mxu0 0
  %10437 = vmatmul.mubr.bf16.gmra.mrb[0].mxu0 %v9782
  %v10438 = vpop.f32.mrb[0].mxu0
  %v10439 = vadd.f32 %v10150, %v10438
  %v10440 = vpop.f32.mrb[0].mxu0
  %v10441 = vpop.f32.mrb[0].mxu0
  %v10442 = vadd.f32 %v10153, %v10441
  %v10443 = vpop.f32.mrb[0].mxu0
  %10444 = vmatprep.mubr.bf16.mxu0 0
  %10445 = vmatmul.mubr.bf16.gmra.mrb[0].mxu0 %v9785
  %v10446 = vpop.f32.mrb[0].mxu0
  %v10447 = vadd.f32 %v10158, %v10446
  %v10448 = vpop.f32.mrb[0].mxu0
  %v10449 = vpop.f32.mrb[0].mxu0
  %v10450 = vadd.f32 %v10161, %v10449
  %v10451 = vpop.f32.mrb[0].mxu0
  %10452 = vmatprep.mubr.bf16.mxu0 0
  %10453 = vmatmul.mubr.bf16.gmra.mrb[0].mxu0 %v9788
  %v10454 = vpop.f32.mrb[0].mxu0
  %v10455 = vadd.f32 %v10166, %v10454
  %v10456 = vpop.f32.mrb[0].mxu0
  %v10457 = vpop.f32.mrb[0].mxu0
  %v10458 = vadd.f32 %v10169, %v10457
  %v10459 = vpop.f32.mrb[0].mxu0
  %10460 = vmatprep.mubr.bf16.mxu0 0
  %10461 = vmatmul.mubr.bf16.gmra.mrb[0].mxu0 %v9791
  %v10462 = vpop.f32.mrb[0].mxu0
  %v10463 = vadd.f32 %v10174, %v10462
  %v10464 = vpop.f32.mrb[0].mxu0
  %v10465 = vpop.f32.mrb[0].mxu0
  %v10466 = vadd.f32 %v10177, %v10465
  %v10467 = vpop.f32.mrb[0].mxu0
  %10468 = vmatprep.mubr.bf16.mxu0 0
  %10469 = vmatmul.mubr.bf16.gmra.mrb[0].mxu0 %v9794
  %v10470 = vpop.f32.mrb[0].mxu0
  %v10471 = vadd.f32 %v10182, %v10470
  %v10472 = vpop.f32.mrb[0].mxu0
  %v10473 = vpop.f32.mrb[0].mxu0
  %v10474 = vadd.f32 %v10185, %v10473
  %v10475 = vpop.f32.mrb[0].mxu0
  %10476 = vmatprep.mubr.bf16.mxu0 0
  %10477 = vmatmul.mubr.bf16.gmra.mrb[0].mxu0 %v9797
  %v10478 = vpop.f32.mrb[0].mxu0
  %v10479 = vadd.f32 %v10190, %v10478
  %v10480 = vpop.f32.mrb[0].mxu0
  %v10481 = vpop.f32.mrb[0].mxu0
  %v10482 = vadd.f32 %v10193, %v10481
  %v10483 = vpop.f32.mrb[0].mxu0
  %10484 = vmatprep.mubr.bf16.mxu0 0
  %10485 = vmatmul.mubr.bf16.gmra.mrb[0].mxu0 %v9800
  %v10486 = vpop.f32.mrb[0].mxu0
  %v10487 = vadd.f32 %v10198, %v10486
  %v10488 = vpop.f32.mrb[0].mxu0
  %v10489 = vpop.f32.mrb[0].mxu0
  %v10490 = vadd.f32 %v10201, %v10489
  %v10491 = vpop.f32.mrb[0].mxu0
  %10492 = vmatprep.mubr.bf16.mxu0 0
  %10493 = vmatmul.mubr.bf16.gmra.mrb[0].mxu0 %v9803
  %v10494 = vpop.f32.mrb[0].mxu0
  %v10495 = vadd.f32 %v10206, %v10494
  %v10496 = vpop.f32.mrb[0].mxu0
  %v10497 = vpop.f32.mrb[0].mxu0
  %v10498 = vadd.f32 %v10209, %v10497
  %v10499 = vpop.f32.mrb[0].mxu0
  %10500 = vmatprep.mubr.bf16.mxu0 0
  %10501 = vmatmul.mubr.bf16.gmra.mrb[0].mxu0 %v9806
  %v10502 = vpop.f32.mrb[0].mxu0
  %v10503 = vadd.f32 %v10214, %v10502
  %v10504 = vpop.f32.mrb[0].mxu0
  %v10505 = vpop.f32.mrb[0].mxu0
  %v10506 = vadd.f32 %v10217, %v10505
  %v10507 = vpop.f32.mrb[0].mxu0
  %10508 = vmatprep.mubr.bf16.mxu0 0
  %10509 = vmatmul.mubr.bf16.gmra.mrb[0].mxu0 %v9809
  %v10510 = vpop.f32.mrb[0].mxu0
  %v10511 = vadd.f32 %v10222, %v10510
  %v10512 = vpop.f32.mrb[0].mxu0
  %v10513 = vpop.f32.mrb[0].mxu0
  %v10514 = vadd.f32 %v10225, %v10513
  %v10515 = vpop.f32.mrb[0].mxu0
  %10516 = vmatprep.mubr.bf16.mxu0 0
  %10517 = vmatmul.mubr.bf16.gmra.mrb[0].mxu0 %v9812
  %v10518 = vpop.f32.mrb[0].mxu0
  %v10519 = vadd.f32 %v10230, %v10518
  %v10520 = vpop.f32.mrb[0].mxu0
  %v10521 = vpop.f32.mrb[0].mxu0
  %v10522 = vadd.f32 %v10233, %v10521
  %v10523 = vpop.f32.mrb[0].mxu0
  %10524 = vmatprep.mubr.bf16.mxu0 0
  %10525 = vmatmul.mubr.bf16.gmra.mrb[0].mxu0 %v9815
  %v10526 = vpop.f32.mrb[0].mxu0
  %v10527 = vadd.f32 %v10238, %v10526
  %v10528 = vpop.f32.mrb[0].mxu0
  %v10529 = vpop.f32.mrb[0].mxu0
  %v10530 = vadd.f32 %v10241, %v10529
  %v10531 = vpop.f32.mrb[0].mxu0
  %10532 = vmatprep.mubr.bf16.mxu0 0
  %10533 = vmatmul.mubr.bf16.gmra.mrb[0].mxu0 %v9818
  %v10534 = vpop.f32.mrb[0].mxu0
  %v10535 = vadd.f32 %v10246, %v10534
  %v10536 = vpop.f32.mrb[0].mxu0
  %v10537 = vpop.f32.mrb[0].mxu0
  %v10538 = vadd.f32 %v10249, %v10537
  %v10539 = vpop.f32.mrb[0].mxu0
  %10540 = vmatprep.mubr.bf16.mxu0 0
  %10541 = vmatmul.mubr.bf16.gmra.mrb[0].mxu0 %v9821
  %v10542 = vpop.f32.mrb[0].mxu0
  %v10543 = vadd.f32 %v10254, %v10542
  %v10544 = vpop.f32.mrb[0].mxu0
  %v10545 = vpop.f32.mrb[0].mxu0
  %v10546 = vadd.f32 %v10257, %v10545
  %v10547 = vpop.f32.mrb[0].mxu0
  %10548 = vmatprep.mubr.bf16.mxu0 0
  %10549 = vmatmul.mubr.bf16.gmra.mrb[0].mxu0 %v9824
  %v10550 = vpop.f32.mrb[0].mxu0
  %v10551 = vadd.f32 %v10262, %v10550
  %v10552 = vpop.f32.mrb[0].mxu0
  %v10553 = vpop.f32.mrb[0].mxu0
  %v10554 = vadd.f32 %v10265, %v10553
  %v10555 = vpop.f32.mrb[0].mxu0
  %10556 = vmatprep.mubr.bf16.mxu0 0
  %10557 = vmatmul.mubr.bf16.gmra.mrb[0].mxu0 %v9827
  %v10558 = vpop.f32.mrb[0].mxu0
  %v10559 = vadd.f32 %v10270, %v10558
  %v10560 = vpop.f32.mrb[0].mxu0
  %v10561 = vpop.f32.mrb[0].mxu0
  %v10562 = vadd.f32 %v10273, %v10561
  %v10563 = vpop.f32.mrb[0].mxu0
  %10564 = vmatprep.mubr.bf16.mxu0 0
  %10565 = vmatmul.mubr.bf16.gmra.mrb[0].mxu0 %v9830
  %v10566 = vpop.f32.mrb[0].mxu0
  %v10567 = vadd.f32 %v10278, %v10566
  %v10568 = vpop.f32.mrb[0].mxu0
  %v10569 = vpop.f32.mrb[0].mxu0
  %v10570 = vadd.f32 %v10281, %v10569
  %v10571 = vpop.f32.mrb[0].mxu0
  %10572 = vmatprep.mubr.bf16.mxu0 0
  %10573 = vmatmul.mubr.bf16.gmra.mrb[0].mxu0 %v9833
  %v10574 = vpop.f32.mrb[0].mxu0
  %v10575 = vadd.f32 %v10286, %v10574
  %v10576 = vpop.f32.mrb[0].mxu0
  %v10577 = vpop.f32.mrb[0].mxu0
  %v10578 = vadd.f32 %v10289, %v10577
  %v10579 = vpop.f32.mrb[0].mxu0
  %10580 = vmatprep.mubr.bf16.mxu0 0
  %10581 = vmatmul.mubr.bf16.gmra.mrb[0].mxu0 %v9836
  %v10582 = vpop.f32.mrb[0].mxu0
  %v10583 = vadd.f32 %v10294, %v10582
  %v10584 = vpop.f32.mrb[0].mxu0
  %v10585 = vpop.f32.mrb[0].mxu0
  %v10586 = vadd.f32 %v10297, %v10585
  %v10587 = vpop.f32.mrb[0].mxu0
  %10588 = vmatprep.mubr.bf16.mxu0 0
  %10589 = vmatmul.mubr.bf16.gmra.mrb[0].mxu0 %v9839
  %v10590 = vpop.f32.mrb[0].mxu0
  %v10591 = vadd.f32 %v10302, %v10590
  %v10592 = vpop.f32.mrb[0].mxu0
  %v10593 = vpop.f32.mrb[0].mxu0
  %v10594 = vadd.f32 %v10305, %v10593
  %v10595 = vpop.f32.mrb[0].mxu0
  %10596 = vmatprep.mubr.bf16.mxu0 0
  %10597 = vmatmul.mubr.bf16.gmra.mrb[0].mxu0 %v9842
  %v10598 = vpop.f32.mrb[0].mxu0
  %v10599 = vadd.f32 %v10310, %v10598
  %v10600 = vpop.f32.mrb[0].mxu0
  %v10601 = vpop.f32.mrb[0].mxu0
  %v10602 = vadd.f32 %v10313, %v10601
  %v10603 = vpop.f32.mrb[0].mxu0
  %10604 = vmatprep.mubr.bf16.mxu0 0
  %10605 = vmatmul.mubr.bf16.gmra.mrb[0].mxu0 %v9845
  %v10606 = vpop.f32.mrb[0].mxu0
  %v10607 = vadd.f32 %v10318, %v10606
  %v10608 = vpop.f32.mrb[0].mxu0
  %v10609 = vpop.f32.mrb[0].mxu0
  %v10610 = vadd.f32 %v10321, %v10609
  %v10611 = vpop.f32.mrb[0].mxu0
  %10612 = vmatprep.mubr.bf16.mxu0 0
  %10613 = vmatmul.mubr.bf16.gmra.mrb[0].mxu0 %v9848
  %v10614 = vpop.f32.mrb[0].mxu0
  %v10615 = vadd.f32 %v10326, %v10614
  %v10616 = vpop.f32.mrb[0].mxu0
  %v10617 = vpop.f32.mrb[0].mxu0
  %v10618 = vadd.f32 %v10329, %v10617
  %v10619 = vpop.f32.mrb[0].mxu0
  %10620 = vmatprep.mubr.bf16.mxu0 0
  %10621 = vmatmul.mubr.bf16.gmra.mrb[0].mxu0 %v9851
  %v10622 = vpop.f32.mrb[0].mxu0
  %v10623 = vadd.f32 %v10334, %v10622
  %v10624 = vpop.f32.mrb[0].mxu0
  %v10625 = vpop.f32.mrb[0].mxu0
  %v10626 = vadd.f32 %v10337, %v10625
  %v10627 = vpop.f32.mrb[0].mxu0
  %10628 = vmatprep.mubr.bf16.mxu0 0
  %10629 = vmatmul.mubr.bf16.gmra.mrb[0].mxu0 %v9854
  %v10630 = vpop.f32.mrb[0].mxu0
  %v10631 = vadd.f32 %v10342, %v10630
  %v10632 = vpop.f32.mrb[0].mxu0
  %v10633 = vpop.f32.mrb[0].mxu0
  %v10634 = vadd.f32 %v10345, %v10633
  %v10635 = vpop.f32.mrb[0].mxu0
  %10636 = vmatprep.mubr.bf16.mxu0 0
  %10637 = vmatmul.mubr.bf16.gmra.mrb[0].mxu0 %v9857
  %v10638 = vpop.f32.mrb[0].mxu0
  %v10639 = vadd.f32 %v10350, %v10638
  %v10640 = vpop.f32.mrb[0].mxu0
  %v10641 = vpop.f32.mrb[0].mxu0
  %v10642 = vadd.f32 %v10353, %v10641
  %v10643 = vpop.f32.mrb[0].mxu0
  %10644 = vmatprep.mubr.bf16.mxu0 0
  %10645 = vmatmul.mubr.bf16.gmra.mrb[0].mxu0 %v9860
  %v10646 = vpop.f32.mrb[0].mxu0
  %v10647 = vadd.f32 %v10358, %v10646
  %v10648 = vpop.f32.mrb[0].mxu0
  %v10649 = vpop.f32.mrb[0].mxu0
  %v10650 = vadd.f32 %v10361, %v10649
  %v10651 = vpop.f32.mrb[0].mxu0
  %10652 = vmatprep.mubr.bf16.mxu0 0
  %10653 = vmatmul.mubr.bf16.gmra.mrb[0].mxu0 %v9863
  %v10654 = vpop.f32.mrb[0].mxu0
  %v10655 = vadd.f32 %v10366, %v10654
  %v10656 = vpop.f32.mrb[0].mxu0
  %v10657 = vpop.f32.mrb[0].mxu0
  %v10658 = vadd.f32 %v10369, %v10657
  %v10659 = vpop.f32.mrb[0].mxu0
  %10660 = vmatprep.mubr.bf16.mxu0 0
  %10661 = vmatmul.mubr.bf16.gmra.mrb[0].mxu0 %v9866
  %v10662 = vpop.f32.mrb[0].mxu0
  %v10663 = vadd.f32 %v10374, %v10662
  %v10664 = vpop.f32.mrb[0].mxu0
  %v10665 = vpop.f32.mrb[0].mxu0
  %v10666 = vadd.f32 %v10377, %v10665
  %v10667 = vpop.f32.mrb[0].mxu0
  %10668 = vdwg.mxu0
  %v10717 = vunpack.c.l.b16 %v8923
  %v10718 = vunpack.c.l.b16 %v8924
  %v10719 = vunpack.c.l.b16 %v8925
  %v10720 = vunpack.c.l.b16 %v8926
  %v10721 = vunpack.c.l.b16 %v8927
  %v10722 = vunpack.c.l.b16 %v8928
  %v10723 = vunpack.c.l.b16 %v8929
  %v10724 = vunpack.c.l.b16 %v8930
  %v10725 = vunpack.c.l.b16 %v8931
  %v10726 = vunpack.c.l.b16 %v8932
  %v10727 = vunpack.c.l.b16 %v8933
  %v10728 = vunpack.c.l.b16 %v8934
  %v10729 = vunpack.c.l.b16 %v8935
  %v10730 = vunpack.c.l.b16 %v8936
  %v10731 = vunpack.c.l.b16 %v8937
  %v10732 = vunpack.c.l.b16 %v8938
  %v10733 = vunpack.c.l.b16 %v8939
  %v10734 = vunpack.c.l.b16 %v8940
  %v10735 = vunpack.c.l.b16 %v8941
  %v10736 = vunpack.c.l.b16 %v8942
  %v10737 = vunpack.c.l.b16 %v8943
  %v10738 = vunpack.c.l.b16 %v8944
  %v10739 = vunpack.c.l.b16 %v8945
  %v10740 = vunpack.c.l.b16 %v8946
  %v10741 = vunpack.c.l.b16 %v8947
  %v10742 = vunpack.c.l.b16 %v8948
  %v10743 = vunpack.c.l.b16 %v8949
  %v10744 = vunpack.c.l.b16 %v8950
  %v10745 = vunpack.c.l.b16 %v8951
  %v10746 = vunpack.c.l.b16 %v8952
  %v10747 = vunpack.c.l.b16 %v8953
  %v10748 = vunpack.c.l.b16 %v8954
  %v10749 = vunpack.c.l.b16 %v8955
  %v10750 = vunpack.c.l.b16 %v8956
  %v10751 = vunpack.c.l.b16 %v8957
  %v10752 = vunpack.c.l.b16 %v8958
  %v10753 = vunpack.c.l.b16 %v8959
  %v10754 = vunpack.c.l.b16 %v8960
  %v10755 = vunpack.c.l.b16 %v8961
  %v10756 = vunpack.c.l.b16 %v8962
  %v10757 = vunpack.c.l.b16 %v8963
  %v10758 = vunpack.c.l.b16 %v8964
  %v10759 = vunpack.c.l.b16 %v8965
  %v10760 = vunpack.c.l.b16 %v8966
  %v10761 = vunpack.c.l.b16 %v8967
  %v10762 = vunpack.c.l.b16 %v8968
  %v10763 = vunpack.c.l.b16 %v8969
  %v10764 = vunpack.c.l.b16 %v8970
  %v10765 = vpack.c.b16 %v10718, %v10717
  %v10766 = vpack.c.b16 %v10720, %v10719
  %v10767 = vpack.c.b16 %v10722, %v10721
  %v10768 = vpack.c.b16 %v10724, %v10723
  %v10769 = vpack.c.b16 %v10726, %v10725
  %v10770 = vpack.c.b16 %v10728, %v10727
  %v10771 = vpack.c.b16 %v10730, %v10729
  %v10772 = vpack.c.b16 %v10732, %v10731
  %v10773 = vpack.c.b16 %v10734, %v10733
  %v10774 = vpack.c.b16 %v10736, %v10735
  %v10775 = vpack.c.b16 %v10738, %v10737
  %v10776 = vpack.c.b16 %v10740, %v10739
  %v10777 = vpack.c.b16 %v10742, %v10741
  %v10778 = vpack.c.b16 %v10744, %v10743
  %v10779 = vpack.c.b16 %v10746, %v10745
  %v10780 = vpack.c.b16 %v10748, %v10747
  %v10781 = vpack.c.b16 %v10750, %v10749
  %v10782 = vpack.c.b16 %v10752, %v10751
  %v10783 = vpack.c.b16 %v10754, %v10753
  %v10784 = vpack.c.b16 %v10756, %v10755
  %v10785 = vpack.c.b16 %v10758, %v10757
  %v10786 = vpack.c.b16 %v10760, %v10759
  %v10787 = vpack.c.b16 %v10762, %v10761
  %v10788 = vpack.c.b16 %v10764, %v10763
  %10813 = vmatprep.subr.bf16.mxu0 0
  %10814 = vmatpush1.bf16.msra.mxu0 %v10765
  %10815 = vmatprep.subr.bf16.mxu0 0
  %10816 = vmatpush1.bf16.msra.mxu0 %v10766
  %10817 = vmatprep.subr.bf16.mxu0 0
  %10818 = vmatpush1.bf16.msra.mxu0 %v10767
  %10819 = vmatprep.subr.bf16.mxu0 0
  %10820 = vmatpush1.bf16.msra.mxu0 %v10768
  %10821 = vmatprep.subr.bf16.mxu0 0
  %10822 = vmatpush1.bf16.msra.mxu0 %v10769
  %10823 = vmatprep.subr.bf16.mxu0 0
  %10824 = vmatpush1.bf16.msra.mxu0 %v10770
  %10825 = vmatprep.subr.bf16.mxu0 0
  %10826 = vmatpush1.bf16.msra.mxu0 %v10771
  %10827 = vmatprep.subr.bf16.mxu0 0
  %10828 = vmatpush1.bf16.msra.mxu0 %v10772
  %10829 = vmatprep.subr.bf16.mxu0 0
  %10830 = vmatpush1.bf16.msra.mxu0 %v10773
  %10831 = vmatprep.subr.bf16.mxu0 0
  %10832 = vmatpush1.bf16.msra.mxu0 %v10774
  %10833 = vmatprep.subr.bf16.mxu0 0
  %10834 = vmatpush1.bf16.msra.mxu0 %v10775
  %10835 = vmatprep.subr.bf16.mxu0 0
  %10836 = vmatpush1.bf16.msra.mxu0 %v10776
  %10837 = vmatprep.subr.bf16.mxu0 0
  %10838 = vmatpush1.bf16.msra.mxu0 %v10777
  %10839 = vmatprep.subr.bf16.mxu0 0
  %10840 = vmatpush1.bf16.msra.mxu0 %v10778
  %10841 = vmatprep.subr.bf16.mxu0 0
  %10842 = vmatpush1.bf16.msra.mxu0 %v10779
  %10843 = vmatprep.subr.bf16.mxu0 0
  %10844 = vmatpush1.bf16.msra.mxu0 %v10780
  %10845 = vmatprep.mubr.bf16.mxu0 %v8390
  %10846 = vmatmul.mubr.bf16.gmra.mrb[0].mxu0 %v8219
  %v10847 = vpop.f32.mrb[0].mxu0
  %v10848 = vadd.f32 %v10415, %v10847
  %v10849 = vpop.f32.mrb[0].mxu0
  %v10850 = vpop.f32.mrb[0].mxu0
  %v10851 = vadd.f32 %v10418, %v10850
  %v10852 = vpop.f32.mrb[0].mxu0
  %10853 = vmatprep.mubr.bf16.mxu0 %v8402
  %10854 = vmatmul.mubr.bf16.gmra.mrb[0].mxu0 %v8220
  %v10855 = vpop.f32.mrb[0].mxu0
  %v10856 = vadd.f32 %v10423, %v10855
  %v10857 = vpop.f32.mrb[0].mxu0
  %v10858 = vpop.f32.mrb[0].mxu0
  %v10859 = vadd.f32 %v10426, %v10858
  %v10860 = vpop.f32.mrb[0].mxu0
  %10861 = vmatprep.mubr.bf16.mxu0 %v8414
  %10862 = vmatmul.mubr.bf16.gmra.mrb[0].mxu0 %v8221
  %v10863 = vpop.f32.mrb[0].mxu0
  %v10864 = vadd.f32 %v10431, %v10863
  %v10865 = vpop.f32.mrb[0].mxu0
  %v10866 = vpop.f32.mrb[0].mxu0
  %v10867 = vadd.f32 %v10434, %v10866
  %v10868 = vpop.f32.mrb[0].mxu0
  %10869 = vmatprep.mubr.bf16.mxu0 %v8426
  %10870 = vmatmul.mubr.bf16.gmra.mrb[0].mxu0 %v8222
  %v10871 = vpop.f32.mrb[0].mxu0
  %v10872 = vadd.f32 %v10439, %v10871
  %v10873 = vpop.f32.mrb[0].mxu0
  %v10874 = vpop.f32.mrb[0].mxu0
  %v10875 = vadd.f32 %v10442, %v10874
  %v10876 = vpop.f32.mrb[0].mxu0
  %10877 = vmatprep.mubr.bf16.mxu0 %v8438
  %10878 = vmatmul.mubr.bf16.gmra.mrb[0].mxu0 %v8223
  %v10879 = vpop.f32.mrb[0].mxu0
  %v10880 = vadd.f32 %v10447, %v10879
  %v10881 = vpop.f32.mrb[0].mxu0
  %v10882 = vpop.f32.mrb[0].mxu0
  %v10883 = vadd.f32 %v10450, %v10882
  %v10884 = vpop.f32.mrb[0].mxu0
  %10885 = vmatprep.mubr.bf16.mxu0 %v8450
  %10886 = vmatmul.mubr.bf16.gmra.mrb[0].mxu0 %v8224
  %v10887 = vpop.f32.mrb[0].mxu0
  %v10888 = vadd.f32 %v10455, %v10887
  %v10889 = vpop.f32.mrb[0].mxu0
  %v10890 = vpop.f32.mrb[0].mxu0
  %v10891 = vadd.f32 %v10458, %v10890
  %v10892 = vpop.f32.mrb[0].mxu0
  %10893 = vmatprep.mubr.bf16.mxu0 %v8462
  %10894 = vmatmul.mubr.bf16.gmra.mrb[0].mxu0 %v8225
  %v10895 = vpop.f32.mrb[0].mxu0
  %v10896 = vadd.f32 %v10463, %v10895
  %v10897 = vpop.f32.mrb[0].mxu0
  %v10898 = vpop.f32.mrb[0].mxu0
  %v10899 = vadd.f32 %v10466, %v10898
  %v10900 = vpop.f32.mrb[0].mxu0
  %10901 = vmatprep.mubr.bf16.mxu0 %v8474
  %10902 = vmatmul.mubr.bf16.gmra.mrb[0].mxu0 %v8226
  %v10903 = vpop.f32.mrb[0].mxu0
  %v10904 = vadd.f32 %v10471, %v10903
  %v10905 = vpop.f32.mrb[0].mxu0
  %v10906 = vpop.f32.mrb[0].mxu0
  %v10907 = vadd.f32 %v10474, %v10906
  %v10908 = vpop.f32.mrb[0].mxu0
  %10909 = vmatprep.mubr.bf16.mxu0 %v8486
  %10910 = vmatmul.mubr.bf16.gmra.mrb[0].mxu0 %v8227
  %v10911 = vpop.f32.mrb[0].mxu0
  %v10912 = vadd.f32 %v10479, %v10911
  %v10913 = vpop.f32.mrb[0].mxu0
  %v10914 = vpop.f32.mrb[0].mxu0
  %v10915 = vadd.f32 %v10482, %v10914
  %v10916 = vpop.f32.mrb[0].mxu0
  %10917 = vmatprep.mubr.bf16.mxu0 %v8498
  %10918 = vmatmul.mubr.bf16.gmra.mrb[0].mxu0 %v8228
  %v10919 = vpop.f32.mrb[0].mxu0
  %v10920 = vadd.f32 %v10487, %v10919
  %v10921 = vpop.f32.mrb[0].mxu0
  %v10922 = vpop.f32.mrb[0].mxu0
  %v10923 = vadd.f32 %v10490, %v10922
  %v10924 = vpop.f32.mrb[0].mxu0
  %10925 = vmatprep.mubr.bf16.mxu0 %v8510
  %10926 = vmatmul.mubr.bf16.gmra.mrb[0].mxu0 %v8229
  %v10927 = vpop.f32.mrb[0].mxu0
  %v10928 = vadd.f32 %v10495, %v10927
  %v10929 = vpop.f32.mrb[0].mxu0
  %v10930 = vpop.f32.mrb[0].mxu0
  %v10931 = vadd.f32 %v10498, %v10930
  %v10932 = vpop.f32.mrb[0].mxu0
  %10933 = vmatprep.mubr.bf16.mxu0 %v8522
  %10934 = vmatmul.mubr.bf16.gmra.mrb[0].mxu0 %v8230
  %v10935 = vpop.f32.mrb[0].mxu0
  %v10936 = vadd.f32 %v10503, %v10935
  %v10937 = vpop.f32.mrb[0].mxu0
  %v10938 = vpop.f32.mrb[0].mxu0
  %v10939 = vadd.f32 %v10506, %v10938
  %v10940 = vpop.f32.mrb[0].mxu0
  %10941 = vmatprep.mubr.bf16.mxu0 %v8534
  %10942 = vmatmul.mubr.bf16.gmra.mrb[0].mxu0 %v8231
  %v10943 = vpop.f32.mrb[0].mxu0
  %v10944 = vadd.f32 %v10511, %v10943
  %v10945 = vpop.f32.mrb[0].mxu0
  %v10946 = vpop.f32.mrb[0].mxu0
  %v10947 = vadd.f32 %v10514, %v10946
  %v10948 = vpop.f32.mrb[0].mxu0
  %10949 = vmatprep.mubr.bf16.mxu0 %v8546
  %10950 = vmatmul.mubr.bf16.gmra.mrb[0].mxu0 %v8232
  %v10951 = vpop.f32.mrb[0].mxu0
  %v10952 = vadd.f32 %v10519, %v10951
  %v10953 = vpop.f32.mrb[0].mxu0
  %v10954 = vpop.f32.mrb[0].mxu0
  %v10955 = vadd.f32 %v10522, %v10954
  %v10956 = vpop.f32.mrb[0].mxu0
  %10957 = vmatprep.mubr.bf16.mxu0 %v8558
  %10958 = vmatmul.mubr.bf16.gmra.mrb[0].mxu0 %v8233
  %v10959 = vpop.f32.mrb[0].mxu0
  %v10960 = vadd.f32 %v10527, %v10959
  %v10961 = vpop.f32.mrb[0].mxu0
  %v10962 = vpop.f32.mrb[0].mxu0
  %v10963 = vadd.f32 %v10530, %v10962
  %v10964 = vpop.f32.mrb[0].mxu0
  %10965 = vmatprep.mubr.bf16.mxu0 %v8570
  %10966 = vmatmul.mubr.bf16.gmra.mrb[0].mxu0 %v8234
  %v10967 = vpop.f32.mrb[0].mxu0
  %v10968 = vadd.f32 %v10535, %v10967
  %v10969 = vpop.f32.mrb[0].mxu0
  %v10970 = vpop.f32.mrb[0].mxu0
  %v10971 = vadd.f32 %v10538, %v10970
  %v10972 = vpop.f32.mrb[0].mxu0
  %10973 = vmatprep.mubr.bf16.mxu0 %v8582
  %10974 = vmatmul.mubr.bf16.gmra.mrb[0].mxu0 %v8235
  %v10975 = vpop.f32.mrb[0].mxu0
  %v10976 = vadd.f32 %v10543, %v10975
  %v10977 = vpop.f32.mrb[0].mxu0
  %v10978 = vpop.f32.mrb[0].mxu0
  %v10979 = vadd.f32 %v10546, %v10978
  %v10980 = vpop.f32.mrb[0].mxu0
  %10981 = vmatprep.mubr.bf16.mxu0 %v8594
  %10982 = vmatmul.mubr.bf16.gmra.mrb[0].mxu0 %v8236
  %v10983 = vpop.f32.mrb[0].mxu0
  %v10984 = vadd.f32 %v10551, %v10983
  %v10985 = vpop.f32.mrb[0].mxu0
  %v10986 = vpop.f32.mrb[0].mxu0
  %v10987 = vadd.f32 %v10554, %v10986
  %v10988 = vpop.f32.mrb[0].mxu0
  %10989 = vmatprep.mubr.bf16.mxu0 %v8606
  %10990 = vmatmul.mubr.bf16.gmra.mrb[0].mxu0 %v8237
  %v10991 = vpop.f32.mrb[0].mxu0
  %v10992 = vadd.f32 %v10559, %v10991
  %v10993 = vpop.f32.mrb[0].mxu0
  %v10994 = vpop.f32.mrb[0].mxu0
  %v10995 = vadd.f32 %v10562, %v10994
  %v10996 = vpop.f32.mrb[0].mxu0
  %10997 = vmatprep.mubr.bf16.mxu0 %v8618
  %10998 = vmatmul.mubr.bf16.gmra.mrb[0].mxu0 %v8238
  %v10999 = vpop.f32.mrb[0].mxu0
  %v11000 = vadd.f32 %v10567, %v10999
  %v11001 = vpop.f32.mrb[0].mxu0
  %v11002 = vpop.f32.mrb[0].mxu0
  %v11003 = vadd.f32 %v10570, %v11002
  %v11004 = vpop.f32.mrb[0].mxu0
  %11005 = vmatprep.mubr.bf16.mxu0 %v8630
  %11006 = vmatmul.mubr.bf16.gmra.mrb[0].mxu0 %v8239
  %v11007 = vpop.f32.mrb[0].mxu0
  %v11008 = vadd.f32 %v10575, %v11007
  %v11009 = vpop.f32.mrb[0].mxu0
  %v11010 = vpop.f32.mrb[0].mxu0
  %v11011 = vadd.f32 %v10578, %v11010
  %v11012 = vpop.f32.mrb[0].mxu0
  %11013 = vmatprep.mubr.bf16.mxu0 %v8642
  %11014 = vmatmul.mubr.bf16.gmra.mrb[0].mxu0 %v8240
  %v11015 = vpop.f32.mrb[0].mxu0
  %v11016 = vadd.f32 %v10583, %v11015
  %v11017 = vpop.f32.mrb[0].mxu0
  %v11018 = vpop.f32.mrb[0].mxu0
  %v11019 = vadd.f32 %v10586, %v11018
  %v11020 = vpop.f32.mrb[0].mxu0
  %11021 = vmatprep.mubr.bf16.mxu0 %v8654
  %11022 = vmatmul.mubr.bf16.gmra.mrb[0].mxu0 %v8241
  %v11023 = vpop.f32.mrb[0].mxu0
  %v11024 = vadd.f32 %v10591, %v11023
  %v11025 = vpop.f32.mrb[0].mxu0
  %v11026 = vpop.f32.mrb[0].mxu0
  %v11027 = vadd.f32 %v10594, %v11026
  %v11028 = vpop.f32.mrb[0].mxu0
  %11029 = vmatprep.mubr.bf16.mxu0 %v8666
  %11030 = vmatmul.mubr.bf16.gmra.mrb[0].mxu0 %v8242
  %v11031 = vpop.f32.mrb[0].mxu0
  %v11032 = vadd.f32 %v10599, %v11031
  %v11033 = vpop.f32.mrb[0].mxu0
  %v11034 = vpop.f32.mrb[0].mxu0
  %v11035 = vadd.f32 %v10602, %v11034
  %v11036 = vpop.f32.mrb[0].mxu0
  %11037 = vmatprep.mubr.bf16.mxu0 %v8678
  %11038 = vmatmul.mubr.bf16.gmra.mrb[0].mxu0 %v8243
  %v11039 = vpop.f32.mrb[0].mxu0
  %v11040 = vadd.f32 %v10607, %v11039
  %v11041 = vpop.f32.mrb[0].mxu0
  %v11042 = vpop.f32.mrb[0].mxu0
  %v11043 = vadd.f32 %v10610, %v11042
  %v11044 = vpop.f32.mrb[0].mxu0
  %11045 = vmatprep.mubr.bf16.mxu0 %v8690
  %11046 = vmatmul.mubr.bf16.gmra.mrb[0].mxu0 %v8244
  %v11047 = vpop.f32.mrb[0].mxu0
  %v11048 = vadd.f32 %v10615, %v11047
  %v11049 = vpop.f32.mrb[0].mxu0
  %v11050 = vpop.f32.mrb[0].mxu0
  %v11051 = vadd.f32 %v10618, %v11050
  %v11052 = vpop.f32.mrb[0].mxu0
  %11053 = vmatprep.mubr.bf16.mxu0 %v8702
  %11054 = vmatmul.mubr.bf16.gmra.mrb[0].mxu0 %v8245
  %v11055 = vpop.f32.mrb[0].mxu0
  %v11056 = vadd.f32 %v10623, %v11055
  %v11057 = vpop.f32.mrb[0].mxu0
  %v11058 = vpop.f32.mrb[0].mxu0
  %v11059 = vadd.f32 %v10626, %v11058
  %v11060 = vpop.f32.mrb[0].mxu0
  %11061 = vmatprep.mubr.bf16.mxu0 %v8714
  %11062 = vmatmul.mubr.bf16.gmra.mrb[0].mxu0 %v8246
  %v11063 = vpop.f32.mrb[0].mxu0
  %v11064 = vadd.f32 %v10631, %v11063
  %v11065 = vpop.f32.mrb[0].mxu0
  %v11066 = vpop.f32.mrb[0].mxu0
  %v11067 = vadd.f32 %v10634, %v11066
  %v11068 = vpop.f32.mrb[0].mxu0
  %11069 = vmatprep.mubr.bf16.mxu0 %v8726
  %11070 = vmatmul.mubr.bf16.gmra.mrb[0].mxu0 %v8247
  %v11071 = vpop.f32.mrb[0].mxu0
  %v11072 = vadd.f32 %v10639, %v11071
  %v11073 = vpop.f32.mrb[0].mxu0
  %v11074 = vpop.f32.mrb[0].mxu0
  %v11075 = vadd.f32 %v10642, %v11074
  %v11076 = vpop.f32.mrb[0].mxu0
  %11077 = vmatprep.mubr.bf16.mxu0 %v8738
  %11078 = vmatmul.mubr.bf16.gmra.mrb[0].mxu0 %v8248
  %v11079 = vpop.f32.mrb[0].mxu0
  %v11080 = vadd.f32 %v10647, %v11079
  %v11081 = vpop.f32.mrb[0].mxu0
  %v11082 = vpop.f32.mrb[0].mxu0
  %v11083 = vadd.f32 %v10650, %v11082
  %v11084 = vpop.f32.mrb[0].mxu0
  %11085 = vmatprep.mubr.bf16.mxu0 %v8750
  %11086 = vmatmul.mubr.bf16.gmra.mrb[0].mxu0 %v8249
  %v11087 = vpop.f32.mrb[0].mxu0
  %v11088 = vadd.f32 %v10655, %v11087
  %v11089 = vpop.f32.mrb[0].mxu0
  %v11090 = vpop.f32.mrb[0].mxu0
  %v11091 = vadd.f32 %v10658, %v11090
  %v11092 = vpop.f32.mrb[0].mxu0
  %11093 = vmatprep.mubr.bf16.mxu0 %v8762
  %11094 = vmatmul.mubr.bf16.gmra.mrb[0].mxu0 %v8250
  %v11095 = vpop.f32.mrb[0].mxu0
  %v11096 = vadd.f32 %v10663, %v11095
  %v11097 = vpop.f32.mrb[0].mxu0
  %v11098 = vpop.f32.mrb[0].mxu0
  %v11099 = vadd.f32 %v10666, %v11098
  %v11100 = vpop.f32.mrb[0].mxu0
  %11101 = vdwg.mxu0
  %11102 = vmatprep.subr.bf16.mxu0 0
  %11103 = vmatpush1.bf16.msra.mxu0 %v10781
  %11104 = vmatprep.subr.bf16.mxu0 0
  %11105 = vmatpush1.bf16.msra.mxu0 %v10782
  %11106 = vmatprep.subr.bf16.mxu0 0
  %11107 = vmatpush1.bf16.msra.mxu0 %v10783
  %11108 = vmatprep.subr.bf16.mxu0 0
  %11109 = vmatpush1.bf16.msra.mxu0 %v10784
  %11110 = vmatprep.subr.bf16.mxu0 0
  %11111 = vmatpush1.bf16.msra.mxu0 %v10785
  %11112 = vmatprep.subr.bf16.mxu0 0
  %11113 = vmatpush1.bf16.msra.mxu0 %v10786
  %11114 = vmatprep.subr.bf16.mxu0 0
  %11115 = vmatpush1.bf16.msra.mxu0 %v10787
  %11116 = vmatprep.subr.bf16.mxu0 0
  %11117 = vmatpush1.bf16.msra.mxu0 %v10788
  %11118 = vmatprep.subr.bf16.mxu0 0
  %11119 = vmatpush1.bf16.msra.mxu0 0
  %11120 = vmatprep.subr.bf16.mxu0 0
  %11121 = vmatpush1.bf16.msra.mxu0 0
  %11122 = vmatprep.subr.bf16.mxu0 0
  %11123 = vmatpush1.bf16.msra.mxu0 0
  %11124 = vmatprep.subr.bf16.mxu0 0
  %11125 = vmatpush1.bf16.msra.mxu0 0
  %11126 = vmatprep.subr.bf16.mxu0 0
  %11127 = vmatpush1.bf16.msra.mxu0 0
  %11128 = vmatprep.subr.bf16.mxu0 0
  %11129 = vmatpush1.bf16.msra.mxu0 0
  %11130 = vmatprep.subr.bf16.mxu0 0
  %11131 = vmatpush1.bf16.msra.mxu0 0
  %11132 = vmatprep.subr.bf16.mxu0 0
  %11133 = vmatpush1.bf16.msra.mxu0 0
  %11134 = vmatprep.mubr.bf16.mxu0 0
  %11135 = vmatmul.mubr.bf16.gmra.mrb[0].mxu0 %v8797
  %v11136 = vpop.f32.mrb[0].mxu0
  %v11137 = vadd.f32 %v10848, %v11136
  %v11138 = vpop.f32.mrb[0].mxu0
  %v11139 = vpop.f32.mrb[0].mxu0
  %v11140 = vadd.f32 %v10851, %v11139
  %v11141 = vpop.f32.mrb[0].mxu0
  %11142 = vmatprep.mubr.bf16.mxu0 0
  %11143 = vmatmul.mubr.bf16.gmra.mrb[0].mxu0 %v8800
  %v11144 = vpop.f32.mrb[0].mxu0
  %v11145 = vadd.f32 %v10856, %v11144
  %v11146 = vpop.f32.mrb[0].mxu0
  %v11147 = vpop.f32.mrb[0].mxu0
  %v11148 = vadd.f32 %v10859, %v11147
  %v11149 = vpop.f32.mrb[0].mxu0
  %11150 = vmatprep.mubr.bf16.mxu0 0
  %11151 = vmatmul.mubr.bf16.gmra.mrb[0].mxu0 %v8803
  %v11152 = vpop.f32.mrb[0].mxu0
  %v11153 = vadd.f32 %v10864, %v11152
  %v11154 = vpop.f32.mrb[0].mxu0
  %v11155 = vpop.f32.mrb[0].mxu0
  %v11156 = vadd.f32 %v10867, %v11155
  %v11157 = vpop.f32.mrb[0].mxu0
  %11158 = vmatprep.mubr.bf16.mxu0 0
  %11159 = vmatmul.mubr.bf16.gmra.mrb[0].mxu0 %v8806
  %v11160 = vpop.f32.mrb[0].mxu0
  %v11161 = vadd.f32 %v10872, %v11160
  %v11162 = vpop.f32.mrb[0].mxu0
  %v11163 = vpop.f32.mrb[0].mxu0
  %v11164 = vadd.f32 %v10875, %v11163
  %v11165 = vpop.f32.mrb[0].mxu0
  %11166 = vmatprep.mubr.bf16.mxu0 0
  %11167 = vmatmul.mubr.bf16.gmra.mrb[0].mxu0 %v8809
  %v11168 = vpop.f32.mrb[0].mxu0
  %v11169 = vadd.f32 %v10880, %v11168
  %v11170 = vpop.f32.mrb[0].mxu0
  %v11171 = vpop.f32.mrb[0].mxu0
  %v11172 = vadd.f32 %v10883, %v11171
  %v11173 = vpop.f32.mrb[0].mxu0
  %11174 = vmatprep.mubr.bf16.mxu0 0
  %11175 = vmatmul.mubr.bf16.gmra.mrb[0].mxu0 %v8812
  %v11176 = vpop.f32.mrb[0].mxu0
  %v11177 = vadd.f32 %v10888, %v11176
  %v11178 = vpop.f32.mrb[0].mxu0
  %v11179 = vpop.f32.mrb[0].mxu0
  %v11180 = vadd.f32 %v10891, %v11179
  %v11181 = vpop.f32.mrb[0].mxu0
  %11182 = vmatprep.mubr.bf16.mxu0 0
  %11183 = vmatmul.mubr.bf16.gmra.mrb[0].mxu0 %v8815
  %v11184 = vpop.f32.mrb[0].mxu0
  %v11185 = vadd.f32 %v10896, %v11184
  %v11186 = vpop.f32.mrb[0].mxu0
  %v11187 = vpop.f32.mrb[0].mxu0
  %v11188 = vadd.f32 %v10899, %v11187
  %v11189 = vpop.f32.mrb[0].mxu0
  %11190 = vmatprep.mubr.bf16.mxu0 0
  %11191 = vmatmul.mubr.bf16.gmra.mrb[0].mxu0 %v8818
  %v11192 = vpop.f32.mrb[0].mxu0
  %v11193 = vadd.f32 %v10904, %v11192
  %v11194 = vpop.f32.mrb[0].mxu0
  %v11195 = vpop.f32.mrb[0].mxu0
  %v11196 = vadd.f32 %v10907, %v11195
  %v11197 = vpop.f32.mrb[0].mxu0
  %11198 = vmatprep.mubr.bf16.mxu0 0
  %11199 = vmatmul.mubr.bf16.gmra.mrb[0].mxu0 %v8821
  %v11200 = vpop.f32.mrb[0].mxu0
  %v11201 = vadd.f32 %v10912, %v11200
  %v11202 = vpop.f32.mrb[0].mxu0
  %v11203 = vpop.f32.mrb[0].mxu0
  %v11204 = vadd.f32 %v10915, %v11203
  %v11205 = vpop.f32.mrb[0].mxu0
  %11206 = vmatprep.mubr.bf16.mxu0 0
  %11207 = vmatmul.mubr.bf16.gmra.mrb[0].mxu0 %v8824
  %v11208 = vpop.f32.mrb[0].mxu0
  %v11209 = vadd.f32 %v10920, %v11208
  %v11210 = vpop.f32.mrb[0].mxu0
  %v11211 = vpop.f32.mrb[0].mxu0
  %v11212 = vadd.f32 %v10923, %v11211
  %v11213 = vpop.f32.mrb[0].mxu0
  %11214 = vmatprep.mubr.bf16.mxu0 0
  %11215 = vmatmul.mubr.bf16.gmra.mrb[0].mxu0 %v8827
  %v11216 = vpop.f32.mrb[0].mxu0
  %v11217 = vadd.f32 %v10928, %v11216
  %v11218 = vpop.f32.mrb[0].mxu0
  %v11219 = vpop.f32.mrb[0].mxu0
  %v11220 = vadd.f32 %v10931, %v11219
  %v11221 = vpop.f32.mrb[0].mxu0
  %11222 = vmatprep.mubr.bf16.mxu0 0
  %11223 = vmatmul.mubr.bf16.gmra.mrb[0].mxu0 %v8830
  %v11224 = vpop.f32.mrb[0].mxu0
  %v11225 = vadd.f32 %v10936, %v11224
  %v11226 = vpop.f32.mrb[0].mxu0
  %v11227 = vpop.f32.mrb[0].mxu0
  %v11228 = vadd.f32 %v10939, %v11227
  %v11229 = vpop.f32.mrb[0].mxu0
  %11230 = vmatprep.mubr.bf16.mxu0 0
  %11231 = vmatmul.mubr.bf16.gmra.mrb[0].mxu0 %v8833
  %v11232 = vpop.f32.mrb[0].mxu0
  %v11233 = vadd.f32 %v10944, %v11232
  %v11234 = vpop.f32.mrb[0].mxu0
  %v11235 = vpop.f32.mrb[0].mxu0
  %v11236 = vadd.f32 %v10947, %v11235
  %v11237 = vpop.f32.mrb[0].mxu0
  %11238 = vmatprep.mubr.bf16.mxu0 0
  %11239 = vmatmul.mubr.bf16.gmra.mrb[0].mxu0 %v8836
  %v11240 = vpop.f32.mrb[0].mxu0
  %v11241 = vadd.f32 %v10952, %v11240
  %v11242 = vpop.f32.mrb[0].mxu0
  %v11243 = vpop.f32.mrb[0].mxu0
  %v11244 = vadd.f32 %v10955, %v11243
  %v11245 = vpop.f32.mrb[0].mxu0
  %11246 = vmatprep.mubr.bf16.mxu0 0
  %11247 = vmatmul.mubr.bf16.gmra.mrb[0].mxu0 %v8839
  %v11248 = vpop.f32.mrb[0].mxu0
  %v11249 = vadd.f32 %v10960, %v11248
  %v11250 = vpop.f32.mrb[0].mxu0
  %v11251 = vpop.f32.mrb[0].mxu0
  %v11252 = vadd.f32 %v10963, %v11251
  %v11253 = vpop.f32.mrb[0].mxu0
  %11254 = vmatprep.mubr.bf16.mxu0 0
  %11255 = vmatmul.mubr.bf16.gmra.mrb[0].mxu0 %v8842
  %v11256 = vpop.f32.mrb[0].mxu0
  %v11257 = vadd.f32 %v10968, %v11256
  %v11258 = vpop.f32.mrb[0].mxu0
  %v11259 = vpop.f32.mrb[0].mxu0
  %v11260 = vadd.f32 %v10971, %v11259
  %v11261 = vpop.f32.mrb[0].mxu0
  %11262 = vmatprep.mubr.bf16.mxu0 0
  %11263 = vmatmul.mubr.bf16.gmra.mrb[0].mxu0 %v8845
  %v11264 = vpop.f32.mrb[0].mxu0
  %v11265 = vadd.f32 %v10976, %v11264
  %v11266 = vpop.f32.mrb[0].mxu0
  %v11267 = vpop.f32.mrb[0].mxu0
  %v11268 = vadd.f32 %v10979, %v11267
  %v11269 = vpop.f32.mrb[0].mxu0
  %11270 = vmatprep.mubr.bf16.mxu0 0
  %11271 = vmatmul.mubr.bf16.gmra.mrb[0].mxu0 %v8848
  %v11272 = vpop.f32.mrb[0].mxu0
  %v11273 = vadd.f32 %v10984, %v11272
  %v11274 = vpop.f32.mrb[0].mxu0
  %v11275 = vpop.f32.mrb[0].mxu0
  %v11276 = vadd.f32 %v10987, %v11275
  %v11277 = vpop.f32.mrb[0].mxu0
  %11278 = vmatprep.mubr.bf16.mxu0 0
  %11279 = vmatmul.mubr.bf16.gmra.mrb[0].mxu0 %v8851
  %v11280 = vpop.f32.mrb[0].mxu0
  %v11281 = vadd.f32 %v10992, %v11280
  %v11282 = vpop.f32.mrb[0].mxu0
  %v11283 = vpop.f32.mrb[0].mxu0
  %v11284 = vadd.f32 %v10995, %v11283
  %v11285 = vpop.f32.mrb[0].mxu0
  %11286 = vmatprep.mubr.bf16.mxu0 0
  %11287 = vmatmul.mubr.bf16.gmra.mrb[0].mxu0 %v8854
  %v11288 = vpop.f32.mrb[0].mxu0
  %v11289 = vadd.f32 %v11000, %v11288
  %v11290 = vpop.f32.mrb[0].mxu0
  %v11291 = vpop.f32.mrb[0].mxu0
  %v11292 = vadd.f32 %v11003, %v11291
  %v11293 = vpop.f32.mrb[0].mxu0
  %11294 = vmatprep.mubr.bf16.mxu0 0
  %11295 = vmatmul.mubr.bf16.gmra.mrb[0].mxu0 %v8857
  %v11296 = vpop.f32.mrb[0].mxu0
  %v11297 = vadd.f32 %v11008, %v11296
  %v11298 = vpop.f32.mrb[0].mxu0
  %v11299 = vpop.f32.mrb[0].mxu0
  %v11300 = vadd.f32 %v11011, %v11299
  %v11301 = vpop.f32.mrb[0].mxu0
  %11302 = vmatprep.mubr.bf16.mxu0 0
  %11303 = vmatmul.mubr.bf16.gmra.mrb[0].mxu0 %v8860
  %v11304 = vpop.f32.mrb[0].mxu0
  %v11305 = vadd.f32 %v11016, %v11304
  %v11306 = vpop.f32.mrb[0].mxu0
  %v11307 = vpop.f32.mrb[0].mxu0
  %v11308 = vadd.f32 %v11019, %v11307
  %v11309 = vpop.f32.mrb[0].mxu0
  %11310 = vmatprep.mubr.bf16.mxu0 0
  %11311 = vmatmul.mubr.bf16.gmra.mrb[0].mxu0 %v8863
  %v11312 = vpop.f32.mrb[0].mxu0
  %v11313 = vadd.f32 %v11024, %v11312
  %v11314 = vpop.f32.mrb[0].mxu0
  %v11315 = vpop.f32.mrb[0].mxu0
  %v11316 = vadd.f32 %v11027, %v11315
  %v11317 = vpop.f32.mrb[0].mxu0
  %11318 = vmatprep.mubr.bf16.mxu0 0
  %11319 = vmatmul.mubr.bf16.gmra.mrb[0].mxu0 %v8866
  %v11320 = vpop.f32.mrb[0].mxu0
  %v11321 = vadd.f32 %v11032, %v11320
  %v11322 = vpop.f32.mrb[0].mxu0
  %v11323 = vpop.f32.mrb[0].mxu0
  %v11324 = vadd.f32 %v11035, %v11323
  %v11325 = vpop.f32.mrb[0].mxu0
  %11326 = vmatprep.mubr.bf16.mxu0 0
  %11327 = vmatmul.mubr.bf16.gmra.mrb[0].mxu0 %v8869
  %v11328 = vpop.f32.mrb[0].mxu0
  %v11329 = vadd.f32 %v11040, %v11328
  %v11330 = vpop.f32.mrb[0].mxu0
  %v11331 = vpop.f32.mrb[0].mxu0
  %v11332 = vadd.f32 %v11043, %v11331
  %v11333 = vpop.f32.mrb[0].mxu0
  %11334 = vmatprep.mubr.bf16.mxu0 0
  %11335 = vmatmul.mubr.bf16.gmra.mrb[0].mxu0 %v8872
  %v11336 = vpop.f32.mrb[0].mxu0
  %v11337 = vadd.f32 %v11048, %v11336
  %v11338 = vpop.f32.mrb[0].mxu0
  %v11339 = vpop.f32.mrb[0].mxu0
  %v11340 = vadd.f32 %v11051, %v11339
  %v11341 = vpop.f32.mrb[0].mxu0
  %11342 = vmatprep.mubr.bf16.mxu0 0
  %11343 = vmatmul.mubr.bf16.gmra.mrb[0].mxu0 %v8875
  %v11344 = vpop.f32.mrb[0].mxu0
  %v11345 = vadd.f32 %v11056, %v11344
  %v11346 = vpop.f32.mrb[0].mxu0
  %v11347 = vpop.f32.mrb[0].mxu0
  %v11348 = vadd.f32 %v11059, %v11347
  %v11349 = vpop.f32.mrb[0].mxu0
  %11350 = vmatprep.mubr.bf16.mxu0 0
  %11351 = vmatmul.mubr.bf16.gmra.mrb[0].mxu0 %v8878
  %v11352 = vpop.f32.mrb[0].mxu0
  %v11353 = vadd.f32 %v11064, %v11352
  %v11354 = vpop.f32.mrb[0].mxu0
  %v11355 = vpop.f32.mrb[0].mxu0
  %v11356 = vadd.f32 %v11067, %v11355
  %v11357 = vpop.f32.mrb[0].mxu0
  %11358 = vmatprep.mubr.bf16.mxu0 0
  %11359 = vmatmul.mubr.bf16.gmra.mrb[0].mxu0 %v8881
  %v11360 = vpop.f32.mrb[0].mxu0
  %v11361 = vadd.f32 %v11072, %v11360
  %v11362 = vpop.f32.mrb[0].mxu0
  %v11363 = vpop.f32.mrb[0].mxu0
  %v11364 = vadd.f32 %v11075, %v11363
  %v11365 = vpop.f32.mrb[0].mxu0
  %11366 = vmatprep.mubr.bf16.mxu0 0
  %11367 = vmatmul.mubr.bf16.gmra.mrb[0].mxu0 %v8884
  %v11368 = vpop.f32.mrb[0].mxu0
  %v11369 = vadd.f32 %v11080, %v11368
  %v11370 = vpop.f32.mrb[0].mxu0
  %v11371 = vpop.f32.mrb[0].mxu0
  %v11372 = vadd.f32 %v11083, %v11371
  %v11373 = vpop.f32.mrb[0].mxu0
  %11374 = vmatprep.mubr.bf16.mxu0 0
  %11375 = vmatmul.mubr.bf16.gmra.mrb[0].mxu0 %v8887
  %v11376 = vpop.f32.mrb[0].mxu0
  %v11377 = vadd.f32 %v11088, %v11376
  %v11378 = vpop.f32.mrb[0].mxu0
  %v11379 = vpop.f32.mrb[0].mxu0
  %v11380 = vadd.f32 %v11091, %v11379
  %v11381 = vpop.f32.mrb[0].mxu0
  %11382 = vmatprep.mubr.bf16.mxu0 0
  %11383 = vmatmul.mubr.bf16.gmra.mrb[0].mxu0 %v8890
  %v11384 = vpop.f32.mrb[0].mxu0
  %v11385 = vadd.f32 %v11096, %v11384
  %v11386 = vpop.f32.mrb[0].mxu0
  %v11387 = vpop.f32.mrb[0].mxu0
  %v11388 = vadd.f32 %v11099, %v11387
  %v11389 = vpop.f32.mrb[0].mxu0
  %11390 = vdwg.mxu0
  %v11391 = vld [vmem:[%s4760] sm:$0xf]
  %v11392 = vld [vmem:[%s4760 + $0x4] sm:$0xf]
  %v11393 = vld [vmem:[%s4760 + $0x8] sm:$0x1]
  %v11394 = vld [vmem:[%s4760 + $0xc] sm:$0xf]
  %v11395 = vld [vmem:[%s4760 + $0x10] sm:$0xf]
  %v11396 = vld [vmem:[%s4760 + $0x14] sm:$0x1]
  %v11397 = vld [vmem:[%s4760 + $0x18] sm:$0xf]
  %v11398 = vld [vmem:[%s4760 + $0x1c] sm:$0xf]
  %v11399 = vld [vmem:[%s4760 + $0x20] sm:$0x1]
  %v11400 = vld [vmem:[%s4760 + $0x24] sm:$0xf]
  %v11401 = vld [vmem:[%s4760 + $0x28] sm:$0xf]
  %v11402 = vld [vmem:[%s4760 + $0x2c] sm:$0x1]
  %v11403 = vld [vmem:[%s4760 + $0x30] sm:$0xf]
  %v11404 = vld [vmem:[%s4760 + $0x34] sm:$0xf]
  %v11405 = vld [vmem:[%s4760 + $0x38] sm:$0x1]
  %v11406 = vld [vmem:[%s4760 + $0x3c] sm:$0xf]
  %v11407 = vld [vmem:[%s4760 + $0x40] sm:$0xf]
  %v11408 = vld [vmem:[%s4760 + $0x44] sm:$0x1]
  %v11409 = vld [vmem:[%s4760 + $0x48] sm:$0xf]
  %v11410 = vld [vmem:[%s4760 + $0x4c] sm:$0xf]
  %v11411 = vld [vmem:[%s4760 + $0x50] sm:$0x1]
  %v11412 = vld [vmem:[%s4760 + $0x54] sm:$0xf]
  %v11413 = vld [vmem:[%s4760 + $0x58] sm:$0xf]
  %v11414 = vld [vmem:[%s4760 + $0x5c] sm:$0x1]
  %v11415 = vld [vmem:[%s4760 + $0x60] sm:$0xf]
  %v11416 = vld [vmem:[%s4760 + $0x64] sm:$0xf]
  %v11417 = vld [vmem:[%s4760 + $0x68] sm:$0x1]
  %v11418 = vld [vmem:[%s4760 + $0x6c] sm:$0xf]
  %v11419 = vld [vmem:[%s4760 + $0x70] sm:$0xf]
  %v11420 = vld [vmem:[%s4760 + $0x74] sm:$0x1]
  %v11421 = vld [vmem:[%s4760 + $0x78] sm:$0xf]
  %v11422 = vld [vmem:[%s4760 + $0x7c] sm:$0xf]
  %v11423 = vld [vmem:[%s4760 + $0x80] sm:$0x1]
  %v11424 = vld [vmem:[%s4760 + $0x84] sm:$0xf]
  %v11425 = vld [vmem:[%s4760 + $0x88] sm:$0xf]
  %v11426 = vld [vmem:[%s4760 + $0x8c] sm:$0x1]
  %v11427 = vld [vmem:[%s4760 + $0x90] sm:$0xf]
  %v11428 = vld [vmem:[%s4760 + $0x94] sm:$0xf]
  %v11429 = vld [vmem:[%s4760 + $0x98] sm:$0x1]
  %v11430 = vld [vmem:[%s4760 + $0x9c] sm:$0xf]
  %v11431 = vld [vmem:[%s4760 + $0xa0] sm:$0xf]
  %v11432 = vld [vmem:[%s4760 + $0xa4] sm:$0x1]
  %v11433 = vld [vmem:[%s4760 + $0xa8] sm:$0xf]
  %v11434 = vld [vmem:[%s4760 + $0xac] sm:$0xf]
  %v11435 = vld [vmem:[%s4760 + $0xb0] sm:$0x1]
  %v11436 = vld [vmem:[%s4760 + $0xb4] sm:$0xf]
  %v11437 = vld [vmem:[%s4760 + $0xb8] sm:$0xf]
  %v11438 = vld [vmem:[%s4760 + $0xbc] sm:$0x1]
  %v11439 = vld [vmem:[%s4760 + $0xd8] sm:$0xf]
  %v11440 = vld [vmem:[%s4760 + $0xdc] sm:$0xf]
  %v11441 = vld [vmem:[%s4760 + $0xe0] sm:$0x1]
  %v11442 = vld [vmem:[%s4760 + $0xe4] sm:$0xf]
  %v11443 = vld [vmem:[%s4760 + $0xe8] sm:$0xf]
  %v11444 = vld [vmem:[%s4760 + $0xec] sm:$0x1]
  %v11445 = vld [vmem:[%s4760 + $0xf0] sm:$0xf]
  %v11446 = vld [vmem:[%s4760 + $0xf4] sm:$0xf]
  %v11447 = vld [vmem:[%s4760 + $0xf8] sm:$0x1]
  %v11448 = vld [vmem:[%s4760 + $0xfc] sm:$0xf]
  %v11449 = vld [vmem:[%s4760 + $0x100] sm:$0xf]
  %v11450 = vld [vmem:[%s4760 + $0x104] sm:$0x1]
  %v11451 = vld [vmem:[%s4760 + $0x108] sm:$0xf]
  %v11452 = vld [vmem:[%s4760 + $0x10c] sm:$0xf]
  %v11453 = vld [vmem:[%s4760 + $0x110] sm:$0x1]
  %v11454 = vld [vmem:[%s4760 + $0x114] sm:$0xf]
  %v11455 = vld [vmem:[%s4760 + $0x118] sm:$0xf]
  %v11456 = vld [vmem:[%s4760 + $0x11c] sm:$0x1]
  %v11457 = vld [vmem:[%s4760 + $0x120] sm:$0xf]
  %v11458 = vld [vmem:[%s4760 + $0x124] sm:$0xf]
  %v11459 = vld [vmem:[%s4760 + $0x128] sm:$0x1]
  %v11460 = vld [vmem:[%s4760 + $0x12c] sm:$0xf]
  %v11461 = vld [vmem:[%s4760 + $0x130] sm:$0xf]
  %v11462 = vld [vmem:[%s4760 + $0x134] sm:$0x1]
  %v11463 = vld [vmem:[%s4760 + $0x138] sm:$0xf]
  %v11464 = vld [vmem:[%s4760 + $0x13c] sm:$0xf]
  %v11465 = vld [vmem:[%s4760 + $0x140] sm:$0x1]
  %v11466 = vld [vmem:[%s4760 + $0x144] sm:$0xf]
  %v11467 = vld [vmem:[%s4760 + $0x148] sm:$0xf]
  %v11468 = vld [vmem:[%s4760 + $0x14c] sm:$0x1]
  %v11469 = vld [vmem:[%s4760 + $0x150] sm:$0xf]
  %v11470 = vld [vmem:[%s4760 + $0x154] sm:$0xf]
  %v11471 = vld [vmem:[%s4760 + $0x158] sm:$0x1]
  %v11472 = vld [vmem:[%s4760 + $0x15c] sm:$0xf]
  %v11473 = vld [vmem:[%s4760 + $0x160] sm:$0xf]
  %v11474 = vld [vmem:[%s4760 + $0x164] sm:$0x1]
  %v11475 = vld [vmem:[%s4760 + $0x168] sm:$0xf]
  %v11476 = vld [vmem:[%s4760 + $0x16c] sm:$0xf]
  %v11477 = vld [vmem:[%s4760 + $0x170] sm:$0x1]
  %v11478 = vld [vmem:[%s4760 + $0x174] sm:$0xf]
  %v11479 = vld [vmem:[%s4760 + $0x178] sm:$0xf]
  %v11480 = vld [vmem:[%s4760 + $0x17c] sm:$0x1]
  %v11481 = vld [vmem:[%s4760 + $0x180] sm:$0xf]
  %v11482 = vld [vmem:[%s4760 + $0x184] sm:$0xf]
  %v11483 = vld [vmem:[%s4760 + $0x188] sm:$0x1]
  %v11484 = vld [vmem:[%s4760 + $0x18c] sm:$0xf]
  %v11485 = vld [vmem:[%s4760 + $0x190] sm:$0xf]
  %v11486 = vld [vmem:[%s4760 + $0x194] sm:$0x1]
  %v11551 = vunpack.c.l.b16 %v11391
  %v11552 = vunpack.c.l.b16 %v11392
  %v11553 = vunpack.c.l.b16 %v11394
  %v11554 = vunpack.c.l.b16 %v11395
  %v11555 = vunpack.c.l.b16 %v11397
  %v11556 = vunpack.c.l.b16 %v11398
  %v11557 = vunpack.c.l.b16 %v11400
  %v11558 = vunpack.c.l.b16 %v11401
  %v11559 = vunpack.c.l.b16 %v11403
  %v11560 = vunpack.c.l.b16 %v11404
  %v11561 = vunpack.c.l.b16 %v11406
  %v11562 = vunpack.c.l.b16 %v11407
  %v11563 = vunpack.c.l.b16 %v11409
  %v11564 = vunpack.c.l.b16 %v11410
  %v11565 = vunpack.c.l.b16 %v11412
  %v11566 = vunpack.c.l.b16 %v11413
  %v11567 = vunpack.c.l.b16 %v11415
  %v11568 = vunpack.c.l.b16 %v11416
  %v11569 = vunpack.c.l.b16 %v11418
  %v11570 = vunpack.c.l.b16 %v11419
  %v11571 = vunpack.c.l.b16 %v11421
  %v11572 = vunpack.c.l.b16 %v11422
  %v11573 = vunpack.c.l.b16 %v11424
  %v11574 = vunpack.c.l.b16 %v11425
  %v11575 = vunpack.c.l.b16 %v11427
  %v11576 = vunpack.c.l.b16 %v11428
  %v11577 = vunpack.c.l.b16 %v11430
  %v11578 = vunpack.c.l.b16 %v11431
  %v11579 = vunpack.c.l.b16 %v11433
  %v11580 = vunpack.c.l.b16 %v11434
  %v11581 = vunpack.c.l.b16 %v11436
  %v11582 = vunpack.c.l.b16 %v11437
  %v11583 = vunpack.c.l.b16 %v11439
  %v11584 = vunpack.c.l.b16 %v11440
  %v11585 = vunpack.c.l.b16 %v11442
  %v11586 = vunpack.c.l.b16 %v11443
  %v11587 = vunpack.c.l.b16 %v11445
  %v11588 = vunpack.c.l.b16 %v11446
  %v11589 = vunpack.c.l.b16 %v11448
  %v11590 = vunpack.c.l.b16 %v11449
  %v11591 = vunpack.c.l.b16 %v11451
  %v11592 = vunpack.c.l.b16 %v11452
  %v11593 = vunpack.c.l.b16 %v11454
  %v11594 = vunpack.c.l.b16 %v11455
  %v11595 = vunpack.c.l.b16 %v11457
  %v11596 = vunpack.c.l.b16 %v11458
  %v11597 = vunpack.c.l.b16 %v11460
  %v11598 = vunpack.c.l.b16 %v11461
  %v11599 = vunpack.c.l.b16 %v11463
  %v11600 = vunpack.c.l.b16 %v11464
  %v11601 = vunpack.c.l.b16 %v11466
  %v11602 = vunpack.c.l.b16 %v11467
  %v11603 = vunpack.c.l.b16 %v11469
  %v11604 = vunpack.c.l.b16 %v11470
  %v11605 = vunpack.c.l.b16 %v11472
  %v11606 = vunpack.c.l.b16 %v11473
  %v11607 = vunpack.c.l.b16 %v11475
  %v11608 = vunpack.c.l.b16 %v11476
  %v11609 = vunpack.c.l.b16 %v11478
  %v11610 = vunpack.c.l.b16 %v11479
  %v11611 = vunpack.c.l.b16 %v11481
  %v11612 = vunpack.c.l.b16 %v11482
  %v11613 = vunpack.c.l.b16 %v11484
  %v11614 = vunpack.c.l.b16 %v11485
  %v11615 = vpack.c.b16 %v11552, %v11551
  %v11616 = vpack.c.b16 %v11554, %v11553
  %v11617 = vpack.c.b16 %v11556, %v11555
  %v11618 = vpack.c.b16 %v11558, %v11557
  %v11619 = vpack.c.b16 %v11560, %v11559
  %v11620 = vpack.c.b16 %v11562, %v11561
  %v11621 = vpack.c.b16 %v11564, %v11563
  %v11622 = vpack.c.b16 %v11566, %v11565
  %v11623 = vpack.c.b16 %v11568, %v11567
  %v11624 = vpack.c.b16 %v11570, %v11569
  %v11625 = vpack.c.b16 %v11572, %v11571
  %v11626 = vpack.c.b16 %v11574, %v11573
  %v11627 = vpack.c.b16 %v11576, %v11575
  %v11628 = vpack.c.b16 %v11578, %v11577
  %v11629 = vpack.c.b16 %v11580, %v11579
  %v11630 = vpack.c.b16 %v11582, %v11581
  %v11631 = vpack.c.b16 %v11584, %v11583
  %v11632 = vpack.c.b16 %v11586, %v11585
  %v11633 = vpack.c.b16 %v11588, %v11587
  %v11634 = vpack.c.b16 %v11590, %v11589
  %v11635 = vpack.c.b16 %v11592, %v11591
  %v11636 = vpack.c.b16 %v11594, %v11593
  %v11637 = vpack.c.b16 %v11596, %v11595
  %v11638 = vpack.c.b16 %v11598, %v11597
  %v11639 = vpack.c.b16 %v11600, %v11599
  %v11640 = vpack.c.b16 %v11602, %v11601
  %v11641 = vpack.c.b16 %v11604, %v11603
  %v11642 = vpack.c.b16 %v11606, %v11605
  %v11643 = vpack.c.b16 %v11608, %v11607
  %v11644 = vpack.c.b16 %v11610, %v11609
  %v11645 = vpack.c.b16 %v11612, %v11611
  %v11646 = vpack.c.b16 %v11614, %v11613
  %v11711 = vunpack.c.l.b16 %v11393
  %v11712 = vunpack.c.l.b16 %v11396
  %v11713 = vunpack.c.l.b16 %v11399
  %v11714 = vunpack.c.l.b16 %v11402
  %v11715 = vunpack.c.l.b16 %v11405
  %v11716 = vunpack.c.l.b16 %v11408
  %v11717 = vunpack.c.l.b16 %v11411
  %v11718 = vunpack.c.l.b16 %v11414
  %v11719 = vunpack.c.l.b16 %v11417
  %v11720 = vunpack.c.l.b16 %v11420
  %v11721 = vunpack.c.l.b16 %v11423
  %v11722 = vunpack.c.l.b16 %v11426
  %v11723 = vunpack.c.l.b16 %v11429
  %v11724 = vunpack.c.l.b16 %v11432
  %v11725 = vunpack.c.l.b16 %v11435
  %v11726 = vunpack.c.l.b16 %v11438
  %v11727 = vunpack.c.l.b16 %v11441
  %v11728 = vunpack.c.l.b16 %v11444
  %v11729 = vunpack.c.l.b16 %v11447
  %v11730 = vunpack.c.l.b16 %v11450
  %v11731 = vunpack.c.l.b16 %v11453
  %v11732 = vunpack.c.l.b16 %v11456
  %v11733 = vunpack.c.l.b16 %v11459
  %v11734 = vunpack.c.l.b16 %v11462
  %v11735 = vunpack.c.l.b16 %v11465
  %v11736 = vunpack.c.l.b16 %v11468
  %v11737 = vunpack.c.l.b16 %v11471
  %v11738 = vunpack.c.l.b16 %v11474
  %v11739 = vunpack.c.l.b16 %v11477
  %v11740 = vunpack.c.l.b16 %v11480
  %v11741 = vunpack.c.l.b16 %v11483
  %v11742 = vunpack.c.l.b16 %v11486
  %v11743 = vpack.c.b16 %v11711, %v11711
  %v11744 = vpack.c.b16 %v11712, %v11712
  %v11745 = vpack.c.b16 %v11713, %v11713
  %v11746 = vpack.c.b16 %v11714, %v11714
  %v11747 = vpack.c.b16 %v11715, %v11715
  %v11748 = vpack.c.b16 %v11716, %v11716
  %v11749 = vpack.c.b16 %v11717, %v11717
  %v11750 = vpack.c.b16 %v11718, %v11718
  %v11751 = vpack.c.b16 %v11719, %v11719
  %v11752 = vpack.c.b16 %v11720, %v11720
  %v11753 = vpack.c.b16 %v11721, %v11721
  %v11754 = vpack.c.b16 %v11722, %v11722
  %v11755 = vpack.c.b16 %v11723, %v11723
  %v11756 = vpack.c.b16 %v11724, %v11724
  %v11757 = vpack.c.b16 %v11725, %v11725
  %v11758 = vpack.c.b16 %v11726, %v11726
  %v11759 = vpack.c.b16 %v11727, %v11727
  %v11760 = vpack.c.b16 %v11728, %v11728
  %v11761 = vpack.c.b16 %v11729, %v11729
  %v11762 = vpack.c.b16 %v11730, %v11730
  %v11763 = vpack.c.b16 %v11731, %v11731
  %v11764 = vpack.c.b16 %v11732, %v11732
  %v11765 = vpack.c.b16 %v11733, %v11733
  %v11766 = vpack.c.b16 %v11734, %v11734
  %v11767 = vpack.c.b16 %v11735, %v11735
  %v11768 = vpack.c.b16 %v11736, %v11736
  %v11769 = vpack.c.b16 %v11737, %v11737
  %v11770 = vpack.c.b16 %v11738, %v11738
  %v11771 = vpack.c.b16 %v11739, %v11739
  %v11772 = vpack.c.b16 %v11740, %v11740
  %v11773 = vpack.c.b16 %v11741, %v11741
  %v11774 = vpack.c.b16 %v11742, %v11742
  %v11776 = vshrl.u32 %v11615, 16
  %v11778 = vshll.u32 %v11615, 16
  %v11780 = vrot.slane %v11778, 1
  %v11781 = vor.u32 %v11776, %v11780
  %v11783 = vshll.u32 %v11743, 16
  %v11785 = vrot.slane %v11783, 1
  %v11786 = vsel %vm1746, %v11781, %v11785
  %v11788 = vshrl.u32 %v11616, 16
  %v11790 = vshll.u32 %v11616, 16
  %v11792 = vrot.slane %v11790, 1
  %v11793 = vor.u32 %v11788, %v11792
  %v11795 = vshll.u32 %v11744, 16
  %v11797 = vrot.slane %v11795, 1
  %v11798 = vsel %vm1746, %v11793, %v11797
  %v11800 = vshrl.u32 %v11617, 16
  %v11802 = vshll.u32 %v11617, 16
  %v11804 = vrot.slane %v11802, 1
  %v11805 = vor.u32 %v11800, %v11804
  %v11807 = vshll.u32 %v11745, 16
  %v11809 = vrot.slane %v11807, 1
  %v11810 = vsel %vm1746, %v11805, %v11809
  %v11812 = vshrl.u32 %v11618, 16
  %v11814 = vshll.u32 %v11618, 16
  %v11816 = vrot.slane %v11814, 1
  %v11817 = vor.u32 %v11812, %v11816
  %v11819 = vshll.u32 %v11746, 16
  %v11821 = vrot.slane %v11819, 1
  %v11822 = vsel %vm1746, %v11817, %v11821
  %v11824 = vshrl.u32 %v11619, 16
  %v11826 = vshll.u32 %v11619, 16
  %v11828 = vrot.slane %v11826, 1
  %v11829 = vor.u32 %v11824, %v11828
  %v11831 = vshll.u32 %v11747, 16
  %v11833 = vrot.slane %v11831, 1
  %v11834 = vsel %vm1746, %v11829, %v11833
  %v11836 = vshrl.u32 %v11620, 16
  %v11838 = vshll.u32 %v11620, 16
  %v11840 = vrot.slane %v11838, 1
  %v11841 = vor.u32 %v11836, %v11840
  %v11843 = vshll.u32 %v11748, 16
  %v11845 = vrot.slane %v11843, 1
  %v11846 = vsel %vm1746, %v11841, %v11845
  %v11848 = vshrl.u32 %v11621, 16
  %v11850 = vshll.u32 %v11621, 16
  %v11852 = vrot.slane %v11850, 1
  %v11853 = vor.u32 %v11848, %v11852
  %v11855 = vshll.u32 %v11749, 16
  %v11857 = vrot.slane %v11855, 1
  %v11858 = vsel %vm1746, %v11853, %v11857
  %v11860 = vshrl.u32 %v11622, 16
  %v11862 = vshll.u32 %v11622, 16
  %v11864 = vrot.slane %v11862, 1
  %v11865 = vor.u32 %v11860, %v11864
  %v11867 = vshll.u32 %v11750, 16
  %v11869 = vrot.slane %v11867, 1
  %v11870 = vsel %vm1746, %v11865, %v11869
  %v11872 = vshrl.u32 %v11623, 16
  %v11874 = vshll.u32 %v11623, 16
  %v11876 = vrot.slane %v11874, 1
  %v11877 = vor.u32 %v11872, %v11876
  %v11879 = vshll.u32 %v11751, 16
  %v11881 = vrot.slane %v11879, 1
  %v11882 = vsel %vm1746, %v11877, %v11881
  %v11884 = vshrl.u32 %v11624, 16
  %v11886 = vshll.u32 %v11624, 16
  %v11888 = vrot.slane %v11886, 1
  %v11889 = vor.u32 %v11884, %v11888
  %v11891 = vshll.u32 %v11752, 16
  %v11893 = vrot.slane %v11891, 1
  %v11894 = vsel %vm1746, %v11889, %v11893
  %v11896 = vshrl.u32 %v11625, 16
  %v11898 = vshll.u32 %v11625, 16
  %v11900 = vrot.slane %v11898, 1
  %v11901 = vor.u32 %v11896, %v11900
  %v11903 = vshll.u32 %v11753, 16
  %v11905 = vrot.slane %v11903, 1
  %v11906 = vsel %vm1746, %v11901, %v11905
  %v11908 = vshrl.u32 %v11626, 16
  %v11910 = vshll.u32 %v11626, 16
  %v11912 = vrot.slane %v11910, 1
  %v11913 = vor.u32 %v11908, %v11912
  %v11915 = vshll.u32 %v11754, 16
  %v11917 = vrot.slane %v11915, 1
  %v11918 = vsel %vm1746, %v11913, %v11917
  %v11920 = vshrl.u32 %v11627, 16
  %v11922 = vshll.u32 %v11627, 16
  %v11924 = vrot.slane %v11922, 1
  %v11925 = vor.u32 %v11920, %v11924
  %v11927 = vshll.u32 %v11755, 16
  %v11929 = vrot.slane %v11927, 1
  %v11930 = vsel %vm1746, %v11925, %v11929
  %v11932 = vshrl.u32 %v11628, 16
  %v11934 = vshll.u32 %v11628, 16
  %v11936 = vrot.slane %v11934, 1
  %v11937 = vor.u32 %v11932, %v11936
  %v11939 = vshll.u32 %v11756, 16
  %v11941 = vrot.slane %v11939, 1
  %v11942 = vsel %vm1746, %v11937, %v11941
  %v11944 = vshrl.u32 %v11629, 16
  %v11946 = vshll.u32 %v11629, 16
  %v11948 = vrot.slane %v11946, 1
  %v11949 = vor.u32 %v11944, %v11948
  %v11951 = vshll.u32 %v11757, 16
  %v11953 = vrot.slane %v11951, 1
  %v11954 = vsel %vm1746, %v11949, %v11953
  %v11956 = vshrl.u32 %v11630, 16
  %v11958 = vshll.u32 %v11630, 16
  %v11960 = vrot.slane %v11958, 1
  %v11961 = vor.u32 %v11956, %v11960
  %v11963 = vshll.u32 %v11758, 16
  %v11965 = vrot.slane %v11963, 1
  %v11966 = vsel %vm1746, %v11961, %v11965
  %v11968 = vshrl.u32 %v11631, 16
  %v11970 = vshll.u32 %v11631, 16
  %v11972 = vrot.slane %v11970, 1
  %v11973 = vor.u32 %v11968, %v11972
  %v11975 = vshll.u32 %v11759, 16
  %v11977 = vrot.slane %v11975, 1
  %v11978 = vsel %vm1746, %v11973, %v11977
  %v11980 = vshrl.u32 %v11632, 16
  %v11982 = vshll.u32 %v11632, 16
  %v11984 = vrot.slane %v11982, 1
  %v11985 = vor.u32 %v11980, %v11984
  %v11987 = vshll.u32 %v11760, 16
  %v11989 = vrot.slane %v11987, 1
  %v11990 = vsel %vm1746, %v11985, %v11989
  %v11992 = vshrl.u32 %v11633, 16
  %v11994 = vshll.u32 %v11633, 16
  %v11996 = vrot.slane %v11994, 1
  %v11997 = vor.u32 %v11992, %v11996
  %v11999 = vshll.u32 %v11761, 16
  %v12001 = vrot.slane %v11999, 1
  %v12002 = vsel %vm1746, %v11997, %v12001
  %v12004 = vshrl.u32 %v11634, 16
  %v12006 = vshll.u32 %v11634, 16
  %v12008 = vrot.slane %v12006, 1
  %v12009 = vor.u32 %v12004, %v12008
  %v12011 = vshll.u32 %v11762, 16
  %v12013 = vrot.slane %v12011, 1
  %v12014 = vsel %vm1746, %v12009, %v12013
  %v12016 = vshrl.u32 %v11635, 16
  %v12018 = vshll.u32 %v11635, 16
  %v12020 = vrot.slane %v12018, 1
  %v12021 = vor.u32 %v12016, %v12020
  %v12023 = vshll.u32 %v11763, 16
  %v12025 = vrot.slane %v12023, 1
  %v12026 = vsel %vm1746, %v12021, %v12025
  %v12028 = vshrl.u32 %v11636, 16
  %v12030 = vshll.u32 %v11636, 16
  %v12032 = vrot.slane %v12030, 1
  %v12033 = vor.u32 %v12028, %v12032
  %v12035 = vshll.u32 %v11764, 16
  %v12037 = vrot.slane %v12035, 1
  %v12038 = vsel %vm1746, %v12033, %v12037
  %v12040 = vshrl.u32 %v11637, 16
  %v12042 = vshll.u32 %v11637, 16
  %v12044 = vrot.slane %v12042, 1
  %v12045 = vor.u32 %v12040, %v12044
  %v12047 = vshll.u32 %v11765, 16
  %v12049 = vrot.slane %v12047, 1
  %v12050 = vsel %vm1746, %v12045, %v12049
  %v12052 = vshrl.u32 %v11638, 16
  %v12054 = vshll.u32 %v11638, 16
  %v12056 = vrot.slane %v12054, 1
  %v12057 = vor.u32 %v12052, %v12056
  %v12059 = vshll.u32 %v11766, 16
  %v12061 = vrot.slane %v12059, 1
  %v12062 = vsel %vm1746, %v12057, %v12061
  %v12064 = vshrl.u32 %v11639, 16
  %v12066 = vshll.u32 %v11639, 16
  %v12068 = vrot.slane %v12066, 1
  %v12069 = vor.u32 %v12064, %v12068
  %v12071 = vshll.u32 %v11767, 16
  %v12073 = vrot.slane %v12071, 1
  %v12074 = vsel %vm1746, %v12069, %v12073
  %v12076 = vshrl.u32 %v11640, 16
  %v12078 = vshll.u32 %v11640, 16
  %v12080 = vrot.slane %v12078, 1
  %v12081 = vor.u32 %v12076, %v12080
  %v12083 = vshll.u32 %v11768, 16
  %v12085 = vrot.slane %v12083, 1
  %v12086 = vsel %vm1746, %v12081, %v12085
  %v12088 = vshrl.u32 %v11641, 16
  %v12090 = vshll.u32 %v11641, 16
  %v12092 = vrot.slane %v12090, 1
  %v12093 = vor.u32 %v12088, %v12092
  %v12095 = vshll.u32 %v11769, 16
  %v12097 = vrot.slane %v12095, 1
  %v12098 = vsel %vm1746, %v12093, %v12097
  %v12100 = vshrl.u32 %v11642, 16
  %v12102 = vshll.u32 %v11642, 16
  %v12104 = vrot.slane %v12102, 1
  %v12105 = vor.u32 %v12100, %v12104
  %v12107 = vshll.u32 %v11770, 16
  %v12109 = vrot.slane %v12107, 1
  %v12110 = vsel %vm1746, %v12105, %v12109
  %v12112 = vshrl.u32 %v11643, 16
  %v12114 = vshll.u32 %v11643, 16
  %v12116 = vrot.slane %v12114, 1
  %v12117 = vor.u32 %v12112, %v12116
  %v12119 = vshll.u32 %v11771, 16
  %v12121 = vrot.slane %v12119, 1
  %v12122 = vsel %vm1746, %v12117, %v12121
  %v12124 = vshrl.u32 %v11644, 16
  %v12126 = vshll.u32 %v11644, 16
  %v12128 = vrot.slane %v12126, 1
  %v12129 = vor.u32 %v12124, %v12128
  %v12131 = vshll.u32 %v11772, 16
  %v12133 = vrot.slane %v12131, 1
  %v12134 = vsel %vm1746, %v12129, %v12133
  %v12136 = vshrl.u32 %v11645, 16
  %v12138 = vshll.u32 %v11645, 16
  %v12140 = vrot.slane %v12138, 1
  %v12141 = vor.u32 %v12136, %v12140
  %v12143 = vshll.u32 %v11773, 16
  %v12145 = vrot.slane %v12143, 1
  %v12146 = vsel %vm1746, %v12141, %v12145
  %v12148 = vshrl.u32 %v11646, 16
  %v12150 = vshll.u32 %v11646, 16
  %v12152 = vrot.slane %v12150, 1
  %v12153 = vor.u32 %v12148, %v12152
  %v12155 = vshll.u32 %v11774, 16
  %v12157 = vrot.slane %v12155, 1
  %v12158 = vsel %vm1746, %v12153, %v12157
  %v12191 = vrot.slane %v11615, 1
  %v12192 = vrot.slane %v11743, 1
  %v12193 = vsel %vm2163, %v12191, %v12192
  %v12194 = vrot.slane %v11616, 1
  %v12195 = vrot.slane %v11744, 1
  %v12196 = vsel %vm2163, %v12194, %v12195
  %v12197 = vrot.slane %v11617, 1
  %v12198 = vrot.slane %v11745, 1
  %v12199 = vsel %vm2163, %v12197, %v12198
  %v12200 = vrot.slane %v11618, 1
  %v12201 = vrot.slane %v11746, 1
  %v12202 = vsel %vm2163, %v12200, %v12201
  %v12203 = vrot.slane %v11619, 1
  %v12204 = vrot.slane %v11747, 1
  %v12205 = vsel %vm2163, %v12203, %v12204
  %v12206 = vrot.slane %v11620, 1
  %v12207 = vrot.slane %v11748, 1
  %v12208 = vsel %vm2163, %v12206, %v12207
  %v12209 = vrot.slane %v11621, 1
  %v12210 = vrot.slane %v11749, 1
  %v12211 = vsel %vm2163, %v12209, %v12210
  %v12212 = vrot.slane %v11622, 1
  %v12213 = vrot.slane %v11750, 1
  %v12214 = vsel %vm2163, %v12212, %v12213
  %v12215 = vrot.slane %v11623, 1
  %v12216 = vrot.slane %v11751, 1
  %v12217 = vsel %vm2163, %v12215, %v12216
  %v12218 = vrot.slane %v11624, 1
  %v12219 = vrot.slane %v11752, 1
  %v12220 = vsel %vm2163, %v12218, %v12219
  %v12221 = vrot.slane %v11625, 1
  %v12222 = vrot.slane %v11753, 1
  %v12223 = vsel %vm2163, %v12221, %v12222
  %v12224 = vrot.slane %v11626, 1
  %v12225 = vrot.slane %v11754, 1
  %v12226 = vsel %vm2163, %v12224, %v12225
  %v12227 = vrot.slane %v11627, 1
  %v12228 = vrot.slane %v11755, 1
  %v12229 = vsel %vm2163, %v12227, %v12228
  %v12230 = vrot.slane %v11628, 1
  %v12231 = vrot.slane %v11756, 1
  %v12232 = vsel %vm2163, %v12230, %v12231
  %v12233 = vrot.slane %v11629, 1
  %v12234 = vrot.slane %v11757, 1
  %v12235 = vsel %vm2163, %v12233, %v12234
  %v12236 = vrot.slane %v11630, 1
  %v12237 = vrot.slane %v11758, 1
  %v12238 = vsel %vm2163, %v12236, %v12237
  %v12239 = vrot.slane %v11631, 1
  %v12240 = vrot.slane %v11759, 1
  %v12241 = vsel %vm2163, %v12239, %v12240
  %v12242 = vrot.slane %v11632, 1
  %v12243 = vrot.slane %v11760, 1
  %v12244 = vsel %vm2163, %v12242, %v12243
  %v12245 = vrot.slane %v11633, 1
  %v12246 = vrot.slane %v11761, 1
  %v12247 = vsel %vm2163, %v12245, %v12246
  %v12248 = vrot.slane %v11634, 1
  %v12249 = vrot.slane %v11762, 1
  %v12250 = vsel %vm2163, %v12248, %v12249
  %v12251 = vrot.slane %v11635, 1
  %v12252 = vrot.slane %v11763, 1
  %v12253 = vsel %vm2163, %v12251, %v12252
  %v12254 = vrot.slane %v11636, 1
  %v12255 = vrot.slane %v11764, 1
  %v12256 = vsel %vm2163, %v12254, %v12255
  %v12257 = vrot.slane %v11637, 1
  %v12258 = vrot.slane %v11765, 1
  %v12259 = vsel %vm2163, %v12257, %v12258
  %v12260 = vrot.slane %v11638, 1
  %v12261 = vrot.slane %v11766, 1
  %v12262 = vsel %vm2163, %v12260, %v12261
  %v12263 = vrot.slane %v11639, 1
  %v12264 = vrot.slane %v11767, 1
  %v12265 = vsel %vm2163, %v12263, %v12264
  %v12266 = vrot.slane %v11640, 1
  %v12267 = vrot.slane %v11768, 1
  %v12268 = vsel %vm2163, %v12266, %v12267
  %v12269 = vrot.slane %v11641, 1
  %v12270 = vrot.slane %v11769, 1
  %v12271 = vsel %vm2163, %v12269, %v12270
  %v12272 = vrot.slane %v11642, 1
  %v12273 = vrot.slane %v11770, 1
  %v12274 = vsel %vm2163, %v12272, %v12273
  %v12275 = vrot.slane %v11643, 1
  %v12276 = vrot.slane %v11771, 1
  %v12277 = vsel %vm2163, %v12275, %v12276
  %v12278 = vrot.slane %v11644, 1
  %v12279 = vrot.slane %v11772, 1
  %v12280 = vsel %vm2163, %v12278, %v12279
  %v12281 = vrot.slane %v11645, 1
  %v12282 = vrot.slane %v11773, 1
  %v12283 = vsel %vm2163, %v12281, %v12282
  %v12284 = vrot.slane %v11646, 1
  %v12285 = vrot.slane %v11774, 1
  %v12286 = vsel %vm2163, %v12284, %v12285
  %v12319 = vld [vmem:[%s4 + $0x180] sm:$0xf]
  %v12320 = vld [vmem:[%s4 + $0x184] sm:$0xf]
  %v12321 = vld [vmem:[%s4 + $0x188] sm:$0xf]
  %v12322 = vld [vmem:[%s4 + $0x18c] sm:$0xf]
  %v12323 = vld [vmem:[%s4 + $0x190] sm:$0xf]
  %v12324 = vld [vmem:[%s4 + $0x194] sm:$0xf]
  %v12325 = vld [vmem:[%s4 + $0x198] sm:$0xf]
  %v12326 = vld [vmem:[%s4 + $0x19c] sm:$0xf]
  %v12327 = vld [vmem:[%s4 + $0x1a0] sm:$0xf]
  %v12328 = vld [vmem:[%s4 + $0x1a4] sm:$0xf]
  %v12329 = vld [vmem:[%s4 + $0x1a8] sm:$0xf]
  %v12330 = vld [vmem:[%s4 + $0x1ac] sm:$0xf]
  %v12331 = vld [vmem:[%s4 + $0x1b0] sm:$0xf]
  %v12332 = vld [vmem:[%s4 + $0x1b4] sm:$0xf]
  %v12333 = vld [vmem:[%s4 + $0x1b8] sm:$0xf]
  %v12334 = vld [vmem:[%s4 + $0x1bc] sm:$0xf]
  %v12335 = vld [vmem:[%s4 + $0x1c0] sm:$0xf]
  %v12336 = vld [vmem:[%s4 + $0x1c4] sm:$0xf]
  %v12337 = vld [vmem:[%s4 + $0x1c8] sm:$0xf]
  %v12338 = vld [vmem:[%s4 + $0x1cc] sm:$0xf]
  %v12339 = vld [vmem:[%s4 + $0x1d0] sm:$0xf]
  %v12340 = vld [vmem:[%s4 + $0x1d4] sm:$0xf]
  %v12341 = vld [vmem:[%s4 + $0x1d8] sm:$0xf]
  %v12342 = vld [vmem:[%s4 + $0x1dc] sm:$0xf]
  %v12343 = vld [vmem:[%s4 + $0x1e0] sm:$0xf]
  %v12344 = vld [vmem:[%s4 + $0x1e4] sm:$0xf]
  %v12345 = vld [vmem:[%s4 + $0x1e8] sm:$0xf]
  %v12346 = vld [vmem:[%s4 + $0x1ec] sm:$0xf]
  %v12347 = vld [vmem:[%s4 + $0x1f0] sm:$0xf]
  %v12348 = vld [vmem:[%s4 + $0x1f4] sm:$0xf]
  %v12349 = vld [vmem:[%s4 + $0x1f8] sm:$0xf]
  %v12350 = vld [vmem:[%s4 + $0x1fc] sm:$0xf]
  %v12351 = vld [vmem:[%s4 + $0x200] sm:$0xf]
  %v12352 = vld [vmem:[%s4 + $0x204] sm:$0xf]
  %v12353 = vld [vmem:[%s4 + $0x208] sm:$0xf]
  %v12354 = vld [vmem:[%s4 + $0x20c] sm:$0xf]
  %v12355 = vld [vmem:[%s4 + $0x210] sm:$0xf]
  %v12356 = vld [vmem:[%s4 + $0x214] sm:$0xf]
  %v12357 = vld [vmem:[%s4 + $0x218] sm:$0xf]
  %v12358 = vld [vmem:[%s4 + $0x21c] sm:$0xf]
  %v12359 = vld [vmem:[%s4 + $0x220] sm:$0xf]
  %v12360 = vld [vmem:[%s4 + $0x224] sm:$0xf]
  %v12361 = vld [vmem:[%s4 + $0x228] sm:$0xf]
  %v12362 = vld [vmem:[%s4 + $0x22c] sm:$0xf]
  %v12363 = vld [vmem:[%s4 + $0x230] sm:$0xf]
  %v12364 = vld [vmem:[%s4 + $0x234] sm:$0xf]
  %v12365 = vld [vmem:[%s4 + $0x238] sm:$0xf]
  %v12366 = vld [vmem:[%s4 + $0x23c] sm:$0xf]
  %v12415 = vunpack.c.l.b16 %v12319
  %v12416 = vunpack.c.l.b16 %v12320
  %v12417 = vunpack.c.l.b16 %v12321
  %v12418 = vunpack.c.l.b16 %v12322
  %v12419 = vunpack.c.l.b16 %v12323
  %v12420 = vunpack.c.l.b16 %v12324
  %v12421 = vunpack.c.l.b16 %v12325
  %v12422 = vunpack.c.l.b16 %v12326
  %v12423 = vunpack.c.l.b16 %v12327
  %v12424 = vunpack.c.l.b16 %v12328
  %v12425 = vunpack.c.l.b16 %v12329
  %v12426 = vunpack.c.l.b16 %v12330
  %v12427 = vunpack.c.l.b16 %v12331
  %v12428 = vunpack.c.l.b16 %v12332
  %v12429 = vunpack.c.l.b16 %v12333
  %v12430 = vunpack.c.l.b16 %v12334
  %v12431 = vunpack.c.l.b16 %v12335
  %v12432 = vunpack.c.l.b16 %v12336
  %v12433 = vunpack.c.l.b16 %v12337
  %v12434 = vunpack.c.l.b16 %v12338
  %v12435 = vunpack.c.l.b16 %v12339
  %v12436 = vunpack.c.l.b16 %v12340
  %v12437 = vunpack.c.l.b16 %v12341
  %v12438 = vunpack.c.l.b16 %v12342
  %v12439 = vunpack.c.l.b16 %v12343
  %v12440 = vunpack.c.l.b16 %v12344
  %v12441 = vunpack.c.l.b16 %v12345
  %v12442 = vunpack.c.l.b16 %v12346
  %v12443 = vunpack.c.l.b16 %v12347
  %v12444 = vunpack.c.l.b16 %v12348
  %v12445 = vunpack.c.l.b16 %v12349
  %v12446 = vunpack.c.l.b16 %v12350
  %v12447 = vunpack.c.l.b16 %v12351
  %v12448 = vunpack.c.l.b16 %v12352
  %v12449 = vunpack.c.l.b16 %v12353
  %v12450 = vunpack.c.l.b16 %v12354
  %v12451 = vunpack.c.l.b16 %v12355
  %v12452 = vunpack.c.l.b16 %v12356
  %v12453 = vunpack.c.l.b16 %v12357
  %v12454 = vunpack.c.l.b16 %v12358
  %v12455 = vunpack.c.l.b16 %v12359
  %v12456 = vunpack.c.l.b16 %v12360
  %v12457 = vunpack.c.l.b16 %v12361
  %v12458 = vunpack.c.l.b16 %v12362
  %v12459 = vunpack.c.l.b16 %v12363
  %v12460 = vunpack.c.l.b16 %v12364
  %v12461 = vunpack.c.l.b16 %v12365
  %v12462 = vunpack.c.l.b16 %v12366
  %v12463 = vpack.c.b16 %v12416, %v12415
  %v12464 = vpack.c.b16 %v12418, %v12417
  %v12465 = vpack.c.b16 %v12420, %v12419
  %v12466 = vpack.c.b16 %v12422, %v12421
  %v12467 = vpack.c.b16 %v12424, %v12423
  %v12468 = vpack.c.b16 %v12426, %v12425
  %v12469 = vpack.c.b16 %v12428, %v12427
  %v12470 = vpack.c.b16 %v12430, %v12429
  %v12471 = vpack.c.b16 %v12432, %v12431
  %v12472 = vpack.c.b16 %v12434, %v12433
  %v12473 = vpack.c.b16 %v12436, %v12435
  %v12474 = vpack.c.b16 %v12438, %v12437
  %v12475 = vpack.c.b16 %v12440, %v12439
  %v12476 = vpack.c.b16 %v12442, %v12441
  %v12477 = vpack.c.b16 %v12444, %v12443
  %v12478 = vpack.c.b16 %v12446, %v12445
  %v12479 = vpack.c.b16 %v12448, %v12447
  %v12480 = vpack.c.b16 %v12450, %v12449
  %v12481 = vpack.c.b16 %v12452, %v12451
  %v12482 = vpack.c.b16 %v12454, %v12453
  %v12483 = vpack.c.b16 %v12456, %v12455
  %v12484 = vpack.c.b16 %v12458, %v12457
  %v12485 = vpack.c.b16 %v12460, %v12459
  %v12486 = vpack.c.b16 %v12462, %v12461
  %12511 = vmatprep.subr.bf16.mxu0 0
  %12512 = vmatpush1.bf16.msra.mxu0 %v12463
  %12513 = vmatprep.subr.bf16.mxu0 0
  %12514 = vmatpush1.bf16.msra.mxu0 %v12464
  %12515 = vmatprep.subr.bf16.mxu0 0
  %12516 = vmatpush1.bf16.msra.mxu0 %v12465
  %12517 = vmatprep.subr.bf16.mxu0 0
  %12518 = vmatpush1.bf16.msra.mxu0 %v12466
  %12519 = vmatprep.subr.bf16.mxu0 0
  %12520 = vmatpush1.bf16.msra.mxu0 %v12467
  %12521 = vmatprep.subr.bf16.mxu0 0
  %12522 = vmatpush1.bf16.msra.mxu0 %v12468
  %12523 = vmatprep.subr.bf16.mxu0 0
  %12524 = vmatpush1.bf16.msra.mxu0 %v12469
  %12525 = vmatprep.subr.bf16.mxu0 0
  %12526 = vmatpush1.bf16.msra.mxu0 %v12470
  %12527 = vmatprep.subr.bf16.mxu0 0
  %12528 = vmatpush1.bf16.msra.mxu0 %v12471
  %12529 = vmatprep.subr.bf16.mxu0 0
  %12530 = vmatpush1.bf16.msra.mxu0 %v12472
  %12531 = vmatprep.subr.bf16.mxu0 0
  %12532 = vmatpush1.bf16.msra.mxu0 %v12473
  %12533 = vmatprep.subr.bf16.mxu0 0
  %12534 = vmatpush1.bf16.msra.mxu0 %v12474
  %12535 = vmatprep.subr.bf16.mxu0 0
  %12536 = vmatpush1.bf16.msra.mxu0 %v12475
  %12537 = vmatprep.subr.bf16.mxu0 0
  %12538 = vmatpush1.bf16.msra.mxu0 %v12476
  %12539 = vmatprep.subr.bf16.mxu0 0
  %12540 = vmatpush1.bf16.msra.mxu0 %v12477
  %12541 = vmatprep.subr.bf16.mxu0 0
  %12542 = vmatpush1.bf16.msra.mxu0 %v12478
  %12543 = vmatprep.mubr.bf16.mxu0 %v11786
  %12544 = vmatmul.mubr.bf16.gmra.mrb[0].mxu0 %v11615
  %v12545 = vpop.f32.mrb[0].mxu0
  %v12546 = vadd.f32 0.0, %v12545
  %v12547 = vpop.f32.mrb[0].mxu0
  %v12548 = vpop.f32.mrb[0].mxu0
  %v12549 = vadd.f32 0.0, %v12548
  %v12550 = vpop.f32.mrb[0].mxu0
  %12551 = vmatprep.mubr.bf16.mxu0 %v11798
  %12552 = vmatmul.mubr.bf16.gmra.mrb[0].mxu0 %v11616
  %v12553 = vpop.f32.mrb[0].mxu0
  %v12554 = vadd.f32 0.0, %v12553
  %v12555 = vpop.f32.mrb[0].mxu0
  %v12556 = vpop.f32.mrb[0].mxu0
  %v12557 = vadd.f32 0.0, %v12556
  %v12558 = vpop.f32.mrb[0].mxu0
  %12559 = vmatprep.mubr.bf16.mxu0 %v11810
  %12560 = vmatmul.mubr.bf16.gmra.mrb[0].mxu0 %v11617
  %v12561 = vpop.f32.mrb[0].mxu0
  %v12562 = vadd.f32 0.0, %v12561
  %v12563 = vpop.f32.mrb[0].mxu0
  %v12564 = vpop.f32.mrb[0].mxu0
  %v12565 = vadd.f32 0.0, %v12564
  %v12566 = vpop.f32.mrb[0].mxu0
  %12567 = vmatprep.mubr.bf16.mxu0 %v11822
  %12568 = vmatmul.mubr.bf16.gmra.mrb[0].mxu0 %v11618
  %v12569 = vpop.f32.mrb[0].mxu0
  %v12570 = vadd.f32 0.0, %v12569
  %v12571 = vpop.f32.mrb[0].mxu0
  %v12572 = vpop.f32.mrb[0].mxu0
  %v12573 = vadd.f32 0.0, %v12572
  %v12574 = vpop.f32.mrb[0].mxu0
  %12575 = vmatprep.mubr.bf16.mxu0 %v11834
  %12576 = vmatmul.mubr.bf16.gmra.mrb[0].mxu0 %v11619
  %v12577 = vpop.f32.mrb[0].mxu0
  %v12578 = vadd.f32 0.0, %v12577
  %v12579 = vpop.f32.mrb[0].mxu0
  %v12580 = vpop.f32.mrb[0].mxu0
  %v12581 = vadd.f32 0.0, %v12580
  %v12582 = vpop.f32.mrb[0].mxu0
  %12583 = vmatprep.mubr.bf16.mxu0 %v11846
  %12584 = vmatmul.mubr.bf16.gmra.mrb[0].mxu0 %v11620
  %v12585 = vpop.f32.mrb[0].mxu0
  %v12586 = vadd.f32 0.0, %v12585
  %v12587 = vpop.f32.mrb[0].mxu0
  %v12588 = vpop.f32.mrb[0].mxu0
  %v12589 = vadd.f32 0.0, %v12588
  %v12590 = vpop.f32.mrb[0].mxu0
  %12591 = vmatprep.mubr.bf16.mxu0 %v11858
  %12592 = vmatmul.mubr.bf16.gmra.mrb[0].mxu0 %v11621
  %v12593 = vpop.f32.mrb[0].mxu0
  %v12594 = vadd.f32 0.0, %v12593
  %v12595 = vpop.f32.mrb[0].mxu0
  %v12596 = vpop.f32.mrb[0].mxu0
  %v12597 = vadd.f32 0.0, %v12596
  %v12598 = vpop.f32.mrb[0].mxu0
  %12599 = vmatprep.mubr.bf16.mxu0 %v11870
  %12600 = vmatmul.mubr.bf16.gmra.mrb[0].mxu0 %v11622
  %v12601 = vpop.f32.mrb[0].mxu0
  %v12602 = vadd.f32 0.0, %v12601
  %v12603 = vpop.f32.mrb[0].mxu0
  %v12604 = vpop.f32.mrb[0].mxu0
  %v12605 = vadd.f32 0.0, %v12604
  %v12606 = vpop.f32.mrb[0].mxu0
  %12607 = vmatprep.mubr.bf16.mxu0 %v11882
  %12608 = vmatmul.mubr.bf16.gmra.mrb[0].mxu0 %v11623
  %v12609 = vpop.f32.mrb[0].mxu0
  %v12610 = vadd.f32 0.0, %v12609
  %v12611 = vpop.f32.mrb[0].mxu0
  %v12612 = vpop.f32.mrb[0].mxu0
  %v12613 = vadd.f32 0.0, %v12612
  %v12614 = vpop.f32.mrb[0].mxu0
  %12615 = vmatprep.mubr.bf16.mxu0 %v11894
  %12616 = vmatmul.mubr.bf16.gmra.mrb[0].mxu0 %v11624
  %v12617 = vpop.f32.mrb[0].mxu0
  %v12618 = vadd.f32 0.0, %v12617
  %v12619 = vpop.f32.mrb[0].mxu0
  %v12620 = vpop.f32.mrb[0].mxu0
  %v12621 = vadd.f32 0.0, %v12620
  %v12622 = vpop.f32.mrb[0].mxu0
  %12623 = vmatprep.mubr.bf16.mxu0 %v11906
  %12624 = vmatmul.mubr.bf16.gmra.mrb[0].mxu0 %v11625
  %v12625 = vpop.f32.mrb[0].mxu0
  %v12626 = vadd.f32 0.0, %v12625
  %v12627 = vpop.f32.mrb[0].mxu0
  %v12628 = vpop.f32.mrb[0].mxu0
  %v12629 = vadd.f32 0.0, %v12628
  %v12630 = vpop.f32.mrb[0].mxu0
  %12631 = vmatprep.mubr.bf16.mxu0 %v11918
  %12632 = vmatmul.mubr.bf16.gmra.mrb[0].mxu0 %v11626
  %v12633 = vpop.f32.mrb[0].mxu0
  %v12634 = vadd.f32 0.0, %v12633
  %v12635 = vpop.f32.mrb[0].mxu0
  %v12636 = vpop.f32.mrb[0].mxu0
  %v12637 = vadd.f32 0.0, %v12636
  %v12638 = vpop.f32.mrb[0].mxu0
  %12639 = vmatprep.mubr.bf16.mxu0 %v11930
  %12640 = vmatmul.mubr.bf16.gmra.mrb[0].mxu0 %v11627
  %v12641 = vpop.f32.mrb[0].mxu0
  %v12642 = vadd.f32 0.0, %v12641
  %v12643 = vpop.f32.mrb[0].mxu0
  %v12644 = vpop.f32.mrb[0].mxu0
  %v12645 = vadd.f32 0.0, %v12644
  %v12646 = vpop.f32.mrb[0].mxu0
  %12647 = vmatprep.mubr.bf16.mxu0 %v11942
  %12648 = vmatmul.mubr.bf16.gmra.mrb[0].mxu0 %v11628
  %v12649 = vpop.f32.mrb[0].mxu0
  %v12650 = vadd.f32 0.0, %v12649
  %v12651 = vpop.f32.mrb[0].mxu0
  %v12652 = vpop.f32.mrb[0].mxu0
  %v12653 = vadd.f32 0.0, %v12652
  %v12654 = vpop.f32.mrb[0].mxu0
  %12655 = vmatprep.mubr.bf16.mxu0 %v11954
  %12656 = vmatmul.mubr.bf16.gmra.mrb[0].mxu0 %v11629
  %v12657 = vpop.f32.mrb[0].mxu0
  %v12658 = vadd.f32 0.0, %v12657
  %v12659 = vpop.f32.mrb[0].mxu0
  %v12660 = vpop.f32.mrb[0].mxu0
  %v12661 = vadd.f32 0.0, %v12660
  %v12662 = vpop.f32.mrb[0].mxu0
  %12663 = vmatprep.mubr.bf16.mxu0 %v11966
  %12664 = vmatmul.mubr.bf16.gmra.mrb[0].mxu0 %v11630
  %v12665 = vpop.f32.mrb[0].mxu0
  %v12666 = vadd.f32 0.0, %v12665
  %v12667 = vpop.f32.mrb[0].mxu0
  %v12668 = vpop.f32.mrb[0].mxu0
  %v12669 = vadd.f32 0.0, %v12668
  %v12670 = vpop.f32.mrb[0].mxu0
  %12671 = vmatprep.mubr.bf16.mxu0 %v11978
  %12672 = vmatmul.mubr.bf16.gmra.mrb[0].mxu0 %v11631
  %v12673 = vpop.f32.mrb[0].mxu0
  %v12674 = vadd.f32 0.0, %v12673
  %v12675 = vpop.f32.mrb[0].mxu0
  %v12676 = vpop.f32.mrb[0].mxu0
  %v12677 = vadd.f32 0.0, %v12676
  %v12678 = vpop.f32.mrb[0].mxu0
  %12679 = vmatprep.mubr.bf16.mxu0 %v11990
  %12680 = vmatmul.mubr.bf16.gmra.mrb[0].mxu0 %v11632
  %v12681 = vpop.f32.mrb[0].mxu0
  %v12682 = vadd.f32 0.0, %v12681
  %v12683 = vpop.f32.mrb[0].mxu0
  %v12684 = vpop.f32.mrb[0].mxu0
  %v12685 = vadd.f32 0.0, %v12684
  %v12686 = vpop.f32.mrb[0].mxu0
  %12687 = vmatprep.mubr.bf16.mxu0 %v12002
  %12688 = vmatmul.mubr.bf16.gmra.mrb[0].mxu0 %v11633
  %v12689 = vpop.f32.mrb[0].mxu0
  %v12690 = vadd.f32 0.0, %v12689
  %v12691 = vpop.f32.mrb[0].mxu0
  %v12692 = vpop.f32.mrb[0].mxu0
  %v12693 = vadd.f32 0.0, %v12692
  %v12694 = vpop.f32.mrb[0].mxu0
  %12695 = vmatprep.mubr.bf16.mxu0 %v12014
  %12696 = vmatmul.mubr.bf16.gmra.mrb[0].mxu0 %v11634
  %v12697 = vpop.f32.mrb[0].mxu0
  %v12698 = vadd.f32 0.0, %v12697
  %v12699 = vpop.f32.mrb[0].mxu0
  %v12700 = vpop.f32.mrb[0].mxu0
  %v12701 = vadd.f32 0.0, %v12700
  %v12702 = vpop.f32.mrb[0].mxu0
  %12703 = vmatprep.mubr.bf16.mxu0 %v12026
  %12704 = vmatmul.mubr.bf16.gmra.mrb[0].mxu0 %v11635
  %v12705 = vpop.f32.mrb[0].mxu0
  %v12706 = vadd.f32 0.0, %v12705
  %v12707 = vpop.f32.mrb[0].mxu0
  %v12708 = vpop.f32.mrb[0].mxu0
  %v12709 = vadd.f32 0.0, %v12708
  %v12710 = vpop.f32.mrb[0].mxu0
  %12711 = vmatprep.mubr.bf16.mxu0 %v12038
  %12712 = vmatmul.mubr.bf16.gmra.mrb[0].mxu0 %v11636
  %v12713 = vpop.f32.mrb[0].mxu0
  %v12714 = vadd.f32 0.0, %v12713
  %v12715 = vpop.f32.mrb[0].mxu0
  %v12716 = vpop.f32.mrb[0].mxu0
  %v12717 = vadd.f32 0.0, %v12716
  %v12718 = vpop.f32.mrb[0].mxu0
  %12719 = vmatprep.mubr.bf16.mxu0 %v12050
  %12720 = vmatmul.mubr.bf16.gmra.mrb[0].mxu0 %v11637
  %v12721 = vpop.f32.mrb[0].mxu0
  %v12722 = vadd.f32 0.0, %v12721
  %v12723 = vpop.f32.mrb[0].mxu0
  %v12724 = vpop.f32.mrb[0].mxu0
  %v12725 = vadd.f32 0.0, %v12724
  %v12726 = vpop.f32.mrb[0].mxu0
  %12727 = vmatprep.mubr.bf16.mxu0 %v12062
  %12728 = vmatmul.mubr.bf16.gmra.mrb[0].mxu0 %v11638
  %v12729 = vpop.f32.mrb[0].mxu0
  %v12730 = vadd.f32 0.0, %v12729
  %v12731 = vpop.f32.mrb[0].mxu0
  %v12732 = vpop.f32.mrb[0].mxu0
  %v12733 = vadd.f32 0.0, %v12732
  %v12734 = vpop.f32.mrb[0].mxu0
  %12735 = vmatprep.mubr.bf16.mxu0 %v12074
  %12736 = vmatmul.mubr.bf16.gmra.mrb[0].mxu0 %v11639
  %v12737 = vpop.f32.mrb[0].mxu0
  %v12738 = vadd.f32 0.0, %v12737
  %v12739 = vpop.f32.mrb[0].mxu0
  %v12740 = vpop.f32.mrb[0].mxu0
  %v12741 = vadd.f32 0.0, %v12740
  %v12742 = vpop.f32.mrb[0].mxu0
  %12743 = vmatprep.mubr.bf16.mxu0 %v12086
  %12744 = vmatmul.mubr.bf16.gmra.mrb[0].mxu0 %v11640
  %v12745 = vpop.f32.mrb[0].mxu0
  %v12746 = vadd.f32 0.0, %v12745
  %v12747 = vpop.f32.mrb[0].mxu0
  %v12748 = vpop.f32.mrb[0].mxu0
  %v12749 = vadd.f32 0.0, %v12748
  %v12750 = vpop.f32.mrb[0].mxu0
  %12751 = vmatprep.mubr.bf16.mxu0 %v12098
  %12752 = vmatmul.mubr.bf16.gmra.mrb[0].mxu0 %v11641
  %v12753 = vpop.f32.mrb[0].mxu0
  %v12754 = vadd.f32 0.0, %v12753
  %v12755 = vpop.f32.mrb[0].mxu0
  %v12756 = vpop.f32.mrb[0].mxu0
  %v12757 = vadd.f32 0.0, %v12756
  %v12758 = vpop.f32.mrb[0].mxu0
  %12759 = vmatprep.mubr.bf16.mxu0 %v12110
  %12760 = vmatmul.mubr.bf16.gmra.mrb[0].mxu0 %v11642
  %v12761 = vpop.f32.mrb[0].mxu0
  %v12762 = vadd.f32 0.0, %v12761
  %v12763 = vpop.f32.mrb[0].mxu0
  %v12764 = vpop.f32.mrb[0].mxu0
  %v12765 = vadd.f32 0.0, %v12764
  %v12766 = vpop.f32.mrb[0].mxu0
  %12767 = vmatprep.mubr.bf16.mxu0 %v12122
  %12768 = vmatmul.mubr.bf16.gmra.mrb[0].mxu0 %v11643
  %v12769 = vpop.f32.mrb[0].mxu0
  %v12770 = vadd.f32 0.0, %v12769
  %v12771 = vpop.f32.mrb[0].mxu0
  %v12772 = vpop.f32.mrb[0].mxu0
  %v12773 = vadd.f32 0.0, %v12772
  %v12774 = vpop.f32.mrb[0].mxu0
  %12775 = vmatprep.mubr.bf16.mxu0 %v12134
  %12776 = vmatmul.mubr.bf16.gmra.mrb[0].mxu0 %v11644
  %v12777 = vpop.f32.mrb[0].mxu0
  %v12778 = vadd.f32 0.0, %v12777
  %v12779 = vpop.f32.mrb[0].mxu0
  %v12780 = vpop.f32.mrb[0].mxu0
  %v12781 = vadd.f32 0.0, %v12780
  %v12782 = vpop.f32.mrb[0].mxu0
  %12783 = vmatprep.mubr.bf16.mxu0 %v12146
  %12784 = vmatmul.mubr.bf16.gmra.mrb[0].mxu0 %v11645
  %v12785 = vpop.f32.mrb[0].mxu0
  %v12786 = vadd.f32 0.0, %v12785
  %v12787 = vpop.f32.mrb[0].mxu0
  %v12788 = vpop.f32.mrb[0].mxu0
  %v12789 = vadd.f32 0.0, %v12788
  %v12790 = vpop.f32.mrb[0].mxu0
  %12791 = vmatprep.mubr.bf16.mxu0 %v12158
  %12792 = vmatmul.mubr.bf16.gmra.mrb[0].mxu0 %v11646
  %v12793 = vpop.f32.mrb[0].mxu0
  %v12794 = vadd.f32 0.0, %v12793
  %v12795 = vpop.f32.mrb[0].mxu0
  %v12796 = vpop.f32.mrb[0].mxu0
  %v12797 = vadd.f32 0.0, %v12796
  %v12798 = vpop.f32.mrb[0].mxu0
  %12799 = vdwg.mxu0
  %12800 = vmatprep.subr.bf16.mxu0 0
  %12801 = vmatpush1.bf16.msra.mxu0 %v12479
  %12802 = vmatprep.subr.bf16.mxu0 0
  %12803 = vmatpush1.bf16.msra.mxu0 %v12480
  %12804 = vmatprep.subr.bf16.mxu0 0
  %12805 = vmatpush1.bf16.msra.mxu0 %v12481
  %12806 = vmatprep.subr.bf16.mxu0 0
  %12807 = vmatpush1.bf16.msra.mxu0 %v12482
  %12808 = vmatprep.subr.bf16.mxu0 0
  %12809 = vmatpush1.bf16.msra.mxu0 %v12483
  %12810 = vmatprep.subr.bf16.mxu0 0
  %12811 = vmatpush1.bf16.msra.mxu0 %v12484
  %12812 = vmatprep.subr.bf16.mxu0 0
  %12813 = vmatpush1.bf16.msra.mxu0 %v12485
  %12814 = vmatprep.subr.bf16.mxu0 0
  %12815 = vmatpush1.bf16.msra.mxu0 %v12486
  %12816 = vmatprep.subr.bf16.mxu0 0
  %12817 = vmatpush1.bf16.msra.mxu0 0
  %12818 = vmatprep.subr.bf16.mxu0 0
  %12819 = vmatpush1.bf16.msra.mxu0 0
  %12820 = vmatprep.subr.bf16.mxu0 0
  %12821 = vmatpush1.bf16.msra.mxu0 0
  %12822 = vmatprep.subr.bf16.mxu0 0
  %12823 = vmatpush1.bf16.msra.mxu0 0
  %12824 = vmatprep.subr.bf16.mxu0 0
  %12825 = vmatpush1.bf16.msra.mxu0 0
  %12826 = vmatprep.subr.bf16.mxu0 0
  %12827 = vmatpush1.bf16.msra.mxu0 0
  %12828 = vmatprep.subr.bf16.mxu0 0
  %12829 = vmatpush1.bf16.msra.mxu0 0
  %12830 = vmatprep.subr.bf16.mxu0 0
  %12831 = vmatpush1.bf16.msra.mxu0 0
  %12832 = vmatprep.mubr.bf16.mxu0 0
  %12833 = vmatmul.mubr.bf16.gmra.mrb[0].mxu0 %v12193
  %v12834 = vpop.f32.mrb[0].mxu0
  %v12835 = vadd.f32 %v12546, %v12834
  %v12836 = vpop.f32.mrb[0].mxu0
  %v12837 = vpop.f32.mrb[0].mxu0
  %v12838 = vadd.f32 %v12549, %v12837
  %v12839 = vpop.f32.mrb[0].mxu0
  %12840 = vmatprep.mubr.bf16.mxu0 0
  %12841 = vmatmul.mubr.bf16.gmra.mrb[0].mxu0 %v12196
  %v12842 = vpop.f32.mrb[0].mxu0
  %v12843 = vadd.f32 %v12554, %v12842
  %v12844 = vpop.f32.mrb[0].mxu0
  %v12845 = vpop.f32.mrb[0].mxu0
  %v12846 = vadd.f32 %v12557, %v12845
  %v12847 = vpop.f32.mrb[0].mxu0
  %12848 = vmatprep.mubr.bf16.mxu0 0
  %12849 = vmatmul.mubr.bf16.gmra.mrb[0].mxu0 %v12199
  %v12850 = vpop.f32.mrb[0].mxu0
  %v12851 = vadd.f32 %v12562, %v12850
  %v12852 = vpop.f32.mrb[0].mxu0
  %v12853 = vpop.f32.mrb[0].mxu0
  %v12854 = vadd.f32 %v12565, %v12853
  %v12855 = vpop.f32.mrb[0].mxu0
  %12856 = vmatprep.mubr.bf16.mxu0 0
  %12857 = vmatmul.mubr.bf16.gmra.mrb[0].mxu0 %v12202
  %v12858 = vpop.f32.mrb[0].mxu0
  %v12859 = vadd.f32 %v12570, %v12858
  %v12860 = vpop.f32.mrb[0].mxu0
  %v12861 = vpop.f32.mrb[0].mxu0
  %v12862 = vadd.f32 %v12573, %v12861
  %v12863 = vpop.f32.mrb[0].mxu0
  %12864 = vmatprep.mubr.bf16.mxu0 0
  %12865 = vmatmul.mubr.bf16.gmra.mrb[0].mxu0 %v12205
  %v12866 = vpop.f32.mrb[0].mxu0
  %v12867 = vadd.f32 %v12578, %v12866
  %v12868 = vpop.f32.mrb[0].mxu0
  %v12869 = vpop.f32.mrb[0].mxu0
  %v12870 = vadd.f32 %v12581, %v12869
  %v12871 = vpop.f32.mrb[0].mxu0
  %12872 = vmatprep.mubr.bf16.mxu0 0
  %12873 = vmatmul.mubr.bf16.gmra.mrb[0].mxu0 %v12208
  %v12874 = vpop.f32.mrb[0].mxu0
  %v12875 = vadd.f32 %v12586, %v12874
  %v12876 = vpop.f32.mrb[0].mxu0
  %v12877 = vpop.f32.mrb[0].mxu0
  %v12878 = vadd.f32 %v12589, %v12877
  %v12879 = vpop.f32.mrb[0].mxu0
  %12880 = vmatprep.mubr.bf16.mxu0 0
  %12881 = vmatmul.mubr.bf16.gmra.mrb[0].mxu0 %v12211
  %v12882 = vpop.f32.mrb[0].mxu0
  %v12883 = vadd.f32 %v12594, %v12882
  %v12884 = vpop.f32.mrb[0].mxu0
  %v12885 = vpop.f32.mrb[0].mxu0
  %v12886 = vadd.f32 %v12597, %v12885
  %v12887 = vpop.f32.mrb[0].mxu0
  %12888 = vmatprep.mubr.bf16.mxu0 0
  %12889 = vmatmul.mubr.bf16.gmra.mrb[0].mxu0 %v12214
  %v12890 = vpop.f32.mrb[0].mxu0
  %v12891 = vadd.f32 %v12602, %v12890
  %v12892 = vpop.f32.mrb[0].mxu0
  %v12893 = vpop.f32.mrb[0].mxu0
  %v12894 = vadd.f32 %v12605, %v12893
  %v12895 = vpop.f32.mrb[0].mxu0
  %12896 = vmatprep.mubr.bf16.mxu0 0
  %12897 = vmatmul.mubr.bf16.gmra.mrb[0].mxu0 %v12217
  %v12898 = vpop.f32.mrb[0].mxu0
  %v12899 = vadd.f32 %v12610, %v12898
  %v12900 = vpop.f32.mrb[0].mxu0
  %v12901 = vpop.f32.mrb[0].mxu0
  %v12902 = vadd.f32 %v12613, %v12901
  %v12903 = vpop.f32.mrb[0].mxu0
  %12904 = vmatprep.mubr.bf16.mxu0 0
  %12905 = vmatmul.mubr.bf16.gmra.mrb[0].mxu0 %v12220
  %v12906 = vpop.f32.mrb[0].mxu0
  %v12907 = vadd.f32 %v12618, %v12906
  %v12908 = vpop.f32.mrb[0].mxu0
  %v12909 = vpop.f32.mrb[0].mxu0
  %v12910 = vadd.f32 %v12621, %v12909
  %v12911 = vpop.f32.mrb[0].mxu0
  %12912 = vmatprep.mubr.bf16.mxu0 0
  %12913 = vmatmul.mubr.bf16.gmra.mrb[0].mxu0 %v12223
  %v12914 = vpop.f32.mrb[0].mxu0
  %v12915 = vadd.f32 %v12626, %v12914
  %v12916 = vpop.f32.mrb[0].mxu0
  %v12917 = vpop.f32.mrb[0].mxu0
  %v12918 = vadd.f32 %v12629, %v12917
  %v12919 = vpop.f32.mrb[0].mxu0
  %12920 = vmatprep.mubr.bf16.mxu0 0
  %12921 = vmatmul.mubr.bf16.gmra.mrb[0].mxu0 %v12226
  %v12922 = vpop.f32.mrb[0].mxu0
  %v12923 = vadd.f32 %v12634, %v12922
  %v12924 = vpop.f32.mrb[0].mxu0
  %v12925 = vpop.f32.mrb[0].mxu0
  %v12926 = vadd.f32 %v12637, %v12925
  %v12927 = vpop.f32.mrb[0].mxu0
  %12928 = vmatprep.mubr.bf16.mxu0 0
  %12929 = vmatmul.mubr.bf16.gmra.mrb[0].mxu0 %v12229
  %v12930 = vpop.f32.mrb[0].mxu0
  %v12931 = vadd.f32 %v12642, %v12930
  %v12932 = vpop.f32.mrb[0].mxu0
  %v12933 = vpop.f32.mrb[0].mxu0
  %v12934 = vadd.f32 %v12645, %v12933
  %v12935 = vpop.f32.mrb[0].mxu0
  %12936 = vmatprep.mubr.bf16.mxu0 0
  %12937 = vmatmul.mubr.bf16.gmra.mrb[0].mxu0 %v12232
  %v12938 = vpop.f32.mrb[0].mxu0
  %v12939 = vadd.f32 %v12650, %v12938
  %v12940 = vpop.f32.mrb[0].mxu0
  %v12941 = vpop.f32.mrb[0].mxu0
  %v12942 = vadd.f32 %v12653, %v12941
  %v12943 = vpop.f32.mrb[0].mxu0
  %12944 = vmatprep.mubr.bf16.mxu0 0
  %12945 = vmatmul.mubr.bf16.gmra.mrb[0].mxu0 %v12235
  %v12946 = vpop.f32.mrb[0].mxu0
  %v12947 = vadd.f32 %v12658, %v12946
  %v12948 = vpop.f32.mrb[0].mxu0
  %v12949 = vpop.f32.mrb[0].mxu0
  %v12950 = vadd.f32 %v12661, %v12949
  %v12951 = vpop.f32.mrb[0].mxu0
  %12952 = vmatprep.mubr.bf16.mxu0 0
  %12953 = vmatmul.mubr.bf16.gmra.mrb[0].mxu0 %v12238
  %v12954 = vpop.f32.mrb[0].mxu0
  %v12955 = vadd.f32 %v12666, %v12954
  %v12956 = vpop.f32.mrb[0].mxu0
  %v12957 = vpop.f32.mrb[0].mxu0
  %v12958 = vadd.f32 %v12669, %v12957
  %v12959 = vpop.f32.mrb[0].mxu0
  %12960 = vmatprep.mubr.bf16.mxu0 0
  %12961 = vmatmul.mubr.bf16.gmra.mrb[0].mxu0 %v12241
  %v12962 = vpop.f32.mrb[0].mxu0
  %v12963 = vadd.f32 %v12674, %v12962
  %v12964 = vpop.f32.mrb[0].mxu0
  %v12965 = vpop.f32.mrb[0].mxu0
  %v12966 = vadd.f32 %v12677, %v12965
  %v12967 = vpop.f32.mrb[0].mxu0
  %12968 = vmatprep.mubr.bf16.mxu0 0
  %12969 = vmatmul.mubr.bf16.gmra.mrb[0].mxu0 %v12244
  %v12970 = vpop.f32.mrb[0].mxu0
  %v12971 = vadd.f32 %v12682, %v12970
  %v12972 = vpop.f32.mrb[0].mxu0
  %v12973 = vpop.f32.mrb[0].mxu0
  %v12974 = vadd.f32 %v12685, %v12973
  %v12975 = vpop.f32.mrb[0].mxu0
  %12976 = vmatprep.mubr.bf16.mxu0 0
  %12977 = vmatmul.mubr.bf16.gmra.mrb[0].mxu0 %v12247
  %v12978 = vpop.f32.mrb[0].mxu0
  %v12979 = vadd.f32 %v12690, %v12978
  %v12980 = vpop.f32.mrb[0].mxu0
  %v12981 = vpop.f32.mrb[0].mxu0
  %v12982 = vadd.f32 %v12693, %v12981
  %v12983 = vpop.f32.mrb[0].mxu0
  %12984 = vmatprep.mubr.bf16.mxu0 0
  %12985 = vmatmul.mubr.bf16.gmra.mrb[0].mxu0 %v12250
  %v12986 = vpop.f32.mrb[0].mxu0
  %v12987 = vadd.f32 %v12698, %v12986
  %v12988 = vpop.f32.mrb[0].mxu0
  %v12989 = vpop.f32.mrb[0].mxu0
  %v12990 = vadd.f32 %v12701, %v12989
  %v12991 = vpop.f32.mrb[0].mxu0
  %12992 = vmatprep.mubr.bf16.mxu0 0
  %12993 = vmatmul.mubr.bf16.gmra.mrb[0].mxu0 %v12253
  %v12994 = vpop.f32.mrb[0].mxu0
  %v12995 = vadd.f32 %v12706, %v12994
  %v12996 = vpop.f32.mrb[0].mxu0
  %v12997 = vpop.f32.mrb[0].mxu0
  %v12998 = vadd.f32 %v12709, %v12997
  %v12999 = vpop.f32.mrb[0].mxu0
  %13000 = vmatprep.mubr.bf16.mxu0 0
  %13001 = vmatmul.mubr.bf16.gmra.mrb[0].mxu0 %v12256
  %v13002 = vpop.f32.mrb[0].mxu0
  %v13003 = vadd.f32 %v12714, %v13002
  %v13004 = vpop.f32.mrb[0].mxu0
  %v13005 = vpop.f32.mrb[0].mxu0
  %v13006 = vadd.f32 %v12717, %v13005
  %v13007 = vpop.f32.mrb[0].mxu0
  %13008 = vmatprep.mubr.bf16.mxu0 0
  %13009 = vmatmul.mubr.bf16.gmra.mrb[0].mxu0 %v12259
  %v13010 = vpop.f32.mrb[0].mxu0
  %v13011 = vadd.f32 %v12722, %v13010
  %v13012 = vpop.f32.mrb[0].mxu0
  %v13013 = vpop.f32.mrb[0].mxu0
  %v13014 = vadd.f32 %v12725, %v13013
  %v13015 = vpop.f32.mrb[0].mxu0
  %13016 = vmatprep.mubr.bf16.mxu0 0
  %13017 = vmatmul.mubr.bf16.gmra.mrb[0].mxu0 %v12262
  %v13018 = vpop.f32.mrb[0].mxu0
  %v13019 = vadd.f32 %v12730, %v13018
  %v13020 = vpop.f32.mrb[0].mxu0
  %v13021 = vpop.f32.mrb[0].mxu0
  %v13022 = vadd.f32 %v12733, %v13021
  %v13023 = vpop.f32.mrb[0].mxu0
  %13024 = vmatprep.mubr.bf16.mxu0 0
  %13025 = vmatmul.mubr.bf16.gmra.mrb[0].mxu0 %v12265
  %v13026 = vpop.f32.mrb[0].mxu0
  %v13027 = vadd.f32 %v12738, %v13026
  %v13028 = vpop.f32.mrb[0].mxu0
  %v13029 = vpop.f32.mrb[0].mxu0
  %v13030 = vadd.f32 %v12741, %v13029
  %v13031 = vpop.f32.mrb[0].mxu0
  %13032 = vmatprep.mubr.bf16.mxu0 0
  %13033 = vmatmul.mubr.bf16.gmra.mrb[0].mxu0 %v12268
  %v13034 = vpop.f32.mrb[0].mxu0
  %v13035 = vadd.f32 %v12746, %v13034
  %v13036 = vpop.f32.mrb[0].mxu0
  %v13037 = vpop.f32.mrb[0].mxu0
  %v13038 = vadd.f32 %v12749, %v13037
  %v13039 = vpop.f32.mrb[0].mxu0
  %13040 = vmatprep.mubr.bf16.mxu0 0
  %13041 = vmatmul.mubr.bf16.gmra.mrb[0].mxu0 %v12271
  %v13042 = vpop.f32.mrb[0].mxu0
  %v13043 = vadd.f32 %v12754, %v13042
  %v13044 = vpop.f32.mrb[0].mxu0
  %v13045 = vpop.f32.mrb[0].mxu0
  %v13046 = vadd.f32 %v12757, %v13045
  %v13047 = vpop.f32.mrb[0].mxu0
  %13048 = vmatprep.mubr.bf16.mxu0 0
  %13049 = vmatmul.mubr.bf16.gmra.mrb[0].mxu0 %v12274
  %v13050 = vpop.f32.mrb[0].mxu0
  %v13051 = vadd.f32 %v12762, %v13050
  %v13052 = vpop.f32.mrb[0].mxu0
  %v13053 = vpop.f32.mrb[0].mxu0
  %v13054 = vadd.f32 %v12765, %v13053
  %v13055 = vpop.f32.mrb[0].mxu0
  %13056 = vmatprep.mubr.bf16.mxu0 0
  %13057 = vmatmul.mubr.bf16.gmra.mrb[0].mxu0 %v12277
  %v13058 = vpop.f32.mrb[0].mxu0
  %v13059 = vadd.f32 %v12770, %v13058
  %v13060 = vpop.f32.mrb[0].mxu0
  %v13061 = vpop.f32.mrb[0].mxu0
  %v13062 = vadd.f32 %v12773, %v13061
  %v13063 = vpop.f32.mrb[0].mxu0
  %13064 = vmatprep.mubr.bf16.mxu0 0
  %13065 = vmatmul.mubr.bf16.gmra.mrb[0].mxu0 %v12280
  %v13066 = vpop.f32.mrb[0].mxu0
  %v13067 = vadd.f32 %v12778, %v13066
  %v13068 = vpop.f32.mrb[0].mxu0
  %v13069 = vpop.f32.mrb[0].mxu0
  %v13070 = vadd.f32 %v12781, %v13069
  %v13071 = vpop.f32.mrb[0].mxu0
  %13072 = vmatprep.mubr.bf16.mxu0 0
  %13073 = vmatmul.mubr.bf16.gmra.mrb[0].mxu0 %v12283
  %v13074 = vpop.f32.mrb[0].mxu0
  %v13075 = vadd.f32 %v12786, %v13074
  %v13076 = vpop.f32.mrb[0].mxu0
  %v13077 = vpop.f32.mrb[0].mxu0
  %v13078 = vadd.f32 %v12789, %v13077
  %v13079 = vpop.f32.mrb[0].mxu0
  %13080 = vmatprep.mubr.bf16.mxu0 0
  %13081 = vmatmul.mubr.bf16.gmra.mrb[0].mxu0 %v12286
  %v13082 = vpop.f32.mrb[0].mxu0
  %v13083 = vadd.f32 %v12794, %v13082
  %v13084 = vpop.f32.mrb[0].mxu0
  %v13085 = vpop.f32.mrb[0].mxu0
  %v13086 = vadd.f32 %v12797, %v13085
  %v13087 = vpop.f32.mrb[0].mxu0
  %13088 = vdwg.mxu0
  %v13089 = vadd.f32 %v11137, %v12835
  %v13090 = vadd.f32 %v11140, %v12838
  %v13091 = vadd.f32 %v11145, %v12843
  %v13092 = vadd.f32 %v11148, %v12846
  %v13093 = vadd.f32 %v11153, %v12851
  %v13094 = vadd.f32 %v11156, %v12854
  %v13095 = vadd.f32 %v11161, %v12859
  %v13096 = vadd.f32 %v11164, %v12862
  %v13097 = vadd.f32 %v11169, %v12867
  %v13098 = vadd.f32 %v11172, %v12870
  %v13099 = vadd.f32 %v11177, %v12875
  %v13100 = vadd.f32 %v11180, %v12878
  %v13101 = vadd.f32 %v11185, %v12883
  %v13102 = vadd.f32 %v11188, %v12886
  %v13103 = vadd.f32 %v11193, %v12891
  %v13104 = vadd.f32 %v11196, %v12894
  %v13105 = vadd.f32 %v11201, %v12899
  %v13106 = vadd.f32 %v11204, %v12902
  %v13107 = vadd.f32 %v11209, %v12907
  %v13108 = vadd.f32 %v11212, %v12910
  %v13109 = vadd.f32 %v11217, %v12915
  %v13110 = vadd.f32 %v11220, %v12918
  %v13111 = vadd.f32 %v11225, %v12923
  %v13112 = vadd.f32 %v11228, %v12926
  %v13113 = vadd.f32 %v11233, %v12931
  %v13114 = vadd.f32 %v11236, %v12934
  %v13115 = vadd.f32 %v11241, %v12939
  %v13116 = vadd.f32 %v11244, %v12942
  %v13117 = vadd.f32 %v11249, %v12947
  %v13118 = vadd.f32 %v11252, %v12950
  %v13119 = vadd.f32 %v11257, %v12955
  %v13120 = vadd.f32 %v11260, %v12958
  %v13121 = vadd.f32 %v11265, %v12963
  %v13122 = vadd.f32 %v11268, %v12966
  %v13123 = vadd.f32 %v11273, %v12971
  %v13124 = vadd.f32 %v11276, %v12974
  %v13125 = vadd.f32 %v11281, %v12979
  %v13126 = vadd.f32 %v11284, %v12982
  %v13127 = vadd.f32 %v11289, %v12987
  %v13128 = vadd.f32 %v11292, %v12990
  %v13129 = vadd.f32 %v11297, %v12995
  %v13130 = vadd.f32 %v11300, %v12998
  %v13131 = vadd.f32 %v11305, %v13003
  %v13132 = vadd.f32 %v11308, %v13006
  %v13133 = vadd.f32 %v11313, %v13011
  %v13134 = vadd.f32 %v11316, %v13014
  %v13135 = vadd.f32 %v11321, %v13019
  %v13136 = vadd.f32 %v11324, %v13022
  %v13137 = vadd.f32 %v11329, %v13027
  %v13138 = vadd.f32 %v11332, %v13030
  %v13139 = vadd.f32 %v11337, %v13035
  %v13140 = vadd.f32 %v11340, %v13038
  %v13141 = vadd.f32 %v11345, %v13043
  %v13142 = vadd.f32 %v11348, %v13046
  %v13143 = vadd.f32 %v11353, %v13051
  %v13144 = vadd.f32 %v11356, %v13054
  %v13145 = vadd.f32 %v11361, %v13059
  %v13146 = vadd.f32 %v11364, %v13062
  %v13147 = vadd.f32 %v11369, %v13067
  %v13148 = vadd.f32 %v11372, %v13070
  %v13149 = vadd.f32 %v11377, %v13075
  %v13150 = vadd.f32 %v11380, %v13078
  %v13151 = vadd.f32 %v11385, %v13083
  %v13152 = vadd.f32 %v11388, %v13086
  %v13153 = vadd.f32 %v13089, %v13090
  %v13154 = vadd.f32 %v13153, %v13091
  %v13155 = vadd.f32 %v13154, %v13092
  %v13156 = vadd.f32 %v13155, %v13093
  %v13157 = vadd.f32 %v13156, %v13094
  %v13158 = vadd.f32 %v13157, %v13095
  %v13159 = vadd.f32 %v13158, %v13096
  %v13160 = vadd.f32 %v13159, %v13097
  %v13161 = vadd.f32 %v13160, %v13098
  %v13162 = vadd.f32 %v13161, %v13099
  %v13163 = vadd.f32 %v13162, %v13100
  %v13164 = vadd.f32 %v13163, %v13101
  %v13165 = vadd.f32 %v13164, %v13102
  %v13166 = vadd.f32 %v13165, %v13103
  %v13167 = vadd.f32 %v13166, %v13104
  %v13168 = vadd.f32 %v13167, %v13105
  %v13169 = vadd.f32 %v13168, %v13106
  %v13170 = vadd.f32 %v13169, %v13107
  %v13171 = vadd.f32 %v13170, %v13108
  %v13172 = vadd.f32 %v13171, %v13109
  %v13173 = vadd.f32 %v13172, %v13110
  %v13174 = vadd.f32 %v13173, %v13111
  %v13175 = vadd.f32 %v13174, %v13112
  %v13176 = vadd.f32 %v13175, %v13113
  %v13177 = vadd.f32 %v13176, %v13114
  %v13178 = vadd.f32 %v13177, %v13115
  %v13179 = vadd.f32 %v13178, %v13116
  %v13180 = vadd.f32 %v13179, %v13117
  %v13181 = vadd.f32 %v13180, %v13118
  %v13182 = vadd.f32 %v13181, %v13119
  %v13183 = vadd.f32 %v13182, %v13120
  %v13184 = vadd.f32 %v13183, %v13121
  %v13185 = vadd.f32 %v13184, %v13122
  %v13186 = vadd.f32 %v13185, %v13123
  %v13187 = vadd.f32 %v13186, %v13124
  %v13188 = vadd.f32 %v13187, %v13125
  %v13189 = vadd.f32 %v13188, %v13126
  %v13190 = vadd.f32 %v13189, %v13127
  %v13191 = vadd.f32 %v13190, %v13128
  %v13192 = vadd.f32 %v13191, %v13129
  %v13193 = vadd.f32 %v13192, %v13130
  %v13194 = vadd.f32 %v13193, %v13131
  %v13195 = vadd.f32 %v13194, %v13132
  %v13196 = vadd.f32 %v13195, %v13133
  %v13197 = vadd.f32 %v13196, %v13134
  %v13198 = vadd.f32 %v13197, %v13135
  %v13199 = vadd.f32 %v13198, %v13136
  %v13200 = vadd.f32 %v13199, %v13137
  %v13201 = vadd.f32 %v13200, %v13138
  %v13202 = vadd.f32 %v13201, %v13139
  %v13203 = vadd.f32 %v13202, %v13140
  %v13204 = vadd.f32 %v13203, %v13141
  %v13205 = vadd.f32 %v13204, %v13142
  %v13206 = vadd.f32 %v13205, %v13143
  %v13207 = vadd.f32 %v13206, %v13144
  %v13208 = vadd.f32 %v13207, %v13145
  %v13209 = vadd.f32 %v13208, %v13146
  %v13210 = vadd.f32 %v13209, %v13147
  %v13211 = vadd.f32 %v13210, %v13148
  %v13212 = vadd.f32 %v13211, %v13149
  %v13213 = vadd.f32 %v13212, %v13150
  %v13214 = vadd.f32 %v13213, %v13151
  %v13215 = vadd.f32 %v13214, %v13152
  %v13216 = vrot.slane %v13215, 4
  %v13217 = vadd.f32 %v13215, %v13216
  %v13218 = vrot.slane %v13217, 2
  %v13219 = vadd.f32 %v13217, %v13218
  %v13220 = vrot.slane %v13219, 1
  %v13221 = vadd.f32 %v13219, %v13220
  %v13222 = vmul.f32 %v13221, 0.001953125
  %v13223 = vmul.f32 %v13089, %v13089
  %v13224 = vmul.f32 %v13090, %v13090
  %v13225 = vmul.f32 %v13091, %v13091
  %v13226 = vmul.f32 %v13092, %v13092
  %v13227 = vmul.f32 %v13093, %v13093
  %v13228 = vmul.f32 %v13094, %v13094
  %v13229 = vmul.f32 %v13095, %v13095
  %v13230 = vmul.f32 %v13096, %v13096
  %v13231 = vmul.f32 %v13097, %v13097
  %v13232 = vmul.f32 %v13098, %v13098
  %v13233 = vmul.f32 %v13099, %v13099
  %v13234 = vmul.f32 %v13100, %v13100
  %v13235 = vmul.f32 %v13101, %v13101
  %v13236 = vmul.f32 %v13102, %v13102
  %v13237 = vmul.f32 %v13103, %v13103
  %v13238 = vmul.f32 %v13104, %v13104
  %v13239 = vmul.f32 %v13105, %v13105
  %v13240 = vmul.f32 %v13106, %v13106
  %v13241 = vmul.f32 %v13107, %v13107
  %v13242 = vmul.f32 %v13108, %v13108
  %v13243 = vmul.f32 %v13109, %v13109
  %v13244 = vmul.f32 %v13110, %v13110
  %v13245 = vmul.f32 %v13111, %v13111
  %v13246 = vmul.f32 %v13112, %v13112
  %v13247 = vmul.f32 %v13113, %v13113
  %v13248 = vmul.f32 %v13114, %v13114
  %v13249 = vmul.f32 %v13115, %v13115
  %v13250 = vmul.f32 %v13116, %v13116
  %v13251 = vmul.f32 %v13117, %v13117
  %v13252 = vmul.f32 %v13118, %v13118
  %v13253 = vmul.f32 %v13119, %v13119
  %v13254 = vmul.f32 %v13120, %v13120
  %v13255 = vmul.f32 %v13121, %v13121
  %v13256 = vmul.f32 %v13122, %v13122
  %v13257 = vmul.f32 %v13123, %v13123
  %v13258 = vmul.f32 %v13124, %v13124
  %v13259 = vmul.f32 %v13125, %v13125
  %v13260 = vmul.f32 %v13126, %v13126
  %v13261 = vmul.f32 %v13127, %v13127
  %v13262 = vmul.f32 %v13128, %v13128
  %v13263 = vmul.f32 %v13129, %v13129
  %v13264 = vmul.f32 %v13130, %v13130
  %v13265 = vmul.f32 %v13131, %v13131
  %v13266 = vmul.f32 %v13132, %v13132
  %v13267 = vmul.f32 %v13133, %v13133
  %v13268 = vmul.f32 %v13134, %v13134
  %v13269 = vmul.f32 %v13135, %v13135
  %v13270 = vmul.f32 %v13136, %v13136
  %v13271 = vmul.f32 %v13137, %v13137
  %v13272 = vmul.f32 %v13138, %v13138
  %v13273 = vmul.f32 %v13139, %v13139
  %v13274 = vmul.f32 %v13140, %v13140
  %v13275 = vmul.f32 %v13141, %v13141
  %v13276 = vmul.f32 %v13142, %v13142
  %v13277 = vmul.f32 %v13143, %v13143
  %v13278 = vmul.f32 %v13144, %v13144
  %v13279 = vmul.f32 %v13145, %v13145
  %v13280 = vmul.f32 %v13146, %v13146
  %v13281 = vmul.f32 %v13147, %v13147
  %v13282 = vmul.f32 %v13148, %v13148
  %v13283 = vmul.f32 %v13149, %v13149
  %v13284 = vmul.f32 %v13150, %v13150
  %v13285 = vmul.f32 %v13151, %v13151
  %v13286 = vmul.f32 %v13152, %v13152
  %v13287 = vadd.f32 %v13223, %v13224
  %v13288 = vadd.f32 %v13287, %v13225
  %v13289 = vadd.f32 %v13288, %v13226
  %v13290 = vadd.f32 %v13289, %v13227
  %v13291 = vadd.f32 %v13290, %v13228
  %v13292 = vadd.f32 %v13291, %v13229
  %v13293 = vadd.f32 %v13292, %v13230
  %v13294 = vadd.f32 %v13293, %v13231
  %v13295 = vadd.f32 %v13294, %v13232
  %v13296 = vadd.f32 %v13295, %v13233
  %v13297 = vadd.f32 %v13296, %v13234
  %v13298 = vadd.f32 %v13297, %v13235
  %v13299 = vadd.f32 %v13298, %v13236
  %v13300 = vadd.f32 %v13299, %v13237
  %v13301 = vadd.f32 %v13300, %v13238
  %v13302 = vadd.f32 %v13301, %v13239
  %v13303 = vadd.f32 %v13302, %v13240
  %v13304 = vadd.f32 %v13303, %v13241
  %v13305 = vadd.f32 %v13304, %v13242
  %v13306 = vadd.f32 %v13305, %v13243
  %v13307 = vadd.f32 %v13306, %v13244
  %v13308 = vadd.f32 %v13307, %v13245
  %v13309 = vadd.f32 %v13308, %v13246
  %v13310 = vadd.f32 %v13309, %v13247
  %v13311 = vadd.f32 %v13310, %v13248
  %v13312 = vadd.f32 %v13311, %v13249
  %v13313 = vadd.f32 %v13312, %v13250
  %v13314 = vadd.f32 %v13313, %v13251
  %v13315 = vadd.f32 %v13314, %v13252
  %v13316 = vadd.f32 %v13315, %v13253
  %v13317 = vadd.f32 %v13316, %v13254
  %v13318 = vadd.f32 %v13317, %v13255
  %v13319 = vadd.f32 %v13318, %v13256
  %v13320 = vadd.f32 %v13319, %v13257
  %v13321 = vadd.f32 %v13320, %v13258
  %v13322 = vadd.f32 %v13321, %v13259
  %v13323 = vadd.f32 %v13322, %v13260
  %v13324 = vadd.f32 %v13323, %v13261
  %v13325 = vadd.f32 %v13324, %v13262
  %v13326 = vadd.f32 %v13325, %v13263
  %v13327 = vadd.f32 %v13326, %v13264
  %v13328 = vadd.f32 %v13327, %v13265
  %v13329 = vadd.f32 %v13328, %v13266
  %v13330 = vadd.f32 %v13329, %v13267
  %v13331 = vadd.f32 %v13330, %v13268
  %v13332 = vadd.f32 %v13331, %v13269
  %v13333 = vadd.f32 %v13332, %v13270
  %v13334 = vadd.f32 %v13333, %v13271
  %v13335 = vadd.f32 %v13334, %v13272
  %v13336 = vadd.f32 %v13335, %v13273
  %v13337 = vadd.f32 %v13336, %v13274
  %v13338 = vadd.f32 %v13337, %v13275
  %v13339 = vadd.f32 %v13338, %v13276
  %v13340 = vadd.f32 %v13339, %v13277
  %v13341 = vadd.f32 %v13340, %v13278
  %v13342 = vadd.f32 %v13341, %v13279
  %v13343 = vadd.f32 %v13342, %v13280
  %v13344 = vadd.f32 %v13343, %v13281
  %v13345 = vadd.f32 %v13344, %v13282
  %v13346 = vadd.f32 %v13345, %v13283
  %v13347 = vadd.f32 %v13346, %v13284
  %v13348 = vadd.f32 %v13347, %v13285
  %v13349 = vadd.f32 %v13348, %v13286
  %v13350 = vrot.slane %v13349, 4
  %v13351 = vadd.f32 %v13349, %v13350
  %v13352 = vrot.slane %v13351, 2
  %v13353 = vadd.f32 %v13351, %v13352
  %v13354 = vrot.slane %v13353, 1
  %v13355 = vadd.f32 %v13353, %v13354
  %v13356 = vmul.f32 %v13355, 0.001953125
  %v13357 = vmul.f32 %v13222, %v13222
  %v13358 = vsub.f32 %v13356, %v13357
  %v13359 = vld [vmem:[%s5] sm:$0x1]
  %v13360 = vadd.f32 %v13358, 1e-05
  %v13361 = vrsqrt.pop %v13360
  %v13362 = vmul.f32 %v13359, %v13361
  %v13363 = vld [vmem:[%s6] sm:$0x1]
  %v13364 = vmul.f32 %v13222, %v13362
  %v13365 = vsub.f32 %v13363, %v13364
  %v13367 = vlaneseq
  %v13368 = vshrl.u32 %v13367, 7
  %v13369 = vsub.s32 0, %v13368
  %v13370 = vrot.slane %v13362, %v13369
  %v13372 = vmul.f32 %v13089, %v13370
  %v13373 = vmul.f32 %v13090, %v13370
  %v13374 = vmul.f32 %v13091, %v13370
  %v13375 = vmul.f32 %v13092, %v13370
  %v13376 = vmul.f32 %v13093, %v13370
  %v13377 = vmul.f32 %v13094, %v13370
  %v13378 = vmul.f32 %v13095, %v13370
  %v13379 = vmul.f32 %v13096, %v13370
  %v13380 = vmul.f32 %v13097, %v13370
  %v13381 = vmul.f32 %v13098, %v13370
  %v13382 = vmul.f32 %v13099, %v13370
  %v13383 = vmul.f32 %v13100, %v13370
  %v13384 = vmul.f32 %v13101, %v13370
  %v13385 = vmul.f32 %v13102, %v13370
  %v13386 = vmul.f32 %v13103, %v13370
  %v13387 = vmul.f32 %v13104, %v13370
  %v13388 = vmul.f32 %v13105, %v13370
  %v13389 = vmul.f32 %v13106, %v13370
  %v13390 = vmul.f32 %v13107, %v13370
  %v13391 = vmul.f32 %v13108, %v13370
  %v13392 = vmul.f32 %v13109, %v13370
  %v13393 = vmul.f32 %v13110, %v13370
  %v13394 = vmul.f32 %v13111, %v13370
  %v13395 = vmul.f32 %v13112, %v13370
  %v13396 = vmul.f32 %v13113, %v13370
  %v13397 = vmul.f32 %v13114, %v13370
  %v13398 = vmul.f32 %v13115, %v13370
  %v13399 = vmul.f32 %v13116, %v13370
  %v13400 = vmul.f32 %v13117, %v13370
  %v13401 = vmul.f32 %v13118, %v13370
  %v13402 = vmul.f32 %v13119, %v13370
  %v13403 = vmul.f32 %v13120, %v13370
  %v13404 = vmul.f32 %v13121, %v13370
  %v13405 = vmul.f32 %v13122, %v13370
  %v13406 = vmul.f32 %v13123, %v13370
  %v13407 = vmul.f32 %v13124, %v13370
  %v13408 = vmul.f32 %v13125, %v13370
  %v13409 = vmul.f32 %v13126, %v13370
  %v13410 = vmul.f32 %v13127, %v13370
  %v13411 = vmul.f32 %v13128, %v13370
  %v13412 = vmul.f32 %v13129, %v13370
  %v13413 = vmul.f32 %v13130, %v13370
  %v13414 = vmul.f32 %v13131, %v13370
  %v13415 = vmul.f32 %v13132, %v13370
  %v13416 = vmul.f32 %v13133, %v13370
  %v13417 = vmul.f32 %v13134, %v13370
  %v13418 = vmul.f32 %v13135, %v13370
  %v13419 = vmul.f32 %v13136, %v13370
  %v13420 = vmul.f32 %v13137, %v13370
  %v13421 = vmul.f32 %v13138, %v13370
  %v13422 = vmul.f32 %v13139, %v13370
  %v13423 = vmul.f32 %v13140, %v13370
  %v13424 = vmul.f32 %v13141, %v13370
  %v13425 = vmul.f32 %v13142, %v13370
  %v13426 = vmul.f32 %v13143, %v13370
  %v13427 = vmul.f32 %v13144, %v13370
  %v13428 = vmul.f32 %v13145, %v13370
  %v13429 = vmul.f32 %v13146, %v13370
  %v13430 = vmul.f32 %v13147, %v13370
  %v13431 = vmul.f32 %v13148, %v13370
  %v13432 = vmul.f32 %v13149, %v13370
  %v13433 = vmul.f32 %v13150, %v13370
  %v13434 = vmul.f32 %v13151, %v13370
  %v13435 = vmul.f32 %v13152, %v13370
  %v13437 = vlaneseq
  %v13438 = vshrl.u32 %v13437, 7
  %v13439 = vsub.s32 0, %v13438
  %v13440 = vrot.slane %v13365, %v13439
  %v13442 = vadd.f32 %v13372, %v13440
  %v13443 = vadd.f32 %v13373, %v13440
  %v13444 = vadd.f32 %v13374, %v13440
  %v13445 = vadd.f32 %v13375, %v13440
  %v13446 = vadd.f32 %v13376, %v13440
  %v13447 = vadd.f32 %v13377, %v13440
  %v13448 = vadd.f32 %v13378, %v13440
  %v13449 = vadd.f32 %v13379, %v13440
  %v13450 = vadd.f32 %v13380, %v13440
  %v13451 = vadd.f32 %v13381, %v13440
  %v13452 = vadd.f32 %v13382, %v13440
  %v13453 = vadd.f32 %v13383, %v13440
  %v13454 = vadd.f32 %v13384, %v13440
  %v13455 = vadd.f32 %v13385, %v13440
  %v13456 = vadd.f32 %v13386, %v13440
  %v13457 = vadd.f32 %v13387, %v13440
  %v13458 = vadd.f32 %v13388, %v13440
  %v13459 = vadd.f32 %v13389, %v13440
  %v13460 = vadd.f32 %v13390, %v13440
  %v13461 = vadd.f32 %v13391, %v13440
  %v13462 = vadd.f32 %v13392, %v13440
  %v13463 = vadd.f32 %v13393, %v13440
  %v13464 = vadd.f32 %v13394, %v13440
  %v13465 = vadd.f32 %v13395, %v13440
  %v13466 = vadd.f32 %v13396, %v13440
  %v13467 = vadd.f32 %v13397, %v13440
  %v13468 = vadd.f32 %v13398, %v13440
  %v13469 = vadd.f32 %v13399, %v13440
  %v13470 = vadd.f32 %v13400, %v13440
  %v13471 = vadd.f32 %v13401, %v13440
  %v13472 = vadd.f32 %v13402, %v13440
  %v13473 = vadd.f32 %v13403, %v13440
  %v13474 = vadd.f32 %v13404, %v13440
  %v13475 = vadd.f32 %v13405, %v13440
  %v13476 = vadd.f32 %v13406, %v13440
  %v13477 = vadd.f32 %v13407, %v13440
  %v13478 = vadd.f32 %v13408, %v13440
  %v13479 = vadd.f32 %v13409, %v13440
  %v13480 = vadd.f32 %v13410, %v13440
  %v13481 = vadd.f32 %v13411, %v13440
  %v13482 = vadd.f32 %v13412, %v13440
  %v13483 = vadd.f32 %v13413, %v13440
  %v13484 = vadd.f32 %v13414, %v13440
  %v13485 = vadd.f32 %v13415, %v13440
  %v13486 = vadd.f32 %v13416, %v13440
  %v13487 = vadd.f32 %v13417, %v13440
  %v13488 = vadd.f32 %v13418, %v13440
  %v13489 = vadd.f32 %v13419, %v13440
  %v13490 = vadd.f32 %v13420, %v13440
  %v13491 = vadd.f32 %v13421, %v13440
  %v13492 = vadd.f32 %v13422, %v13440
  %v13493 = vadd.f32 %v13423, %v13440
  %v13494 = vadd.f32 %v13424, %v13440
  %v13495 = vadd.f32 %v13425, %v13440
  %v13496 = vadd.f32 %v13426, %v13440
  %v13497 = vadd.f32 %v13427, %v13440
  %v13498 = vadd.f32 %v13428, %v13440
  %v13499 = vadd.f32 %v13429, %v13440
  %v13500 = vadd.f32 %v13430, %v13440
  %v13501 = vadd.f32 %v13431, %v13440
  %v13502 = vadd.f32 %v13432, %v13440
  %v13503 = vadd.f32 %v13433, %v13440
  %v13504 = vadd.f32 %v13434, %v13440
  %v13505 = vadd.f32 %v13435, %v13440
  %v13506 = vld [vmem:[%s0] sm:$0xff]
  %v13507 = vld [vmem:[%s0 + $0x8] sm:$0xff]
  %v13508 = vld [vmem:[%s0 + $0x10] sm:$0xff]
  %v13509 = vld [vmem:[%s0 + $0x18] sm:$0xff]
  %v13510 = vld [vmem:[%s0 + $0x20] sm:$0xff]
  %v13511 = vld [vmem:[%s0 + $0x28] sm:$0xff]
  %v13512 = vld [vmem:[%s0 + $0x30] sm:$0xff]
  %v13513 = vld [vmem:[%s0 + $0x38] sm:$0xff]
  %v13514 = vld [vmem:[%s0 + $0x40] sm:$0xff]
  %v13515 = vld [vmem:[%s0 + $0x48] sm:$0xff]
  %v13516 = vld [vmem:[%s0 + $0x50] sm:$0xff]
  %v13517 = vld [vmem:[%s0 + $0x58] sm:$0xff]
  %v13518 = vld [vmem:[%s0 + $0x60] sm:$0xff]
  %v13519 = vld [vmem:[%s0 + $0x68] sm:$0xff]
  %v13520 = vld [vmem:[%s0 + $0x70] sm:$0xff]
  %v13521 = vld [vmem:[%s0 + $0x78] sm:$0xff]
  %v13522 = vld [vmem:[%s0 + $0x80] sm:$0xff]
  %v13523 = vld [vmem:[%s0 + $0x88] sm:$0xff]
  %v13524 = vld [vmem:[%s0 + $0x90] sm:$0xff]
  %v13525 = vld [vmem:[%s0 + $0x98] sm:$0xff]
  %v13526 = vld [vmem:[%s0 + $0xa0] sm:$0xff]
  %v13527 = vld [vmem:[%s0 + $0xa8] sm:$0xff]
  %v13528 = vld [vmem:[%s0 + $0xb0] sm:$0xff]
  %v13529 = vld [vmem:[%s0 + $0xb8] sm:$0xff]
  %v13530 = vld [vmem:[%s0 + $0xc0] sm:$0xff]
  %v13531 = vld [vmem:[%s0 + $0xc8] sm:$0xff]
  %v13532 = vld [vmem:[%s0 + $0xd0] sm:$0xff]
  %v13533 = vld [vmem:[%s0 + $0xd8] sm:$0xff]
  %v13534 = vld [vmem:[%s0 + $0xe0] sm:$0xff]
  %v13535 = vld [vmem:[%s0 + $0xe8] sm:$0xff]
  %v13536 = vld [vmem:[%s0 + $0xf0] sm:$0xff]
  %v13537 = vld [vmem:[%s0 + $0xf8] sm:$0xff]
  %v13538 = vld [vmem:[%s0 + $0x100] sm:$0xff]
  %v13539 = vld [vmem:[%s0 + $0x108] sm:$0xff]
  %v13540 = vld [vmem:[%s0 + $0x110] sm:$0xff]
  %v13541 = vld [vmem:[%s0 + $0x118] sm:$0xff]
  %v13542 = vld [vmem:[%s0 + $0x120] sm:$0xff]
  %v13543 = vld [vmem:[%s0 + $0x128] sm:$0xff]
  %v13544 = vld [vmem:[%s0 + $0x130] sm:$0xff]
  %v13545 = vld [vmem:[%s0 + $0x138] sm:$0xff]
  %v13546 = vld [vmem:[%s0 + $0x140] sm:$0xff]
  %v13547 = vld [vmem:[%s0 + $0x148] sm:$0xff]
  %v13548 = vld [vmem:[%s0 + $0x150] sm:$0xff]
  %v13549 = vld [vmem:[%s0 + $0x158] sm:$0xff]
  %v13550 = vld [vmem:[%s0 + $0x160] sm:$0xff]
  %v13551 = vld [vmem:[%s0 + $0x168] sm:$0xff]
  %v13552 = vld [vmem:[%s0 + $0x170] sm:$0xff]
  %v13553 = vld [vmem:[%s0 + $0x178] sm:$0xff]
  %v13554 = vld [vmem:[%s0 + $0x180] sm:$0xff]
  %v13555 = vld [vmem:[%s0 + $0x188] sm:$0xff]
  %v13556 = vld [vmem:[%s0 + $0x190] sm:$0xff]
  %v13557 = vld [vmem:[%s0 + $0x198] sm:$0xff]
  %v13558 = vld [vmem:[%s0 + $0x1a0] sm:$0xff]
  %v13559 = vld [vmem:[%s0 + $0x1a8] sm:$0xff]
  %v13560 = vld [vmem:[%s0 + $0x1b0] sm:$0xff]
  %v13561 = vld [vmem:[%s0 + $0x1b8] sm:$0xff]
  %v13562 = vld [vmem:[%s0 + $0x1c0] sm:$0xff]
  %v13563 = vld [vmem:[%s0 + $0x1c8] sm:$0xff]
  %v13564 = vld [vmem:[%s0 + $0x1d0] sm:$0xff]
  %v13565 = vld [vmem:[%s0 + $0x1d8] sm:$0xff]
  %v13566 = vld [vmem:[%s0 + $0x1e0] sm:$0xff]
  %v13567 = vld [vmem:[%s0 + $0x1e8] sm:$0xff]
  %v13568 = vld [vmem:[%s0 + $0x1f0] sm:$0xff]
  %v13569 = vld [vmem:[%s0 + $0x1f8] sm:$0xff]
  %v13570 = vadd.f32 %v13442, %v13506
  %v13571 = vadd.f32 %v13443, %v13507
  %v13572 = vadd.f32 %v13444, %v13508
  %v13573 = vadd.f32 %v13445, %v13509
  %v13574 = vadd.f32 %v13446, %v13510
  %v13575 = vadd.f32 %v13447, %v13511
  %v13576 = vadd.f32 %v13448, %v13512
  %v13577 = vadd.f32 %v13449, %v13513
  %v13578 = vadd.f32 %v13450, %v13514
  %v13579 = vadd.f32 %v13451, %v13515
  %v13580 = vadd.f32 %v13452, %v13516
  %v13581 = vadd.f32 %v13453, %v13517
  %v13582 = vadd.f32 %v13454, %v13518
  %v13583 = vadd.f32 %v13455, %v13519
  %v13584 = vadd.f32 %v13456, %v13520
  %v13585 = vadd.f32 %v13457, %v13521
  %v13586 = vadd.f32 %v13458, %v13522
  %v13587 = vadd.f32 %v13459, %v13523
  %v13588 = vadd.f32 %v13460, %v13524
  %v13589 = vadd.f32 %v13461, %v13525
  %v13590 = vadd.f32 %v13462, %v13526
  %v13591 = vadd.f32 %v13463, %v13527
  %v13592 = vadd.f32 %v13464, %v13528
  %v13593 = vadd.f32 %v13465, %v13529
  %v13594 = vadd.f32 %v13466, %v13530
  %v13595 = vadd.f32 %v13467, %v13531
  %v13596 = vadd.f32 %v13468, %v13532
  %v13597 = vadd.f32 %v13469, %v13533
  %v13598 = vadd.f32 %v13470, %v13534
  %v13599 = vadd.f32 %v13471, %v13535
  %v13600 = vadd.f32 %v13472, %v13536
  %v13601 = vadd.f32 %v13473, %v13537
  %v13602 = vadd.f32 %v13474, %v13538
  %v13603 = vadd.f32 %v13475, %v13539
  %v13604 = vadd.f32 %v13476, %v13540
  %v13605 = vadd.f32 %v13477, %v13541
  %v13606 = vadd.f32 %v13478, %v13542
  %v13607 = vadd.f32 %v13479, %v13543
  %v13608 = vadd.f32 %v13480, %v13544
  %v13609 = vadd.f32 %v13481, %v13545
  %v13610 = vadd.f32 %v13482, %v13546
  %v13611 = vadd.f32 %v13483, %v13547
  %v13612 = vadd.f32 %v13484, %v13548
  %v13613 = vadd.f32 %v13485, %v13549
  %v13614 = vadd.f32 %v13486, %v13550
  %v13615 = vadd.f32 %v13487, %v13551
  %v13616 = vadd.f32 %v13488, %v13552
  %v13617 = vadd.f32 %v13489, %v13553
  %v13618 = vadd.f32 %v13490, %v13554
  %v13619 = vadd.f32 %v13491, %v13555
  %v13620 = vadd.f32 %v13492, %v13556
  %v13621 = vadd.f32 %v13493, %v13557
  %v13622 = vadd.f32 %v13494, %v13558
  %v13623 = vadd.f32 %v13495, %v13559
  %v13624 = vadd.f32 %v13496, %v13560
  %v13625 = vadd.f32 %v13497, %v13561
  %v13626 = vadd.f32 %v13498, %v13562
  %v13627 = vadd.f32 %v13499, %v13563
  %v13628 = vadd.f32 %v13500, %v13564
  %v13629 = vadd.f32 %v13501, %v13565
  %v13630 = vadd.f32 %v13502, %v13566
  %v13631 = vadd.f32 %v13503, %v13567
  %v13632 = vadd.f32 %v13504, %v13568
  %v13633 = vadd.f32 %v13505, %v13569
  %v13634 = vmax.f32 %v13570, 0.0
  %v13635 = vmax.f32 %v13571, 0.0
  %v13636 = vmax.f32 %v13572, 0.0
  %v13637 = vmax.f32 %v13573, 0.0
  %v13638 = vmax.f32 %v13574, 0.0
  %v13639 = vmax.f32 %v13575, 0.0
  %v13640 = vmax.f32 %v13576, 0.0
  %v13641 = vmax.f32 %v13577, 0.0
  %v13642 = vmax.f32 %v13578, 0.0
  %v13643 = vmax.f32 %v13579, 0.0
  %v13644 = vmax.f32 %v13580, 0.0
  %v13645 = vmax.f32 %v13581, 0.0
  %v13646 = vmax.f32 %v13582, 0.0
  %v13647 = vmax.f32 %v13583, 0.0
  %v13648 = vmax.f32 %v13584, 0.0
  %v13649 = vmax.f32 %v13585, 0.0
  %v13650 = vmax.f32 %v13586, 0.0
  %v13651 = vmax.f32 %v13587, 0.0
  %v13652 = vmax.f32 %v13588, 0.0
  %v13653 = vmax.f32 %v13589, 0.0
  %v13654 = vmax.f32 %v13590, 0.0
  %v13655 = vmax.f32 %v13591, 0.0
  %v13656 = vmax.f32 %v13592, 0.0
  %v13657 = vmax.f32 %v13593, 0.0
  %v13658 = vmax.f32 %v13594, 0.0
  %v13659 = vmax.f32 %v13595, 0.0
  %v13660 = vmax.f32 %v13596, 0.0
  %v13661 = vmax.f32 %v13597, 0.0
  %v13662 = vmax.f32 %v13598, 0.0
  %v13663 = vmax.f32 %v13599, 0.0
  %v13664 = vmax.f32 %v13600, 0.0
  %v13665 = vmax.f32 %v13601, 0.0
  %v13666 = vmax.f32 %v13602, 0.0
  %v13667 = vmax.f32 %v13603, 0.0
  %v13668 = vmax.f32 %v13604, 0.0
  %v13669 = vmax.f32 %v13605, 0.0
  %v13670 = vmax.f32 %v13606, 0.0
  %v13671 = vmax.f32 %v13607, 0.0
  %v13672 = vmax.f32 %v13608, 0.0
  %v13673 = vmax.f32 %v13609, 0.0
  %v13674 = vmax.f32 %v13610, 0.0
  %v13675 = vmax.f32 %v13611, 0.0
  %v13676 = vmax.f32 %v13612, 0.0
  %v13677 = vmax.f32 %v13613, 0.0
  %v13678 = vmax.f32 %v13614, 0.0
  %v13679 = vmax.f32 %v13615, 0.0
  %v13680 = vmax.f32 %v13616, 0.0
  %v13681 = vmax.f32 %v13617, 0.0
  %v13682 = vmax.f32 %v13618, 0.0
  %v13683 = vmax.f32 %v13619, 0.0
  %v13684 = vmax.f32 %v13620, 0.0
  %v13685 = vmax.f32 %v13621, 0.0
  %v13686 = vmax.f32 %v13622, 0.0
  %v13687 = vmax.f32 %v13623, 0.0
  %v13688 = vmax.f32 %v13624, 0.0
  %v13689 = vmax.f32 %v13625, 0.0
  %v13690 = vmax.f32 %v13626, 0.0
  %v13691 = vmax.f32 %v13627, 0.0
  %v13692 = vmax.f32 %v13628, 0.0
  %v13693 = vmax.f32 %v13629, 0.0
  %v13694 = vmax.f32 %v13630, 0.0
  %v13695 = vmax.f32 %v13631, 0.0
  %v13696 = vmax.f32 %v13632, 0.0
  %v13697 = vmax.f32 %v13633, 0.0
  %13698 = vst [vmem:[%s7] sm:$0xff] %v13634
  %13699 = vst [vmem:[%s7 + $0x8] sm:$0xff] %v13635
  %13700 = vst [vmem:[%s7 + $0x10] sm:$0xff] %v13636
  %13701 = vst [vmem:[%s7 + $0x18] sm:$0xff] %v13637
  %13702 = vst [vmem:[%s7 + $0x20] sm:$0xff] %v13638
  %13703 = vst [vmem:[%s7 + $0x28] sm:$0xff] %v13639
  %13704 = vst [vmem:[%s7 + $0x30] sm:$0xff] %v13640
  %13705 = vst [vmem:[%s7 + $0x38] sm:$0xff] %v13641
  %13706 = vst [vmem:[%s7 + $0x40] sm:$0xff] %v13642
  %13707 = vst [vmem:[%s7 + $0x48] sm:$0xff] %v13643
  %13708 = vst [vmem:[%s7 + $0x50] sm:$0xff] %v13644
  %13709 = vst [vmem:[%s7 + $0x58] sm:$0xff] %v13645
  %13710 = vst [vmem:[%s7 + $0x60] sm:$0xff] %v13646
  %13711 = vst [vmem:[%s7 + $0x68] sm:$0xff] %v13647
  %13712 = vst [vmem:[%s7 + $0x70] sm:$0xff] %v13648
  %13713 = vst [vmem:[%s7 + $0x78] sm:$0xff] %v13649
  %13714 = vst [vmem:[%s7 + $0x80] sm:$0xff] %v13650
  %13715 = vst [vmem:[%s7 + $0x88] sm:$0xff] %v13651
  %13716 = vst [vmem:[%s7 + $0x90] sm:$0xff] %v13652
  %13717 = vst [vmem:[%s7 + $0x98] sm:$0xff] %v13653
  %13718 = vst [vmem:[%s7 + $0xa0] sm:$0xff] %v13654
  %13719 = vst [vmem:[%s7 + $0xa8] sm:$0xff] %v13655
  %13720 = vst [vmem:[%s7 + $0xb0] sm:$0xff] %v13656
  %13721 = vst [vmem:[%s7 + $0xb8] sm:$0xff] %v13657
  %13722 = vst [vmem:[%s7 + $0xc0] sm:$0xff] %v13658
  %13723 = vst [vmem:[%s7 + $0xc8] sm:$0xff] %v13659
  %13724 = vst [vmem:[%s7 + $0xd0] sm:$0xff] %v13660
  %13725 = vst [vmem:[%s7 + $0xd8] sm:$0xff] %v13661
  %13726 = vst [vmem:[%s7 + $0xe0] sm:$0xff] %v13662
  %13727 = vst [vmem:[%s7 + $0xe8] sm:$0xff] %v13663
  %13728 = vst [vmem:[%s7 + $0xf0] sm:$0xff] %v13664
  %13729 = vst [vmem:[%s7 + $0xf8] sm:$0xff] %v13665
  %13730 = vst [vmem:[%s7 + $0x100] sm:$0xff] %v13666
  %13731 = vst [vmem:[%s7 + $0x108] sm:$0xff] %v13667
  %13732 = vst [vmem:[%s7 + $0x110] sm:$0xff] %v13668
  %13733 = vst [vmem:[%s7 + $0x118] sm:$0xff] %v13669
  %13734 = vst [vmem:[%s7 + $0x120] sm:$0xff] %v13670
  %13735 = vst [vmem:[%s7 + $0x128] sm:$0xff] %v13671
  %13736 = vst [vmem:[%s7 + $0x130] sm:$0xff] %v13672
  %13737 = vst [vmem:[%s7 + $0x138] sm:$0xff] %v13673
  %13738 = vst [vmem:[%s7 + $0x140] sm:$0xff] %v13674
  %13739 = vst [vmem:[%s7 + $0x148] sm:$0xff] %v13675
  %13740 = vst [vmem:[%s7 + $0x150] sm:$0xff] %v13676
  %13741 = vst [vmem:[%s7 + $0x158] sm:$0xff] %v13677
  %13742 = vst [vmem:[%s7 + $0x160] sm:$0xff] %v13678
  %13743 = vst [vmem:[%s7 + $0x168] sm:$0xff] %v13679
  %13744 = vst [vmem:[%s7 + $0x170] sm:$0xff] %v13680
  %13745 = vst [vmem:[%s7 + $0x178] sm:$0xff] %v13681
  %13746 = vst [vmem:[%s7 + $0x180] sm:$0xff] %v13682
  %13747 = vst [vmem:[%s7 + $0x188] sm:$0xff] %v13683
  %13748 = vst [vmem:[%s7 + $0x190] sm:$0xff] %v13684
  %13749 = vst [vmem:[%s7 + $0x198] sm:$0xff] %v13685
  %13750 = vst [vmem:[%s7 + $0x1a0] sm:$0xff] %v13686
  %13751 = vst [vmem:[%s7 + $0x1a8] sm:$0xff] %v13687
  %13752 = vst [vmem:[%s7 + $0x1b0] sm:$0xff] %v13688
  %13753 = vst [vmem:[%s7 + $0x1b8] sm:$0xff] %v13689
  %13754 = vst [vmem:[%s7 + $0x1c0] sm:$0xff] %v13690
  %13755 = vst [vmem:[%s7 + $0x1c8] sm:$0xff] %v13691
  %13756 = vst [vmem:[%s7 + $0x1d0] sm:$0xff] %v13692
  %13757 = vst [vmem:[%s7 + $0x1d8] sm:$0xff] %v13693
  %13758 = vst [vmem:[%s7 + $0x1e0] sm:$0xff] %v13694
  %13759 = vst [vmem:[%s7 + $0x1e8] sm:$0xff] %v13695
  %13760 = vst [vmem:[%s7 + $0x1f0] sm:$0xff] %v13696
  %13761 = vst [vmem:[%s7 + $0x1f8] sm:$0xff] %v13697
  // Predicated region
  $region30: #{resnet_block.1} parent=0 // pred_check
    _
  $region31: #{resnet_block.1} parent=0 // pred_check_branch
    %13763 = sbr.rel (0) target = $region33
  $region32: #{resnet_block.1} parent=0 // pred_region
    _
  $region33: #{resnet_block.1} parent=0 // pred_fallthru
    _
  // Predicated region
  $region34: #{resnet_block.1} parent=0 // pred_check
    _
  $region35: #{resnet_block.1} parent=0 // pred_check_branch
    %13765 = sbr.rel (0) target = $region37
  $region36: #{resnet_block.1} parent=0 // pred_region
    _
  $region37: #{resnet_block.1} parent=0 // pred_fallthru
    _

</llo_original>
